<compile_context>
chip_gen: v7x
topology: tpu7x:2x2x1
jax: 0.10.0
libtpu: 0.0.40
codegen_flags: <defaults>
</compile_context>

<pallas_src>
import functools

import jax
import jax.numpy as jnp
from jax.experimental import pallas as pl
from jax.experimental.pallas import tpu as pltpu

OMEGA = 30.0  # SIREN frequency used by STRAINER's MLP layers


# ---------------------------------------------------------------------------
# Small helpers
# ---------------------------------------------------------------------------
def _round_up(x, m):
    return ((x + m - 1) // m) * m


def _padded_bytes(shape, dtype):
    """Bytes of a VMEM buffer after (8, 128) sublane/lane tile padding."""
    itemsize = jnp.dtype(dtype).itemsize
    shape = (1,) * max(0, 2 - len(shape)) + tuple(int(s) for s in shape)
    *lead, r, c = shape
    n = 1
    for s in lead:
        n *= s
    return n * _round_up(r, 8) * _round_up(c, 128) * itemsize


def _vmem_capacity_bytes():
    try:
        cap = getattr(pltpu.get_tpu_info(), "vmem_capacity_bytes", None)
        if cap:
            return int(cap)
    except Exception:
        pass
    return 64 << 20  # conservative default (v7x per-TensorCore VMEM)


# ---------------------------------------------------------------------------
# Fused kernel: encoder (2 SIREN layers) + all decoder heads in one pass
# ---------------------------------------------------------------------------
def _fused_strainer_kernel(x_ref, ew0_ref, eb0_ref, ew1_ref, eb1_ref,
                           dw0_ref, db0_ref, dw1_ref, db1_ref, o_ref,
                           *, dim_in, matmul_dtype):
    x = x_ref[...].astype(jnp.float32)                       # (tile, dim_in)

    # --- encoder layer 0 -----------------------------------------------------
    # Contraction depth == dim_in (2 coords) -> VPU broadcast multiply-adds;
    # OMEGA is already folded into ew0/eb0 by the wrapper.
    w0 = ew0_ref[...]                                         # (dim_in, Hp) f32
    h = eb0_ref[...]                                          # (1, Hp) -> bcast
    for k in range(dim_in):                                   # static unroll
        h = h + x[:, k:k + 1] * w0[k:k + 1, :]
    h = jnp.sin(h)                                            # (tile, Hp)

    # --- encoder layer 1 (Strainer sets final_activation == activation) -----
    h = jnp.sin(jnp.dot(h.astype(matmul_dtype), ew1_ref[...],
                        preferred_element_type=jnp.float32) + eb1_ref[...])

    # --- decoder hidden layer: ALL heads as one wide matmul ------------------
    # (tile, Hp) x (Hp, D*Hp) -> (tile, D*Hp), single sin over the slab.
    hd = jnp.sin(jnp.dot(h.astype(matmul_dtype), dw0_ref[...],
                         preferred_element_type=jnp.float32) + db0_ref[...])

    # --- decoder output layer: block-diagonal projection ---------------------
    # (tile, D*Hp) x (D*Hp, out_pad) -> (tile, out_pad), out_pad % 128 == 0,
    # so the store below is a single unmasked lane-dense slab write.
    y = jnp.dot(hd.astype(matmul_dtype), dw1_ref[...],
                preferred_element_type=jnp.float32) + db1_ref[...]
    o_ref[...] = y.astype(o_ref.dtype)


# ---------------------------------------------------------------------------
# Wrapper (the "Strainer.forward" equivalent)
# ---------------------------------------------------------------------------
def strainer_forward(x, params, *, num_decoders, patch_size, tile_n=1024,
                     preprocess_output=True, matmul_dtype=jnp.float32):
    """x: [N, dim_in] coordinates. Returns [num_decoders, N, dim_out] or the
    patch-reshaped [num_decoders, N, 3, patch_size, patch_size]."""
    N, dim_in = x.shape
    H = params["enc_w0"].shape[1]
    dim_out = params["dec_w1"].shape[-1]
    D = num_decoders
    f32 = jnp.float32

    # Pad hidden dim so every matmul K/N dim is a multiple of 128 (exact:
    # padded hidden units are sin(0)=0 and feed zero weights downstream).
    Hp = _round_up(max(H, 128), 128)
    out_w = D * dim_out
    out_pad = _round_up(max(out_w, 128), 128)

    def pad_to(a, shape):
        return jnp.pad(a, [(0, t - s) for s, t in zip(a.shape, shape)])

    # ---- parameter prep: OMEGA folding, fusion, padding, (optional) bf16 ----
    # OMEGA is folded into every layer feeding a sin; NOT into dec_w1/dec_b1.
    ew0 = pad_to(params["enc_w0"].astype(f32) * OMEGA, (dim_in, Hp))
    eb0 = pad_to(params["enc_b0"].astype(f32) * OMEGA, (1, Hp))
    ew1 = pad_to(params["enc_w1"].astype(f32) * OMEGA, (Hp, Hp)).astype(matmul_dtype)
    eb1 = pad_to(params["enc_b1"].astype(f32) * OMEGA, (1, Hp))

    # decoder hidden layer: concat heads along the output axis -> (Hp, D*Hp)
    dw0 = pad_to(params["dec_w0"].astype(f32) * OMEGA, (D, Hp, Hp))
    dw0 = dw0.transpose(1, 0, 2).reshape(Hp, D * Hp).astype(matmul_dtype)
    db0 = pad_to(params["dec_b0"].astype(f32) * OMEGA, (D, 1, Hp)).reshape(1, D * Hp)

    # decoder output layer: block-diagonal (D*Hp, out_pad), zero padded
    dw1 = jnp.zeros((D * Hp, out_pad), f32)
    for d in range(D):
        dw1 = dw1.at[d * Hp:d * Hp + H, d * dim_out:(d + 1) * dim_out].set(
            params["dec_w1"][d].astype(f32))
    dw1 = dw1.astype(matmul_dtype)
    db1 = pad_to(params["dec_b1"].astype(f32).reshape(1, out_w), (1, out_pad))

    # ---- tiling: multiple of 8 sublanes, grid_n >= 2 when possible ----------
    tile = int(min(tile_n, max(8, _round_up(pl.cdiv(N, 2), 8))))
    grid_n = pl.cdiv(N, tile)
    n_pad = grid_n * tile
    if n_pad != N:
        x = jnp.pad(x, ((0, n_pad - N), (0, 0)))
    x = x.astype(f32)

    # ---- padding-aware VMEM budget / generation-aware cap -------------------
    weights = (ew0, eb0, ew1, eb1, dw0, db0, dw1, db1)
    weight_vmem = sum(_padded_bytes(w.shape, w.dtype) for w in weights)
    io_vmem = 2 * (_padded_bytes((tile, dim_in), f32)
                   + _padded_bytes((tile, out_pad), f32))       # double-buffered
    act_vmem = 3 * (_padded_bytes((tile, Hp), f32)
                    + _padded_bytes((tile, D * Hp), f32)
                    + _padded_bytes((tile, out_pad), f32))
    vmem_budget = io_vmem + 2 * weight_vmem + act_vmem + (4 << 20)
    vmem_limit = int(min(max(vmem_budget, 16 << 20),
                         int(0.75 * _vmem_capacity_bytes())))

    # ---- scheduling hints ----------------------------------------------------
    flops = 2 * n_pad * (dim_in * Hp + Hp * Hp + Hp * (D * Hp)
                         + (D * Hp) * out_pad)
    transcendentals = n_pad * (2 * Hp + D * Hp)
    bytes_accessed = (4 * n_pad * (dim_in + out_pad)
                      + sum(int(w.size) * w.dtype.itemsize for w in weights))

    kernel = functools.partial(_fused_strainer_kernel, dim_in=dim_in,
                               matmul_dtype=matmul_dtype)

    def resident(n):           # weights: constant block index -> fetched once
        return (0, 0)

    out = pl.pallas_call(
        kernel,
        out_shape=jax.ShapeDtypeStruct((n_pad, out_pad), jnp.float32),
        grid=(grid_n,),
        in_specs=[
            pl.BlockSpec((tile, dim_in), lambda n: (n, 0)),
            pl.BlockSpec((dim_in, Hp), resident),
            pl.BlockSpec((1, Hp), resident),
            pl.BlockSpec((Hp, Hp), resident),
            pl.BlockSpec((1, Hp), resident),
            pl.BlockSpec((Hp, D * Hp), resident),
            pl.BlockSpec((1, D * Hp), resident),
            pl.BlockSpec((D * Hp, out_pad), resident),
            pl.BlockSpec((1, out_pad), resident),
        ],
        out_specs=pl.BlockSpec((tile, out_pad), lambda n: (n, 0)),
        compiler_params=pltpu.CompilerParams(
            dimension_semantics=("parallel",),   # shards grid across TCs on v7x
            vmem_limit_bytes=vmem_limit),
        cost_estimate=pl.CostEstimate(flops=flops,
                                      transcendentals=transcendentals,
                                      bytes_accessed=bytes_accessed),
    )(x, ew0, eb0, ew1, eb1, dw0, db0, dw1, db1)

    # Strip pixel/lane padding, convert slab -> (num_decoders, N, dim_out).
    out = out[:N, :out_w].reshape(N, D, dim_out).transpose(1, 0, 2)

    # process_output
    if preprocess_output and patch_size is not None:
        out = out.reshape(D, N, 3, patch_size, patch_size)
    return out


# ---------------------------------------------------------------------------
# Deterministic parameter init (SIREN-style) and pure-JAX reference
# ---------------------------------------------------------------------------
def init_params(key, dim_in, hidden, num_decoders, dim_out):
    ks = jax.random.split(key, 8)

    def siren_uniform(k, shape, fan_in, first=False):
        bound = (1.0 / fan_in) if first else ((6.0 / fan_in) ** 0.5) / OMEGA
        return jax.random.uniform(k, shape, jnp.float32, -bound, bound)

    return dict(
        enc_w0=siren_uniform(ks[0], (dim_in, hidden), dim_in, first=True),
        enc_b0=siren_uniform(ks[1], (1, hidden), dim_in, first=True),
        enc_w1=siren_uniform(ks[2], (hidden, hidden), hidden),
        enc_b1=siren_uniform(ks[3], (1, hidden), hidden),
        dec_w0=siren_uniform(ks[4], (num_decoders, hidden, hidden), hidden),
        dec_b0=siren_uniform(ks[5], (num_decoders, 1, hidden), hidden),
        dec_w1=siren_uniform(ks[6], (num_decoders, hidden, dim_out), hidden),
        dec_b1=siren_uniform(ks[7], (num_decoders, 1, dim_out), hidden),
    )


def reference_forward(x, p, patch_size):
    h = jnp.sin(OMEGA * (x @ p["enc_w0"] + p["enc_b0"]))
    h = jnp.sin(OMEGA * (h @ p["enc_w1"] + p["enc_b1"]))
    h = jnp.sin(OMEGA * (jnp.einsum("nh,dhk->dnk", h, p["dec_w0"]) + p["dec_b0"]))
    y = jnp.einsum("dnh,dhk->dnk", h, p["dec_w1"]) + p["dec_b1"]
    if patch_size is not None:
        y = y.reshape(y.shape[0], y.shape[1], 3, patch_size, patch_size)
    return y


# ---------------------------------------------------------------------------
if __name__ == "__main__":
    # Small, forward-consistent shapes:
    #   16x16 coordinate grid -> N = 256 pixels, dim_in = 2 (y, x)
    #   hidden = 32 (padded to 128 internally), num_decoders = 2,
    #   patch_size = 2 -> dim_out = 3*2*2 = 12
    img_h, img_w = 16, 16
    dim_in, hidden = 2, 32
    num_decoders = 2
    patch_size = 2
    dim_out = 3 * patch_size * patch_size

    key = jax.random.PRNGKey(0)
    params = init_params(key, dim_in, hidden, num_decoders, dim_out)

    ys, xs = jnp.meshgrid(
        jnp.linspace(-1.0, 1.0, img_h),
        jnp.linspace(-1.0, 1.0, img_w),
        indexing="ij",
    )
    coords = jnp.stack([ys.reshape(-1), xs.reshape(-1)], axis=-1).astype(jnp.float32)

    out = strainer_forward(coords, params, num_decoders=num_decoders,
                           patch_size=patch_size, tile_n=1024)
    out = jax.block_until_ready(out)

    ref = reference_forward(coords, params, patch_size)
    assert out.shape == (num_decoders, img_h * img_w, 3, patch_size, patch_size)
    assert jnp.allclose(out, ref, atol=1e-3, rtol=1e-3)

    print("KERNEL_OK")
</pallas_src>

<mosaic_0001>
module attributes {stable_mosaic.version = 11 : i64} {
  func.func @_fused_strainer_kernel(%arg0: i32, %arg1: memref<128x2xf32, #tpu.memory_space<vmem>>, %arg2: memref<2x128xf32, #tpu.memory_space<vmem>>, %arg3: memref<1x128xf32, #tpu.memory_space<vmem>>, %arg4: memref<128x128xf32, #tpu.memory_space<vmem>>, %arg5: memref<1x128xf32, #tpu.memory_space<vmem>>, %arg6: memref<128x256xf32, #tpu.memory_space<vmem>>, %arg7: memref<1x256xf32, #tpu.memory_space<vmem>>, %arg8: memref<256x128xf32, #tpu.memory_space<vmem>>, %arg9: memref<1x128xf32, #tpu.memory_space<vmem>>, %arg10: memref<128x128xf32, #tpu.memory_space<vmem>>) attributes {dimension_semantics = [#tpu.dimension_semantics<parallel>], iteration_bounds = array<i64: 2>, scalar_prefetch = 0 : i64, scratch_operands = 0 : i64, tpu.core_type = #tpu.core_type<tc>, window_params = [{transform_indices = @transform_0, window_bounds = array<i64: 128, 2>}, {pipeline_mode = #tpu.pipeline_mode<synchronous>, transform_indices = @transform_1, window_bounds = array<i64: 2, 128>}, {pipeline_mode = #tpu.pipeline_mode<synchronous>, transform_indices = @transform_2, window_bounds = array<i64: 1, 128>}, {pipeline_mode = #tpu.pipeline_mode<synchronous>, transform_indices = @transform_3, window_bounds = array<i64: 128, 128>}, {pipeline_mode = #tpu.pipeline_mode<synchronous>, transform_indices = @transform_4, window_bounds = array<i64: 1, 128>}, {pipeline_mode = #tpu.pipeline_mode<synchronous>, transform_indices = @transform_5, window_bounds = array<i64: 128, 256>}, {pipeline_mode = #tpu.pipeline_mode<synchronous>, transform_indices = @transform_6, window_bounds = array<i64: 1, 256>}, {pipeline_mode = #tpu.pipeline_mode<synchronous>, transform_indices = @transform_7, window_bounds = array<i64: 256, 128>}, {pipeline_mode = #tpu.pipeline_mode<synchronous>, transform_indices = @transform_8, window_bounds = array<i64: 1, 128>}, {transform_indices = @transform_9, window_bounds = array<i64: 128, 128>}]} {
    %c0 = arith.constant 0 : index
    %c0_0 = arith.constant 0 : index
    %0 = vector.load %arg1[%c0, %c0_0] : memref<128x2xf32, #tpu.memory_space<vmem>>, vector<128x2xf32>
    %c0_1 = arith.constant 0 : index
    %c0_2 = arith.constant 0 : index
    %1 = vector.load %arg2[%c0_1, %c0_2] : memref<2x128xf32, #tpu.memory_space<vmem>>, vector<2x128xf32>
    %c0_3 = arith.constant 0 : index
    %c0_4 = arith.constant 0 : index
    %2 = vector.load %arg3[%c0_3, %c0_4] : memref<1x128xf32, #tpu.memory_space<vmem>>, vector<1x128xf32>
    %3 = vector.extract_strided_slice %0 {offsets = [0, 0], sizes = [128, 1], strides = [1, 1]} : vector<128x2xf32> to vector<128x1xf32>
    %4 = vector.extract_strided_slice %1 {offsets = [0, 0], sizes = [1, 128], strides = [1, 1]} : vector<2x128xf32> to vector<1x128xf32>
    %5 = vector.broadcast %3 : vector<128x1xf32> to vector<128x128xf32>
    %6 = vector.broadcast %4 : vector<1x128xf32> to vector<128x128xf32>
    %7 = arith.mulf %5, %6 : vector<128x128xf32>
    %8 = vector.broadcast %2 : vector<1x128xf32> to vector<128x128xf32>
    %9 = arith.addf %8, %7 : vector<128x128xf32>
    %10 = vector.extract_strided_slice %0 {offsets = [0, 1], sizes = [128, 1], strides = [1, 1]} : vector<128x2xf32> to vector<128x1xf32>
    %11 = vector.extract_strided_slice %1 {offsets = [1, 0], sizes = [1, 128], strides = [1, 1]} : vector<2x128xf32> to vector<1x128xf32>
    %12 = vector.broadcast %10 : vector<128x1xf32> to vector<128x128xf32>
    %13 = vector.broadcast %11 : vector<1x128xf32> to vector<128x128xf32>
    %14 = arith.mulf %12, %13 : vector<128x128xf32>
    %15 = arith.addf %9, %14 : vector<128x128xf32>
    %16 = math.sin %15 : vector<128x128xf32>
    %c0_5 = arith.constant 0 : index
    %c0_6 = arith.constant 0 : index
    %17 = vector.load %arg4[%c0_5, %c0_6] : memref<128x128xf32, #tpu.memory_space<vmem>>, vector<128x128xf32>
    %cst = arith.constant dense<0.000000e+00> : vector<128x128xf32>
    %18 = tpu.matmul %16, %17, %cst {dimension_numbers = #tpu.dot_dimension_numbers<[1], [0], [0], [1], [0, 0, 1, 1], [], []>} : vector<128x128xf32>, vector<128x128xf32>, vector<128x128xf32> -> vector<128x128xf32>
    %c0_7 = arith.constant 0 : index
    %c0_8 = arith.constant 0 : index
    %19 = vector.load %arg5[%c0_7, %c0_8] : memref<1x128xf32, #tpu.memory_space<vmem>>, vector<1x128xf32>
    %20 = vector.broadcast %19 : vector<1x128xf32> to vector<128x128xf32>
    %21 = arith.addf %18, %20 : vector<128x128xf32>
    %22 = math.sin %21 : vector<128x128xf32>
    %c0_9 = arith.constant 0 : index
    %c0_10 = arith.constant 0 : index
    %23 = vector.load %arg6[%c0_9, %c0_10] : memref<128x256xf32, #tpu.memory_space<vmem>>, vector<128x256xf32>
    %cst_11 = arith.constant dense<0.000000e+00> : vector<128x256xf32>
    %24 = tpu.matmul %22, %23, %cst_11 {dimension_numbers = #tpu.dot_dimension_numbers<[1], [0], [0], [1], [0, 0, 1, 1], [], []>} : vector<128x128xf32>, vector<128x256xf32>, vector<128x256xf32> -> vector<128x256xf32>
    %c0_12 = arith.constant 0 : index
    %c0_13 = arith.constant 0 : index
    %25 = vector.load %arg7[%c0_12, %c0_13] : memref<1x256xf32, #tpu.memory_space<vmem>>, vector<1x256xf32>
    %26 = vector.broadcast %25 : vector<1x256xf32> to vector<128x256xf32>
    %27 = arith.addf %24, %26 : vector<128x256xf32>
    %28 = math.sin %27 : vector<128x256xf32>
    %c0_14 = arith.constant 0 : index
    %c0_15 = arith.constant 0 : index
    %29 = vector.load %arg8[%c0_14, %c0_15] : memref<256x128xf32, #tpu.memory_space<vmem>>, vector<256x128xf32>
    %cst_16 = arith.constant dense<0.000000e+00> : vector<128x128xf32>
    %30 = tpu.matmul %28, %29, %cst_16 {dimension_numbers = #tpu.dot_dimension_numbers<[1], [0], [0], [1], [0, 0, 1, 1], [], []>} : vector<128x256xf32>, vector<256x128xf32>, vector<128x128xf32> -> vector<128x128xf32>
    %c0_17 = arith.constant 0 : index
    %c0_18 = arith.constant 0 : index
    %31 = vector.load %arg9[%c0_17, %c0_18] : memref<1x128xf32, #tpu.memory_space<vmem>>, vector<1x128xf32>
    %32 = vector.broadcast %31 : vector<1x128xf32> to vector<128x128xf32>
    %33 = arith.addf %30, %32 : vector<128x128xf32>
    %c0_19 = arith.constant 0 : index
    %c0_20 = arith.constant 0 : index
    %34 = vector.load %arg10[%c0_19, %c0_20] : memref<128x128xf32, #tpu.memory_space<vmem>>, vector<128x128xf32>
    tpu.vector_store %arg10[%c0_19, %c0_20], %33 {strides = array<i32>} : memref<128x128xf32, #tpu.memory_space<vmem>>, vector<128x128xf32>,
    return
  }
  func.func @transform_0(%arg0: i32) -> (i32, i32) {
    %c0_i32 = arith.constant 0 : i32
    %c0_i32_0 = arith.constant 0 : i32
    return %arg0, %c0_i32 : i32, i32
  }
  func.func @transform_1(%arg0: i32) -> (i32, i32) {
    %c0_i32 = arith.constant 0 : i32
    %c0_i32_0 = arith.constant 0 : i32
    %c0_i32_1 = arith.constant 0 : i32
    return %c0_i32, %c0_i32_0 : i32, i32
  }
  func.func @transform_2(%arg0: i32) -> (i32, i32) {
    %c0_i32 = arith.constant 0 : i32
    %c0_i32_0 = arith.constant 0 : i32
    %c0_i32_1 = arith.constant 0 : i32
    return %c0_i32, %c0_i32_0 : i32, i32
  }
  func.func @transform_3(%arg0: i32) -> (i32, i32) {
    %c0_i32 = arith.constant 0 : i32
    %c0_i32_0 = arith.constant 0 : i32
    %c0_i32_1 = arith.constant 0 : i32
    return %c0_i32, %c0_i32_0 : i32, i32
  }
  func.func @transform_4(%arg0: i32) -> (i32, i32) {
    %c0_i32 = arith.constant 0 : i32
    %c0_i32_0 = arith.constant 0 : i32
    %c0_i32_1 = arith.constant 0 : i32
    return %c0_i32, %c0_i32_0 : i32, i32
  }
  func.func @transform_5(%arg0: i32) -> (i32, i32) {
    %c0_i32 = arith.constant 0 : i32
    %c0_i32_0 = arith.constant 0 : i32
    %c0_i32_1 = arith.constant 0 : i32
    return %c0_i32, %c0_i32_0 : i32, i32
  }
  func.func @transform_6(%arg0: i32) -> (i32, i32) {
    %c0_i32 = arith.constant 0 : i32
    %c0_i32_0 = arith.constant 0 : i32
    %c0_i32_1 = arith.constant 0 : i32
    return %c0_i32, %c0_i32_0 : i32, i32
  }
  func.func @transform_7(%arg0: i32) -> (i32, i32) {
    %c0_i32 = arith.constant 0 : i32
    %c0_i32_0 = arith.constant 0 : i32
    %c0_i32_1 = arith.constant 0 : i32
    return %c0_i32, %c0_i32_0 : i32, i32
  }
  func.func @transform_8(%arg0: i32) -> (i32, i32) {
    %c0_i32 = arith.constant 0 : i32
    %c0_i32_0 = arith.constant 0 : i32
    %c0_i32_1 = arith.constant 0 : i32
    return %c0_i32, %c0_i32_0 : i32, i32
  }
  func.func @transform_9(%arg0: i32) -> (i32, i32) {
    %c0_i32 = arith.constant 0 : i32
    %c0_i32_0 = arith.constant 0 : i32
    return %arg0, %c0_i32 : i32, i32
  }
}

</mosaic_0001>

<llo_original>
// kernel: tpu_custom_call.1
$region0: #{tpu_custom_call.1}
  #allocation0 [shape = 'u32[]', space=smem, size = 0x4, offset = 0x4, fixed_abs, tag = 'smem constant byte address 0x4 - core index']
  #allocation1 [shape = 'u32[144,128]{1,0:T(1,128)}', space=vmem, size = 0x12000, scoped, tag = 'internal scratch']
  %s0 = inlined_call_operand.vmem [shape: f32[256,2], index: 0, kind: input, shape index: {}]
  %s1 = inlined_call_operand.vmem [shape: f32[2,128], index: 1, kind: input, shape index: {}]
  %s2 = inlined_call_operand.vmem [shape: f32[1,128], index: 2, kind: input, shape index: {}]
  %s3 = inlined_call_operand.hbm [shape: f32[128,128], index: 3, kind: input, shape index: {}]
  %s4 = inlined_call_operand.vmem [shape: f32[1,128], index: 4, kind: input, shape index: {}]
  %s5 = inlined_call_operand.vmem [shape: f32[128,256], index: 5, kind: input, shape index: {}]
  %s6 = inlined_call_operand.vmem [shape: f32[1,256], index: 6, kind: input, shape index: {}]
  %s7 = inlined_call_operand.hbm [shape: f32[256,128], index: 7, kind: input, shape index: {}]
  %s8 = inlined_call_operand.vmem [shape: f32[1,128], index: 8, kind: input, shape index: {}]
  %s9 = inlined_call_operand.hbm [shape: f32[256,128], index: 9, kind: output, shape index: {}]
  %s10 = sld [smem:[#allocation0]]
  $region77: #{tpu_custom_call.1} parent=0
    _
  %s12 = ssub.s32 1, %s10
  %s13 = scalar_select 0, %s12, %s10
  $region1: #{tpu_custom_call.1} parent=0
    #allocation2 [shape = 'u8[65536]{0}', space=vmem, size = 0x10000, scoped, tag = 'input window, operand 3, single buffered']
    #allocation3 [shape = 's32[2]{0}', space=sflag, size = 0x8, scoped, tag = 'scoped memory for tpu_custom_call.1']
    #allocation4 [shape = 's32[2]{0}', space=sflag, size = 0x8, scoped, tag = 'scoped memory for tpu_custom_call.1']
    #allocation5 [shape = 'u8[131072]{0}', space=vmem, size = 0x20000, scoped, tag = 'input window, operand 7, single buffered']
    #allocation6 [shape = 's32[1]{0}', space=sflag, size = 0x4, scoped, tag = 'scoped memory for tpu_custom_call.1']
    #allocation7 [shape = 'u8[131072]{0}', space=vmem, size = 0x20000, scoped, tag = 'output window, operand 0']
    %14 = vsyncpa [#allocation3], 0
    %15 = vsyncpa [#allocation6], 0
    %16 = vsyncpa [#allocation4], 0
    %s17 = scalar_lea.sflag [#allocation4], 1
    %18 = vsyncpa %s17, 0
    loop: start=0, step=1, limit=4
    $region2: #{tpu_custom_call.1} parent=1 // loop_pre_header
      _
    $region3: #{tpu_custom_call.1} parent=1 // loop_header
      %s20 = sphi 0, %s24
      %p21 = scmp.ge.s32.totalorder %s20, 4
      %s30 = sphi 0, %s32
      %s33 = sphi 0, %s30
      %s34 = sphi 0, %s33
      %s50 = sphi 0, %s34
      %s54 = sphi 0, %s54
      %s56 = sphi 0, %s54
      %s57 = sphi 0, %s56
      %s71 = sphi 0, %s57
      %s75 = sphi 0, %s75
      %s77 = sphi 0, %s75
      %s78 = sphi 0, %s77
      %s92 = sphi 0, %s78
      %s96 = sphi 0, %s96
      %s98 = sphi 0, %s96
      %s99 = sphi 0, %s98
      %s113 = sphi 0, %s99
      %s117 = sphi 0, %s117
      %s119 = sphi 0, %s117
      %s120 = sphi 0, %s119
      %s134 = sphi 0, %s120
      %s138 = sphi 0, %s138
      %s140 = sphi 0, %s138
      %s141 = sphi 0, %s140
      %s155 = sphi 0, %s141
      %s159 = sphi 0, %s159
      %s161 = sphi 0, %s159
      %s162 = sphi 0, %s161
      %s176 = sphi 0, %s162
      %s180 = sphi 0, %s180
      %s182 = sphi 0, %s180
      %s183 = sphi 0, %s182
      %s197 = sphi 0, %s183
      %s201 = sphi 0, %s201
      %s203 = sphi 0, %s201
      %s204 = sphi 0, %s203
      %s218 = sphi 0, %s204
      %s224 = sphi 0, %s226
      %s227 = sphi 0, %s224
      %s228 = sphi 0, %s227
      %s244 = sphi 0, %s228
    $region4: #{tpu_custom_call.1} parent=1 // loop_header_branch
      %23 = sbr.rel (%p21) target = $region8
    $region5: #{tpu_custom_call.1} parent=1 // loop_body
      %s25 = ssub.s32 %s20, 1
      %s26 = ssub.s32 %s20, 2
      %s27 = sadd.s32 %s20, 1
      %s28 = ssub.s32 %s20, %s27
      %p29 = scmp.eq.s32.totalorder %s28, 0
      %s31 = sadd.s32 %s30, 1
      %s32 = scalar_select %p29, %s30, %s31
      %p35 = pneg %p29
      %p36 = scmp.eq.s32.totalorder %s20, 1
      %p37 = por %p35, %p36
      %p38 = scmp.ne.s32.totalorder %s30, %s33
      %p39 = scmp.eq.s32.totalorder %s20, 0
      %p40 = por %p38, %p39
      %p41 = scmp.ne.s32.totalorder %s30, %s33
      %p42 = scmp.eq.s32.totalorder %s25, 1
      %p43 = por %p41, %p42
      %p44 = scmp.ne.s32.totalorder %s33, %s34
      %p45 = scmp.eq.s32.totalorder %s25, 0
      %p46 = por %p44, %p45
      %p47 = scmp.ne.s32.totalorder %s33, %s34
      %p48 = scmp.eq.s32.totalorder %s26, 1
      %p49 = por %p47, %p48
      %p51 = scmp.ne.s32.totalorder %s34, %s50
      %p52 = scmp.eq.s32.totalorder %s26, 0
      %p53 = por %p51, %p52
      %s55 = sadd.s32 %s54, 1
      %p58 = scmp.eq.s32.totalorder %s20, 1
      %p59 = scmp.ne.s32.totalorder %s54, %s56
      %p60 = scmp.eq.s32.totalorder %s20, 0
      %p61 = por %p59, %p60
      %p62 = scmp.ne.s32.totalorder %s54, %s56
      %p63 = scmp.eq.s32.totalorder %s25, 1
      %p64 = por %p62, %p63
      %p65 = scmp.ne.s32.totalorder %s56, %s57
      %p66 = scmp.eq.s32.totalorder %s25, 0
      %p67 = por %p65, %p66
      %p68 = scmp.ne.s32.totalorder %s56, %s57
      %p69 = scmp.eq.s32.totalorder %s26, 1
      %p70 = por %p68, %p69
      %p72 = scmp.ne.s32.totalorder %s57, %s71
      %p73 = scmp.eq.s32.totalorder %s26, 0
      %p74 = por %p72, %p73
      %s76 = sadd.s32 %s75, 1
      %p79 = scmp.eq.s32.totalorder %s20, 1
      %p80 = scmp.ne.s32.totalorder %s75, %s77
      %p81 = scmp.eq.s32.totalorder %s20, 0
      %p82 = por %p80, %p81
      %p83 = scmp.ne.s32.totalorder %s75, %s77
      %p84 = scmp.eq.s32.totalorder %s25, 1
      %p85 = por %p83, %p84
      %p86 = scmp.ne.s32.totalorder %s77, %s78
      %p87 = scmp.eq.s32.totalorder %s25, 0
      %p88 = por %p86, %p87
      %p89 = scmp.ne.s32.totalorder %s77, %s78
      %p90 = scmp.eq.s32.totalorder %s26, 1
      %p91 = por %p89, %p90
      %p93 = scmp.ne.s32.totalorder %s78, %s92
      %p94 = scmp.eq.s32.totalorder %s26, 0
      %p95 = por %p93, %p94
      %s97 = sadd.s32 %s96, 1
      %p100 = scmp.eq.s32.totalorder %s20, 1
      %p101 = scmp.ne.s32.totalorder %s96, %s98
      %p102 = scmp.eq.s32.totalorder %s20, 0
      %p103 = por %p101, %p102
      %p104 = scmp.ne.s32.totalorder %s96, %s98
      %p105 = scmp.eq.s32.totalorder %s25, 1
      %p106 = por %p104, %p105
      %p107 = scmp.ne.s32.totalorder %s98, %s99
      %p108 = scmp.eq.s32.totalorder %s25, 0
      %p109 = por %p107, %p108
      %p110 = scmp.ne.s32.totalorder %s98, %s99
      %p111 = scmp.eq.s32.totalorder %s26, 1
      %p112 = por %p110, %p111
      %p114 = scmp.ne.s32.totalorder %s99, %s113
      %p115 = scmp.eq.s32.totalorder %s26, 0
      %p116 = por %p114, %p115
      %s118 = sadd.s32 %s117, 1
      %p121 = scmp.eq.s32.totalorder %s20, 1
      %p122 = scmp.ne.s32.totalorder %s117, %s119
      %p123 = scmp.eq.s32.totalorder %s20, 0
      %p124 = por %p122, %p123
      %p125 = scmp.ne.s32.totalorder %s117, %s119
      %p126 = scmp.eq.s32.totalorder %s25, 1
      %p127 = por %p125, %p126
      %p128 = scmp.ne.s32.totalorder %s119, %s120
      %p129 = scmp.eq.s32.totalorder %s25, 0
      %p130 = por %p128, %p129
      %p131 = scmp.ne.s32.totalorder %s119, %s120
      %p132 = scmp.eq.s32.totalorder %s26, 1
      %p133 = por %p131, %p132
      %p135 = scmp.ne.s32.totalorder %s120, %s134
      %p136 = scmp.eq.s32.totalorder %s26, 0
      %p137 = por %p135, %p136
      %s139 = sadd.s32 %s138, 1
      %p142 = scmp.eq.s32.totalorder %s20, 1
      %p143 = scmp.ne.s32.totalorder %s138, %s140
      %p144 = scmp.eq.s32.totalorder %s20, 0
      %p145 = por %p143, %p144
      %p146 = scmp.ne.s32.totalorder %s138, %s140
      %p147 = scmp.eq.s32.totalorder %s25, 1
      %p148 = por %p146, %p147
      %p149 = scmp.ne.s32.totalorder %s140, %s141
      %p150 = scmp.eq.s32.totalorder %s25, 0
      %p151 = por %p149, %p150
      %p152 = scmp.ne.s32.totalorder %s140, %s141
      %p153 = scmp.eq.s32.totalorder %s26, 1
      %p154 = por %p152, %p153
      %p156 = scmp.ne.s32.totalorder %s141, %s155
      %p157 = scmp.eq.s32.totalorder %s26, 0
      %p158 = por %p156, %p157
      %s160 = sadd.s32 %s159, 1
      %p163 = scmp.eq.s32.totalorder %s20, 1
      %p164 = scmp.ne.s32.totalorder %s159, %s161
      %p165 = scmp.eq.s32.totalorder %s20, 0
      %p166 = por %p164, %p165
      %p167 = scmp.ne.s32.totalorder %s159, %s161
      %p168 = scmp.eq.s32.totalorder %s25, 1
      %p169 = por %p167, %p168
      %p170 = scmp.ne.s32.totalorder %s161, %s162
      %p171 = scmp.eq.s32.totalorder %s25, 0
      %p172 = por %p170, %p171
      %p173 = scmp.ne.s32.totalorder %s161, %s162
      %p174 = scmp.eq.s32.totalorder %s26, 1
      %p175 = por %p173, %p174
      %p177 = scmp.ne.s32.totalorder %s162, %s176
      %p178 = scmp.eq.s32.totalorder %s26, 0
      %p179 = por %p177, %p178
      %s181 = sadd.s32 %s180, 1
      %p184 = scmp.eq.s32.totalorder %s20, 1
      %p185 = scmp.ne.s32.totalorder %s180, %s182
      %p186 = scmp.eq.s32.totalorder %s20, 0
      %p187 = por %p185, %p186
      %p188 = scmp.ne.s32.totalorder %s180, %s182
      %p189 = scmp.eq.s32.totalorder %s25, 1
      %p190 = por %p188, %p189
      %p191 = scmp.ne.s32.totalorder %s182, %s183
      %p192 = scmp.eq.s32.totalorder %s25, 0
      %p193 = por %p191, %p192
      %p194 = scmp.ne.s32.totalorder %s182, %s183
      %p195 = scmp.eq.s32.totalorder %s26, 1
      %p196 = por %p194, %p195
      %p198 = scmp.ne.s32.totalorder %s183, %s197
      %p199 = scmp.eq.s32.totalorder %s26, 0
      %p200 = por %p198, %p199
      %s202 = sadd.s32 %s201, 1
      %p205 = scmp.eq.s32.totalorder %s20, 1
      %p206 = scmp.ne.s32.totalorder %s201, %s203
      %p207 = scmp.eq.s32.totalorder %s20, 0
      %p208 = por %p206, %p207
      %p209 = scmp.ne.s32.totalorder %s201, %s203
      %p210 = scmp.eq.s32.totalorder %s25, 1
      %p211 = por %p209, %p210
      %p212 = scmp.ne.s32.totalorder %s203, %s204
      %p213 = scmp.eq.s32.totalorder %s25, 0
      %p214 = por %p212, %p213
      %p215 = scmp.ne.s32.totalorder %s203, %s204
      %p216 = scmp.eq.s32.totalorder %s26, 1
      %p217 = por %p215, %p216
      %p219 = scmp.ne.s32.totalorder %s204, %s218
      %p220 = scmp.eq.s32.totalorder %s26, 0
      %p221 = por %p219, %p220
      %s222 = ssub.s32 %s20, %s27
      %p223 = scmp.eq.s32.totalorder %s222, 0
      %s225 = sadd.s32 %s224, 1
      %s226 = scalar_select %p223, %s224, %s225
      %p229 = pneg %p223
      %p230 = scmp.eq.s32.totalorder %s20, 1
      %p231 = por %p229, %p230
      %p232 = scmp.ne.s32.totalorder %s224, %s227
      %p233 = scmp.eq.s32.totalorder %s20, 0
      %p234 = por %p232, %p233
      %p235 = scmp.ne.s32.totalorder %s224, %s227
      %p236 = scmp.eq.s32.totalorder %s25, 1
      %p237 = por %p235, %p236
      %p238 = scmp.ne.s32.totalorder %s227, %s228
      %p239 = scmp.eq.s32.totalorder %s25, 0
      %p240 = por %p238, %p239
      %p241 = scmp.ne.s32.totalorder %s227, %s228
      %p242 = scmp.eq.s32.totalorder %s26, 1
      %p243 = por %p241, %p242
      %p245 = scmp.ne.s32.totalorder %s228, %s244
      %p246 = scmp.eq.s32.totalorder %s26, 0
      %p247 = por %p245, %p246
      %p248 = scmp.le.s32.totalorder 1, %s20
      %p249 = scmp.lt.s32.totalorder %s20, 3
      %p250 = pnand %p248, %p249
      %p251 = pneg %p250
      // Predicated region
      $region9: #{tpu_custom_call.1} parent=5 // pred_check
        _
      $region10: #{tpu_custom_call.1} parent=5 // pred_check_branch
        %253 = sbr.rel (%p250) target = $region12
      $region11: #{tpu_custom_call.1} parent=5 // pred_region
        %s254 = ssub.s32 %s20, 1
        // Predicated region
        $region13: #{tpu_custom_call.1} parent=11 // pred_check
          %p255 = pneg %p67
        $region14: #{tpu_custom_call.1} parent=11 // pred_check_branch
          %257 = sbr.rel (%p255) target = $region16
        $region15: #{tpu_custom_call.1} parent=11 // pred_region
          _
        $region16: #{tpu_custom_call.1} parent=11 // pred_fallthru
          _
        // Predicated region
        $region17: #{tpu_custom_call.1} parent=11 // pred_check
          %p258 = pneg %p88
        $region18: #{tpu_custom_call.1} parent=11 // pred_check_branch
          %260 = sbr.rel (%p258) target = $region20
        $region19: #{tpu_custom_call.1} parent=11 // pred_region
          _
        $region20: #{tpu_custom_call.1} parent=11 // pred_fallthru
          _
        // Predicated region
        $region21: #{tpu_custom_call.1} parent=11 // pred_check
          %p261 = pneg %p109
        $region22: #{tpu_custom_call.1} parent=11 // pred_check_branch
          %263 = sbr.rel (%p261) target = $region24
        $region23: #{tpu_custom_call.1} parent=11 // pred_region
          %s265 = ssub.s32 2048, 2048
          %266 = vsyncadd [#allocation3], %s265
          %s267 = sshll.u32 [#allocation2], 4
          %s268 = int_to_ptr.vmem [resolvable:$true] %s267
          %273 = dma.hbm_to_vmem [thread:$0]  %s3, 2048, %s268, [#allocation3], 128, 128, 8
        $region24: #{tpu_custom_call.1} parent=11 // pred_fallthru
          _
        // Predicated region
        $region25: #{tpu_custom_call.1} parent=11 // pred_check
          %p274 = pneg %p130
        $region26: #{tpu_custom_call.1} parent=11 // pred_check_branch
          %276 = sbr.rel (%p274) target = $region28
        $region27: #{tpu_custom_call.1} parent=11 // pred_region
          _
        $region28: #{tpu_custom_call.1} parent=11 // pred_fallthru
          _
        // Predicated region
        $region29: #{tpu_custom_call.1} parent=11 // pred_check
          %p277 = pneg %p151
        $region30: #{tpu_custom_call.1} parent=11 // pred_check_branch
          %279 = sbr.rel (%p277) target = $region32
        $region31: #{tpu_custom_call.1} parent=11 // pred_region
          _
        $region32: #{tpu_custom_call.1} parent=11 // pred_fallthru
          _
        // Predicated region
        $region33: #{tpu_custom_call.1} parent=11 // pred_check
          %p280 = pneg %p172
        $region34: #{tpu_custom_call.1} parent=11 // pred_check_branch
          %282 = sbr.rel (%p280) target = $region36
        $region35: #{tpu_custom_call.1} parent=11 // pred_region
          _
        $region36: #{tpu_custom_call.1} parent=11 // pred_fallthru
          _
        // Predicated region
        $region37: #{tpu_custom_call.1} parent=11 // pred_check
          %p283 = pneg %p193
        $region38: #{tpu_custom_call.1} parent=11 // pred_check_branch
          %285 = sbr.rel (%p283) target = $region40
        $region39: #{tpu_custom_call.1} parent=11 // pred_region
          %s287 = ssub.s32 4096, 4096
          %288 = vsyncadd [#allocation6], %s287
          %s289 = sshll.u32 [#allocation5], 4
          %s290 = int_to_ptr.vmem [resolvable:$true] %s289
          %295 = dma.hbm_to_vmem [thread:$0]  %s7, 4096, %s290, [#allocation6], 128, 128, 8
        $region40: #{tpu_custom_call.1} parent=11 // pred_fallthru
          _
        // Predicated region
        $region41: #{tpu_custom_call.1} parent=11 // pred_check
          %p296 = pneg %p214
        $region42: #{tpu_custom_call.1} parent=11 // pred_check_branch
          %298 = sbr.rel (%p296) target = $region44
        $region43: #{tpu_custom_call.1} parent=11 // pred_region
          _
        $region44: #{tpu_custom_call.1} parent=11 // pred_fallthru
          _
      $region12: #{tpu_custom_call.1} parent=5 // pred_fallthru
        _
      %p299 = scmp.lt.s32.totalorder %s20, 2
      // Predicated region
      $region45: #{tpu_custom_call.1} parent=5 // pred_check
        %p300 = pneg %p299
      $region46: #{tpu_custom_call.1} parent=5 // pred_check_branch
        %302 = sbr.rel (%p300) target = $region48
      $region47: #{tpu_custom_call.1} parent=5 // pred_region
        // Predicated region
        $region49: #{tpu_custom_call.1} parent=47 // pred_check
          %p303 = pneg %p40
        $region50: #{tpu_custom_call.1} parent=47 // pred_check_branch
          %305 = sbr.rel (%p303) target = $region52
        $region51: #{tpu_custom_call.1} parent=47 // pred_region
          %s306 = smul.u32 16, %s20
          %p307 = scmp.lt.s32.totalorder %s306, 31
          %s308 = scalar_select %p307, %s306, 31
          %s309 = smul.addr %s308, 8
          %s310 = scalar_lea.vmem %s0, %s309
          %s311 = smul.u32 16, %s20
        $region52: #{tpu_custom_call.1} parent=47 // pred_fallthru
          _
      $region48: #{tpu_custom_call.1} parent=5 // pred_fallthru
        _
      %p312 = scmp.le.s32.totalorder 1, %s20
      %p313 = scmp.lt.s32.totalorder %s20, 3
      %p314 = pnand %p312, %p313
      %p315 = pneg %p314
      // Predicated region
      $region53: #{tpu_custom_call.1} parent=5 // pred_check
        _
      $region54: #{tpu_custom_call.1} parent=5 // pred_check_branch
        %317 = sbr.rel (%p314) target = $region56
      $region55: #{tpu_custom_call.1} parent=5 // pred_region
        %s318 = ssub.s32 %s20, 1
        // Predicated region
        $region57: #{tpu_custom_call.1} parent=55 // pred_check
          %p319 = pneg %p109
        $region58: #{tpu_custom_call.1} parent=55 // pred_check_branch
          %321 = sbr.rel (%p319) target = $region60
        $region59: #{tpu_custom_call.1} parent=55 // pred_region
          %322 = dma.done [#allocation3], 2048
        $region60: #{tpu_custom_call.1} parent=55 // pred_fallthru
          _
        // Predicated region
        $region61: #{tpu_custom_call.1} parent=55 // pred_check
          %p323 = pneg %p193
        $region62: #{tpu_custom_call.1} parent=55 // pred_check_branch
          %325 = sbr.rel (%p323) target = $region64
        $region63: #{tpu_custom_call.1} parent=55 // pred_region
          %326 = dma.done [#allocation6], 4096
        $region64: #{tpu_custom_call.1} parent=55 // pred_fallthru
          _
        %s327 = smul.u32 16, %s25
        %p328 = scmp.lt.s32.totalorder %s327, 31
        %s329 = scalar_select %p328, %s327, 31
        %s330 = smul.addr %s329, 8
        %s331 = scalar_lea.vmem %s0, %s330
        %p332 = pneg %p46
        %p333 = pneg %p43
        %p334 = pneg %p67
        %p335 = pneg %p64
        %p336 = pneg %p88
        %p337 = pneg %p85
        %p338 = pneg %p109
        %p339 = pneg %p106
        %p340 = pneg %p130
        %p341 = pneg %p127
        %p342 = pneg %p151
        %p343 = pneg %p148
        %p344 = pneg %p172
        %p345 = pneg %p169
        %p346 = pneg %p193
        %p347 = pneg %p190
        %p348 = pneg %p214
        %p349 = pneg %p211
        %p350 = pneg %p240
        %p351 = pneg %p237
        %s352 = sand.u32 %s227, 1
        %s353 = scalar_lea.sflag [#allocation4], %s352
        %s354 = sand.u32 %s227, 1
        %s355 = smul.addr %s354, 128
        %s356 = scalar_lea.vmem [#allocation7], %s355
        %s357 = smul.u32 16, %s25
        %p358 = scmp.lt.s32.totalorder %s357, 31
        %s359 = scalar_select %p358, %s357, 31
        %s360 = smul.addr %s359, 8
        %s361 = scalar_lea.vmem %s0, %s360
        %s362 = smul.u32 16, %s25
        %s363 = smul.u32 16, %s25
        %v364 = vld [vmem:[%s361] sm:$0xff]
        %v365 = vld [vmem:[%s361 + $0x8] sm:$0xff]
        %v366 = vld [vmem:[%s361 + $0x10] sm:$0xff]
        %v367 = vld [vmem:[%s361 + $0x18] sm:$0xff]
        %v368 = vld [vmem:[%s361 + $0x20] sm:$0xff]
        %v369 = vld [vmem:[%s361 + $0x28] sm:$0xff]
        %v370 = vld [vmem:[%s361 + $0x30] sm:$0xff]
        %v371 = vld [vmem:[%s361 + $0x38] sm:$0xff]
        %v372 = vld [vmem:[%s361 + $0x40] sm:$0xff]
        %v373 = vld [vmem:[%s361 + $0x48] sm:$0xff]
        %v374 = vld [vmem:[%s361 + $0x50] sm:$0xff]
        %v375 = vld [vmem:[%s361 + $0x58] sm:$0xff]
        %v376 = vld [vmem:[%s361 + $0x60] sm:$0xff]
        %v377 = vld [vmem:[%s361 + $0x68] sm:$0xff]
        %v378 = vld [vmem:[%s361 + $0x70] sm:$0xff]
        %v379 = vld [vmem:[%s361 + $0x78] sm:$0xff]
        %v380 = vld [vmem:[%s1] sm:$0x3]
        %v381 = vld [vmem:[%s2] sm:$0x1]
        %383 = vset.pattern.permute.xlu0 0
        %384 = vperm.xlu0 %383, %v364
        %v385 = vpop.permute.xlu0 %384
        %388 = vset.pattern.permute.xlu0 0
        %389 = vperm.xlu0 %388, %v365
        %v390 = vpop.permute.xlu0 %389
        %393 = vset.pattern.permute.xlu0 0
        %394 = vperm.xlu0 %393, %v366
        %v395 = vpop.permute.xlu0 %394
        %398 = vset.pattern.permute.xlu0 0
        %399 = vperm.xlu0 %398, %v367
        %v400 = vpop.permute.xlu0 %399
        %403 = vset.pattern.permute.xlu0 0
        %404 = vperm.xlu0 %403, %v368
        %v405 = vpop.permute.xlu0 %404
        %408 = vset.pattern.permute.xlu0 0
        %409 = vperm.xlu0 %408, %v369
        %v410 = vpop.permute.xlu0 %409
        %413 = vset.pattern.permute.xlu0 0
        %414 = vperm.xlu0 %413, %v370
        %v415 = vpop.permute.xlu0 %414
        %418 = vset.pattern.permute.xlu0 0
        %419 = vperm.xlu0 %418, %v371
        %v420 = vpop.permute.xlu0 %419
        %423 = vset.pattern.permute.xlu0 0
        %424 = vperm.xlu0 %423, %v372
        %v425 = vpop.permute.xlu0 %424
        %428 = vset.pattern.permute.xlu0 0
        %429 = vperm.xlu0 %428, %v373
        %v430 = vpop.permute.xlu0 %429
        %433 = vset.pattern.permute.xlu0 0
        %434 = vperm.xlu0 %433, %v374
        %v435 = vpop.permute.xlu0 %434
        %438 = vset.pattern.permute.xlu0 0
        %439 = vperm.xlu0 %438, %v375
        %v440 = vpop.permute.xlu0 %439
        %443 = vset.pattern.permute.xlu0 0
        %444 = vperm.xlu0 %443, %v376
        %v445 = vpop.permute.xlu0 %444
        %448 = vset.pattern.permute.xlu0 0
        %449 = vperm.xlu0 %448, %v377
        %v450 = vpop.permute.xlu0 %449
        %453 = vset.pattern.permute.xlu0 0
        %454 = vperm.xlu0 %453, %v378
        %v455 = vpop.permute.xlu0 %454
        %458 = vset.pattern.permute.xlu0 0
        %459 = vperm.xlu0 %458, %v379
        %v460 = vpop.permute.xlu0 %459
        %v462 = vlaneseq
        %v463 = vshrl.u32 %v462, 7
        %v464 = vsub.s32 0, %v463
        %v465 = vrot.slane %v380, %v464
        %v466 = vmul.f32 %v385, %v465
        %v467 = vmul.f32 %v390, %v465
        %v468 = vmul.f32 %v395, %v465
        %v469 = vmul.f32 %v400, %v465
        %v470 = vmul.f32 %v405, %v465
        %v471 = vmul.f32 %v410, %v465
        %v472 = vmul.f32 %v415, %v465
        %v473 = vmul.f32 %v420, %v465
        %v474 = vmul.f32 %v425, %v465
        %v475 = vmul.f32 %v430, %v465
        %v476 = vmul.f32 %v435, %v465
        %v477 = vmul.f32 %v440, %v465
        %v478 = vmul.f32 %v445, %v465
        %v479 = vmul.f32 %v450, %v465
        %v480 = vmul.f32 %v455, %v465
        %v481 = vmul.f32 %v460, %v465
        %v483 = vlaneseq
        %v484 = vshrl.u32 %v483, 7
        %v485 = vsub.s32 0, %v484
        %v486 = vrot.slane %v381, %v485
        %v488 = vadd.f32 %v486, %v466
        %v489 = vadd.f32 %v486, %v467
        %v490 = vadd.f32 %v486, %v468
        %v491 = vadd.f32 %v486, %v469
        %v492 = vadd.f32 %v486, %v470
        %v493 = vadd.f32 %v486, %v471
        %v494 = vadd.f32 %v486, %v472
        %v495 = vadd.f32 %v486, %v473
        %v496 = vadd.f32 %v486, %v474
        %v497 = vadd.f32 %v486, %v475
        %v498 = vadd.f32 %v486, %v476
        %v499 = vadd.f32 %v486, %v477
        %v500 = vadd.f32 %v486, %v478
        %v501 = vadd.f32 %v486, %v479
        %v502 = vadd.f32 %v486, %v480
        %v503 = vadd.f32 %v486, %v481
        %504 = vset.pattern.permute.xlu0 1
        %505 = vperm.xlu0 %504, %v364
        %v506 = vpop.permute.xlu0 %505
        %508 = vset.pattern.permute.xlu0 1
        %509 = vperm.xlu0 %508, %v365
        %v510 = vpop.permute.xlu0 %509
        %512 = vset.pattern.permute.xlu0 1
        %513 = vperm.xlu0 %512, %v366
        %v514 = vpop.permute.xlu0 %513
        %516 = vset.pattern.permute.xlu0 1
        %517 = vperm.xlu0 %516, %v367
        %v518 = vpop.permute.xlu0 %517
        %520 = vset.pattern.permute.xlu0 1
        %521 = vperm.xlu0 %520, %v368
        %v522 = vpop.permute.xlu0 %521
        %524 = vset.pattern.permute.xlu0 1
        %525 = vperm.xlu0 %524, %v369
        %v526 = vpop.permute.xlu0 %525
        %528 = vset.pattern.permute.xlu0 1
        %529 = vperm.xlu0 %528, %v370
        %v530 = vpop.permute.xlu0 %529
        %532 = vset.pattern.permute.xlu0 1
        %533 = vperm.xlu0 %532, %v371
        %v534 = vpop.permute.xlu0 %533
        %536 = vset.pattern.permute.xlu0 1
        %537 = vperm.xlu0 %536, %v372
        %v538 = vpop.permute.xlu0 %537
        %540 = vset.pattern.permute.xlu0 1
        %541 = vperm.xlu0 %540, %v373
        %v542 = vpop.permute.xlu0 %541
        %544 = vset.pattern.permute.xlu0 1
        %545 = vperm.xlu0 %544, %v374
        %v546 = vpop.permute.xlu0 %545
        %548 = vset.pattern.permute.xlu0 1
        %549 = vperm.xlu0 %548, %v375
        %v550 = vpop.permute.xlu0 %549
        %552 = vset.pattern.permute.xlu0 1
        %553 = vperm.xlu0 %552, %v376
        %v554 = vpop.permute.xlu0 %553
        %556 = vset.pattern.permute.xlu0 1
        %557 = vperm.xlu0 %556, %v377
        %v558 = vpop.permute.xlu0 %557
        %560 = vset.pattern.permute.xlu0 1
        %561 = vperm.xlu0 %560, %v378
        %v562 = vpop.permute.xlu0 %561
        %564 = vset.pattern.permute.xlu0 1
        %565 = vperm.xlu0 %564, %v379
        %v566 = vpop.permute.xlu0 %565
        %v568 = vlaneseq
        %v569 = vshrl.u32 %v568, 7
        %v570 = vsub.s32 1, %v569
        %v571 = vrot.slane %v380, %v570
        %v572 = vmul.f32 %v506, %v571
        %v573 = vmul.f32 %v510, %v571
        %v574 = vmul.f32 %v514, %v571
        %v575 = vmul.f32 %v518, %v571
        %v576 = vmul.f32 %v522, %v571
        %v577 = vmul.f32 %v526, %v571
        %v578 = vmul.f32 %v530, %v571
        %v579 = vmul.f32 %v534, %v571
        %v580 = vmul.f32 %v538, %v571
        %v581 = vmul.f32 %v542, %v571
        %v582 = vmul.f32 %v546, %v571
        %v583 = vmul.f32 %v550, %v571
        %v584 = vmul.f32 %v554, %v571
        %v585 = vmul.f32 %v558, %v571
        %v586 = vmul.f32 %v562, %v571
        %v587 = vmul.f32 %v566, %v571
        %v588 = vadd.f32 %v488, %v572
        %v589 = vadd.f32 %v489, %v573
        %v590 = vadd.f32 %v490, %v574
        %v591 = vadd.f32 %v491, %v575
        %v592 = vadd.f32 %v492, %v576
        %v593 = vadd.f32 %v493, %v577
        %v594 = vadd.f32 %v494, %v578
        %v595 = vadd.f32 %v495, %v579
        %v596 = vadd.f32 %v496, %v580
        %v597 = vadd.f32 %v497, %v581
        %v598 = vadd.f32 %v498, %v582
        %v599 = vadd.f32 %v499, %v583
        %v600 = vadd.f32 %v500, %v584
        %v601 = vadd.f32 %v501, %v585
        %v602 = vadd.f32 %v502, %v586
        %v603 = vadd.f32 %v503, %v587
        %v604 = vand.u32 2147483647, %v588
        %vm605 = vcmp.le.f32.partialorder %v604, 0.7853982
        %vm606 = vcmp.lt.s32.totalorder %v588, 0
        %v607 = vand.u32 %v588, 2139095040
        %v608 = vshrl.u32 %v607, 23
        %v609 = vsub.s32 %v608, 127
        %v610 = vand.u32 2147483647, %v588
        %v611 = vand.u32 %v610, 8388607
        %v612 = vor.u32 %v611, 8388608
        %v613 = vsub.s32 0, %v612
        %v614 = vadd.s32 %v609, 1
        %vm615 = vcmp.gt.s32.totalorder %v614, 0
        %v616 = vsel %vm615, %v614, 0
        %v617 = vshrl.u32 %v616, 5
        %v618 = vand.u32 %v616, 31
        %v619 = vsub.s32 32, %v618
        %v620 = vshrl.u32 683565275, %v619
        %v621 = vshll.u32 683565275, %v618
        %v622 = vshrl.u32 2475754826, %v619
        %v623 = vor.u32 %v621, %v622
        %v624 = vshll.u32 2475754826, %v618
        %v625 = vshrl.u32 2131351028, %v619
        %v626 = vor.u32 %v624, %v625
        %v627 = vshll.u32 2131351028, %v618
        %v628 = vshrl.u32 2102212464, %v619
        %v629 = vor.u32 %v627, %v628
        %v630 = vshll.u32 2102212464, %v618
        %v631 = vshrl.u32 920167782, %v619
        %v632 = vor.u32 %v630, %v631
        %v633 = vshll.u32 920167782, %v618
        %v634 = vshrl.u32 1326507024, %v619
        %v635 = vor.u32 %v633, %v634
        %vm636 = vcmp.lt.s32.totalorder %v617, 1
        %vm637 = vcmp.lt.s32.totalorder %v617, 2
        %vm638 = vcmp.lt.s32.totalorder %v617, 3
        %vm639 = vcmp.lt.s32.totalorder %v617, 4
        %v640 = vsel %vm636, %v620, %v623
        %v641 = vsel %vm639, %v629, 2102212464
        %v642 = vsel %vm638, %v626, %v641
        %v643 = vsel %vm637, %v640, %v642
        %v644 = vsel %vm636, %v623, %v626
        %v645 = vsel %vm639, %v632, 920167782
        %v646 = vsel %vm638, %v629, %v645
        %v647 = vsel %vm637, %v644, %v646
        %v648 = vsel %vm636, %v626, %v629
        %v649 = vsel %vm639, %v635, 1326507024
        %v650 = vsel %vm638, %v632, %v649
        %v651 = vsel %vm637, %v648, %v650
        %v652 = vshll.u32 %v612, 8
        %v653 = vmul.u32.u64.compose %v652, %v651
        %v654 = vextract.low.u32 %v653
        %v655 = vextract.high.u32 %v653
        %v656 = vmul.u32.u64.compose %v652, %v647
        %v657 = vextract.low.u32 %v656
        %v658 = vextract.high.u32 %v656
        %v659 = vmul.u32 %v652, %v643
        %v660 = vadd.s32 %v655, %v657
        %vm661 = vc.u32 %v655, %v657
        %v662 = vadd.s32 %v658, 1
        %v663 = vsel %vm661, %v662, %v658
        %v664 = vadd.s32 %v659, %v663
        %v665 = vadd.s32 %v664, 536870912
        %v666 = vshrl.u32 %v665, 30
        %v667 = vshll.u32 %v666, 30
        %v668 = vsub.s32 %v664, %v667
        %vm669 = vcmp.lt.s32.totalorder %v668, 0
        %v670 = vsub.s32 0, %v668
        %v671 = vsel %vm669, %v670, %v668
        %v672 = vclz %v671
        %v673 = vsub.s32 %v672, 2
        %vm674 = vcmp.gt.s32.totalorder 0, %v673
        %v675 = vsel %vm674, 0, %v673
        %v676 = vsub.s32 32, %v675
        %v677 = vshll.u32 %v668, %v675
        %v678 = vshrl.u32 %v660, %v676
        %v679 = vor.u32 %v677, %v678
        %v680 = vsub.s32 4294967266, %v675
        %v681 = vadd.s32 %v680, 127
        %v682 = vshll.u32 %v681, 23
        %v683 = vor.u32 4788187, %v682
        %v684 = vand.u32 2147483647, %v683
        %v686 = vcvt.s32.f32 %v679
        %v687 = vmul.f32 %v686, %v684
        %v688 = vxor.u32 %v687, 2147483648
        %v689 = vsel %vm606, %v688, %v687
        %v690 = vsub.s32 4, %v666
        %v691 = vsel %vm606, %v690, %v666
        %v692 = vsel %vm605, %v588, %v689
        %v693 = vsel %vm605, 0, %v691
        %v694 = vcosq.f32.pop %v692
        %v695 = vsinq.f32.pop %v692
        %vm696 = vweird.f32 %v588
        %v697 = vadd.s32 %v693, 3
        %v698 = vand.u32 %v697, 3
        %vm699 = vcmp.lt.s32.totalorder %v698, 2
        %vm700 = vcmp.eq.s32.totalorder %v698, 0
        %v701 = vxor.u32 %v695, 2147483648
        %v702 = vsel %vm700, %v694, %v701
        %vm703 = vcmp.eq.s32.totalorder %v698, 2
        %v704 = vxor.u32 %v694, 2147483648
        %v705 = vsel %vm703, %v704, %v695
        %v706 = vsel %vm699, %v702, %v705
        %v707 = vsel %vm696, nan, %v706
        %v708 = vand.u32 2147483647, %v589
        %vm709 = vcmp.le.f32.partialorder %v708, 0.7853982
        %vm710 = vcmp.lt.s32.totalorder %v589, 0
        %v711 = vand.u32 %v589, 2139095040
        %v712 = vshrl.u32 %v711, 23
        %v713 = vsub.s32 %v712, 127
        %v714 = vand.u32 2147483647, %v589
        %v715 = vand.u32 %v714, 8388607
        %v716 = vor.u32 %v715, 8388608
        %v717 = vsub.s32 0, %v716
        %v718 = vadd.s32 %v713, 1
        %vm719 = vcmp.gt.s32.totalorder %v718, 0
        %v720 = vsel %vm719, %v718, 0
        %v721 = vshrl.u32 %v720, 5
        %v722 = vand.u32 %v720, 31
        %v723 = vsub.s32 32, %v722
        %v724 = vshrl.u32 683565275, %v723
        %v725 = vshll.u32 683565275, %v722
        %v726 = vshrl.u32 2475754826, %v723
        %v727 = vor.u32 %v725, %v726
        %v728 = vshll.u32 2475754826, %v722
        %v729 = vshrl.u32 2131351028, %v723
        %v730 = vor.u32 %v728, %v729
        %v731 = vshll.u32 2131351028, %v722
        %v732 = vshrl.u32 2102212464, %v723
        %v733 = vor.u32 %v731, %v732
        %v734 = vshll.u32 2102212464, %v722
        %v735 = vshrl.u32 920167782, %v723
        %v736 = vor.u32 %v734, %v735
        %v737 = vshll.u32 920167782, %v722
        %v738 = vshrl.u32 1326507024, %v723
        %v739 = vor.u32 %v737, %v738
        %vm740 = vcmp.lt.s32.totalorder %v721, 1
        %vm741 = vcmp.lt.s32.totalorder %v721, 2
        %vm742 = vcmp.lt.s32.totalorder %v721, 3
        %vm743 = vcmp.lt.s32.totalorder %v721, 4
        %v744 = vsel %vm740, %v724, %v727
        %v745 = vsel %vm743, %v733, 2102212464
        %v746 = vsel %vm742, %v730, %v745
        %v747 = vsel %vm741, %v744, %v746
        %v748 = vsel %vm740, %v727, %v730
        %v749 = vsel %vm743, %v736, 920167782
        %v750 = vsel %vm742, %v733, %v749
        %v751 = vsel %vm741, %v748, %v750
        %v752 = vsel %vm740, %v730, %v733
        %v753 = vsel %vm743, %v739, 1326507024
        %v754 = vsel %vm742, %v736, %v753
        %v755 = vsel %vm741, %v752, %v754
        %v756 = vshll.u32 %v716, 8
        %v757 = vmul.u32.u64.compose %v756, %v755
        %v758 = vextract.low.u32 %v757
        %v759 = vextract.high.u32 %v757
        %v760 = vmul.u32.u64.compose %v756, %v751
        %v761 = vextract.low.u32 %v760
        %v762 = vextract.high.u32 %v760
        %v763 = vmul.u32 %v756, %v747
        %v764 = vadd.s32 %v759, %v761
        %vm765 = vc.u32 %v759, %v761
        %v766 = vadd.s32 %v762, 1
        %v767 = vsel %vm765, %v766, %v762
        %v768 = vadd.s32 %v763, %v767
        %v769 = vadd.s32 %v768, 536870912
        %v770 = vshrl.u32 %v769, 30
        %v771 = vshll.u32 %v770, 30
        %v772 = vsub.s32 %v768, %v771
        %vm773 = vcmp.lt.s32.totalorder %v772, 0
        %v774 = vsub.s32 0, %v772
        %v775 = vsel %vm773, %v774, %v772
        %v776 = vclz %v775
        %v777 = vsub.s32 %v776, 2
        %vm778 = vcmp.gt.s32.totalorder 0, %v777
        %v779 = vsel %vm778, 0, %v777
        %v780 = vsub.s32 32, %v779
        %v781 = vshll.u32 %v772, %v779
        %v782 = vshrl.u32 %v764, %v780
        %v783 = vor.u32 %v781, %v782
        %v784 = vsub.s32 4294967266, %v779
        %v785 = vadd.s32 %v784, 127
        %v786 = vshll.u32 %v785, 23
        %v787 = vor.u32 4788187, %v786
        %v788 = vand.u32 2147483647, %v787
        %v790 = vcvt.s32.f32 %v783
        %v791 = vmul.f32 %v790, %v788
        %v792 = vxor.u32 %v791, 2147483648
        %v793 = vsel %vm710, %v792, %v791
        %v794 = vsub.s32 4, %v770
        %v795 = vsel %vm710, %v794, %v770
        %v796 = vsel %vm709, %v589, %v793
        %v797 = vsel %vm709, 0, %v795
        %v798 = vcosq.f32.pop %v796
        %v799 = vsinq.f32.pop %v796
        %vm800 = vweird.f32 %v589
        %v801 = vadd.s32 %v797, 3
        %v802 = vand.u32 %v801, 3
        %vm803 = vcmp.lt.s32.totalorder %v802, 2
        %vm804 = vcmp.eq.s32.totalorder %v802, 0
        %v805 = vxor.u32 %v799, 2147483648
        %v806 = vsel %vm804, %v798, %v805
        %vm807 = vcmp.eq.s32.totalorder %v802, 2
        %v808 = vxor.u32 %v798, 2147483648
        %v809 = vsel %vm807, %v808, %v799
        %v810 = vsel %vm803, %v806, %v809
        %v811 = vsel %vm800, nan, %v810
        %v812 = vand.u32 2147483647, %v590
        %vm813 = vcmp.le.f32.partialorder %v812, 0.7853982
        %vm814 = vcmp.lt.s32.totalorder %v590, 0
        %v815 = vand.u32 %v590, 2139095040
        %v816 = vshrl.u32 %v815, 23
        %v817 = vsub.s32 %v816, 127
        %v818 = vand.u32 2147483647, %v590
        %v819 = vand.u32 %v818, 8388607
        %v820 = vor.u32 %v819, 8388608
        %v821 = vsub.s32 0, %v820
        %v822 = vadd.s32 %v817, 1
        %vm823 = vcmp.gt.s32.totalorder %v822, 0
        %v824 = vsel %vm823, %v822, 0
        %v825 = vshrl.u32 %v824, 5
        %v826 = vand.u32 %v824, 31
        %v827 = vsub.s32 32, %v826
        %v828 = vshrl.u32 683565275, %v827
        %v829 = vshll.u32 683565275, %v826
        %v830 = vshrl.u32 2475754826, %v827
        %v831 = vor.u32 %v829, %v830
        %v832 = vshll.u32 2475754826, %v826
        %v833 = vshrl.u32 2131351028, %v827
        %v834 = vor.u32 %v832, %v833
        %v835 = vshll.u32 2131351028, %v826
        %v836 = vshrl.u32 2102212464, %v827
        %v837 = vor.u32 %v835, %v836
        %v838 = vshll.u32 2102212464, %v826
        %v839 = vshrl.u32 920167782, %v827
        %v840 = vor.u32 %v838, %v839
        %v841 = vshll.u32 920167782, %v826
        %v842 = vshrl.u32 1326507024, %v827
        %v843 = vor.u32 %v841, %v842
        %vm844 = vcmp.lt.s32.totalorder %v825, 1
        %vm845 = vcmp.lt.s32.totalorder %v825, 2
        %vm846 = vcmp.lt.s32.totalorder %v825, 3
        %vm847 = vcmp.lt.s32.totalorder %v825, 4
        %v848 = vsel %vm844, %v828, %v831
        %v849 = vsel %vm847, %v837, 2102212464
        %v850 = vsel %vm846, %v834, %v849
        %v851 = vsel %vm845, %v848, %v850
        %v852 = vsel %vm844, %v831, %v834
        %v853 = vsel %vm847, %v840, 920167782
        %v854 = vsel %vm846, %v837, %v853
        %v855 = vsel %vm845, %v852, %v854
        %v856 = vsel %vm844, %v834, %v837
        %v857 = vsel %vm847, %v843, 1326507024
        %v858 = vsel %vm846, %v840, %v857
        %v859 = vsel %vm845, %v856, %v858
        %v860 = vshll.u32 %v820, 8
        %v861 = vmul.u32.u64.compose %v860, %v859
        %v862 = vextract.low.u32 %v861
        %v863 = vextract.high.u32 %v861
        %v864 = vmul.u32.u64.compose %v860, %v855
        %v865 = vextract.low.u32 %v864
        %v866 = vextract.high.u32 %v864
        %v867 = vmul.u32 %v860, %v851
        %v868 = vadd.s32 %v863, %v865
        %vm869 = vc.u32 %v863, %v865
        %v870 = vadd.s32 %v866, 1
        %v871 = vsel %vm869, %v870, %v866
        %v872 = vadd.s32 %v867, %v871
        %v873 = vadd.s32 %v872, 536870912
        %v874 = vshrl.u32 %v873, 30
        %v875 = vshll.u32 %v874, 30
        %v876 = vsub.s32 %v872, %v875
        %vm877 = vcmp.lt.s32.totalorder %v876, 0
        %v878 = vsub.s32 0, %v876
        %v879 = vsel %vm877, %v878, %v876
        %v880 = vclz %v879
        %v881 = vsub.s32 %v880, 2
        %vm882 = vcmp.gt.s32.totalorder 0, %v881
        %v883 = vsel %vm882, 0, %v881
        %v884 = vsub.s32 32, %v883
        %v885 = vshll.u32 %v876, %v883
        %v886 = vshrl.u32 %v868, %v884
        %v887 = vor.u32 %v885, %v886
        %v888 = vsub.s32 4294967266, %v883
        %v889 = vadd.s32 %v888, 127
        %v890 = vshll.u32 %v889, 23
        %v891 = vor.u32 4788187, %v890
        %v892 = vand.u32 2147483647, %v891
        %v894 = vcvt.s32.f32 %v887
        %v895 = vmul.f32 %v894, %v892
        %v896 = vxor.u32 %v895, 2147483648
        %v897 = vsel %vm814, %v896, %v895
        %v898 = vsub.s32 4, %v874
        %v899 = vsel %vm814, %v898, %v874
        %v900 = vsel %vm813, %v590, %v897
        %v901 = vsel %vm813, 0, %v899
        %v902 = vcosq.f32.pop %v900
        %v903 = vsinq.f32.pop %v900
        %vm904 = vweird.f32 %v590
        %v905 = vadd.s32 %v901, 3
        %v906 = vand.u32 %v905, 3
        %vm907 = vcmp.lt.s32.totalorder %v906, 2
        %vm908 = vcmp.eq.s32.totalorder %v906, 0
        %v909 = vxor.u32 %v903, 2147483648
        %v910 = vsel %vm908, %v902, %v909
        %vm911 = vcmp.eq.s32.totalorder %v906, 2
        %v912 = vxor.u32 %v902, 2147483648
        %v913 = vsel %vm911, %v912, %v903
        %v914 = vsel %vm907, %v910, %v913
        %v915 = vsel %vm904, nan, %v914
        %v916 = vand.u32 2147483647, %v591
        %vm917 = vcmp.le.f32.partialorder %v916, 0.7853982
        %vm918 = vcmp.lt.s32.totalorder %v591, 0
        %v919 = vand.u32 %v591, 2139095040
        %v920 = vshrl.u32 %v919, 23
        %v921 = vsub.s32 %v920, 127
        %v922 = vand.u32 2147483647, %v591
        %v923 = vand.u32 %v922, 8388607
        %v924 = vor.u32 %v923, 8388608
        %v925 = vsub.s32 0, %v924
        %v926 = vadd.s32 %v921, 1
        %vm927 = vcmp.gt.s32.totalorder %v926, 0
        %v928 = vsel %vm927, %v926, 0
        %v929 = vshrl.u32 %v928, 5
        %v930 = vand.u32 %v928, 31
        %v931 = vsub.s32 32, %v930
        %v932 = vshrl.u32 683565275, %v931
        %v933 = vshll.u32 683565275, %v930
        %v934 = vshrl.u32 2475754826, %v931
        %v935 = vor.u32 %v933, %v934
        %v936 = vshll.u32 2475754826, %v930
        %v937 = vshrl.u32 2131351028, %v931
        %v938 = vor.u32 %v936, %v937
        %v939 = vshll.u32 2131351028, %v930
        %v940 = vshrl.u32 2102212464, %v931
        %v941 = vor.u32 %v939, %v940
        %v942 = vshll.u32 2102212464, %v930
        %v943 = vshrl.u32 920167782, %v931
        %v944 = vor.u32 %v942, %v943
        %v945 = vshll.u32 920167782, %v930
        %v946 = vshrl.u32 1326507024, %v931
        %v947 = vor.u32 %v945, %v946
        %vm948 = vcmp.lt.s32.totalorder %v929, 1
        %vm949 = vcmp.lt.s32.totalorder %v929, 2
        %vm950 = vcmp.lt.s32.totalorder %v929, 3
        %vm951 = vcmp.lt.s32.totalorder %v929, 4
        %v952 = vsel %vm948, %v932, %v935
        %v953 = vsel %vm951, %v941, 2102212464
        %v954 = vsel %vm950, %v938, %v953
        %v955 = vsel %vm949, %v952, %v954
        %v956 = vsel %vm948, %v935, %v938
        %v957 = vsel %vm951, %v944, 920167782
        %v958 = vsel %vm950, %v941, %v957
        %v959 = vsel %vm949, %v956, %v958
        %v960 = vsel %vm948, %v938, %v941
        %v961 = vsel %vm951, %v947, 1326507024
        %v962 = vsel %vm950, %v944, %v961
        %v963 = vsel %vm949, %v960, %v962
        %v964 = vshll.u32 %v924, 8
        %v965 = vmul.u32.u64.compose %v964, %v963
        %v966 = vextract.low.u32 %v965
        %v967 = vextract.high.u32 %v965
        %v968 = vmul.u32.u64.compose %v964, %v959
        %v969 = vextract.low.u32 %v968
        %v970 = vextract.high.u32 %v968
        %v971 = vmul.u32 %v964, %v955
        %v972 = vadd.s32 %v967, %v969
        %vm973 = vc.u32 %v967, %v969
        %v974 = vadd.s32 %v970, 1
        %v975 = vsel %vm973, %v974, %v970
        %v976 = vadd.s32 %v971, %v975
        %v977 = vadd.s32 %v976, 536870912
        %v978 = vshrl.u32 %v977, 30
        %v979 = vshll.u32 %v978, 30
        %v980 = vsub.s32 %v976, %v979
        %vm981 = vcmp.lt.s32.totalorder %v980, 0
        %v982 = vsub.s32 0, %v980
        %v983 = vsel %vm981, %v982, %v980
        %v984 = vclz %v983
        %v985 = vsub.s32 %v984, 2
        %vm986 = vcmp.gt.s32.totalorder 0, %v985
        %v987 = vsel %vm986, 0, %v985
        %v988 = vsub.s32 32, %v987
        %v989 = vshll.u32 %v980, %v987
        %v990 = vshrl.u32 %v972, %v988
        %v991 = vor.u32 %v989, %v990
        %v992 = vsub.s32 4294967266, %v987
        %v993 = vadd.s32 %v992, 127
        %v994 = vshll.u32 %v993, 23
        %v995 = vor.u32 4788187, %v994
        %v996 = vand.u32 2147483647, %v995
        %v998 = vcvt.s32.f32 %v991
        %v999 = vmul.f32 %v998, %v996
        %v1000 = vxor.u32 %v999, 2147483648
        %v1001 = vsel %vm918, %v1000, %v999
        %v1002 = vsub.s32 4, %v978
        %v1003 = vsel %vm918, %v1002, %v978
        %v1004 = vsel %vm917, %v591, %v1001
        %v1005 = vsel %vm917, 0, %v1003
        %v1006 = vcosq.f32.pop %v1004
        %v1007 = vsinq.f32.pop %v1004
        %vm1008 = vweird.f32 %v591
        %v1009 = vadd.s32 %v1005, 3
        %v1010 = vand.u32 %v1009, 3
        %vm1011 = vcmp.lt.s32.totalorder %v1010, 2
        %vm1012 = vcmp.eq.s32.totalorder %v1010, 0
        %v1013 = vxor.u32 %v1007, 2147483648
        %v1014 = vsel %vm1012, %v1006, %v1013
        %vm1015 = vcmp.eq.s32.totalorder %v1010, 2
        %v1016 = vxor.u32 %v1006, 2147483648
        %v1017 = vsel %vm1015, %v1016, %v1007
        %v1018 = vsel %vm1011, %v1014, %v1017
        %v1019 = vsel %vm1008, nan, %v1018
        %v1020 = vand.u32 2147483647, %v592
        %vm1021 = vcmp.le.f32.partialorder %v1020, 0.7853982
        %vm1022 = vcmp.lt.s32.totalorder %v592, 0
        %v1023 = vand.u32 %v592, 2139095040
        %v1024 = vshrl.u32 %v1023, 23
        %v1025 = vsub.s32 %v1024, 127
        %v1026 = vand.u32 2147483647, %v592
        %v1027 = vand.u32 %v1026, 8388607
        %v1028 = vor.u32 %v1027, 8388608
        %v1029 = vsub.s32 0, %v1028
        %v1030 = vadd.s32 %v1025, 1
        %vm1031 = vcmp.gt.s32.totalorder %v1030, 0
        %v1032 = vsel %vm1031, %v1030, 0
        %v1033 = vshrl.u32 %v1032, 5
        %v1034 = vand.u32 %v1032, 31
        %v1035 = vsub.s32 32, %v1034
        %v1036 = vshrl.u32 683565275, %v1035
        %v1037 = vshll.u32 683565275, %v1034
        %v1038 = vshrl.u32 2475754826, %v1035
        %v1039 = vor.u32 %v1037, %v1038
        %v1040 = vshll.u32 2475754826, %v1034
        %v1041 = vshrl.u32 2131351028, %v1035
        %v1042 = vor.u32 %v1040, %v1041
        %v1043 = vshll.u32 2131351028, %v1034
        %v1044 = vshrl.u32 2102212464, %v1035
        %v1045 = vor.u32 %v1043, %v1044
        %v1046 = vshll.u32 2102212464, %v1034
        %v1047 = vshrl.u32 920167782, %v1035
        %v1048 = vor.u32 %v1046, %v1047
        %v1049 = vshll.u32 920167782, %v1034
        %v1050 = vshrl.u32 1326507024, %v1035
        %v1051 = vor.u32 %v1049, %v1050
        %vm1052 = vcmp.lt.s32.totalorder %v1033, 1
        %vm1053 = vcmp.lt.s32.totalorder %v1033, 2
        %vm1054 = vcmp.lt.s32.totalorder %v1033, 3
        %vm1055 = vcmp.lt.s32.totalorder %v1033, 4
        %v1056 = vsel %vm1052, %v1036, %v1039
        %v1057 = vsel %vm1055, %v1045, 2102212464
        %v1058 = vsel %vm1054, %v1042, %v1057
        %v1059 = vsel %vm1053, %v1056, %v1058
        %v1060 = vsel %vm1052, %v1039, %v1042
        %v1061 = vsel %vm1055, %v1048, 920167782
        %v1062 = vsel %vm1054, %v1045, %v1061
        %v1063 = vsel %vm1053, %v1060, %v1062
        %v1064 = vsel %vm1052, %v1042, %v1045
        %v1065 = vsel %vm1055, %v1051, 1326507024
        %v1066 = vsel %vm1054, %v1048, %v1065
        %v1067 = vsel %vm1053, %v1064, %v1066
        %v1068 = vshll.u32 %v1028, 8
        %v1069 = vmul.u32.u64.compose %v1068, %v1067
        %v1070 = vextract.low.u32 %v1069
        %v1071 = vextract.high.u32 %v1069
        %v1072 = vmul.u32.u64.compose %v1068, %v1063
        %v1073 = vextract.low.u32 %v1072
        %v1074 = vextract.high.u32 %v1072
        %v1075 = vmul.u32 %v1068, %v1059
        %v1076 = vadd.s32 %v1071, %v1073
        %vm1077 = vc.u32 %v1071, %v1073
        %v1078 = vadd.s32 %v1074, 1
        %v1079 = vsel %vm1077, %v1078, %v1074
        %v1080 = vadd.s32 %v1075, %v1079
        %v1081 = vadd.s32 %v1080, 536870912
        %v1082 = vshrl.u32 %v1081, 30
        %v1083 = vshll.u32 %v1082, 30
        %v1084 = vsub.s32 %v1080, %v1083
        %vm1085 = vcmp.lt.s32.totalorder %v1084, 0
        %v1086 = vsub.s32 0, %v1084
        %v1087 = vsel %vm1085, %v1086, %v1084
        %v1088 = vclz %v1087
        %v1089 = vsub.s32 %v1088, 2
        %vm1090 = vcmp.gt.s32.totalorder 0, %v1089
        %v1091 = vsel %vm1090, 0, %v1089
        %v1092 = vsub.s32 32, %v1091
        %v1093 = vshll.u32 %v1084, %v1091
        %v1094 = vshrl.u32 %v1076, %v1092
        %v1095 = vor.u32 %v1093, %v1094
        %v1096 = vsub.s32 4294967266, %v1091
        %v1097 = vadd.s32 %v1096, 127
        %v1098 = vshll.u32 %v1097, 23
        %v1099 = vor.u32 4788187, %v1098
        %v1100 = vand.u32 2147483647, %v1099
        %v1102 = vcvt.s32.f32 %v1095
        %v1103 = vmul.f32 %v1102, %v1100
        %v1104 = vxor.u32 %v1103, 2147483648
        %v1105 = vsel %vm1022, %v1104, %v1103
        %v1106 = vsub.s32 4, %v1082
        %v1107 = vsel %vm1022, %v1106, %v1082
        %v1108 = vsel %vm1021, %v592, %v1105
        %v1109 = vsel %vm1021, 0, %v1107
        %v1110 = vcosq.f32.pop %v1108
        %v1111 = vsinq.f32.pop %v1108
        %vm1112 = vweird.f32 %v592
        %v1113 = vadd.s32 %v1109, 3
        %v1114 = vand.u32 %v1113, 3
        %vm1115 = vcmp.lt.s32.totalorder %v1114, 2
        %vm1116 = vcmp.eq.s32.totalorder %v1114, 0
        %v1117 = vxor.u32 %v1111, 2147483648
        %v1118 = vsel %vm1116, %v1110, %v1117
        %vm1119 = vcmp.eq.s32.totalorder %v1114, 2
        %v1120 = vxor.u32 %v1110, 2147483648
        %v1121 = vsel %vm1119, %v1120, %v1111
        %v1122 = vsel %vm1115, %v1118, %v1121
        %v1123 = vsel %vm1112, nan, %v1122
        %v1124 = vand.u32 2147483647, %v593
        %vm1125 = vcmp.le.f32.partialorder %v1124, 0.7853982
        %vm1126 = vcmp.lt.s32.totalorder %v593, 0
        %v1127 = vand.u32 %v593, 2139095040
        %v1128 = vshrl.u32 %v1127, 23
        %v1129 = vsub.s32 %v1128, 127
        %v1130 = vand.u32 2147483647, %v593
        %v1131 = vand.u32 %v1130, 8388607
        %v1132 = vor.u32 %v1131, 8388608
        %v1133 = vsub.s32 0, %v1132
        %v1134 = vadd.s32 %v1129, 1
        %vm1135 = vcmp.gt.s32.totalorder %v1134, 0
        %v1136 = vsel %vm1135, %v1134, 0
        %v1137 = vshrl.u32 %v1136, 5
        %v1138 = vand.u32 %v1136, 31
        %v1139 = vsub.s32 32, %v1138
        %v1140 = vshrl.u32 683565275, %v1139
        %v1141 = vshll.u32 683565275, %v1138
        %v1142 = vshrl.u32 2475754826, %v1139
        %v1143 = vor.u32 %v1141, %v1142
        %v1144 = vshll.u32 2475754826, %v1138
        %v1145 = vshrl.u32 2131351028, %v1139
        %v1146 = vor.u32 %v1144, %v1145
        %v1147 = vshll.u32 2131351028, %v1138
        %v1148 = vshrl.u32 2102212464, %v1139
        %v1149 = vor.u32 %v1147, %v1148
        %v1150 = vshll.u32 2102212464, %v1138
        %v1151 = vshrl.u32 920167782, %v1139
        %v1152 = vor.u32 %v1150, %v1151
        %v1153 = vshll.u32 920167782, %v1138
        %v1154 = vshrl.u32 1326507024, %v1139
        %v1155 = vor.u32 %v1153, %v1154
        %vm1156 = vcmp.lt.s32.totalorder %v1137, 1
        %vm1157 = vcmp.lt.s32.totalorder %v1137, 2
        %vm1158 = vcmp.lt.s32.totalorder %v1137, 3
        %vm1159 = vcmp.lt.s32.totalorder %v1137, 4
        %v1160 = vsel %vm1156, %v1140, %v1143
        %v1161 = vsel %vm1159, %v1149, 2102212464
        %v1162 = vsel %vm1158, %v1146, %v1161
        %v1163 = vsel %vm1157, %v1160, %v1162
        %v1164 = vsel %vm1156, %v1143, %v1146
        %v1165 = vsel %vm1159, %v1152, 920167782
        %v1166 = vsel %vm1158, %v1149, %v1165
        %v1167 = vsel %vm1157, %v1164, %v1166
        %v1168 = vsel %vm1156, %v1146, %v1149
        %v1169 = vsel %vm1159, %v1155, 1326507024
        %v1170 = vsel %vm1158, %v1152, %v1169
        %v1171 = vsel %vm1157, %v1168, %v1170
        %v1172 = vshll.u32 %v1132, 8
        %v1173 = vmul.u32.u64.compose %v1172, %v1171
        %v1174 = vextract.low.u32 %v1173
        %v1175 = vextract.high.u32 %v1173
        %v1176 = vmul.u32.u64.compose %v1172, %v1167
        %v1177 = vextract.low.u32 %v1176
        %v1178 = vextract.high.u32 %v1176
        %v1179 = vmul.u32 %v1172, %v1163
        %v1180 = vadd.s32 %v1175, %v1177
        %vm1181 = vc.u32 %v1175, %v1177
        %v1182 = vadd.s32 %v1178, 1
        %v1183 = vsel %vm1181, %v1182, %v1178
        %v1184 = vadd.s32 %v1179, %v1183
        %v1185 = vadd.s32 %v1184, 536870912
        %v1186 = vshrl.u32 %v1185, 30
        %v1187 = vshll.u32 %v1186, 30
        %v1188 = vsub.s32 %v1184, %v1187
        %vm1189 = vcmp.lt.s32.totalorder %v1188, 0
        %v1190 = vsub.s32 0, %v1188
        %v1191 = vsel %vm1189, %v1190, %v1188
        %v1192 = vclz %v1191
        %v1193 = vsub.s32 %v1192, 2
        %vm1194 = vcmp.gt.s32.totalorder 0, %v1193
        %v1195 = vsel %vm1194, 0, %v1193
        %v1196 = vsub.s32 32, %v1195
        %v1197 = vshll.u32 %v1188, %v1195
        %v1198 = vshrl.u32 %v1180, %v1196
        %v1199 = vor.u32 %v1197, %v1198
        %v1200 = vsub.s32 4294967266, %v1195
        %v1201 = vadd.s32 %v1200, 127
        %v1202 = vshll.u32 %v1201, 23
        %v1203 = vor.u32 4788187, %v1202
        %v1204 = vand.u32 2147483647, %v1203
        %v1206 = vcvt.s32.f32 %v1199
        %v1207 = vmul.f32 %v1206, %v1204
        %v1208 = vxor.u32 %v1207, 2147483648
        %v1209 = vsel %vm1126, %v1208, %v1207
        %v1210 = vsub.s32 4, %v1186
        %v1211 = vsel %vm1126, %v1210, %v1186
        %v1212 = vsel %vm1125, %v593, %v1209
        %v1213 = vsel %vm1125, 0, %v1211
        %v1214 = vcosq.f32.pop %v1212
        %v1215 = vsinq.f32.pop %v1212
        %vm1216 = vweird.f32 %v593
        %v1217 = vadd.s32 %v1213, 3
        %v1218 = vand.u32 %v1217, 3
        %vm1219 = vcmp.lt.s32.totalorder %v1218, 2
        %vm1220 = vcmp.eq.s32.totalorder %v1218, 0
        %v1221 = vxor.u32 %v1215, 2147483648
        %v1222 = vsel %vm1220, %v1214, %v1221
        %vm1223 = vcmp.eq.s32.totalorder %v1218, 2
        %v1224 = vxor.u32 %v1214, 2147483648
        %v1225 = vsel %vm1223, %v1224, %v1215
        %v1226 = vsel %vm1219, %v1222, %v1225
        %v1227 = vsel %vm1216, nan, %v1226
        %v1228 = vand.u32 2147483647, %v594
        %vm1229 = vcmp.le.f32.partialorder %v1228, 0.7853982
        %vm1230 = vcmp.lt.s32.totalorder %v594, 0
        %v1231 = vand.u32 %v594, 2139095040
        %v1232 = vshrl.u32 %v1231, 23
        %v1233 = vsub.s32 %v1232, 127
        %v1234 = vand.u32 2147483647, %v594
        %v1235 = vand.u32 %v1234, 8388607
        %v1236 = vor.u32 %v1235, 8388608
        %v1237 = vsub.s32 0, %v1236
        %v1238 = vadd.s32 %v1233, 1
        %vm1239 = vcmp.gt.s32.totalorder %v1238, 0
        %v1240 = vsel %vm1239, %v1238, 0
        %v1241 = vshrl.u32 %v1240, 5
        %v1242 = vand.u32 %v1240, 31
        %v1243 = vsub.s32 32, %v1242
        %v1244 = vshrl.u32 683565275, %v1243
        %v1245 = vshll.u32 683565275, %v1242
        %v1246 = vshrl.u32 2475754826, %v1243
        %v1247 = vor.u32 %v1245, %v1246
        %v1248 = vshll.u32 2475754826, %v1242
        %v1249 = vshrl.u32 2131351028, %v1243
        %v1250 = vor.u32 %v1248, %v1249
        %v1251 = vshll.u32 2131351028, %v1242
        %v1252 = vshrl.u32 2102212464, %v1243
        %v1253 = vor.u32 %v1251, %v1252
        %v1254 = vshll.u32 2102212464, %v1242
        %v1255 = vshrl.u32 920167782, %v1243
        %v1256 = vor.u32 %v1254, %v1255
        %v1257 = vshll.u32 920167782, %v1242
        %v1258 = vshrl.u32 1326507024, %v1243
        %v1259 = vor.u32 %v1257, %v1258
        %vm1260 = vcmp.lt.s32.totalorder %v1241, 1
        %vm1261 = vcmp.lt.s32.totalorder %v1241, 2
        %vm1262 = vcmp.lt.s32.totalorder %v1241, 3
        %vm1263 = vcmp.lt.s32.totalorder %v1241, 4
        %v1264 = vsel %vm1260, %v1244, %v1247
        %v1265 = vsel %vm1263, %v1253, 2102212464
        %v1266 = vsel %vm1262, %v1250, %v1265
        %v1267 = vsel %vm1261, %v1264, %v1266
        %v1268 = vsel %vm1260, %v1247, %v1250
        %v1269 = vsel %vm1263, %v1256, 920167782
        %v1270 = vsel %vm1262, %v1253, %v1269
        %v1271 = vsel %vm1261, %v1268, %v1270
        %v1272 = vsel %vm1260, %v1250, %v1253
        %v1273 = vsel %vm1263, %v1259, 1326507024
        %v1274 = vsel %vm1262, %v1256, %v1273
        %v1275 = vsel %vm1261, %v1272, %v1274
        %v1276 = vshll.u32 %v1236, 8
        %v1277 = vmul.u32.u64.compose %v1276, %v1275
        %v1278 = vextract.low.u32 %v1277
        %v1279 = vextract.high.u32 %v1277
        %v1280 = vmul.u32.u64.compose %v1276, %v1271
        %v1281 = vextract.low.u32 %v1280
        %v1282 = vextract.high.u32 %v1280
        %v1283 = vmul.u32 %v1276, %v1267
        %v1284 = vadd.s32 %v1279, %v1281
        %vm1285 = vc.u32 %v1279, %v1281
        %v1286 = vadd.s32 %v1282, 1
        %v1287 = vsel %vm1285, %v1286, %v1282
        %v1288 = vadd.s32 %v1283, %v1287
        %v1289 = vadd.s32 %v1288, 536870912
        %v1290 = vshrl.u32 %v1289, 30
        %v1291 = vshll.u32 %v1290, 30
        %v1292 = vsub.s32 %v1288, %v1291
        %vm1293 = vcmp.lt.s32.totalorder %v1292, 0
        %v1294 = vsub.s32 0, %v1292
        %v1295 = vsel %vm1293, %v1294, %v1292
        %v1296 = vclz %v1295
        %v1297 = vsub.s32 %v1296, 2
        %vm1298 = vcmp.gt.s32.totalorder 0, %v1297
        %v1299 = vsel %vm1298, 0, %v1297
        %v1300 = vsub.s32 32, %v1299
        %v1301 = vshll.u32 %v1292, %v1299
        %v1302 = vshrl.u32 %v1284, %v1300
        %v1303 = vor.u32 %v1301, %v1302
        %v1304 = vsub.s32 4294967266, %v1299
        %v1305 = vadd.s32 %v1304, 127
        %v1306 = vshll.u32 %v1305, 23
        %v1307 = vor.u32 4788187, %v1306
        %v1308 = vand.u32 2147483647, %v1307
        %v1310 = vcvt.s32.f32 %v1303
        %v1311 = vmul.f32 %v1310, %v1308
        %v1312 = vxor.u32 %v1311, 2147483648
        %v1313 = vsel %vm1230, %v1312, %v1311
        %v1314 = vsub.s32 4, %v1290
        %v1315 = vsel %vm1230, %v1314, %v1290
        %v1316 = vsel %vm1229, %v594, %v1313
        %v1317 = vsel %vm1229, 0, %v1315
        %v1318 = vcosq.f32.pop %v1316
        %v1319 = vsinq.f32.pop %v1316
        %vm1320 = vweird.f32 %v594
        %v1321 = vadd.s32 %v1317, 3
        %v1322 = vand.u32 %v1321, 3
        %vm1323 = vcmp.lt.s32.totalorder %v1322, 2
        %vm1324 = vcmp.eq.s32.totalorder %v1322, 0
        %v1325 = vxor.u32 %v1319, 2147483648
        %v1326 = vsel %vm1324, %v1318, %v1325
        %vm1327 = vcmp.eq.s32.totalorder %v1322, 2
        %v1328 = vxor.u32 %v1318, 2147483648
        %v1329 = vsel %vm1327, %v1328, %v1319
        %v1330 = vsel %vm1323, %v1326, %v1329
        %v1331 = vsel %vm1320, nan, %v1330
        %v1332 = vand.u32 2147483647, %v595
        %vm1333 = vcmp.le.f32.partialorder %v1332, 0.7853982
        %vm1334 = vcmp.lt.s32.totalorder %v595, 0
        %v1335 = vand.u32 %v595, 2139095040
        %v1336 = vshrl.u32 %v1335, 23
        %v1337 = vsub.s32 %v1336, 127
        %v1338 = vand.u32 2147483647, %v595
        %v1339 = vand.u32 %v1338, 8388607
        %v1340 = vor.u32 %v1339, 8388608
        %v1341 = vsub.s32 0, %v1340
        %v1342 = vadd.s32 %v1337, 1
        %vm1343 = vcmp.gt.s32.totalorder %v1342, 0
        %v1344 = vsel %vm1343, %v1342, 0
        %v1345 = vshrl.u32 %v1344, 5
        %v1346 = vand.u32 %v1344, 31
        %v1347 = vsub.s32 32, %v1346
        %v1348 = vshrl.u32 683565275, %v1347
        %v1349 = vshll.u32 683565275, %v1346
        %v1350 = vshrl.u32 2475754826, %v1347
        %v1351 = vor.u32 %v1349, %v1350
        %v1352 = vshll.u32 2475754826, %v1346
        %v1353 = vshrl.u32 2131351028, %v1347
        %v1354 = vor.u32 %v1352, %v1353
        %v1355 = vshll.u32 2131351028, %v1346
        %v1356 = vshrl.u32 2102212464, %v1347
        %v1357 = vor.u32 %v1355, %v1356
        %v1358 = vshll.u32 2102212464, %v1346
        %v1359 = vshrl.u32 920167782, %v1347
        %v1360 = vor.u32 %v1358, %v1359
        %v1361 = vshll.u32 920167782, %v1346
        %v1362 = vshrl.u32 1326507024, %v1347
        %v1363 = vor.u32 %v1361, %v1362
        %vm1364 = vcmp.lt.s32.totalorder %v1345, 1
        %vm1365 = vcmp.lt.s32.totalorder %v1345, 2
        %vm1366 = vcmp.lt.s32.totalorder %v1345, 3
        %vm1367 = vcmp.lt.s32.totalorder %v1345, 4
        %v1368 = vsel %vm1364, %v1348, %v1351
        %v1369 = vsel %vm1367, %v1357, 2102212464
        %v1370 = vsel %vm1366, %v1354, %v1369
        %v1371 = vsel %vm1365, %v1368, %v1370
        %v1372 = vsel %vm1364, %v1351, %v1354
        %v1373 = vsel %vm1367, %v1360, 920167782
        %v1374 = vsel %vm1366, %v1357, %v1373
        %v1375 = vsel %vm1365, %v1372, %v1374
        %v1376 = vsel %vm1364, %v1354, %v1357
        %v1377 = vsel %vm1367, %v1363, 1326507024
        %v1378 = vsel %vm1366, %v1360, %v1377
        %v1379 = vsel %vm1365, %v1376, %v1378
        %v1380 = vshll.u32 %v1340, 8
        %v1381 = vmul.u32.u64.compose %v1380, %v1379
        %v1382 = vextract.low.u32 %v1381
        %v1383 = vextract.high.u32 %v1381
        %v1384 = vmul.u32.u64.compose %v1380, %v1375
        %v1385 = vextract.low.u32 %v1384
        %v1386 = vextract.high.u32 %v1384
        %v1387 = vmul.u32 %v1380, %v1371
        %v1388 = vadd.s32 %v1383, %v1385
        %vm1389 = vc.u32 %v1383, %v1385
        %v1390 = vadd.s32 %v1386, 1
        %v1391 = vsel %vm1389, %v1390, %v1386
        %v1392 = vadd.s32 %v1387, %v1391
        %v1393 = vadd.s32 %v1392, 536870912
        %v1394 = vshrl.u32 %v1393, 30
        %v1395 = vshll.u32 %v1394, 30
        %v1396 = vsub.s32 %v1392, %v1395
        %vm1397 = vcmp.lt.s32.totalorder %v1396, 0
        %v1398 = vsub.s32 0, %v1396
        %v1399 = vsel %vm1397, %v1398, %v1396
        %v1400 = vclz %v1399
        %v1401 = vsub.s32 %v1400, 2
        %vm1402 = vcmp.gt.s32.totalorder 0, %v1401
        %v1403 = vsel %vm1402, 0, %v1401
        %v1404 = vsub.s32 32, %v1403
        %v1405 = vshll.u32 %v1396, %v1403
        %v1406 = vshrl.u32 %v1388, %v1404
        %v1407 = vor.u32 %v1405, %v1406
        %v1408 = vsub.s32 4294967266, %v1403
        %v1409 = vadd.s32 %v1408, 127
        %v1410 = vshll.u32 %v1409, 23
        %v1411 = vor.u32 4788187, %v1410
        %v1412 = vand.u32 2147483647, %v1411
        %v1414 = vcvt.s32.f32 %v1407
        %v1415 = vmul.f32 %v1414, %v1412
        %v1416 = vxor.u32 %v1415, 2147483648
        %v1417 = vsel %vm1334, %v1416, %v1415
        %v1418 = vsub.s32 4, %v1394
        %v1419 = vsel %vm1334, %v1418, %v1394
        %v1420 = vsel %vm1333, %v595, %v1417
        %v1421 = vsel %vm1333, 0, %v1419
        %v1422 = vcosq.f32.pop %v1420
        %v1423 = vsinq.f32.pop %v1420
        %vm1424 = vweird.f32 %v595
        %v1425 = vadd.s32 %v1421, 3
        %v1426 = vand.u32 %v1425, 3
        %vm1427 = vcmp.lt.s32.totalorder %v1426, 2
        %vm1428 = vcmp.eq.s32.totalorder %v1426, 0
        %v1429 = vxor.u32 %v1423, 2147483648
        %v1430 = vsel %vm1428, %v1422, %v1429
        %vm1431 = vcmp.eq.s32.totalorder %v1426, 2
        %v1432 = vxor.u32 %v1422, 2147483648
        %v1433 = vsel %vm1431, %v1432, %v1423
        %v1434 = vsel %vm1427, %v1430, %v1433
        %v1435 = vsel %vm1424, nan, %v1434
        %v1436 = vand.u32 2147483647, %v596
        %vm1437 = vcmp.le.f32.partialorder %v1436, 0.7853982
        %vm1438 = vcmp.lt.s32.totalorder %v596, 0
        %v1439 = vand.u32 %v596, 2139095040
        %v1440 = vshrl.u32 %v1439, 23
        %v1441 = vsub.s32 %v1440, 127
        %v1442 = vand.u32 2147483647, %v596
        %v1443 = vand.u32 %v1442, 8388607
        %v1444 = vor.u32 %v1443, 8388608
        %v1445 = vsub.s32 0, %v1444
        %v1446 = vadd.s32 %v1441, 1
        %vm1447 = vcmp.gt.s32.totalorder %v1446, 0
        %v1448 = vsel %vm1447, %v1446, 0
        %v1449 = vshrl.u32 %v1448, 5
        %v1450 = vand.u32 %v1448, 31
        %v1451 = vsub.s32 32, %v1450
        %v1452 = vshrl.u32 683565275, %v1451
        %v1453 = vshll.u32 683565275, %v1450
        %v1454 = vshrl.u32 2475754826, %v1451
        %v1455 = vor.u32 %v1453, %v1454
        %v1456 = vshll.u32 2475754826, %v1450
        %v1457 = vshrl.u32 2131351028, %v1451
        %v1458 = vor.u32 %v1456, %v1457
        %v1459 = vshll.u32 2131351028, %v1450
        %v1460 = vshrl.u32 2102212464, %v1451
        %v1461 = vor.u32 %v1459, %v1460
        %v1462 = vshll.u32 2102212464, %v1450
        %v1463 = vshrl.u32 920167782, %v1451
        %v1464 = vor.u32 %v1462, %v1463
        %v1465 = vshll.u32 920167782, %v1450
        %v1466 = vshrl.u32 1326507024, %v1451
        %v1467 = vor.u32 %v1465, %v1466
        %vm1468 = vcmp.lt.s32.totalorder %v1449, 1
        %vm1469 = vcmp.lt.s32.totalorder %v1449, 2
        %vm1470 = vcmp.lt.s32.totalorder %v1449, 3
        %vm1471 = vcmp.lt.s32.totalorder %v1449, 4
        %v1472 = vsel %vm1468, %v1452, %v1455
        %v1473 = vsel %vm1471, %v1461, 2102212464
        %v1474 = vsel %vm1470, %v1458, %v1473
        %v1475 = vsel %vm1469, %v1472, %v1474
        %v1476 = vsel %vm1468, %v1455, %v1458
        %v1477 = vsel %vm1471, %v1464, 920167782
        %v1478 = vsel %vm1470, %v1461, %v1477
        %v1479 = vsel %vm1469, %v1476, %v1478
        %v1480 = vsel %vm1468, %v1458, %v1461
        %v1481 = vsel %vm1471, %v1467, 1326507024
        %v1482 = vsel %vm1470, %v1464, %v1481
        %v1483 = vsel %vm1469, %v1480, %v1482
        %v1484 = vshll.u32 %v1444, 8
        %v1485 = vmul.u32.u64.compose %v1484, %v1483
        %v1486 = vextract.low.u32 %v1485
        %v1487 = vextract.high.u32 %v1485
        %v1488 = vmul.u32.u64.compose %v1484, %v1479
        %v1489 = vextract.low.u32 %v1488
        %v1490 = vextract.high.u32 %v1488
        %v1491 = vmul.u32 %v1484, %v1475
        %v1492 = vadd.s32 %v1487, %v1489
        %vm1493 = vc.u32 %v1487, %v1489
        %v1494 = vadd.s32 %v1490, 1
        %v1495 = vsel %vm1493, %v1494, %v1490
        %v1496 = vadd.s32 %v1491, %v1495
        %v1497 = vadd.s32 %v1496, 536870912
        %v1498 = vshrl.u32 %v1497, 30
        %v1499 = vshll.u32 %v1498, 30
        %v1500 = vsub.s32 %v1496, %v1499
        %vm1501 = vcmp.lt.s32.totalorder %v1500, 0
        %v1502 = vsub.s32 0, %v1500
        %v1503 = vsel %vm1501, %v1502, %v1500
        %v1504 = vclz %v1503
        %v1505 = vsub.s32 %v1504, 2
        %vm1506 = vcmp.gt.s32.totalorder 0, %v1505
        %v1507 = vsel %vm1506, 0, %v1505
        %v1508 = vsub.s32 32, %v1507
        %v1509 = vshll.u32 %v1500, %v1507
        %v1510 = vshrl.u32 %v1492, %v1508
        %v1511 = vor.u32 %v1509, %v1510
        %v1512 = vsub.s32 4294967266, %v1507
        %v1513 = vadd.s32 %v1512, 127
        %v1514 = vshll.u32 %v1513, 23
        %v1515 = vor.u32 4788187, %v1514
        %v1516 = vand.u32 2147483647, %v1515
        %v1518 = vcvt.s32.f32 %v1511
        %v1519 = vmul.f32 %v1518, %v1516
        %v1520 = vxor.u32 %v1519, 2147483648
        %v1521 = vsel %vm1438, %v1520, %v1519
        %v1522 = vsub.s32 4, %v1498
        %v1523 = vsel %vm1438, %v1522, %v1498
        %v1524 = vsel %vm1437, %v596, %v1521
        %v1525 = vsel %vm1437, 0, %v1523
        %v1526 = vcosq.f32.pop %v1524
        %v1527 = vsinq.f32.pop %v1524
        %vm1528 = vweird.f32 %v596
        %v1529 = vadd.s32 %v1525, 3
        %v1530 = vand.u32 %v1529, 3
        %vm1531 = vcmp.lt.s32.totalorder %v1530, 2
        %vm1532 = vcmp.eq.s32.totalorder %v1530, 0
        %v1533 = vxor.u32 %v1527, 2147483648
        %v1534 = vsel %vm1532, %v1526, %v1533
        %vm1535 = vcmp.eq.s32.totalorder %v1530, 2
        %v1536 = vxor.u32 %v1526, 2147483648
        %v1537 = vsel %vm1535, %v1536, %v1527
        %v1538 = vsel %vm1531, %v1534, %v1537
        %v1539 = vsel %vm1528, nan, %v1538
        %v1540 = vand.u32 2147483647, %v597
        %vm1541 = vcmp.le.f32.partialorder %v1540, 0.7853982
        %vm1542 = vcmp.lt.s32.totalorder %v597, 0
        %v1543 = vand.u32 %v597, 2139095040
        %v1544 = vshrl.u32 %v1543, 23
        %v1545 = vsub.s32 %v1544, 127
        %v1546 = vand.u32 2147483647, %v597
        %v1547 = vand.u32 %v1546, 8388607
        %v1548 = vor.u32 %v1547, 8388608
        %v1549 = vsub.s32 0, %v1548
        %v1550 = vadd.s32 %v1545, 1
        %vm1551 = vcmp.gt.s32.totalorder %v1550, 0
        %v1552 = vsel %vm1551, %v1550, 0
        %v1553 = vshrl.u32 %v1552, 5
        %v1554 = vand.u32 %v1552, 31
        %v1555 = vsub.s32 32, %v1554
        %v1556 = vshrl.u32 683565275, %v1555
        %v1557 = vshll.u32 683565275, %v1554
        %v1558 = vshrl.u32 2475754826, %v1555
        %v1559 = vor.u32 %v1557, %v1558
        %v1560 = vshll.u32 2475754826, %v1554
        %v1561 = vshrl.u32 2131351028, %v1555
        %v1562 = vor.u32 %v1560, %v1561
        %v1563 = vshll.u32 2131351028, %v1554
        %v1564 = vshrl.u32 2102212464, %v1555
        %v1565 = vor.u32 %v1563, %v1564
        %v1566 = vshll.u32 2102212464, %v1554
        %v1567 = vshrl.u32 920167782, %v1555
        %v1568 = vor.u32 %v1566, %v1567
        %v1569 = vshll.u32 920167782, %v1554
        %v1570 = vshrl.u32 1326507024, %v1555
        %v1571 = vor.u32 %v1569, %v1570
        %vm1572 = vcmp.lt.s32.totalorder %v1553, 1
        %vm1573 = vcmp.lt.s32.totalorder %v1553, 2
        %vm1574 = vcmp.lt.s32.totalorder %v1553, 3
        %vm1575 = vcmp.lt.s32.totalorder %v1553, 4
        %v1576 = vsel %vm1572, %v1556, %v1559
        %v1577 = vsel %vm1575, %v1565, 2102212464
        %v1578 = vsel %vm1574, %v1562, %v1577
        %v1579 = vsel %vm1573, %v1576, %v1578
        %v1580 = vsel %vm1572, %v1559, %v1562
        %v1581 = vsel %vm1575, %v1568, 920167782
        %v1582 = vsel %vm1574, %v1565, %v1581
        %v1583 = vsel %vm1573, %v1580, %v1582
        %v1584 = vsel %vm1572, %v1562, %v1565
        %v1585 = vsel %vm1575, %v1571, 1326507024
        %v1586 = vsel %vm1574, %v1568, %v1585
        %v1587 = vsel %vm1573, %v1584, %v1586
        %v1588 = vshll.u32 %v1548, 8
        %v1589 = vmul.u32.u64.compose %v1588, %v1587
        %v1590 = vextract.low.u32 %v1589
        %v1591 = vextract.high.u32 %v1589
        %v1592 = vmul.u32.u64.compose %v1588, %v1583
        %v1593 = vextract.low.u32 %v1592
        %v1594 = vextract.high.u32 %v1592
        %v1595 = vmul.u32 %v1588, %v1579
        %v1596 = vadd.s32 %v1591, %v1593
        %vm1597 = vc.u32 %v1591, %v1593
        %v1598 = vadd.s32 %v1594, 1
        %v1599 = vsel %vm1597, %v1598, %v1594
        %v1600 = vadd.s32 %v1595, %v1599
        %v1601 = vadd.s32 %v1600, 536870912
        %v1602 = vshrl.u32 %v1601, 30
        %v1603 = vshll.u32 %v1602, 30
        %v1604 = vsub.s32 %v1600, %v1603
        %vm1605 = vcmp.lt.s32.totalorder %v1604, 0
        %v1606 = vsub.s32 0, %v1604
        %v1607 = vsel %vm1605, %v1606, %v1604
        %v1608 = vclz %v1607
        %v1609 = vsub.s32 %v1608, 2
        %vm1610 = vcmp.gt.s32.totalorder 0, %v1609
        %v1611 = vsel %vm1610, 0, %v1609
        %v1612 = vsub.s32 32, %v1611
        %v1613 = vshll.u32 %v1604, %v1611
        %v1614 = vshrl.u32 %v1596, %v1612
        %v1615 = vor.u32 %v1613, %v1614
        %v1616 = vsub.s32 4294967266, %v1611
        %v1617 = vadd.s32 %v1616, 127
        %v1618 = vshll.u32 %v1617, 23
        %v1619 = vor.u32 4788187, %v1618
        %v1620 = vand.u32 2147483647, %v1619
        %v1622 = vcvt.s32.f32 %v1615
        %v1623 = vmul.f32 %v1622, %v1620
        %v1624 = vxor.u32 %v1623, 2147483648
        %v1625 = vsel %vm1542, %v1624, %v1623
        %v1626 = vsub.s32 4, %v1602
        %v1627 = vsel %vm1542, %v1626, %v1602
        %v1628 = vsel %vm1541, %v597, %v1625
        %v1629 = vsel %vm1541, 0, %v1627
        %v1630 = vcosq.f32.pop %v1628
        %v1631 = vsinq.f32.pop %v1628
        %vm1632 = vweird.f32 %v597
        %v1633 = vadd.s32 %v1629, 3
        %v1634 = vand.u32 %v1633, 3
        %vm1635 = vcmp.lt.s32.totalorder %v1634, 2
        %vm1636 = vcmp.eq.s32.totalorder %v1634, 0
        %v1637 = vxor.u32 %v1631, 2147483648
        %v1638 = vsel %vm1636, %v1630, %v1637
        %vm1639 = vcmp.eq.s32.totalorder %v1634, 2
        %v1640 = vxor.u32 %v1630, 2147483648
        %v1641 = vsel %vm1639, %v1640, %v1631
        %v1642 = vsel %vm1635, %v1638, %v1641
        %v1643 = vsel %vm1632, nan, %v1642
        %v1644 = vand.u32 2147483647, %v598
        %vm1645 = vcmp.le.f32.partialorder %v1644, 0.7853982
        %vm1646 = vcmp.lt.s32.totalorder %v598, 0
        %v1647 = vand.u32 %v598, 2139095040
        %v1648 = vshrl.u32 %v1647, 23
        %v1649 = vsub.s32 %v1648, 127
        %v1650 = vand.u32 2147483647, %v598
        %v1651 = vand.u32 %v1650, 8388607
        %v1652 = vor.u32 %v1651, 8388608
        %v1653 = vsub.s32 0, %v1652
        %v1654 = vadd.s32 %v1649, 1
        %vm1655 = vcmp.gt.s32.totalorder %v1654, 0
        %v1656 = vsel %vm1655, %v1654, 0
        %v1657 = vshrl.u32 %v1656, 5
        %v1658 = vand.u32 %v1656, 31
        %v1659 = vsub.s32 32, %v1658
        %v1660 = vshrl.u32 683565275, %v1659
        %v1661 = vshll.u32 683565275, %v1658
        %v1662 = vshrl.u32 2475754826, %v1659
        %v1663 = vor.u32 %v1661, %v1662
        %v1664 = vshll.u32 2475754826, %v1658
        %v1665 = vshrl.u32 2131351028, %v1659
        %v1666 = vor.u32 %v1664, %v1665
        %v1667 = vshll.u32 2131351028, %v1658
        %v1668 = vshrl.u32 2102212464, %v1659
        %v1669 = vor.u32 %v1667, %v1668
        %v1670 = vshll.u32 2102212464, %v1658
        %v1671 = vshrl.u32 920167782, %v1659
        %v1672 = vor.u32 %v1670, %v1671
        %v1673 = vshll.u32 920167782, %v1658
        %v1674 = vshrl.u32 1326507024, %v1659
        %v1675 = vor.u32 %v1673, %v1674
        %vm1676 = vcmp.lt.s32.totalorder %v1657, 1
        %vm1677 = vcmp.lt.s32.totalorder %v1657, 2
        %vm1678 = vcmp.lt.s32.totalorder %v1657, 3
        %vm1679 = vcmp.lt.s32.totalorder %v1657, 4
        %v1680 = vsel %vm1676, %v1660, %v1663
        %v1681 = vsel %vm1679, %v1669, 2102212464
        %v1682 = vsel %vm1678, %v1666, %v1681
        %v1683 = vsel %vm1677, %v1680, %v1682
        %v1684 = vsel %vm1676, %v1663, %v1666
        %v1685 = vsel %vm1679, %v1672, 920167782
        %v1686 = vsel %vm1678, %v1669, %v1685
        %v1687 = vsel %vm1677, %v1684, %v1686
        %v1688 = vsel %vm1676, %v1666, %v1669
        %v1689 = vsel %vm1679, %v1675, 1326507024
        %v1690 = vsel %vm1678, %v1672, %v1689
        %v1691 = vsel %vm1677, %v1688, %v1690
        %v1692 = vshll.u32 %v1652, 8
        %v1693 = vmul.u32.u64.compose %v1692, %v1691
        %v1694 = vextract.low.u32 %v1693
        %v1695 = vextract.high.u32 %v1693
        %v1696 = vmul.u32.u64.compose %v1692, %v1687
        %v1697 = vextract.low.u32 %v1696
        %v1698 = vextract.high.u32 %v1696
        %v1699 = vmul.u32 %v1692, %v1683
        %v1700 = vadd.s32 %v1695, %v1697
        %vm1701 = vc.u32 %v1695, %v1697
        %v1702 = vadd.s32 %v1698, 1
        %v1703 = vsel %vm1701, %v1702, %v1698
        %v1704 = vadd.s32 %v1699, %v1703
        %v1705 = vadd.s32 %v1704, 536870912
        %v1706 = vshrl.u32 %v1705, 30
        %v1707 = vshll.u32 %v1706, 30
        %v1708 = vsub.s32 %v1704, %v1707
        %vm1709 = vcmp.lt.s32.totalorder %v1708, 0
        %v1710 = vsub.s32 0, %v1708
        %v1711 = vsel %vm1709, %v1710, %v1708
        %v1712 = vclz %v1711
        %v1713 = vsub.s32 %v1712, 2
        %vm1714 = vcmp.gt.s32.totalorder 0, %v1713
        %v1715 = vsel %vm1714, 0, %v1713
        %v1716 = vsub.s32 32, %v1715
        %v1717 = vshll.u32 %v1708, %v1715
        %v1718 = vshrl.u32 %v1700, %v1716
        %v1719 = vor.u32 %v1717, %v1718
        %v1720 = vsub.s32 4294967266, %v1715
        %v1721 = vadd.s32 %v1720, 127
        %v1722 = vshll.u32 %v1721, 23
        %v1723 = vor.u32 4788187, %v1722
        %v1724 = vand.u32 2147483647, %v1723
        %v1726 = vcvt.s32.f32 %v1719
        %v1727 = vmul.f32 %v1726, %v1724
        %v1728 = vxor.u32 %v1727, 2147483648
        %v1729 = vsel %vm1646, %v1728, %v1727
        %v1730 = vsub.s32 4, %v1706
        %v1731 = vsel %vm1646, %v1730, %v1706
        %v1732 = vsel %vm1645, %v598, %v1729
        %v1733 = vsel %vm1645, 0, %v1731
        %v1734 = vcosq.f32.pop %v1732
        %v1735 = vsinq.f32.pop %v1732
        %vm1736 = vweird.f32 %v598
        %v1737 = vadd.s32 %v1733, 3
        %v1738 = vand.u32 %v1737, 3
        %vm1739 = vcmp.lt.s32.totalorder %v1738, 2
        %vm1740 = vcmp.eq.s32.totalorder %v1738, 0
        %v1741 = vxor.u32 %v1735, 2147483648
        %v1742 = vsel %vm1740, %v1734, %v1741
        %vm1743 = vcmp.eq.s32.totalorder %v1738, 2
        %v1744 = vxor.u32 %v1734, 2147483648
        %v1745 = vsel %vm1743, %v1744, %v1735
        %v1746 = vsel %vm1739, %v1742, %v1745
        %v1747 = vsel %vm1736, nan, %v1746
        %v1748 = vand.u32 2147483647, %v599
        %vm1749 = vcmp.le.f32.partialorder %v1748, 0.7853982
        %vm1750 = vcmp.lt.s32.totalorder %v599, 0
        %v1751 = vand.u32 %v599, 2139095040
        %v1752 = vshrl.u32 %v1751, 23
        %v1753 = vsub.s32 %v1752, 127
        %v1754 = vand.u32 2147483647, %v599
        %v1755 = vand.u32 %v1754, 8388607
        %v1756 = vor.u32 %v1755, 8388608
        %v1757 = vsub.s32 0, %v1756
        %v1758 = vadd.s32 %v1753, 1
        %vm1759 = vcmp.gt.s32.totalorder %v1758, 0
        %v1760 = vsel %vm1759, %v1758, 0
        %v1761 = vshrl.u32 %v1760, 5
        %v1762 = vand.u32 %v1760, 31
        %v1763 = vsub.s32 32, %v1762
        %v1764 = vshrl.u32 683565275, %v1763
        %v1765 = vshll.u32 683565275, %v1762
        %v1766 = vshrl.u32 2475754826, %v1763
        %v1767 = vor.u32 %v1765, %v1766
        %v1768 = vshll.u32 2475754826, %v1762
        %v1769 = vshrl.u32 2131351028, %v1763
        %v1770 = vor.u32 %v1768, %v1769
        %v1771 = vshll.u32 2131351028, %v1762
        %v1772 = vshrl.u32 2102212464, %v1763
        %v1773 = vor.u32 %v1771, %v1772
        %v1774 = vshll.u32 2102212464, %v1762
        %v1775 = vshrl.u32 920167782, %v1763
        %v1776 = vor.u32 %v1774, %v1775
        %v1777 = vshll.u32 920167782, %v1762
        %v1778 = vshrl.u32 1326507024, %v1763
        %v1779 = vor.u32 %v1777, %v1778
        %vm1780 = vcmp.lt.s32.totalorder %v1761, 1
        %vm1781 = vcmp.lt.s32.totalorder %v1761, 2
        %vm1782 = vcmp.lt.s32.totalorder %v1761, 3
        %vm1783 = vcmp.lt.s32.totalorder %v1761, 4
        %v1784 = vsel %vm1780, %v1764, %v1767
        %v1785 = vsel %vm1783, %v1773, 2102212464
        %v1786 = vsel %vm1782, %v1770, %v1785
        %v1787 = vsel %vm1781, %v1784, %v1786
        %v1788 = vsel %vm1780, %v1767, %v1770
        %v1789 = vsel %vm1783, %v1776, 920167782
        %v1790 = vsel %vm1782, %v1773, %v1789
        %v1791 = vsel %vm1781, %v1788, %v1790
        %v1792 = vsel %vm1780, %v1770, %v1773
        %v1793 = vsel %vm1783, %v1779, 1326507024
        %v1794 = vsel %vm1782, %v1776, %v1793
        %v1795 = vsel %vm1781, %v1792, %v1794
        %v1796 = vshll.u32 %v1756, 8
        %v1797 = vmul.u32.u64.compose %v1796, %v1795
        %v1798 = vextract.low.u32 %v1797
        %v1799 = vextract.high.u32 %v1797
        %v1800 = vmul.u32.u64.compose %v1796, %v1791
        %v1801 = vextract.low.u32 %v1800
        %v1802 = vextract.high.u32 %v1800
        %v1803 = vmul.u32 %v1796, %v1787
        %v1804 = vadd.s32 %v1799, %v1801
        %vm1805 = vc.u32 %v1799, %v1801
        %v1806 = vadd.s32 %v1802, 1
        %v1807 = vsel %vm1805, %v1806, %v1802
        %v1808 = vadd.s32 %v1803, %v1807
        %v1809 = vadd.s32 %v1808, 536870912
        %v1810 = vshrl.u32 %v1809, 30
        %v1811 = vshll.u32 %v1810, 30
        %v1812 = vsub.s32 %v1808, %v1811
        %vm1813 = vcmp.lt.s32.totalorder %v1812, 0
        %v1814 = vsub.s32 0, %v1812
        %v1815 = vsel %vm1813, %v1814, %v1812
        %v1816 = vclz %v1815
        %v1817 = vsub.s32 %v1816, 2
        %vm1818 = vcmp.gt.s32.totalorder 0, %v1817
        %v1819 = vsel %vm1818, 0, %v1817
        %v1820 = vsub.s32 32, %v1819
        %v1821 = vshll.u32 %v1812, %v1819
        %v1822 = vshrl.u32 %v1804, %v1820
        %v1823 = vor.u32 %v1821, %v1822
        %v1824 = vsub.s32 4294967266, %v1819
        %v1825 = vadd.s32 %v1824, 127
        %v1826 = vshll.u32 %v1825, 23
        %v1827 = vor.u32 4788187, %v1826
        %v1828 = vand.u32 2147483647, %v1827
        %v1830 = vcvt.s32.f32 %v1823
        %v1831 = vmul.f32 %v1830, %v1828
        %v1832 = vxor.u32 %v1831, 2147483648
        %v1833 = vsel %vm1750, %v1832, %v1831
        %v1834 = vsub.s32 4, %v1810
        %v1835 = vsel %vm1750, %v1834, %v1810
        %v1836 = vsel %vm1749, %v599, %v1833
        %v1837 = vsel %vm1749, 0, %v1835
        %v1838 = vcosq.f32.pop %v1836
        %v1839 = vsinq.f32.pop %v1836
        %vm1840 = vweird.f32 %v599
        %v1841 = vadd.s32 %v1837, 3
        %v1842 = vand.u32 %v1841, 3
        %vm1843 = vcmp.lt.s32.totalorder %v1842, 2
        %vm1844 = vcmp.eq.s32.totalorder %v1842, 0
        %v1845 = vxor.u32 %v1839, 2147483648
        %v1846 = vsel %vm1844, %v1838, %v1845
        %vm1847 = vcmp.eq.s32.totalorder %v1842, 2
        %v1848 = vxor.u32 %v1838, 2147483648
        %v1849 = vsel %vm1847, %v1848, %v1839
        %v1850 = vsel %vm1843, %v1846, %v1849
        %v1851 = vsel %vm1840, nan, %v1850
        %v1852 = vand.u32 2147483647, %v600
        %vm1853 = vcmp.le.f32.partialorder %v1852, 0.7853982
        %vm1854 = vcmp.lt.s32.totalorder %v600, 0
        %v1855 = vand.u32 %v600, 2139095040
        %v1856 = vshrl.u32 %v1855, 23
        %v1857 = vsub.s32 %v1856, 127
        %v1858 = vand.u32 2147483647, %v600
        %v1859 = vand.u32 %v1858, 8388607
        %v1860 = vor.u32 %v1859, 8388608
        %v1861 = vsub.s32 0, %v1860
        %v1862 = vadd.s32 %v1857, 1
        %vm1863 = vcmp.gt.s32.totalorder %v1862, 0
        %v1864 = vsel %vm1863, %v1862, 0
        %v1865 = vshrl.u32 %v1864, 5
        %v1866 = vand.u32 %v1864, 31
        %v1867 = vsub.s32 32, %v1866
        %v1868 = vshrl.u32 683565275, %v1867
        %v1869 = vshll.u32 683565275, %v1866
        %v1870 = vshrl.u32 2475754826, %v1867
        %v1871 = vor.u32 %v1869, %v1870
        %v1872 = vshll.u32 2475754826, %v1866
        %v1873 = vshrl.u32 2131351028, %v1867
        %v1874 = vor.u32 %v1872, %v1873
        %v1875 = vshll.u32 2131351028, %v1866
        %v1876 = vshrl.u32 2102212464, %v1867
        %v1877 = vor.u32 %v1875, %v1876
        %v1878 = vshll.u32 2102212464, %v1866
        %v1879 = vshrl.u32 920167782, %v1867
        %v1880 = vor.u32 %v1878, %v1879
        %v1881 = vshll.u32 920167782, %v1866
        %v1882 = vshrl.u32 1326507024, %v1867
        %v1883 = vor.u32 %v1881, %v1882
        %vm1884 = vcmp.lt.s32.totalorder %v1865, 1
        %vm1885 = vcmp.lt.s32.totalorder %v1865, 2
        %vm1886 = vcmp.lt.s32.totalorder %v1865, 3
        %vm1887 = vcmp.lt.s32.totalorder %v1865, 4
        %v1888 = vsel %vm1884, %v1868, %v1871
        %v1889 = vsel %vm1887, %v1877, 2102212464
        %v1890 = vsel %vm1886, %v1874, %v1889
        %v1891 = vsel %vm1885, %v1888, %v1890
        %v1892 = vsel %vm1884, %v1871, %v1874
        %v1893 = vsel %vm1887, %v1880, 920167782
        %v1894 = vsel %vm1886, %v1877, %v1893
        %v1895 = vsel %vm1885, %v1892, %v1894
        %v1896 = vsel %vm1884, %v1874, %v1877
        %v1897 = vsel %vm1887, %v1883, 1326507024
        %v1898 = vsel %vm1886, %v1880, %v1897
        %v1899 = vsel %vm1885, %v1896, %v1898
        %v1900 = vshll.u32 %v1860, 8
        %v1901 = vmul.u32.u64.compose %v1900, %v1899
        %v1902 = vextract.low.u32 %v1901
        %v1903 = vextract.high.u32 %v1901
        %v1904 = vmul.u32.u64.compose %v1900, %v1895
        %v1905 = vextract.low.u32 %v1904
        %v1906 = vextract.high.u32 %v1904
        %v1907 = vmul.u32 %v1900, %v1891
        %v1908 = vadd.s32 %v1903, %v1905
        %vm1909 = vc.u32 %v1903, %v1905
        %v1910 = vadd.s32 %v1906, 1
        %v1911 = vsel %vm1909, %v1910, %v1906
        %v1912 = vadd.s32 %v1907, %v1911
        %v1913 = vadd.s32 %v1912, 536870912
        %v1914 = vshrl.u32 %v1913, 30
        %v1915 = vshll.u32 %v1914, 30
        %v1916 = vsub.s32 %v1912, %v1915
        %vm1917 = vcmp.lt.s32.totalorder %v1916, 0
        %v1918 = vsub.s32 0, %v1916
        %v1919 = vsel %vm1917, %v1918, %v1916
        %v1920 = vclz %v1919
        %v1921 = vsub.s32 %v1920, 2
        %vm1922 = vcmp.gt.s32.totalorder 0, %v1921
        %v1923 = vsel %vm1922, 0, %v1921
        %v1924 = vsub.s32 32, %v1923
        %v1925 = vshll.u32 %v1916, %v1923
        %v1926 = vshrl.u32 %v1908, %v1924
        %v1927 = vor.u32 %v1925, %v1926
        %v1928 = vsub.s32 4294967266, %v1923
        %v1929 = vadd.s32 %v1928, 127
        %v1930 = vshll.u32 %v1929, 23
        %v1931 = vor.u32 4788187, %v1930
        %v1932 = vand.u32 2147483647, %v1931
        %v1934 = vcvt.s32.f32 %v1927
        %v1935 = vmul.f32 %v1934, %v1932
        %v1936 = vxor.u32 %v1935, 2147483648
        %v1937 = vsel %vm1854, %v1936, %v1935
        %v1938 = vsub.s32 4, %v1914
        %v1939 = vsel %vm1854, %v1938, %v1914
        %v1940 = vsel %vm1853, %v600, %v1937
        %v1941 = vsel %vm1853, 0, %v1939
        %v1942 = vcosq.f32.pop %v1940
        %v1943 = vsinq.f32.pop %v1940
        %vm1944 = vweird.f32 %v600
        %v1945 = vadd.s32 %v1941, 3
        %v1946 = vand.u32 %v1945, 3
        %vm1947 = vcmp.lt.s32.totalorder %v1946, 2
        %vm1948 = vcmp.eq.s32.totalorder %v1946, 0
        %v1949 = vxor.u32 %v1943, 2147483648
        %v1950 = vsel %vm1948, %v1942, %v1949
        %vm1951 = vcmp.eq.s32.totalorder %v1946, 2
        %v1952 = vxor.u32 %v1942, 2147483648
        %v1953 = vsel %vm1951, %v1952, %v1943
        %v1954 = vsel %vm1947, %v1950, %v1953
        %v1955 = vsel %vm1944, nan, %v1954
        %v1956 = vand.u32 2147483647, %v601
        %vm1957 = vcmp.le.f32.partialorder %v1956, 0.7853982
        %vm1958 = vcmp.lt.s32.totalorder %v601, 0
        %v1959 = vand.u32 %v601, 2139095040
        %v1960 = vshrl.u32 %v1959, 23
        %v1961 = vsub.s32 %v1960, 127
        %v1962 = vand.u32 2147483647, %v601
        %v1963 = vand.u32 %v1962, 8388607
        %v1964 = vor.u32 %v1963, 8388608
        %v1965 = vsub.s32 0, %v1964
        %v1966 = vadd.s32 %v1961, 1
        %vm1967 = vcmp.gt.s32.totalorder %v1966, 0
        %v1968 = vsel %vm1967, %v1966, 0
        %v1969 = vshrl.u32 %v1968, 5
        %v1970 = vand.u32 %v1968, 31
        %v1971 = vsub.s32 32, %v1970
        %v1972 = vshrl.u32 683565275, %v1971
        %v1973 = vshll.u32 683565275, %v1970
        %v1974 = vshrl.u32 2475754826, %v1971
        %v1975 = vor.u32 %v1973, %v1974
        %v1976 = vshll.u32 2475754826, %v1970
        %v1977 = vshrl.u32 2131351028, %v1971
        %v1978 = vor.u32 %v1976, %v1977
        %v1979 = vshll.u32 2131351028, %v1970
        %v1980 = vshrl.u32 2102212464, %v1971
        %v1981 = vor.u32 %v1979, %v1980
        %v1982 = vshll.u32 2102212464, %v1970
        %v1983 = vshrl.u32 920167782, %v1971
        %v1984 = vor.u32 %v1982, %v1983
        %v1985 = vshll.u32 920167782, %v1970
        %v1986 = vshrl.u32 1326507024, %v1971
        %v1987 = vor.u32 %v1985, %v1986
        %vm1988 = vcmp.lt.s32.totalorder %v1969, 1
        %vm1989 = vcmp.lt.s32.totalorder %v1969, 2
        %vm1990 = vcmp.lt.s32.totalorder %v1969, 3
        %vm1991 = vcmp.lt.s32.totalorder %v1969, 4
        %v1992 = vsel %vm1988, %v1972, %v1975
        %v1993 = vsel %vm1991, %v1981, 2102212464
        %v1994 = vsel %vm1990, %v1978, %v1993
        %v1995 = vsel %vm1989, %v1992, %v1994
        %v1996 = vsel %vm1988, %v1975, %v1978
        %v1997 = vsel %vm1991, %v1984, 920167782
        %v1998 = vsel %vm1990, %v1981, %v1997
        %v1999 = vsel %vm1989, %v1996, %v1998
        %v2000 = vsel %vm1988, %v1978, %v1981
        %v2001 = vsel %vm1991, %v1987, 1326507024
        %v2002 = vsel %vm1990, %v1984, %v2001
        %v2003 = vsel %vm1989, %v2000, %v2002
        %v2004 = vshll.u32 %v1964, 8
        %v2005 = vmul.u32.u64.compose %v2004, %v2003
        %v2006 = vextract.low.u32 %v2005
        %v2007 = vextract.high.u32 %v2005
        %v2008 = vmul.u32.u64.compose %v2004, %v1999
        %v2009 = vextract.low.u32 %v2008
        %v2010 = vextract.high.u32 %v2008
        %v2011 = vmul.u32 %v2004, %v1995
        %v2012 = vadd.s32 %v2007, %v2009
        %vm2013 = vc.u32 %v2007, %v2009
        %v2014 = vadd.s32 %v2010, 1
        %v2015 = vsel %vm2013, %v2014, %v2010
        %v2016 = vadd.s32 %v2011, %v2015
        %v2017 = vadd.s32 %v2016, 536870912
        %v2018 = vshrl.u32 %v2017, 30
        %v2019 = vshll.u32 %v2018, 30
        %v2020 = vsub.s32 %v2016, %v2019
        %vm2021 = vcmp.lt.s32.totalorder %v2020, 0
        %v2022 = vsub.s32 0, %v2020
        %v2023 = vsel %vm2021, %v2022, %v2020
        %v2024 = vclz %v2023
        %v2025 = vsub.s32 %v2024, 2
        %vm2026 = vcmp.gt.s32.totalorder 0, %v2025
        %v2027 = vsel %vm2026, 0, %v2025
        %v2028 = vsub.s32 32, %v2027
        %v2029 = vshll.u32 %v2020, %v2027
        %v2030 = vshrl.u32 %v2012, %v2028
        %v2031 = vor.u32 %v2029, %v2030
        %v2032 = vsub.s32 4294967266, %v2027
        %v2033 = vadd.s32 %v2032, 127
        %v2034 = vshll.u32 %v2033, 23
        %v2035 = vor.u32 4788187, %v2034
        %v2036 = vand.u32 2147483647, %v2035
        %v2038 = vcvt.s32.f32 %v2031
        %v2039 = vmul.f32 %v2038, %v2036
        %v2040 = vxor.u32 %v2039, 2147483648
        %v2041 = vsel %vm1958, %v2040, %v2039
        %v2042 = vsub.s32 4, %v2018
        %v2043 = vsel %vm1958, %v2042, %v2018
        %v2044 = vsel %vm1957, %v601, %v2041
        %v2045 = vsel %vm1957, 0, %v2043
        %v2046 = vcosq.f32.pop %v2044
        %v2047 = vsinq.f32.pop %v2044
        %vm2048 = vweird.f32 %v601
        %v2049 = vadd.s32 %v2045, 3
        %v2050 = vand.u32 %v2049, 3
        %vm2051 = vcmp.lt.s32.totalorder %v2050, 2
        %vm2052 = vcmp.eq.s32.totalorder %v2050, 0
        %v2053 = vxor.u32 %v2047, 2147483648
        %v2054 = vsel %vm2052, %v2046, %v2053
        %vm2055 = vcmp.eq.s32.totalorder %v2050, 2
        %v2056 = vxor.u32 %v2046, 2147483648
        %v2057 = vsel %vm2055, %v2056, %v2047
        %v2058 = vsel %vm2051, %v2054, %v2057
        %v2059 = vsel %vm2048, nan, %v2058
        %v2060 = vand.u32 2147483647, %v602
        %vm2061 = vcmp.le.f32.partialorder %v2060, 0.7853982
        %vm2062 = vcmp.lt.s32.totalorder %v602, 0
        %v2063 = vand.u32 %v602, 2139095040
        %v2064 = vshrl.u32 %v2063, 23
        %v2065 = vsub.s32 %v2064, 127
        %v2066 = vand.u32 2147483647, %v602
        %v2067 = vand.u32 %v2066, 8388607
        %v2068 = vor.u32 %v2067, 8388608
        %v2069 = vsub.s32 0, %v2068
        %v2070 = vadd.s32 %v2065, 1
        %vm2071 = vcmp.gt.s32.totalorder %v2070, 0
        %v2072 = vsel %vm2071, %v2070, 0
        %v2073 = vshrl.u32 %v2072, 5
        %v2074 = vand.u32 %v2072, 31
        %v2075 = vsub.s32 32, %v2074
        %v2076 = vshrl.u32 683565275, %v2075
        %v2077 = vshll.u32 683565275, %v2074
        %v2078 = vshrl.u32 2475754826, %v2075
        %v2079 = vor.u32 %v2077, %v2078
        %v2080 = vshll.u32 2475754826, %v2074
        %v2081 = vshrl.u32 2131351028, %v2075
        %v2082 = vor.u32 %v2080, %v2081
        %v2083 = vshll.u32 2131351028, %v2074
        %v2084 = vshrl.u32 2102212464, %v2075
        %v2085 = vor.u32 %v2083, %v2084
        %v2086 = vshll.u32 2102212464, %v2074
        %v2087 = vshrl.u32 920167782, %v2075
        %v2088 = vor.u32 %v2086, %v2087
        %v2089 = vshll.u32 920167782, %v2074
        %v2090 = vshrl.u32 1326507024, %v2075
        %v2091 = vor.u32 %v2089, %v2090
        %vm2092 = vcmp.lt.s32.totalorder %v2073, 1
        %vm2093 = vcmp.lt.s32.totalorder %v2073, 2
        %vm2094 = vcmp.lt.s32.totalorder %v2073, 3
        %vm2095 = vcmp.lt.s32.totalorder %v2073, 4
        %v2096 = vsel %vm2092, %v2076, %v2079
        %v2097 = vsel %vm2095, %v2085, 2102212464
        %v2098 = vsel %vm2094, %v2082, %v2097
        %v2099 = vsel %vm2093, %v2096, %v2098
        %v2100 = vsel %vm2092, %v2079, %v2082
        %v2101 = vsel %vm2095, %v2088, 920167782
        %v2102 = vsel %vm2094, %v2085, %v2101
        %v2103 = vsel %vm2093, %v2100, %v2102
        %v2104 = vsel %vm2092, %v2082, %v2085
        %v2105 = vsel %vm2095, %v2091, 1326507024
        %v2106 = vsel %vm2094, %v2088, %v2105
        %v2107 = vsel %vm2093, %v2104, %v2106
        %v2108 = vshll.u32 %v2068, 8
        %v2109 = vmul.u32.u64.compose %v2108, %v2107
        %v2110 = vextract.low.u32 %v2109
        %v2111 = vextract.high.u32 %v2109
        %v2112 = vmul.u32.u64.compose %v2108, %v2103
        %v2113 = vextract.low.u32 %v2112
        %v2114 = vextract.high.u32 %v2112
        %v2115 = vmul.u32 %v2108, %v2099
        %v2116 = vadd.s32 %v2111, %v2113
        %vm2117 = vc.u32 %v2111, %v2113
        %v2118 = vadd.s32 %v2114, 1
        %v2119 = vsel %vm2117, %v2118, %v2114
        %v2120 = vadd.s32 %v2115, %v2119
        %v2121 = vadd.s32 %v2120, 536870912
        %v2122 = vshrl.u32 %v2121, 30
        %v2123 = vshll.u32 %v2122, 30
        %v2124 = vsub.s32 %v2120, %v2123
        %vm2125 = vcmp.lt.s32.totalorder %v2124, 0
        %v2126 = vsub.s32 0, %v2124
        %v2127 = vsel %vm2125, %v2126, %v2124
        %v2128 = vclz %v2127
        %v2129 = vsub.s32 %v2128, 2
        %vm2130 = vcmp.gt.s32.totalorder 0, %v2129
        %v2131 = vsel %vm2130, 0, %v2129
        %v2132 = vsub.s32 32, %v2131
        %v2133 = vshll.u32 %v2124, %v2131
        %v2134 = vshrl.u32 %v2116, %v2132
        %v2135 = vor.u32 %v2133, %v2134
        %v2136 = vsub.s32 4294967266, %v2131
        %v2137 = vadd.s32 %v2136, 127
        %v2138 = vshll.u32 %v2137, 23
        %v2139 = vor.u32 4788187, %v2138
        %v2140 = vand.u32 2147483647, %v2139
        %v2142 = vcvt.s32.f32 %v2135
        %v2143 = vmul.f32 %v2142, %v2140
        %v2144 = vxor.u32 %v2143, 2147483648
        %v2145 = vsel %vm2062, %v2144, %v2143
        %v2146 = vsub.s32 4, %v2122
        %v2147 = vsel %vm2062, %v2146, %v2122
        %v2148 = vsel %vm2061, %v602, %v2145
        %v2149 = vsel %vm2061, 0, %v2147
        %v2150 = vcosq.f32.pop %v2148
        %v2151 = vsinq.f32.pop %v2148
        %vm2152 = vweird.f32 %v602
        %v2153 = vadd.s32 %v2149, 3
        %v2154 = vand.u32 %v2153, 3
        %vm2155 = vcmp.lt.s32.totalorder %v2154, 2
        %vm2156 = vcmp.eq.s32.totalorder %v2154, 0
        %v2157 = vxor.u32 %v2151, 2147483648
        %v2158 = vsel %vm2156, %v2150, %v2157
        %vm2159 = vcmp.eq.s32.totalorder %v2154, 2
        %v2160 = vxor.u32 %v2150, 2147483648
        %v2161 = vsel %vm2159, %v2160, %v2151
        %v2162 = vsel %vm2155, %v2158, %v2161
        %v2163 = vsel %vm2152, nan, %v2162
        %v2164 = vand.u32 2147483647, %v603
        %vm2165 = vcmp.le.f32.partialorder %v2164, 0.7853982
        %vm2166 = vcmp.lt.s32.totalorder %v603, 0
        %v2167 = vand.u32 %v603, 2139095040
        %v2168 = vshrl.u32 %v2167, 23
        %v2169 = vsub.s32 %v2168, 127
        %v2170 = vand.u32 2147483647, %v603
        %v2171 = vand.u32 %v2170, 8388607
        %v2172 = vor.u32 %v2171, 8388608
        %v2173 = vsub.s32 0, %v2172
        %v2174 = vadd.s32 %v2169, 1
        %vm2175 = vcmp.gt.s32.totalorder %v2174, 0
        %v2176 = vsel %vm2175, %v2174, 0
        %v2177 = vshrl.u32 %v2176, 5
        %v2178 = vand.u32 %v2176, 31
        %v2179 = vsub.s32 32, %v2178
        %v2180 = vshrl.u32 683565275, %v2179
        %v2181 = vshll.u32 683565275, %v2178
        %v2182 = vshrl.u32 2475754826, %v2179
        %v2183 = vor.u32 %v2181, %v2182
        %v2184 = vshll.u32 2475754826, %v2178
        %v2185 = vshrl.u32 2131351028, %v2179
        %v2186 = vor.u32 %v2184, %v2185
        %v2187 = vshll.u32 2131351028, %v2178
        %v2188 = vshrl.u32 2102212464, %v2179
        %v2189 = vor.u32 %v2187, %v2188
        %v2190 = vshll.u32 2102212464, %v2178
        %v2191 = vshrl.u32 920167782, %v2179
        %v2192 = vor.u32 %v2190, %v2191
        %v2193 = vshll.u32 920167782, %v2178
        %v2194 = vshrl.u32 1326507024, %v2179
        %v2195 = vor.u32 %v2193, %v2194
        %vm2196 = vcmp.lt.s32.totalorder %v2177, 1
        %vm2197 = vcmp.lt.s32.totalorder %v2177, 2
        %vm2198 = vcmp.lt.s32.totalorder %v2177, 3
        %vm2199 = vcmp.lt.s32.totalorder %v2177, 4
        %v2200 = vsel %vm2196, %v2180, %v2183
        %v2201 = vsel %vm2199, %v2189, 2102212464
        %v2202 = vsel %vm2198, %v2186, %v2201
        %v2203 = vsel %vm2197, %v2200, %v2202
        %v2204 = vsel %vm2196, %v2183, %v2186
        %v2205 = vsel %vm2199, %v2192, 920167782
        %v2206 = vsel %vm2198, %v2189, %v2205
        %v2207 = vsel %vm2197, %v2204, %v2206
        %v2208 = vsel %vm2196, %v2186, %v2189
        %v2209 = vsel %vm2199, %v2195, 1326507024
        %v2210 = vsel %vm2198, %v2192, %v2209
        %v2211 = vsel %vm2197, %v2208, %v2210
        %v2212 = vshll.u32 %v2172, 8
        %v2213 = vmul.u32.u64.compose %v2212, %v2211
        %v2214 = vextract.low.u32 %v2213
        %v2215 = vextract.high.u32 %v2213
        %v2216 = vmul.u32.u64.compose %v2212, %v2207
        %v2217 = vextract.low.u32 %v2216
        %v2218 = vextract.high.u32 %v2216
        %v2219 = vmul.u32 %v2212, %v2203
        %v2220 = vadd.s32 %v2215, %v2217
        %vm2221 = vc.u32 %v2215, %v2217
        %v2222 = vadd.s32 %v2218, 1
        %v2223 = vsel %vm2221, %v2222, %v2218
        %v2224 = vadd.s32 %v2219, %v2223
        %v2225 = vadd.s32 %v2224, 536870912
        %v2226 = vshrl.u32 %v2225, 30
        %v2227 = vshll.u32 %v2226, 30
        %v2228 = vsub.s32 %v2224, %v2227
        %vm2229 = vcmp.lt.s32.totalorder %v2228, 0
        %v2230 = vsub.s32 0, %v2228
        %v2231 = vsel %vm2229, %v2230, %v2228
        %v2232 = vclz %v2231
        %v2233 = vsub.s32 %v2232, 2
        %vm2234 = vcmp.gt.s32.totalorder 0, %v2233
        %v2235 = vsel %vm2234, 0, %v2233
        %v2236 = vsub.s32 32, %v2235
        %v2237 = vshll.u32 %v2228, %v2235
        %v2238 = vshrl.u32 %v2220, %v2236
        %v2239 = vor.u32 %v2237, %v2238
        %v2240 = vsub.s32 4294967266, %v2235
        %v2241 = vadd.s32 %v2240, 127
        %v2242 = vshll.u32 %v2241, 23
        %v2243 = vor.u32 4788187, %v2242
        %v2244 = vand.u32 2147483647, %v2243
        %v2246 = vcvt.s32.f32 %v2239
        %v2247 = vmul.f32 %v2246, %v2244
        %v2248 = vxor.u32 %v2247, 2147483648
        %v2249 = vsel %vm2166, %v2248, %v2247
        %v2250 = vsub.s32 4, %v2226
        %v2251 = vsel %vm2166, %v2250, %v2226
        %v2252 = vsel %vm2165, %v603, %v2249
        %v2253 = vsel %vm2165, 0, %v2251
        %v2254 = vcosq.f32.pop %v2252
        %v2255 = vsinq.f32.pop %v2252
        %vm2256 = vweird.f32 %v603
        %v2257 = vadd.s32 %v2253, 3
        %v2258 = vand.u32 %v2257, 3
        %vm2259 = vcmp.lt.s32.totalorder %v2258, 2
        %vm2260 = vcmp.eq.s32.totalorder %v2258, 0
        %v2261 = vxor.u32 %v2255, 2147483648
        %v2262 = vsel %vm2260, %v2254, %v2261
        %vm2263 = vcmp.eq.s32.totalorder %v2258, 2
        %v2264 = vxor.u32 %v2254, 2147483648
        %v2265 = vsel %vm2263, %v2264, %v2255
        %v2266 = vsel %vm2259, %v2262, %v2265
        %v2267 = vsel %vm2256, nan, %v2266
        %v2268 = vld [vmem:[#allocation2] sm:$0xff]
        %v2269 = vld [vmem:[#allocation2 + $0x8] sm:$0xff]
        %v2270 = vld [vmem:[#allocation2 + $0x10] sm:$0xff]
        %v2271 = vld [vmem:[#allocation2 + $0x18] sm:$0xff]
        %v2272 = vld [vmem:[#allocation2 + $0x20] sm:$0xff]
        %v2273 = vld [vmem:[#allocation2 + $0x28] sm:$0xff]
        %v2274 = vld [vmem:[#allocation2 + $0x30] sm:$0xff]
        %v2275 = vld [vmem:[#allocation2 + $0x38] sm:$0xff]
        %v2276 = vld [vmem:[#allocation2 + $0x40] sm:$0xff]
        %v2277 = vld [vmem:[#allocation2 + $0x48] sm:$0xff]
        %v2278 = vld [vmem:[#allocation2 + $0x50] sm:$0xff]
        %v2279 = vld [vmem:[#allocation2 + $0x58] sm:$0xff]
        %v2280 = vld [vmem:[#allocation2 + $0x60] sm:$0xff]
        %v2281 = vld [vmem:[#allocation2 + $0x68] sm:$0xff]
        %v2282 = vld [vmem:[#allocation2 + $0x70] sm:$0xff]
        %v2283 = vld [vmem:[#allocation2 + $0x78] sm:$0xff]
        %v2284 = vld [vmem:[%s4] sm:$0x1]
        %v2286 = vlaneseq
        %v2287 = vshrl.u32 %v2286, 7
        %v2288 = vsub.s32 0, %v2287
        %v2289 = vrot.slane %v2284, %v2288
        %2291 = vmatprep.subr.mxu0 0.0
        %2292 = vmatpush1.msra.mxu0 %v2268
        %2293 = vmatprep.subr.mxu0 0.0
        %2294 = vmatpush1.msra.mxu0 %v2269
        %2295 = vmatprep.subr.mxu0 0.0
        %2296 = vmatpush1.msra.mxu0 %v2270
        %2297 = vmatprep.subr.mxu0 0.0
        %2298 = vmatpush1.msra.mxu0 %v2271
        %2299 = vmatprep.subr.mxu0 0.0
        %2300 = vmatpush1.msra.mxu0 %v2272
        %2301 = vmatprep.subr.mxu0 0.0
        %2302 = vmatpush1.msra.mxu0 %v2273
        %2303 = vmatprep.subr.mxu0 0.0
        %2304 = vmatpush1.msra.mxu0 %v2274
        %2305 = vmatprep.subr.mxu0 0.0
        %2306 = vmatpush1.msra.mxu0 %v2275
        %2307 = vmatprep.subr.mxu0 0.0
        %2308 = vmatpush1.msra.mxu0 %v2276
        %2309 = vmatprep.subr.mxu0 0.0
        %2310 = vmatpush1.msra.mxu0 %v2277
        %2311 = vmatprep.subr.mxu0 0.0
        %2312 = vmatpush1.msra.mxu0 %v2278
        %2313 = vmatprep.subr.mxu0 0.0
        %2314 = vmatpush1.msra.mxu0 %v2279
        %2315 = vmatprep.subr.mxu0 0.0
        %2316 = vmatpush1.msra.mxu0 %v2280
        %2317 = vmatprep.subr.mxu0 0.0
        %2318 = vmatpush1.msra.mxu0 %v2281
        %2319 = vmatprep.subr.mxu0 0.0
        %2320 = vmatpush1.msra.mxu0 %v2282
        %2321 = vmatprep.subr.mxu0 0.0
        %2322 = vmatpush1.msra.mxu0 %v2283
        %2323 = vmatprep.subr.mxu0 0.0
        %2324 = vmatpush1.msra.mxu0 0.0
        %2325 = vmatprep.subr.mxu0 0.0
        %2326 = vmatpush1.msra.mxu0 0.0
        %2327 = vmatprep.subr.mxu0 0.0
        %2328 = vmatpush1.msra.mxu0 0.0
        %2329 = vmatprep.subr.mxu0 0.0
        %2330 = vmatpush1.msra.mxu0 0.0
        %2331 = vmatprep.subr.mxu0 0.0
        %2332 = vmatpush1.msra.mxu0 0.0
        %2333 = vmatprep.subr.mxu0 0.0
        %2334 = vmatpush1.msra.mxu0 0.0
        %2335 = vmatprep.subr.mxu0 0.0
        %2336 = vmatpush1.msra.mxu0 0.0
        %2337 = vmatprep.subr.mxu0 0.0
        %2338 = vmatpush1.msra.mxu0 0.0
        %2339 = vmatprep.subr.mxu0 0.0
        %2340 = vmatpush1.msra.mxu0 0.0
        %2341 = vmatprep.subr.mxu0 0.0
        %2342 = vmatpush1.msra.mxu0 0.0
        %2343 = vmatprep.subr.mxu0 0.0
        %2344 = vmatpush1.msra.mxu0 0.0
        %2345 = vmatprep.subr.mxu0 0.0
        %2346 = vmatpush1.msra.mxu0 0.0
        %2347 = vmatprep.subr.mxu0 0.0
        %2348 = vmatpush1.msra.mxu0 0.0
        %2349 = vmatprep.subr.mxu0 0.0
        %2350 = vmatpush1.msra.mxu0 0.0
        %2351 = vmatprep.subr.mxu0 0.0
        %2352 = vmatpush1.msra.mxu0 0.0
        %2353 = vmatprep.subr.mxu0 0.0
        %2354 = vmatpush1.msra.mxu0 0.0
        %2355 = vmatprep.mubr.f32.mxu0 0.0
        %2356 = vmatmul.mubr.f32.gmra.mrb[0].mxu0 %v707
        %v2357 = vpop.f32.mrb[0].mxu0
        %v2358 = vadd.f32 %v2289, %v2357
        %v2359 = vpop.f32.mrb[0].mxu0
        %2360 = vmatprep.mubr.f32.mxu0 0.0
        %2361 = vmatmul.mubr.f32.gmra.mrb[0].mxu0 %v811
        %v2362 = vpop.f32.mrb[0].mxu0
        %v2363 = vadd.f32 %v2289, %v2362
        %v2364 = vpop.f32.mrb[0].mxu0
        %2365 = vmatprep.mubr.f32.mxu0 0.0
        %2366 = vmatmul.mubr.f32.gmra.mrb[0].mxu0 %v915
        %v2367 = vpop.f32.mrb[0].mxu0
        %v2368 = vadd.f32 %v2289, %v2367
        %v2369 = vpop.f32.mrb[0].mxu0
        %2370 = vmatprep.mubr.f32.mxu0 0.0
        %2371 = vmatmul.mubr.f32.gmra.mrb[0].mxu0 %v1019
        %v2372 = vpop.f32.mrb[0].mxu0
        %v2373 = vadd.f32 %v2289, %v2372
        %v2374 = vpop.f32.mrb[0].mxu0
        %2375 = vmatprep.mubr.f32.mxu0 0.0
        %2376 = vmatmul.mubr.f32.gmra.mrb[0].mxu0 %v1123
        %v2377 = vpop.f32.mrb[0].mxu0
        %v2378 = vadd.f32 %v2289, %v2377
        %v2379 = vpop.f32.mrb[0].mxu0
        %2380 = vmatprep.mubr.f32.mxu0 0.0
        %2381 = vmatmul.mubr.f32.gmra.mrb[0].mxu0 %v1227
        %v2382 = vpop.f32.mrb[0].mxu0
        %v2383 = vadd.f32 %v2289, %v2382
        %v2384 = vpop.f32.mrb[0].mxu0
        %2385 = vmatprep.mubr.f32.mxu0 0.0
        %2386 = vmatmul.mubr.f32.gmra.mrb[0].mxu0 %v1331
        %v2387 = vpop.f32.mrb[0].mxu0
        %v2388 = vadd.f32 %v2289, %v2387
        %v2389 = vpop.f32.mrb[0].mxu0
        %2390 = vmatprep.mubr.f32.mxu0 0.0
        %2391 = vmatmul.mubr.f32.gmra.mrb[0].mxu0 %v1435
        %v2392 = vpop.f32.mrb[0].mxu0
        %v2393 = vadd.f32 %v2289, %v2392
        %v2394 = vpop.f32.mrb[0].mxu0
        %2395 = vmatprep.mubr.f32.mxu0 0.0
        %2396 = vmatmul.mubr.f32.gmra.mrb[0].mxu0 %v1539
        %v2397 = vpop.f32.mrb[0].mxu0
        %v2398 = vadd.f32 %v2289, %v2397
        %v2399 = vpop.f32.mrb[0].mxu0
        %2400 = vmatprep.mubr.f32.mxu0 0.0
        %2401 = vmatmul.mubr.f32.gmra.mrb[0].mxu0 %v1643
        %v2402 = vpop.f32.mrb[0].mxu0
        %v2403 = vadd.f32 %v2289, %v2402
        %v2404 = vpop.f32.mrb[0].mxu0
        %2405 = vmatprep.mubr.f32.mxu0 0.0
        %2406 = vmatmul.mubr.f32.gmra.mrb[0].mxu0 %v1747
        %v2407 = vpop.f32.mrb[0].mxu0
        %v2408 = vadd.f32 %v2289, %v2407
        %v2409 = vpop.f32.mrb[0].mxu0
        %2410 = vmatprep.mubr.f32.mxu0 0.0
        %2411 = vmatmul.mubr.f32.gmra.mrb[0].mxu0 %v1851
        %v2412 = vpop.f32.mrb[0].mxu0
        %v2413 = vadd.f32 %v2289, %v2412
        %v2414 = vpop.f32.mrb[0].mxu0
        %2415 = vmatprep.mubr.f32.mxu0 0.0
        %2416 = vmatmul.mubr.f32.gmra.mrb[0].mxu0 %v1955
        %v2417 = vpop.f32.mrb[0].mxu0
        %v2418 = vadd.f32 %v2289, %v2417
        %v2419 = vpop.f32.mrb[0].mxu0
        %2420 = vmatprep.mubr.f32.mxu0 0.0
        %2421 = vmatmul.mubr.f32.gmra.mrb[0].mxu0 %v2059
        %v2422 = vpop.f32.mrb[0].mxu0
        %v2423 = vadd.f32 %v2289, %v2422
        %v2424 = vpop.f32.mrb[0].mxu0
        %2425 = vmatprep.mubr.f32.mxu0 0.0
        %2426 = vmatmul.mubr.f32.gmra.mrb[0].mxu0 %v2163
        %v2427 = vpop.f32.mrb[0].mxu0
        %v2428 = vadd.f32 %v2289, %v2427
        %v2429 = vpop.f32.mrb[0].mxu0
        %2430 = vmatprep.mubr.f32.mxu0 0.0
        %2431 = vmatmul.mubr.f32.gmra.mrb[0].mxu0 %v2267
        %v2432 = vpop.f32.mrb[0].mxu0
        %v2433 = vadd.f32 %v2289, %v2432
        %v2434 = vpop.f32.mrb[0].mxu0
        %2435 = vdwg.mxu0
        %v2436 = vand.u32 2147483647, %v2358
        %vm2437 = vcmp.le.f32.partialorder %v2436, 0.7853982
        %vm2438 = vcmp.lt.s32.totalorder %v2358, 0
        %v2439 = vand.u32 %v2358, 2139095040
        %v2440 = vshrl.u32 %v2439, 23
        %v2441 = vsub.s32 %v2440, 127
        %v2442 = vand.u32 2147483647, %v2358
        %v2443 = vand.u32 %v2442, 8388607
        %v2444 = vor.u32 %v2443, 8388608
        %v2445 = vsub.s32 0, %v2444
        %v2446 = vadd.s32 %v2441, 1
        %vm2447 = vcmp.gt.s32.totalorder %v2446, 0
        %v2448 = vsel %vm2447, %v2446, 0
        %v2449 = vshrl.u32 %v2448, 5
        %v2450 = vand.u32 %v2448, 31
        %v2451 = vsub.s32 32, %v2450
        %v2452 = vshrl.u32 683565275, %v2451
        %v2453 = vshll.u32 683565275, %v2450
        %v2454 = vshrl.u32 2475754826, %v2451
        %v2455 = vor.u32 %v2453, %v2454
        %v2456 = vshll.u32 2475754826, %v2450
        %v2457 = vshrl.u32 2131351028, %v2451
        %v2458 = vor.u32 %v2456, %v2457
        %v2459 = vshll.u32 2131351028, %v2450
        %v2460 = vshrl.u32 2102212464, %v2451
        %v2461 = vor.u32 %v2459, %v2460
        %v2462 = vshll.u32 2102212464, %v2450
        %v2463 = vshrl.u32 920167782, %v2451
        %v2464 = vor.u32 %v2462, %v2463
        %v2465 = vshll.u32 920167782, %v2450
        %v2466 = vshrl.u32 1326507024, %v2451
        %v2467 = vor.u32 %v2465, %v2466
        %vm2468 = vcmp.lt.s32.totalorder %v2449, 1
        %vm2469 = vcmp.lt.s32.totalorder %v2449, 2
        %vm2470 = vcmp.lt.s32.totalorder %v2449, 3
        %vm2471 = vcmp.lt.s32.totalorder %v2449, 4
        %v2472 = vsel %vm2468, %v2452, %v2455
        %v2473 = vsel %vm2471, %v2461, 2102212464
        %v2474 = vsel %vm2470, %v2458, %v2473
        %v2475 = vsel %vm2469, %v2472, %v2474
        %v2476 = vsel %vm2468, %v2455, %v2458
        %v2477 = vsel %vm2471, %v2464, 920167782
        %v2478 = vsel %vm2470, %v2461, %v2477
        %v2479 = vsel %vm2469, %v2476, %v2478
        %v2480 = vsel %vm2468, %v2458, %v2461
        %v2481 = vsel %vm2471, %v2467, 1326507024
        %v2482 = vsel %vm2470, %v2464, %v2481
        %v2483 = vsel %vm2469, %v2480, %v2482
        %v2484 = vshll.u32 %v2444, 8
        %v2485 = vmul.u32.u64.compose %v2484, %v2483
        %v2486 = vextract.low.u32 %v2485
        %v2487 = vextract.high.u32 %v2485
        %v2488 = vmul.u32.u64.compose %v2484, %v2479
        %v2489 = vextract.low.u32 %v2488
        %v2490 = vextract.high.u32 %v2488
        %v2491 = vmul.u32 %v2484, %v2475
        %v2492 = vadd.s32 %v2487, %v2489
        %vm2493 = vc.u32 %v2487, %v2489
        %v2494 = vadd.s32 %v2490, 1
        %v2495 = vsel %vm2493, %v2494, %v2490
        %v2496 = vadd.s32 %v2491, %v2495
        %v2497 = vadd.s32 %v2496, 536870912
        %v2498 = vshrl.u32 %v2497, 30
        %v2499 = vshll.u32 %v2498, 30
        %v2500 = vsub.s32 %v2496, %v2499
        %vm2501 = vcmp.lt.s32.totalorder %v2500, 0
        %v2502 = vsub.s32 0, %v2500
        %v2503 = vsel %vm2501, %v2502, %v2500
        %v2504 = vclz %v2503
        %v2505 = vsub.s32 %v2504, 2
        %vm2506 = vcmp.gt.s32.totalorder 0, %v2505
        %v2507 = vsel %vm2506, 0, %v2505
        %v2508 = vsub.s32 32, %v2507
        %v2509 = vshll.u32 %v2500, %v2507
        %v2510 = vshrl.u32 %v2492, %v2508
        %v2511 = vor.u32 %v2509, %v2510
        %v2512 = vsub.s32 4294967266, %v2507
        %v2513 = vadd.s32 %v2512, 127
        %v2514 = vshll.u32 %v2513, 23
        %v2515 = vor.u32 4788187, %v2514
        %v2516 = vand.u32 2147483647, %v2515
        %v2518 = vcvt.s32.f32 %v2511
        %v2519 = vmul.f32 %v2518, %v2516
        %v2520 = vxor.u32 %v2519, 2147483648
        %v2521 = vsel %vm2438, %v2520, %v2519
        %v2522 = vsub.s32 4, %v2498
        %v2523 = vsel %vm2438, %v2522, %v2498
        %v2524 = vsel %vm2437, %v2358, %v2521
        %v2525 = vsel %vm2437, 0, %v2523
        %v2526 = vcosq.f32.pop %v2524
        %v2527 = vsinq.f32.pop %v2524
        %vm2528 = vweird.f32 %v2358
        %v2529 = vadd.s32 %v2525, 3
        %v2530 = vand.u32 %v2529, 3
        %vm2531 = vcmp.lt.s32.totalorder %v2530, 2
        %vm2532 = vcmp.eq.s32.totalorder %v2530, 0
        %v2533 = vxor.u32 %v2527, 2147483648
        %v2534 = vsel %vm2532, %v2526, %v2533
        %vm2535 = vcmp.eq.s32.totalorder %v2530, 2
        %v2536 = vxor.u32 %v2526, 2147483648
        %v2537 = vsel %vm2535, %v2536, %v2527
        %v2538 = vsel %vm2531, %v2534, %v2537
        %v2539 = vsel %vm2528, nan, %v2538
        %v2540 = vand.u32 2147483647, %v2363
        %vm2541 = vcmp.le.f32.partialorder %v2540, 0.7853982
        %vm2542 = vcmp.lt.s32.totalorder %v2363, 0
        %v2543 = vand.u32 %v2363, 2139095040
        %v2544 = vshrl.u32 %v2543, 23
        %v2545 = vsub.s32 %v2544, 127
        %v2546 = vand.u32 2147483647, %v2363
        %v2547 = vand.u32 %v2546, 8388607
        %v2548 = vor.u32 %v2547, 8388608
        %v2549 = vsub.s32 0, %v2548
        %v2550 = vadd.s32 %v2545, 1
        %vm2551 = vcmp.gt.s32.totalorder %v2550, 0
        %v2552 = vsel %vm2551, %v2550, 0
        %v2553 = vshrl.u32 %v2552, 5
        %v2554 = vand.u32 %v2552, 31
        %v2555 = vsub.s32 32, %v2554
        %v2556 = vshrl.u32 683565275, %v2555
        %v2557 = vshll.u32 683565275, %v2554
        %v2558 = vshrl.u32 2475754826, %v2555
        %v2559 = vor.u32 %v2557, %v2558
        %v2560 = vshll.u32 2475754826, %v2554
        %v2561 = vshrl.u32 2131351028, %v2555
        %v2562 = vor.u32 %v2560, %v2561
        %v2563 = vshll.u32 2131351028, %v2554
        %v2564 = vshrl.u32 2102212464, %v2555
        %v2565 = vor.u32 %v2563, %v2564
        %v2566 = vshll.u32 2102212464, %v2554
        %v2567 = vshrl.u32 920167782, %v2555
        %v2568 = vor.u32 %v2566, %v2567
        %v2569 = vshll.u32 920167782, %v2554
        %v2570 = vshrl.u32 1326507024, %v2555
        %v2571 = vor.u32 %v2569, %v2570
        %vm2572 = vcmp.lt.s32.totalorder %v2553, 1
        %vm2573 = vcmp.lt.s32.totalorder %v2553, 2
        %vm2574 = vcmp.lt.s32.totalorder %v2553, 3
        %vm2575 = vcmp.lt.s32.totalorder %v2553, 4
        %v2576 = vsel %vm2572, %v2556, %v2559
        %v2577 = vsel %vm2575, %v2565, 2102212464
        %v2578 = vsel %vm2574, %v2562, %v2577
        %v2579 = vsel %vm2573, %v2576, %v2578
        %v2580 = vsel %vm2572, %v2559, %v2562
        %v2581 = vsel %vm2575, %v2568, 920167782
        %v2582 = vsel %vm2574, %v2565, %v2581
        %v2583 = vsel %vm2573, %v2580, %v2582
        %v2584 = vsel %vm2572, %v2562, %v2565
        %v2585 = vsel %vm2575, %v2571, 1326507024
        %v2586 = vsel %vm2574, %v2568, %v2585
        %v2587 = vsel %vm2573, %v2584, %v2586
        %v2588 = vshll.u32 %v2548, 8
        %v2589 = vmul.u32.u64.compose %v2588, %v2587
        %v2590 = vextract.low.u32 %v2589
        %v2591 = vextract.high.u32 %v2589
        %v2592 = vmul.u32.u64.compose %v2588, %v2583
        %v2593 = vextract.low.u32 %v2592
        %v2594 = vextract.high.u32 %v2592
        %v2595 = vmul.u32 %v2588, %v2579
        %v2596 = vadd.s32 %v2591, %v2593
        %vm2597 = vc.u32 %v2591, %v2593
        %v2598 = vadd.s32 %v2594, 1
        %v2599 = vsel %vm2597, %v2598, %v2594
        %v2600 = vadd.s32 %v2595, %v2599
        %v2601 = vadd.s32 %v2600, 536870912
        %v2602 = vshrl.u32 %v2601, 30
        %v2603 = vshll.u32 %v2602, 30
        %v2604 = vsub.s32 %v2600, %v2603
        %vm2605 = vcmp.lt.s32.totalorder %v2604, 0
        %v2606 = vsub.s32 0, %v2604
        %v2607 = vsel %vm2605, %v2606, %v2604
        %v2608 = vclz %v2607
        %v2609 = vsub.s32 %v2608, 2
        %vm2610 = vcmp.gt.s32.totalorder 0, %v2609
        %v2611 = vsel %vm2610, 0, %v2609
        %v2612 = vsub.s32 32, %v2611
        %v2613 = vshll.u32 %v2604, %v2611
        %v2614 = vshrl.u32 %v2596, %v2612
        %v2615 = vor.u32 %v2613, %v2614
        %v2616 = vsub.s32 4294967266, %v2611
        %v2617 = vadd.s32 %v2616, 127
        %v2618 = vshll.u32 %v2617, 23
        %v2619 = vor.u32 4788187, %v2618
        %v2620 = vand.u32 2147483647, %v2619
        %v2622 = vcvt.s32.f32 %v2615
        %v2623 = vmul.f32 %v2622, %v2620
        %v2624 = vxor.u32 %v2623, 2147483648
        %v2625 = vsel %vm2542, %v2624, %v2623
        %v2626 = vsub.s32 4, %v2602
        %v2627 = vsel %vm2542, %v2626, %v2602
        %v2628 = vsel %vm2541, %v2363, %v2625
        %v2629 = vsel %vm2541, 0, %v2627
        %v2630 = vcosq.f32.pop %v2628
        %v2631 = vsinq.f32.pop %v2628
        %vm2632 = vweird.f32 %v2363
        %v2633 = vadd.s32 %v2629, 3
        %v2634 = vand.u32 %v2633, 3
        %vm2635 = vcmp.lt.s32.totalorder %v2634, 2
        %vm2636 = vcmp.eq.s32.totalorder %v2634, 0
        %v2637 = vxor.u32 %v2631, 2147483648
        %v2638 = vsel %vm2636, %v2630, %v2637
        %vm2639 = vcmp.eq.s32.totalorder %v2634, 2
        %v2640 = vxor.u32 %v2630, 2147483648
        %v2641 = vsel %vm2639, %v2640, %v2631
        %v2642 = vsel %vm2635, %v2638, %v2641
        %v2643 = vsel %vm2632, nan, %v2642
        %v2644 = vand.u32 2147483647, %v2368
        %vm2645 = vcmp.le.f32.partialorder %v2644, 0.7853982
        %vm2646 = vcmp.lt.s32.totalorder %v2368, 0
        %v2647 = vand.u32 %v2368, 2139095040
        %v2648 = vshrl.u32 %v2647, 23
        %v2649 = vsub.s32 %v2648, 127
        %v2650 = vand.u32 2147483647, %v2368
        %v2651 = vand.u32 %v2650, 8388607
        %v2652 = vor.u32 %v2651, 8388608
        %v2653 = vsub.s32 0, %v2652
        %v2654 = vadd.s32 %v2649, 1
        %vm2655 = vcmp.gt.s32.totalorder %v2654, 0
        %v2656 = vsel %vm2655, %v2654, 0
        %v2657 = vshrl.u32 %v2656, 5
        %v2658 = vand.u32 %v2656, 31
        %v2659 = vsub.s32 32, %v2658
        %v2660 = vshrl.u32 683565275, %v2659
        %v2661 = vshll.u32 683565275, %v2658
        %v2662 = vshrl.u32 2475754826, %v2659
        %v2663 = vor.u32 %v2661, %v2662
        %v2664 = vshll.u32 2475754826, %v2658
        %v2665 = vshrl.u32 2131351028, %v2659
        %v2666 = vor.u32 %v2664, %v2665
        %v2667 = vshll.u32 2131351028, %v2658
        %v2668 = vshrl.u32 2102212464, %v2659
        %v2669 = vor.u32 %v2667, %v2668
        %v2670 = vshll.u32 2102212464, %v2658
        %v2671 = vshrl.u32 920167782, %v2659
        %v2672 = vor.u32 %v2670, %v2671
        %v2673 = vshll.u32 920167782, %v2658
        %v2674 = vshrl.u32 1326507024, %v2659
        %v2675 = vor.u32 %v2673, %v2674
        %vm2676 = vcmp.lt.s32.totalorder %v2657, 1
        %vm2677 = vcmp.lt.s32.totalorder %v2657, 2
        %vm2678 = vcmp.lt.s32.totalorder %v2657, 3
        %vm2679 = vcmp.lt.s32.totalorder %v2657, 4
        %v2680 = vsel %vm2676, %v2660, %v2663
        %v2681 = vsel %vm2679, %v2669, 2102212464
        %v2682 = vsel %vm2678, %v2666, %v2681
        %v2683 = vsel %vm2677, %v2680, %v2682
        %v2684 = vsel %vm2676, %v2663, %v2666
        %v2685 = vsel %vm2679, %v2672, 920167782
        %v2686 = vsel %vm2678, %v2669, %v2685
        %v2687 = vsel %vm2677, %v2684, %v2686
        %v2688 = vsel %vm2676, %v2666, %v2669
        %v2689 = vsel %vm2679, %v2675, 1326507024
        %v2690 = vsel %vm2678, %v2672, %v2689
        %v2691 = vsel %vm2677, %v2688, %v2690
        %v2692 = vshll.u32 %v2652, 8
        %v2693 = vmul.u32.u64.compose %v2692, %v2691
        %v2694 = vextract.low.u32 %v2693
        %v2695 = vextract.high.u32 %v2693
        %v2696 = vmul.u32.u64.compose %v2692, %v2687
        %v2697 = vextract.low.u32 %v2696
        %v2698 = vextract.high.u32 %v2696
        %v2699 = vmul.u32 %v2692, %v2683
        %v2700 = vadd.s32 %v2695, %v2697
        %vm2701 = vc.u32 %v2695, %v2697
        %v2702 = vadd.s32 %v2698, 1
        %v2703 = vsel %vm2701, %v2702, %v2698
        %v2704 = vadd.s32 %v2699, %v2703
        %v2705 = vadd.s32 %v2704, 536870912
        %v2706 = vshrl.u32 %v2705, 30
        %v2707 = vshll.u32 %v2706, 30
        %v2708 = vsub.s32 %v2704, %v2707
        %vm2709 = vcmp.lt.s32.totalorder %v2708, 0
        %v2710 = vsub.s32 0, %v2708
        %v2711 = vsel %vm2709, %v2710, %v2708
        %v2712 = vclz %v2711
        %v2713 = vsub.s32 %v2712, 2
        %vm2714 = vcmp.gt.s32.totalorder 0, %v2713
        %v2715 = vsel %vm2714, 0, %v2713
        %v2716 = vsub.s32 32, %v2715
        %v2717 = vshll.u32 %v2708, %v2715
        %v2718 = vshrl.u32 %v2700, %v2716
        %v2719 = vor.u32 %v2717, %v2718
        %v2720 = vsub.s32 4294967266, %v2715
        %v2721 = vadd.s32 %v2720, 127
        %v2722 = vshll.u32 %v2721, 23
        %v2723 = vor.u32 4788187, %v2722
        %v2724 = vand.u32 2147483647, %v2723
        %v2726 = vcvt.s32.f32 %v2719
        %v2727 = vmul.f32 %v2726, %v2724
        %v2728 = vxor.u32 %v2727, 2147483648
        %v2729 = vsel %vm2646, %v2728, %v2727
        %v2730 = vsub.s32 4, %v2706
        %v2731 = vsel %vm2646, %v2730, %v2706
        %v2732 = vsel %vm2645, %v2368, %v2729
        %v2733 = vsel %vm2645, 0, %v2731
        %v2734 = vcosq.f32.pop %v2732
        %v2735 = vsinq.f32.pop %v2732
        %vm2736 = vweird.f32 %v2368
        %v2737 = vadd.s32 %v2733, 3
        %v2738 = vand.u32 %v2737, 3
        %vm2739 = vcmp.lt.s32.totalorder %v2738, 2
        %vm2740 = vcmp.eq.s32.totalorder %v2738, 0
        %v2741 = vxor.u32 %v2735, 2147483648
        %v2742 = vsel %vm2740, %v2734, %v2741
        %vm2743 = vcmp.eq.s32.totalorder %v2738, 2
        %v2744 = vxor.u32 %v2734, 2147483648
        %v2745 = vsel %vm2743, %v2744, %v2735
        %v2746 = vsel %vm2739, %v2742, %v2745
        %v2747 = vsel %vm2736, nan, %v2746
        %v2748 = vand.u32 2147483647, %v2373
        %vm2749 = vcmp.le.f32.partialorder %v2748, 0.7853982
        %vm2750 = vcmp.lt.s32.totalorder %v2373, 0
        %v2751 = vand.u32 %v2373, 2139095040
        %v2752 = vshrl.u32 %v2751, 23
        %v2753 = vsub.s32 %v2752, 127
        %v2754 = vand.u32 2147483647, %v2373
        %v2755 = vand.u32 %v2754, 8388607
        %v2756 = vor.u32 %v2755, 8388608
        %v2757 = vsub.s32 0, %v2756
        %v2758 = vadd.s32 %v2753, 1
        %vm2759 = vcmp.gt.s32.totalorder %v2758, 0
        %v2760 = vsel %vm2759, %v2758, 0
        %v2761 = vshrl.u32 %v2760, 5
        %v2762 = vand.u32 %v2760, 31
        %v2763 = vsub.s32 32, %v2762
        %v2764 = vshrl.u32 683565275, %v2763
        %v2765 = vshll.u32 683565275, %v2762
        %v2766 = vshrl.u32 2475754826, %v2763
        %v2767 = vor.u32 %v2765, %v2766
        %v2768 = vshll.u32 2475754826, %v2762
        %v2769 = vshrl.u32 2131351028, %v2763
        %v2770 = vor.u32 %v2768, %v2769
        %v2771 = vshll.u32 2131351028, %v2762
        %v2772 = vshrl.u32 2102212464, %v2763
        %v2773 = vor.u32 %v2771, %v2772
        %v2774 = vshll.u32 2102212464, %v2762
        %v2775 = vshrl.u32 920167782, %v2763
        %v2776 = vor.u32 %v2774, %v2775
        %v2777 = vshll.u32 920167782, %v2762
        %v2778 = vshrl.u32 1326507024, %v2763
        %v2779 = vor.u32 %v2777, %v2778
        %vm2780 = vcmp.lt.s32.totalorder %v2761, 1
        %vm2781 = vcmp.lt.s32.totalorder %v2761, 2
        %vm2782 = vcmp.lt.s32.totalorder %v2761, 3
        %vm2783 = vcmp.lt.s32.totalorder %v2761, 4
        %v2784 = vsel %vm2780, %v2764, %v2767
        %v2785 = vsel %vm2783, %v2773, 2102212464
        %v2786 = vsel %vm2782, %v2770, %v2785
        %v2787 = vsel %vm2781, %v2784, %v2786
        %v2788 = vsel %vm2780, %v2767, %v2770
        %v2789 = vsel %vm2783, %v2776, 920167782
        %v2790 = vsel %vm2782, %v2773, %v2789
        %v2791 = vsel %vm2781, %v2788, %v2790
        %v2792 = vsel %vm2780, %v2770, %v2773
        %v2793 = vsel %vm2783, %v2779, 1326507024
        %v2794 = vsel %vm2782, %v2776, %v2793
        %v2795 = vsel %vm2781, %v2792, %v2794
        %v2796 = vshll.u32 %v2756, 8
        %v2797 = vmul.u32.u64.compose %v2796, %v2795
        %v2798 = vextract.low.u32 %v2797
        %v2799 = vextract.high.u32 %v2797
        %v2800 = vmul.u32.u64.compose %v2796, %v2791
        %v2801 = vextract.low.u32 %v2800
        %v2802 = vextract.high.u32 %v2800
        %v2803 = vmul.u32 %v2796, %v2787
        %v2804 = vadd.s32 %v2799, %v2801
        %vm2805 = vc.u32 %v2799, %v2801
        %v2806 = vadd.s32 %v2802, 1
        %v2807 = vsel %vm2805, %v2806, %v2802
        %v2808 = vadd.s32 %v2803, %v2807
        %v2809 = vadd.s32 %v2808, 536870912
        %v2810 = vshrl.u32 %v2809, 30
        %v2811 = vshll.u32 %v2810, 30
        %v2812 = vsub.s32 %v2808, %v2811
        %vm2813 = vcmp.lt.s32.totalorder %v2812, 0
        %v2814 = vsub.s32 0, %v2812
        %v2815 = vsel %vm2813, %v2814, %v2812
        %v2816 = vclz %v2815
        %v2817 = vsub.s32 %v2816, 2
        %vm2818 = vcmp.gt.s32.totalorder 0, %v2817
        %v2819 = vsel %vm2818, 0, %v2817
        %v2820 = vsub.s32 32, %v2819
        %v2821 = vshll.u32 %v2812, %v2819
        %v2822 = vshrl.u32 %v2804, %v2820
        %v2823 = vor.u32 %v2821, %v2822
        %v2824 = vsub.s32 4294967266, %v2819
        %v2825 = vadd.s32 %v2824, 127
        %v2826 = vshll.u32 %v2825, 23
        %v2827 = vor.u32 4788187, %v2826
        %v2828 = vand.u32 2147483647, %v2827
        %v2830 = vcvt.s32.f32 %v2823
        %v2831 = vmul.f32 %v2830, %v2828
        %v2832 = vxor.u32 %v2831, 2147483648
        %v2833 = vsel %vm2750, %v2832, %v2831
        %v2834 = vsub.s32 4, %v2810
        %v2835 = vsel %vm2750, %v2834, %v2810
        %v2836 = vsel %vm2749, %v2373, %v2833
        %v2837 = vsel %vm2749, 0, %v2835
        %v2838 = vcosq.f32.pop %v2836
        %v2839 = vsinq.f32.pop %v2836
        %vm2840 = vweird.f32 %v2373
        %v2841 = vadd.s32 %v2837, 3
        %v2842 = vand.u32 %v2841, 3
        %vm2843 = vcmp.lt.s32.totalorder %v2842, 2
        %vm2844 = vcmp.eq.s32.totalorder %v2842, 0
        %v2845 = vxor.u32 %v2839, 2147483648
        %v2846 = vsel %vm2844, %v2838, %v2845
        %vm2847 = vcmp.eq.s32.totalorder %v2842, 2
        %v2848 = vxor.u32 %v2838, 2147483648
        %v2849 = vsel %vm2847, %v2848, %v2839
        %v2850 = vsel %vm2843, %v2846, %v2849
        %v2851 = vsel %vm2840, nan, %v2850
        %v2852 = vand.u32 2147483647, %v2378
        %vm2853 = vcmp.le.f32.partialorder %v2852, 0.7853982
        %vm2854 = vcmp.lt.s32.totalorder %v2378, 0
        %v2855 = vand.u32 %v2378, 2139095040
        %v2856 = vshrl.u32 %v2855, 23
        %v2857 = vsub.s32 %v2856, 127
        %v2858 = vand.u32 2147483647, %v2378
        %v2859 = vand.u32 %v2858, 8388607
        %v2860 = vor.u32 %v2859, 8388608
        %v2861 = vsub.s32 0, %v2860
        %v2862 = vadd.s32 %v2857, 1
        %vm2863 = vcmp.gt.s32.totalorder %v2862, 0
        %v2864 = vsel %vm2863, %v2862, 0
        %v2865 = vshrl.u32 %v2864, 5
        %v2866 = vand.u32 %v2864, 31
        %v2867 = vsub.s32 32, %v2866
        %v2868 = vshrl.u32 683565275, %v2867
        %v2869 = vshll.u32 683565275, %v2866
        %v2870 = vshrl.u32 2475754826, %v2867
        %v2871 = vor.u32 %v2869, %v2870
        %v2872 = vshll.u32 2475754826, %v2866
        %v2873 = vshrl.u32 2131351028, %v2867
        %v2874 = vor.u32 %v2872, %v2873
        %v2875 = vshll.u32 2131351028, %v2866
        %v2876 = vshrl.u32 2102212464, %v2867
        %v2877 = vor.u32 %v2875, %v2876
        %v2878 = vshll.u32 2102212464, %v2866
        %v2879 = vshrl.u32 920167782, %v2867
        %v2880 = vor.u32 %v2878, %v2879
        %v2881 = vshll.u32 920167782, %v2866
        %v2882 = vshrl.u32 1326507024, %v2867
        %v2883 = vor.u32 %v2881, %v2882
        %vm2884 = vcmp.lt.s32.totalorder %v2865, 1
        %vm2885 = vcmp.lt.s32.totalorder %v2865, 2
        %vm2886 = vcmp.lt.s32.totalorder %v2865, 3
        %vm2887 = vcmp.lt.s32.totalorder %v2865, 4
        %v2888 = vsel %vm2884, %v2868, %v2871
        %v2889 = vsel %vm2887, %v2877, 2102212464
        %v2890 = vsel %vm2886, %v2874, %v2889
        %v2891 = vsel %vm2885, %v2888, %v2890
        %v2892 = vsel %vm2884, %v2871, %v2874
        %v2893 = vsel %vm2887, %v2880, 920167782
        %v2894 = vsel %vm2886, %v2877, %v2893
        %v2895 = vsel %vm2885, %v2892, %v2894
        %v2896 = vsel %vm2884, %v2874, %v2877
        %v2897 = vsel %vm2887, %v2883, 1326507024
        %v2898 = vsel %vm2886, %v2880, %v2897
        %v2899 = vsel %vm2885, %v2896, %v2898
        %v2900 = vshll.u32 %v2860, 8
        %v2901 = vmul.u32.u64.compose %v2900, %v2899
        %v2902 = vextract.low.u32 %v2901
        %v2903 = vextract.high.u32 %v2901
        %v2904 = vmul.u32.u64.compose %v2900, %v2895
        %v2905 = vextract.low.u32 %v2904
        %v2906 = vextract.high.u32 %v2904
        %v2907 = vmul.u32 %v2900, %v2891
        %v2908 = vadd.s32 %v2903, %v2905
        %vm2909 = vc.u32 %v2903, %v2905
        %v2910 = vadd.s32 %v2906, 1
        %v2911 = vsel %vm2909, %v2910, %v2906
        %v2912 = vadd.s32 %v2907, %v2911
        %v2913 = vadd.s32 %v2912, 536870912
        %v2914 = vshrl.u32 %v2913, 30
        %v2915 = vshll.u32 %v2914, 30
        %v2916 = vsub.s32 %v2912, %v2915
        %vm2917 = vcmp.lt.s32.totalorder %v2916, 0
        %v2918 = vsub.s32 0, %v2916
        %v2919 = vsel %vm2917, %v2918, %v2916
        %v2920 = vclz %v2919
        %v2921 = vsub.s32 %v2920, 2
        %vm2922 = vcmp.gt.s32.totalorder 0, %v2921
        %v2923 = vsel %vm2922, 0, %v2921
        %v2924 = vsub.s32 32, %v2923
        %v2925 = vshll.u32 %v2916, %v2923
        %v2926 = vshrl.u32 %v2908, %v2924
        %v2927 = vor.u32 %v2925, %v2926
        %v2928 = vsub.s32 4294967266, %v2923
        %v2929 = vadd.s32 %v2928, 127
        %v2930 = vshll.u32 %v2929, 23
        %v2931 = vor.u32 4788187, %v2930
        %v2932 = vand.u32 2147483647, %v2931
        %v2934 = vcvt.s32.f32 %v2927
        %v2935 = vmul.f32 %v2934, %v2932
        %v2936 = vxor.u32 %v2935, 2147483648
        %v2937 = vsel %vm2854, %v2936, %v2935
        %v2938 = vsub.s32 4, %v2914
        %v2939 = vsel %vm2854, %v2938, %v2914
        %v2940 = vsel %vm2853, %v2378, %v2937
        %v2941 = vsel %vm2853, 0, %v2939
        %v2942 = vcosq.f32.pop %v2940
        %v2943 = vsinq.f32.pop %v2940
        %vm2944 = vweird.f32 %v2378
        %v2945 = vadd.s32 %v2941, 3
        %v2946 = vand.u32 %v2945, 3
        %vm2947 = vcmp.lt.s32.totalorder %v2946, 2
        %vm2948 = vcmp.eq.s32.totalorder %v2946, 0
        %v2949 = vxor.u32 %v2943, 2147483648
        %v2950 = vsel %vm2948, %v2942, %v2949
        %vm2951 = vcmp.eq.s32.totalorder %v2946, 2
        %v2952 = vxor.u32 %v2942, 2147483648
        %v2953 = vsel %vm2951, %v2952, %v2943
        %v2954 = vsel %vm2947, %v2950, %v2953
        %v2955 = vsel %vm2944, nan, %v2954
        %v2956 = vand.u32 2147483647, %v2383
        %vm2957 = vcmp.le.f32.partialorder %v2956, 0.7853982
        %vm2958 = vcmp.lt.s32.totalorder %v2383, 0
        %v2959 = vand.u32 %v2383, 2139095040
        %v2960 = vshrl.u32 %v2959, 23
        %v2961 = vsub.s32 %v2960, 127
        %v2962 = vand.u32 2147483647, %v2383
        %v2963 = vand.u32 %v2962, 8388607
        %v2964 = vor.u32 %v2963, 8388608
        %v2965 = vsub.s32 0, %v2964
        %v2966 = vadd.s32 %v2961, 1
        %vm2967 = vcmp.gt.s32.totalorder %v2966, 0
        %v2968 = vsel %vm2967, %v2966, 0
        %v2969 = vshrl.u32 %v2968, 5
        %v2970 = vand.u32 %v2968, 31
        %v2971 = vsub.s32 32, %v2970
        %v2972 = vshrl.u32 683565275, %v2971
        %v2973 = vshll.u32 683565275, %v2970
        %v2974 = vshrl.u32 2475754826, %v2971
        %v2975 = vor.u32 %v2973, %v2974
        %v2976 = vshll.u32 2475754826, %v2970
        %v2977 = vshrl.u32 2131351028, %v2971
        %v2978 = vor.u32 %v2976, %v2977
        %v2979 = vshll.u32 2131351028, %v2970
        %v2980 = vshrl.u32 2102212464, %v2971
        %v2981 = vor.u32 %v2979, %v2980
        %v2982 = vshll.u32 2102212464, %v2970
        %v2983 = vshrl.u32 920167782, %v2971
        %v2984 = vor.u32 %v2982, %v2983
        %v2985 = vshll.u32 920167782, %v2970
        %v2986 = vshrl.u32 1326507024, %v2971
        %v2987 = vor.u32 %v2985, %v2986
        %vm2988 = vcmp.lt.s32.totalorder %v2969, 1
        %vm2989 = vcmp.lt.s32.totalorder %v2969, 2
        %vm2990 = vcmp.lt.s32.totalorder %v2969, 3
        %vm2991 = vcmp.lt.s32.totalorder %v2969, 4
        %v2992 = vsel %vm2988, %v2972, %v2975
        %v2993 = vsel %vm2991, %v2981, 2102212464
        %v2994 = vsel %vm2990, %v2978, %v2993
        %v2995 = vsel %vm2989, %v2992, %v2994
        %v2996 = vsel %vm2988, %v2975, %v2978
        %v2997 = vsel %vm2991, %v2984, 920167782
        %v2998 = vsel %vm2990, %v2981, %v2997
        %v2999 = vsel %vm2989, %v2996, %v2998
        %v3000 = vsel %vm2988, %v2978, %v2981
        %v3001 = vsel %vm2991, %v2987, 1326507024
        %v3002 = vsel %vm2990, %v2984, %v3001
        %v3003 = vsel %vm2989, %v3000, %v3002
        %v3004 = vshll.u32 %v2964, 8
        %v3005 = vmul.u32.u64.compose %v3004, %v3003
        %v3006 = vextract.low.u32 %v3005
        %v3007 = vextract.high.u32 %v3005
        %v3008 = vmul.u32.u64.compose %v3004, %v2999
        %v3009 = vextract.low.u32 %v3008
        %v3010 = vextract.high.u32 %v3008
        %v3011 = vmul.u32 %v3004, %v2995
        %v3012 = vadd.s32 %v3007, %v3009
        %vm3013 = vc.u32 %v3007, %v3009
        %v3014 = vadd.s32 %v3010, 1
        %v3015 = vsel %vm3013, %v3014, %v3010
        %v3016 = vadd.s32 %v3011, %v3015
        %v3017 = vadd.s32 %v3016, 536870912
        %v3018 = vshrl.u32 %v3017, 30
        %v3019 = vshll.u32 %v3018, 30
        %v3020 = vsub.s32 %v3016, %v3019
        %vm3021 = vcmp.lt.s32.totalorder %v3020, 0
        %v3022 = vsub.s32 0, %v3020
        %v3023 = vsel %vm3021, %v3022, %v3020
        %v3024 = vclz %v3023
        %v3025 = vsub.s32 %v3024, 2
        %vm3026 = vcmp.gt.s32.totalorder 0, %v3025
        %v3027 = vsel %vm3026, 0, %v3025
        %v3028 = vsub.s32 32, %v3027
        %v3029 = vshll.u32 %v3020, %v3027
        %v3030 = vshrl.u32 %v3012, %v3028
        %v3031 = vor.u32 %v3029, %v3030
        %v3032 = vsub.s32 4294967266, %v3027
        %v3033 = vadd.s32 %v3032, 127
        %v3034 = vshll.u32 %v3033, 23
        %v3035 = vor.u32 4788187, %v3034
        %v3036 = vand.u32 2147483647, %v3035
        %v3038 = vcvt.s32.f32 %v3031
        %v3039 = vmul.f32 %v3038, %v3036
        %v3040 = vxor.u32 %v3039, 2147483648
        %v3041 = vsel %vm2958, %v3040, %v3039
        %v3042 = vsub.s32 4, %v3018
        %v3043 = vsel %vm2958, %v3042, %v3018
        %v3044 = vsel %vm2957, %v2383, %v3041
        %v3045 = vsel %vm2957, 0, %v3043
        %v3046 = vcosq.f32.pop %v3044
        %v3047 = vsinq.f32.pop %v3044
        %vm3048 = vweird.f32 %v2383
        %v3049 = vadd.s32 %v3045, 3
        %v3050 = vand.u32 %v3049, 3
        %vm3051 = vcmp.lt.s32.totalorder %v3050, 2
        %vm3052 = vcmp.eq.s32.totalorder %v3050, 0
        %v3053 = vxor.u32 %v3047, 2147483648
        %v3054 = vsel %vm3052, %v3046, %v3053
        %vm3055 = vcmp.eq.s32.totalorder %v3050, 2
        %v3056 = vxor.u32 %v3046, 2147483648
        %v3057 = vsel %vm3055, %v3056, %v3047
        %v3058 = vsel %vm3051, %v3054, %v3057
        %v3059 = vsel %vm3048, nan, %v3058
        %v3060 = vand.u32 2147483647, %v2388
        %vm3061 = vcmp.le.f32.partialorder %v3060, 0.7853982
        %vm3062 = vcmp.lt.s32.totalorder %v2388, 0
        %v3063 = vand.u32 %v2388, 2139095040
        %v3064 = vshrl.u32 %v3063, 23
        %v3065 = vsub.s32 %v3064, 127
        %v3066 = vand.u32 2147483647, %v2388
        %v3067 = vand.u32 %v3066, 8388607
        %v3068 = vor.u32 %v3067, 8388608
        %v3069 = vsub.s32 0, %v3068
        %v3070 = vadd.s32 %v3065, 1
        %vm3071 = vcmp.gt.s32.totalorder %v3070, 0
        %v3072 = vsel %vm3071, %v3070, 0
        %v3073 = vshrl.u32 %v3072, 5
        %v3074 = vand.u32 %v3072, 31
        %v3075 = vsub.s32 32, %v3074
        %v3076 = vshrl.u32 683565275, %v3075
        %v3077 = vshll.u32 683565275, %v3074
        %v3078 = vshrl.u32 2475754826, %v3075
        %v3079 = vor.u32 %v3077, %v3078
        %v3080 = vshll.u32 2475754826, %v3074
        %v3081 = vshrl.u32 2131351028, %v3075
        %v3082 = vor.u32 %v3080, %v3081
        %v3083 = vshll.u32 2131351028, %v3074
        %v3084 = vshrl.u32 2102212464, %v3075
        %v3085 = vor.u32 %v3083, %v3084
        %v3086 = vshll.u32 2102212464, %v3074
        %v3087 = vshrl.u32 920167782, %v3075
        %v3088 = vor.u32 %v3086, %v3087
        %v3089 = vshll.u32 920167782, %v3074
        %v3090 = vshrl.u32 1326507024, %v3075
        %v3091 = vor.u32 %v3089, %v3090
        %vm3092 = vcmp.lt.s32.totalorder %v3073, 1
        %vm3093 = vcmp.lt.s32.totalorder %v3073, 2
        %vm3094 = vcmp.lt.s32.totalorder %v3073, 3
        %vm3095 = vcmp.lt.s32.totalorder %v3073, 4
        %v3096 = vsel %vm3092, %v3076, %v3079
        %v3097 = vsel %vm3095, %v3085, 2102212464
        %v3098 = vsel %vm3094, %v3082, %v3097
        %v3099 = vsel %vm3093, %v3096, %v3098
        %v3100 = vsel %vm3092, %v3079, %v3082
        %v3101 = vsel %vm3095, %v3088, 920167782
        %v3102 = vsel %vm3094, %v3085, %v3101
        %v3103 = vsel %vm3093, %v3100, %v3102
        %v3104 = vsel %vm3092, %v3082, %v3085
        %v3105 = vsel %vm3095, %v3091, 1326507024
        %v3106 = vsel %vm3094, %v3088, %v3105
        %v3107 = vsel %vm3093, %v3104, %v3106
        %v3108 = vshll.u32 %v3068, 8
        %v3109 = vmul.u32.u64.compose %v3108, %v3107
        %v3110 = vextract.low.u32 %v3109
        %v3111 = vextract.high.u32 %v3109
        %v3112 = vmul.u32.u64.compose %v3108, %v3103
        %v3113 = vextract.low.u32 %v3112
        %v3114 = vextract.high.u32 %v3112
        %v3115 = vmul.u32 %v3108, %v3099
        %v3116 = vadd.s32 %v3111, %v3113
        %vm3117 = vc.u32 %v3111, %v3113
        %v3118 = vadd.s32 %v3114, 1
        %v3119 = vsel %vm3117, %v3118, %v3114
        %v3120 = vadd.s32 %v3115, %v3119
        %v3121 = vadd.s32 %v3120, 536870912
        %v3122 = vshrl.u32 %v3121, 30
        %v3123 = vshll.u32 %v3122, 30
        %v3124 = vsub.s32 %v3120, %v3123
        %vm3125 = vcmp.lt.s32.totalorder %v3124, 0
        %v3126 = vsub.s32 0, %v3124
        %v3127 = vsel %vm3125, %v3126, %v3124
        %v3128 = vclz %v3127
        %v3129 = vsub.s32 %v3128, 2
        %vm3130 = vcmp.gt.s32.totalorder 0, %v3129
        %v3131 = vsel %vm3130, 0, %v3129
        %v3132 = vsub.s32 32, %v3131
        %v3133 = vshll.u32 %v3124, %v3131
        %v3134 = vshrl.u32 %v3116, %v3132
        %v3135 = vor.u32 %v3133, %v3134
        %v3136 = vsub.s32 4294967266, %v3131
        %v3137 = vadd.s32 %v3136, 127
        %v3138 = vshll.u32 %v3137, 23
        %v3139 = vor.u32 4788187, %v3138
        %v3140 = vand.u32 2147483647, %v3139
        %v3142 = vcvt.s32.f32 %v3135
        %v3143 = vmul.f32 %v3142, %v3140
        %v3144 = vxor.u32 %v3143, 2147483648
        %v3145 = vsel %vm3062, %v3144, %v3143
        %v3146 = vsub.s32 4, %v3122
        %v3147 = vsel %vm3062, %v3146, %v3122
        %v3148 = vsel %vm3061, %v2388, %v3145
        %v3149 = vsel %vm3061, 0, %v3147
        %v3150 = vcosq.f32.pop %v3148
        %v3151 = vsinq.f32.pop %v3148
        %vm3152 = vweird.f32 %v2388
        %v3153 = vadd.s32 %v3149, 3
        %v3154 = vand.u32 %v3153, 3
        %vm3155 = vcmp.lt.s32.totalorder %v3154, 2
        %vm3156 = vcmp.eq.s32.totalorder %v3154, 0
        %v3157 = vxor.u32 %v3151, 2147483648
        %v3158 = vsel %vm3156, %v3150, %v3157
        %vm3159 = vcmp.eq.s32.totalorder %v3154, 2
        %v3160 = vxor.u32 %v3150, 2147483648
        %v3161 = vsel %vm3159, %v3160, %v3151
        %v3162 = vsel %vm3155, %v3158, %v3161
        %v3163 = vsel %vm3152, nan, %v3162
        %v3164 = vand.u32 2147483647, %v2393
        %vm3165 = vcmp.le.f32.partialorder %v3164, 0.7853982
        %vm3166 = vcmp.lt.s32.totalorder %v2393, 0
        %v3167 = vand.u32 %v2393, 2139095040
        %v3168 = vshrl.u32 %v3167, 23
        %v3169 = vsub.s32 %v3168, 127
        %v3170 = vand.u32 2147483647, %v2393
        %v3171 = vand.u32 %v3170, 8388607
        %v3172 = vor.u32 %v3171, 8388608
        %v3173 = vsub.s32 0, %v3172
        %v3174 = vadd.s32 %v3169, 1
        %vm3175 = vcmp.gt.s32.totalorder %v3174, 0
        %v3176 = vsel %vm3175, %v3174, 0
        %v3177 = vshrl.u32 %v3176, 5
        %v3178 = vand.u32 %v3176, 31
        %v3179 = vsub.s32 32, %v3178
        %v3180 = vshrl.u32 683565275, %v3179
        %v3181 = vshll.u32 683565275, %v3178
        %v3182 = vshrl.u32 2475754826, %v3179
        %v3183 = vor.u32 %v3181, %v3182
        %v3184 = vshll.u32 2475754826, %v3178
        %v3185 = vshrl.u32 2131351028, %v3179
        %v3186 = vor.u32 %v3184, %v3185
        %v3187 = vshll.u32 2131351028, %v3178
        %v3188 = vshrl.u32 2102212464, %v3179
        %v3189 = vor.u32 %v3187, %v3188
        %v3190 = vshll.u32 2102212464, %v3178
        %v3191 = vshrl.u32 920167782, %v3179
        %v3192 = vor.u32 %v3190, %v3191
        %v3193 = vshll.u32 920167782, %v3178
        %v3194 = vshrl.u32 1326507024, %v3179
        %v3195 = vor.u32 %v3193, %v3194
        %vm3196 = vcmp.lt.s32.totalorder %v3177, 1
        %vm3197 = vcmp.lt.s32.totalorder %v3177, 2
        %vm3198 = vcmp.lt.s32.totalorder %v3177, 3
        %vm3199 = vcmp.lt.s32.totalorder %v3177, 4
        %v3200 = vsel %vm3196, %v3180, %v3183
        %v3201 = vsel %vm3199, %v3189, 2102212464
        %v3202 = vsel %vm3198, %v3186, %v3201
        %v3203 = vsel %vm3197, %v3200, %v3202
        %v3204 = vsel %vm3196, %v3183, %v3186
        %v3205 = vsel %vm3199, %v3192, 920167782
        %v3206 = vsel %vm3198, %v3189, %v3205
        %v3207 = vsel %vm3197, %v3204, %v3206
        %v3208 = vsel %vm3196, %v3186, %v3189
        %v3209 = vsel %vm3199, %v3195, 1326507024
        %v3210 = vsel %vm3198, %v3192, %v3209
        %v3211 = vsel %vm3197, %v3208, %v3210
        %v3212 = vshll.u32 %v3172, 8
        %v3213 = vmul.u32.u64.compose %v3212, %v3211
        %v3214 = vextract.low.u32 %v3213
        %v3215 = vextract.high.u32 %v3213
        %v3216 = vmul.u32.u64.compose %v3212, %v3207
        %v3217 = vextract.low.u32 %v3216
        %v3218 = vextract.high.u32 %v3216
        %v3219 = vmul.u32 %v3212, %v3203
        %v3220 = vadd.s32 %v3215, %v3217
        %vm3221 = vc.u32 %v3215, %v3217
        %v3222 = vadd.s32 %v3218, 1
        %v3223 = vsel %vm3221, %v3222, %v3218
        %v3224 = vadd.s32 %v3219, %v3223
        %v3225 = vadd.s32 %v3224, 536870912
        %v3226 = vshrl.u32 %v3225, 30
        %v3227 = vshll.u32 %v3226, 30
        %v3228 = vsub.s32 %v3224, %v3227
        %vm3229 = vcmp.lt.s32.totalorder %v3228, 0
        %v3230 = vsub.s32 0, %v3228
        %v3231 = vsel %vm3229, %v3230, %v3228
        %v3232 = vclz %v3231
        %v3233 = vsub.s32 %v3232, 2
        %vm3234 = vcmp.gt.s32.totalorder 0, %v3233
        %v3235 = vsel %vm3234, 0, %v3233
        %v3236 = vsub.s32 32, %v3235
        %v3237 = vshll.u32 %v3228, %v3235
        %v3238 = vshrl.u32 %v3220, %v3236
        %v3239 = vor.u32 %v3237, %v3238
        %v3240 = vsub.s32 4294967266, %v3235
        %v3241 = vadd.s32 %v3240, 127
        %v3242 = vshll.u32 %v3241, 23
        %v3243 = vor.u32 4788187, %v3242
        %v3244 = vand.u32 2147483647, %v3243
        %v3246 = vcvt.s32.f32 %v3239
        %v3247 = vmul.f32 %v3246, %v3244
        %v3248 = vxor.u32 %v3247, 2147483648
        %v3249 = vsel %vm3166, %v3248, %v3247
        %v3250 = vsub.s32 4, %v3226
        %v3251 = vsel %vm3166, %v3250, %v3226
        %v3252 = vsel %vm3165, %v2393, %v3249
        %v3253 = vsel %vm3165, 0, %v3251
        %v3254 = vcosq.f32.pop %v3252
        %v3255 = vsinq.f32.pop %v3252
        %vm3256 = vweird.f32 %v2393
        %v3257 = vadd.s32 %v3253, 3
        %v3258 = vand.u32 %v3257, 3
        %vm3259 = vcmp.lt.s32.totalorder %v3258, 2
        %vm3260 = vcmp.eq.s32.totalorder %v3258, 0
        %v3261 = vxor.u32 %v3255, 2147483648
        %v3262 = vsel %vm3260, %v3254, %v3261
        %vm3263 = vcmp.eq.s32.totalorder %v3258, 2
        %v3264 = vxor.u32 %v3254, 2147483648
        %v3265 = vsel %vm3263, %v3264, %v3255
        %v3266 = vsel %vm3259, %v3262, %v3265
        %v3267 = vsel %vm3256, nan, %v3266
        %v3268 = vand.u32 2147483647, %v2398
        %vm3269 = vcmp.le.f32.partialorder %v3268, 0.7853982
        %vm3270 = vcmp.lt.s32.totalorder %v2398, 0
        %v3271 = vand.u32 %v2398, 2139095040
        %v3272 = vshrl.u32 %v3271, 23
        %v3273 = vsub.s32 %v3272, 127
        %v3274 = vand.u32 2147483647, %v2398
        %v3275 = vand.u32 %v3274, 8388607
        %v3276 = vor.u32 %v3275, 8388608
        %v3277 = vsub.s32 0, %v3276
        %v3278 = vadd.s32 %v3273, 1
        %vm3279 = vcmp.gt.s32.totalorder %v3278, 0
        %v3280 = vsel %vm3279, %v3278, 0
        %v3281 = vshrl.u32 %v3280, 5
        %v3282 = vand.u32 %v3280, 31
        %v3283 = vsub.s32 32, %v3282
        %v3284 = vshrl.u32 683565275, %v3283
        %v3285 = vshll.u32 683565275, %v3282
        %v3286 = vshrl.u32 2475754826, %v3283
        %v3287 = vor.u32 %v3285, %v3286
        %v3288 = vshll.u32 2475754826, %v3282
        %v3289 = vshrl.u32 2131351028, %v3283
        %v3290 = vor.u32 %v3288, %v3289
        %v3291 = vshll.u32 2131351028, %v3282
        %v3292 = vshrl.u32 2102212464, %v3283
        %v3293 = vor.u32 %v3291, %v3292
        %v3294 = vshll.u32 2102212464, %v3282
        %v3295 = vshrl.u32 920167782, %v3283
        %v3296 = vor.u32 %v3294, %v3295
        %v3297 = vshll.u32 920167782, %v3282
        %v3298 = vshrl.u32 1326507024, %v3283
        %v3299 = vor.u32 %v3297, %v3298
        %vm3300 = vcmp.lt.s32.totalorder %v3281, 1
        %vm3301 = vcmp.lt.s32.totalorder %v3281, 2
        %vm3302 = vcmp.lt.s32.totalorder %v3281, 3
        %vm3303 = vcmp.lt.s32.totalorder %v3281, 4
        %v3304 = vsel %vm3300, %v3284, %v3287
        %v3305 = vsel %vm3303, %v3293, 2102212464
        %v3306 = vsel %vm3302, %v3290, %v3305
        %v3307 = vsel %vm3301, %v3304, %v3306
        %v3308 = vsel %vm3300, %v3287, %v3290
        %v3309 = vsel %vm3303, %v3296, 920167782
        %v3310 = vsel %vm3302, %v3293, %v3309
        %v3311 = vsel %vm3301, %v3308, %v3310
        %v3312 = vsel %vm3300, %v3290, %v3293
        %v3313 = vsel %vm3303, %v3299, 1326507024
        %v3314 = vsel %vm3302, %v3296, %v3313
        %v3315 = vsel %vm3301, %v3312, %v3314
        %v3316 = vshll.u32 %v3276, 8
        %v3317 = vmul.u32.u64.compose %v3316, %v3315
        %v3318 = vextract.low.u32 %v3317
        %v3319 = vextract.high.u32 %v3317
        %v3320 = vmul.u32.u64.compose %v3316, %v3311
        %v3321 = vextract.low.u32 %v3320
        %v3322 = vextract.high.u32 %v3320
        %v3323 = vmul.u32 %v3316, %v3307
        %v3324 = vadd.s32 %v3319, %v3321
        %vm3325 = vc.u32 %v3319, %v3321
        %v3326 = vadd.s32 %v3322, 1
        %v3327 = vsel %vm3325, %v3326, %v3322
        %v3328 = vadd.s32 %v3323, %v3327
        %v3329 = vadd.s32 %v3328, 536870912
        %v3330 = vshrl.u32 %v3329, 30
        %v3331 = vshll.u32 %v3330, 30
        %v3332 = vsub.s32 %v3328, %v3331
        %vm3333 = vcmp.lt.s32.totalorder %v3332, 0
        %v3334 = vsub.s32 0, %v3332
        %v3335 = vsel %vm3333, %v3334, %v3332
        %v3336 = vclz %v3335
        %v3337 = vsub.s32 %v3336, 2
        %vm3338 = vcmp.gt.s32.totalorder 0, %v3337
        %v3339 = vsel %vm3338, 0, %v3337
        %v3340 = vsub.s32 32, %v3339
        %v3341 = vshll.u32 %v3332, %v3339
        %v3342 = vshrl.u32 %v3324, %v3340
        %v3343 = vor.u32 %v3341, %v3342
        %v3344 = vsub.s32 4294967266, %v3339
        %v3345 = vadd.s32 %v3344, 127
        %v3346 = vshll.u32 %v3345, 23
        %v3347 = vor.u32 4788187, %v3346
        %v3348 = vand.u32 2147483647, %v3347
        %v3350 = vcvt.s32.f32 %v3343
        %v3351 = vmul.f32 %v3350, %v3348
        %v3352 = vxor.u32 %v3351, 2147483648
        %v3353 = vsel %vm3270, %v3352, %v3351
        %v3354 = vsub.s32 4, %v3330
        %v3355 = vsel %vm3270, %v3354, %v3330
        %v3356 = vsel %vm3269, %v2398, %v3353
        %v3357 = vsel %vm3269, 0, %v3355
        %v3358 = vcosq.f32.pop %v3356
        %v3359 = vsinq.f32.pop %v3356
        %vm3360 = vweird.f32 %v2398
        %v3361 = vadd.s32 %v3357, 3
        %v3362 = vand.u32 %v3361, 3
        %vm3363 = vcmp.lt.s32.totalorder %v3362, 2
        %vm3364 = vcmp.eq.s32.totalorder %v3362, 0
        %v3365 = vxor.u32 %v3359, 2147483648
        %v3366 = vsel %vm3364, %v3358, %v3365
        %vm3367 = vcmp.eq.s32.totalorder %v3362, 2
        %v3368 = vxor.u32 %v3358, 2147483648
        %v3369 = vsel %vm3367, %v3368, %v3359
        %v3370 = vsel %vm3363, %v3366, %v3369
        %v3371 = vsel %vm3360, nan, %v3370
        %v3372 = vand.u32 2147483647, %v2403
        %vm3373 = vcmp.le.f32.partialorder %v3372, 0.7853982
        %vm3374 = vcmp.lt.s32.totalorder %v2403, 0
        %v3375 = vand.u32 %v2403, 2139095040
        %v3376 = vshrl.u32 %v3375, 23
        %v3377 = vsub.s32 %v3376, 127
        %v3378 = vand.u32 2147483647, %v2403
        %v3379 = vand.u32 %v3378, 8388607
        %v3380 = vor.u32 %v3379, 8388608
        %v3381 = vsub.s32 0, %v3380
        %v3382 = vadd.s32 %v3377, 1
        %vm3383 = vcmp.gt.s32.totalorder %v3382, 0
        %v3384 = vsel %vm3383, %v3382, 0
        %v3385 = vshrl.u32 %v3384, 5
        %v3386 = vand.u32 %v3384, 31
        %v3387 = vsub.s32 32, %v3386
        %v3388 = vshrl.u32 683565275, %v3387
        %v3389 = vshll.u32 683565275, %v3386
        %v3390 = vshrl.u32 2475754826, %v3387
        %v3391 = vor.u32 %v3389, %v3390
        %v3392 = vshll.u32 2475754826, %v3386
        %v3393 = vshrl.u32 2131351028, %v3387
        %v3394 = vor.u32 %v3392, %v3393
        %v3395 = vshll.u32 2131351028, %v3386
        %v3396 = vshrl.u32 2102212464, %v3387
        %v3397 = vor.u32 %v3395, %v3396
        %v3398 = vshll.u32 2102212464, %v3386
        %v3399 = vshrl.u32 920167782, %v3387
        %v3400 = vor.u32 %v3398, %v3399
        %v3401 = vshll.u32 920167782, %v3386
        %v3402 = vshrl.u32 1326507024, %v3387
        %v3403 = vor.u32 %v3401, %v3402
        %vm3404 = vcmp.lt.s32.totalorder %v3385, 1
        %vm3405 = vcmp.lt.s32.totalorder %v3385, 2
        %vm3406 = vcmp.lt.s32.totalorder %v3385, 3
        %vm3407 = vcmp.lt.s32.totalorder %v3385, 4
        %v3408 = vsel %vm3404, %v3388, %v3391
        %v3409 = vsel %vm3407, %v3397, 2102212464
        %v3410 = vsel %vm3406, %v3394, %v3409
        %v3411 = vsel %vm3405, %v3408, %v3410
        %v3412 = vsel %vm3404, %v3391, %v3394
        %v3413 = vsel %vm3407, %v3400, 920167782
        %v3414 = vsel %vm3406, %v3397, %v3413
        %v3415 = vsel %vm3405, %v3412, %v3414
        %v3416 = vsel %vm3404, %v3394, %v3397
        %v3417 = vsel %vm3407, %v3403, 1326507024
        %v3418 = vsel %vm3406, %v3400, %v3417
        %v3419 = vsel %vm3405, %v3416, %v3418
        %v3420 = vshll.u32 %v3380, 8
        %v3421 = vmul.u32.u64.compose %v3420, %v3419
        %v3422 = vextract.low.u32 %v3421
        %v3423 = vextract.high.u32 %v3421
        %v3424 = vmul.u32.u64.compose %v3420, %v3415
        %v3425 = vextract.low.u32 %v3424
        %v3426 = vextract.high.u32 %v3424
        %v3427 = vmul.u32 %v3420, %v3411
        %v3428 = vadd.s32 %v3423, %v3425
        %vm3429 = vc.u32 %v3423, %v3425
        %v3430 = vadd.s32 %v3426, 1
        %v3431 = vsel %vm3429, %v3430, %v3426
        %v3432 = vadd.s32 %v3427, %v3431
        %v3433 = vadd.s32 %v3432, 536870912
        %v3434 = vshrl.u32 %v3433, 30
        %v3435 = vshll.u32 %v3434, 30
        %v3436 = vsub.s32 %v3432, %v3435
        %vm3437 = vcmp.lt.s32.totalorder %v3436, 0
        %v3438 = vsub.s32 0, %v3436
        %v3439 = vsel %vm3437, %v3438, %v3436
        %v3440 = vclz %v3439
        %v3441 = vsub.s32 %v3440, 2
        %vm3442 = vcmp.gt.s32.totalorder 0, %v3441
        %v3443 = vsel %vm3442, 0, %v3441
        %v3444 = vsub.s32 32, %v3443
        %v3445 = vshll.u32 %v3436, %v3443
        %v3446 = vshrl.u32 %v3428, %v3444
        %v3447 = vor.u32 %v3445, %v3446
        %v3448 = vsub.s32 4294967266, %v3443
        %v3449 = vadd.s32 %v3448, 127
        %v3450 = vshll.u32 %v3449, 23
        %v3451 = vor.u32 4788187, %v3450
        %v3452 = vand.u32 2147483647, %v3451
        %v3454 = vcvt.s32.f32 %v3447
        %v3455 = vmul.f32 %v3454, %v3452
        %v3456 = vxor.u32 %v3455, 2147483648
        %v3457 = vsel %vm3374, %v3456, %v3455
        %v3458 = vsub.s32 4, %v3434
        %v3459 = vsel %vm3374, %v3458, %v3434
        %v3460 = vsel %vm3373, %v2403, %v3457
        %v3461 = vsel %vm3373, 0, %v3459
        %v3462 = vcosq.f32.pop %v3460
        %v3463 = vsinq.f32.pop %v3460
        %vm3464 = vweird.f32 %v2403
        %v3465 = vadd.s32 %v3461, 3
        %v3466 = vand.u32 %v3465, 3
        %vm3467 = vcmp.lt.s32.totalorder %v3466, 2
        %vm3468 = vcmp.eq.s32.totalorder %v3466, 0
        %v3469 = vxor.u32 %v3463, 2147483648
        %v3470 = vsel %vm3468, %v3462, %v3469
        %vm3471 = vcmp.eq.s32.totalorder %v3466, 2
        %v3472 = vxor.u32 %v3462, 2147483648
        %v3473 = vsel %vm3471, %v3472, %v3463
        %v3474 = vsel %vm3467, %v3470, %v3473
        %v3475 = vsel %vm3464, nan, %v3474
        %v3476 = vand.u32 2147483647, %v2408
        %vm3477 = vcmp.le.f32.partialorder %v3476, 0.7853982
        %vm3478 = vcmp.lt.s32.totalorder %v2408, 0
        %v3479 = vand.u32 %v2408, 2139095040
        %v3480 = vshrl.u32 %v3479, 23
        %v3481 = vsub.s32 %v3480, 127
        %v3482 = vand.u32 2147483647, %v2408
        %v3483 = vand.u32 %v3482, 8388607
        %v3484 = vor.u32 %v3483, 8388608
        %v3485 = vsub.s32 0, %v3484
        %v3486 = vadd.s32 %v3481, 1
        %vm3487 = vcmp.gt.s32.totalorder %v3486, 0
        %v3488 = vsel %vm3487, %v3486, 0
        %v3489 = vshrl.u32 %v3488, 5
        %v3490 = vand.u32 %v3488, 31
        %v3491 = vsub.s32 32, %v3490
        %v3492 = vshrl.u32 683565275, %v3491
        %v3493 = vshll.u32 683565275, %v3490
        %v3494 = vshrl.u32 2475754826, %v3491
        %v3495 = vor.u32 %v3493, %v3494
        %v3496 = vshll.u32 2475754826, %v3490
        %v3497 = vshrl.u32 2131351028, %v3491
        %v3498 = vor.u32 %v3496, %v3497
        %v3499 = vshll.u32 2131351028, %v3490
        %v3500 = vshrl.u32 2102212464, %v3491
        %v3501 = vor.u32 %v3499, %v3500
        %v3502 = vshll.u32 2102212464, %v3490
        %v3503 = vshrl.u32 920167782, %v3491
        %v3504 = vor.u32 %v3502, %v3503
        %v3505 = vshll.u32 920167782, %v3490
        %v3506 = vshrl.u32 1326507024, %v3491
        %v3507 = vor.u32 %v3505, %v3506
        %vm3508 = vcmp.lt.s32.totalorder %v3489, 1
        %vm3509 = vcmp.lt.s32.totalorder %v3489, 2
        %vm3510 = vcmp.lt.s32.totalorder %v3489, 3
        %vm3511 = vcmp.lt.s32.totalorder %v3489, 4
        %v3512 = vsel %vm3508, %v3492, %v3495
        %v3513 = vsel %vm3511, %v3501, 2102212464
        %v3514 = vsel %vm3510, %v3498, %v3513
        %v3515 = vsel %vm3509, %v3512, %v3514
        %v3516 = vsel %vm3508, %v3495, %v3498
        %v3517 = vsel %vm3511, %v3504, 920167782
        %v3518 = vsel %vm3510, %v3501, %v3517
        %v3519 = vsel %vm3509, %v3516, %v3518
        %v3520 = vsel %vm3508, %v3498, %v3501
        %v3521 = vsel %vm3511, %v3507, 1326507024
        %v3522 = vsel %vm3510, %v3504, %v3521
        %v3523 = vsel %vm3509, %v3520, %v3522
        %v3524 = vshll.u32 %v3484, 8
        %v3525 = vmul.u32.u64.compose %v3524, %v3523
        %v3526 = vextract.low.u32 %v3525
        %v3527 = vextract.high.u32 %v3525
        %v3528 = vmul.u32.u64.compose %v3524, %v3519
        %v3529 = vextract.low.u32 %v3528
        %v3530 = vextract.high.u32 %v3528
        %v3531 = vmul.u32 %v3524, %v3515
        %v3532 = vadd.s32 %v3527, %v3529
        %vm3533 = vc.u32 %v3527, %v3529
        %v3534 = vadd.s32 %v3530, 1
        %v3535 = vsel %vm3533, %v3534, %v3530
        %v3536 = vadd.s32 %v3531, %v3535
        %v3537 = vadd.s32 %v3536, 536870912
        %v3538 = vshrl.u32 %v3537, 30
        %v3539 = vshll.u32 %v3538, 30
        %v3540 = vsub.s32 %v3536, %v3539
        %vm3541 = vcmp.lt.s32.totalorder %v3540, 0
        %v3542 = vsub.s32 0, %v3540
        %v3543 = vsel %vm3541, %v3542, %v3540
        %v3544 = vclz %v3543
        %v3545 = vsub.s32 %v3544, 2
        %vm3546 = vcmp.gt.s32.totalorder 0, %v3545
        %v3547 = vsel %vm3546, 0, %v3545
        %v3548 = vsub.s32 32, %v3547
        %v3549 = vshll.u32 %v3540, %v3547
        %v3550 = vshrl.u32 %v3532, %v3548
        %v3551 = vor.u32 %v3549, %v3550
        %v3552 = vsub.s32 4294967266, %v3547
        %v3553 = vadd.s32 %v3552, 127
        %v3554 = vshll.u32 %v3553, 23
        %v3555 = vor.u32 4788187, %v3554
        %v3556 = vand.u32 2147483647, %v3555
        %v3558 = vcvt.s32.f32 %v3551
        %v3559 = vmul.f32 %v3558, %v3556
        %v3560 = vxor.u32 %v3559, 2147483648
        %v3561 = vsel %vm3478, %v3560, %v3559
        %v3562 = vsub.s32 4, %v3538
        %v3563 = vsel %vm3478, %v3562, %v3538
        %v3564 = vsel %vm3477, %v2408, %v3561
        %v3565 = vsel %vm3477, 0, %v3563
        %v3566 = vcosq.f32.pop %v3564
        %v3567 = vsinq.f32.pop %v3564
        %vm3568 = vweird.f32 %v2408
        %v3569 = vadd.s32 %v3565, 3
        %v3570 = vand.u32 %v3569, 3
        %vm3571 = vcmp.lt.s32.totalorder %v3570, 2
        %vm3572 = vcmp.eq.s32.totalorder %v3570, 0
        %v3573 = vxor.u32 %v3567, 2147483648
        %v3574 = vsel %vm3572, %v3566, %v3573
        %vm3575 = vcmp.eq.s32.totalorder %v3570, 2
        %v3576 = vxor.u32 %v3566, 2147483648
        %v3577 = vsel %vm3575, %v3576, %v3567
        %v3578 = vsel %vm3571, %v3574, %v3577
        %v3579 = vsel %vm3568, nan, %v3578
        %v3580 = vand.u32 2147483647, %v2413
        %vm3581 = vcmp.le.f32.partialorder %v3580, 0.7853982
        %vm3582 = vcmp.lt.s32.totalorder %v2413, 0
        %v3583 = vand.u32 %v2413, 2139095040
        %v3584 = vshrl.u32 %v3583, 23
        %v3585 = vsub.s32 %v3584, 127
        %v3586 = vand.u32 2147483647, %v2413
        %v3587 = vand.u32 %v3586, 8388607
        %v3588 = vor.u32 %v3587, 8388608
        %v3589 = vsub.s32 0, %v3588
        %v3590 = vadd.s32 %v3585, 1
        %vm3591 = vcmp.gt.s32.totalorder %v3590, 0
        %v3592 = vsel %vm3591, %v3590, 0
        %v3593 = vshrl.u32 %v3592, 5
        %v3594 = vand.u32 %v3592, 31
        %v3595 = vsub.s32 32, %v3594
        %v3596 = vshrl.u32 683565275, %v3595
        %v3597 = vshll.u32 683565275, %v3594
        %v3598 = vshrl.u32 2475754826, %v3595
        %v3599 = vor.u32 %v3597, %v3598
        %v3600 = vshll.u32 2475754826, %v3594
        %v3601 = vshrl.u32 2131351028, %v3595
        %v3602 = vor.u32 %v3600, %v3601
        %v3603 = vshll.u32 2131351028, %v3594
        %v3604 = vshrl.u32 2102212464, %v3595
        %v3605 = vor.u32 %v3603, %v3604
        %v3606 = vshll.u32 2102212464, %v3594
        %v3607 = vshrl.u32 920167782, %v3595
        %v3608 = vor.u32 %v3606, %v3607
        %v3609 = vshll.u32 920167782, %v3594
        %v3610 = vshrl.u32 1326507024, %v3595
        %v3611 = vor.u32 %v3609, %v3610
        %vm3612 = vcmp.lt.s32.totalorder %v3593, 1
        %vm3613 = vcmp.lt.s32.totalorder %v3593, 2
        %vm3614 = vcmp.lt.s32.totalorder %v3593, 3
        %vm3615 = vcmp.lt.s32.totalorder %v3593, 4
        %v3616 = vsel %vm3612, %v3596, %v3599
        %v3617 = vsel %vm3615, %v3605, 2102212464
        %v3618 = vsel %vm3614, %v3602, %v3617
        %v3619 = vsel %vm3613, %v3616, %v3618
        %v3620 = vsel %vm3612, %v3599, %v3602
        %v3621 = vsel %vm3615, %v3608, 920167782
        %v3622 = vsel %vm3614, %v3605, %v3621
        %v3623 = vsel %vm3613, %v3620, %v3622
        %v3624 = vsel %vm3612, %v3602, %v3605
        %v3625 = vsel %vm3615, %v3611, 1326507024
        %v3626 = vsel %vm3614, %v3608, %v3625
        %v3627 = vsel %vm3613, %v3624, %v3626
        %v3628 = vshll.u32 %v3588, 8
        %v3629 = vmul.u32.u64.compose %v3628, %v3627
        %v3630 = vextract.low.u32 %v3629
        %v3631 = vextract.high.u32 %v3629
        %v3632 = vmul.u32.u64.compose %v3628, %v3623
        %v3633 = vextract.low.u32 %v3632
        %v3634 = vextract.high.u32 %v3632
        %v3635 = vmul.u32 %v3628, %v3619
        %v3636 = vadd.s32 %v3631, %v3633
        %vm3637 = vc.u32 %v3631, %v3633
        %v3638 = vadd.s32 %v3634, 1
        %v3639 = vsel %vm3637, %v3638, %v3634
        %v3640 = vadd.s32 %v3635, %v3639
        %v3641 = vadd.s32 %v3640, 536870912
        %v3642 = vshrl.u32 %v3641, 30
        %v3643 = vshll.u32 %v3642, 30
        %v3644 = vsub.s32 %v3640, %v3643
        %vm3645 = vcmp.lt.s32.totalorder %v3644, 0
        %v3646 = vsub.s32 0, %v3644
        %v3647 = vsel %vm3645, %v3646, %v3644
        %v3648 = vclz %v3647
        %v3649 = vsub.s32 %v3648, 2
        %vm3650 = vcmp.gt.s32.totalorder 0, %v3649
        %v3651 = vsel %vm3650, 0, %v3649
        %v3652 = vsub.s32 32, %v3651
        %v3653 = vshll.u32 %v3644, %v3651
        %v3654 = vshrl.u32 %v3636, %v3652
        %v3655 = vor.u32 %v3653, %v3654
        %v3656 = vsub.s32 4294967266, %v3651
        %v3657 = vadd.s32 %v3656, 127
        %v3658 = vshll.u32 %v3657, 23
        %v3659 = vor.u32 4788187, %v3658
        %v3660 = vand.u32 2147483647, %v3659
        %v3662 = vcvt.s32.f32 %v3655
        %v3663 = vmul.f32 %v3662, %v3660
        %v3664 = vxor.u32 %v3663, 2147483648
        %v3665 = vsel %vm3582, %v3664, %v3663
        %v3666 = vsub.s32 4, %v3642
        %v3667 = vsel %vm3582, %v3666, %v3642
        %v3668 = vsel %vm3581, %v2413, %v3665
        %v3669 = vsel %vm3581, 0, %v3667
        %v3670 = vcosq.f32.pop %v3668
        %v3671 = vsinq.f32.pop %v3668
        %vm3672 = vweird.f32 %v2413
        %v3673 = vadd.s32 %v3669, 3
        %v3674 = vand.u32 %v3673, 3
        %vm3675 = vcmp.lt.s32.totalorder %v3674, 2
        %vm3676 = vcmp.eq.s32.totalorder %v3674, 0
        %v3677 = vxor.u32 %v3671, 2147483648
        %v3678 = vsel %vm3676, %v3670, %v3677
        %vm3679 = vcmp.eq.s32.totalorder %v3674, 2
        %v3680 = vxor.u32 %v3670, 2147483648
        %v3681 = vsel %vm3679, %v3680, %v3671
        %v3682 = vsel %vm3675, %v3678, %v3681
        %v3683 = vsel %vm3672, nan, %v3682
        %v3684 = vand.u32 2147483647, %v2418
        %vm3685 = vcmp.le.f32.partialorder %v3684, 0.7853982
        %vm3686 = vcmp.lt.s32.totalorder %v2418, 0
        %v3687 = vand.u32 %v2418, 2139095040
        %v3688 = vshrl.u32 %v3687, 23
        %v3689 = vsub.s32 %v3688, 127
        %v3690 = vand.u32 2147483647, %v2418
        %v3691 = vand.u32 %v3690, 8388607
        %v3692 = vor.u32 %v3691, 8388608
        %v3693 = vsub.s32 0, %v3692
        %v3694 = vadd.s32 %v3689, 1
        %vm3695 = vcmp.gt.s32.totalorder %v3694, 0
        %v3696 = vsel %vm3695, %v3694, 0
        %v3697 = vshrl.u32 %v3696, 5
        %v3698 = vand.u32 %v3696, 31
        %v3699 = vsub.s32 32, %v3698
        %v3700 = vshrl.u32 683565275, %v3699
        %v3701 = vshll.u32 683565275, %v3698
        %v3702 = vshrl.u32 2475754826, %v3699
        %v3703 = vor.u32 %v3701, %v3702
        %v3704 = vshll.u32 2475754826, %v3698
        %v3705 = vshrl.u32 2131351028, %v3699
        %v3706 = vor.u32 %v3704, %v3705
        %v3707 = vshll.u32 2131351028, %v3698
        %v3708 = vshrl.u32 2102212464, %v3699
        %v3709 = vor.u32 %v3707, %v3708
        %v3710 = vshll.u32 2102212464, %v3698
        %v3711 = vshrl.u32 920167782, %v3699
        %v3712 = vor.u32 %v3710, %v3711
        %v3713 = vshll.u32 920167782, %v3698
        %v3714 = vshrl.u32 1326507024, %v3699
        %v3715 = vor.u32 %v3713, %v3714
        %vm3716 = vcmp.lt.s32.totalorder %v3697, 1
        %vm3717 = vcmp.lt.s32.totalorder %v3697, 2
        %vm3718 = vcmp.lt.s32.totalorder %v3697, 3
        %vm3719 = vcmp.lt.s32.totalorder %v3697, 4
        %v3720 = vsel %vm3716, %v3700, %v3703
        %v3721 = vsel %vm3719, %v3709, 2102212464
        %v3722 = vsel %vm3718, %v3706, %v3721
        %v3723 = vsel %vm3717, %v3720, %v3722
        %v3724 = vsel %vm3716, %v3703, %v3706
        %v3725 = vsel %vm3719, %v3712, 920167782
        %v3726 = vsel %vm3718, %v3709, %v3725
        %v3727 = vsel %vm3717, %v3724, %v3726
        %v3728 = vsel %vm3716, %v3706, %v3709
        %v3729 = vsel %vm3719, %v3715, 1326507024
        %v3730 = vsel %vm3718, %v3712, %v3729
        %v3731 = vsel %vm3717, %v3728, %v3730
        %v3732 = vshll.u32 %v3692, 8
        %v3733 = vmul.u32.u64.compose %v3732, %v3731
        %v3734 = vextract.low.u32 %v3733
        %v3735 = vextract.high.u32 %v3733
        %v3736 = vmul.u32.u64.compose %v3732, %v3727
        %v3737 = vextract.low.u32 %v3736
        %v3738 = vextract.high.u32 %v3736
        %v3739 = vmul.u32 %v3732, %v3723
        %v3740 = vadd.s32 %v3735, %v3737
        %vm3741 = vc.u32 %v3735, %v3737
        %v3742 = vadd.s32 %v3738, 1
        %v3743 = vsel %vm3741, %v3742, %v3738
        %v3744 = vadd.s32 %v3739, %v3743
        %v3745 = vadd.s32 %v3744, 536870912
        %v3746 = vshrl.u32 %v3745, 30
        %v3747 = vshll.u32 %v3746, 30
        %v3748 = vsub.s32 %v3744, %v3747
        %vm3749 = vcmp.lt.s32.totalorder %v3748, 0
        %v3750 = vsub.s32 0, %v3748
        %v3751 = vsel %vm3749, %v3750, %v3748
        %v3752 = vclz %v3751
        %v3753 = vsub.s32 %v3752, 2
        %vm3754 = vcmp.gt.s32.totalorder 0, %v3753
        %v3755 = vsel %vm3754, 0, %v3753
        %v3756 = vsub.s32 32, %v3755
        %v3757 = vshll.u32 %v3748, %v3755
        %v3758 = vshrl.u32 %v3740, %v3756
        %v3759 = vor.u32 %v3757, %v3758
        %v3760 = vsub.s32 4294967266, %v3755
        %v3761 = vadd.s32 %v3760, 127
        %v3762 = vshll.u32 %v3761, 23
        %v3763 = vor.u32 4788187, %v3762
        %v3764 = vand.u32 2147483647, %v3763
        %v3766 = vcvt.s32.f32 %v3759
        %v3767 = vmul.f32 %v3766, %v3764
        %v3768 = vxor.u32 %v3767, 2147483648
        %v3769 = vsel %vm3686, %v3768, %v3767
        %v3770 = vsub.s32 4, %v3746
        %v3771 = vsel %vm3686, %v3770, %v3746
        %v3772 = vsel %vm3685, %v2418, %v3769
        %v3773 = vsel %vm3685, 0, %v3771
        %v3774 = vcosq.f32.pop %v3772
        %v3775 = vsinq.f32.pop %v3772
        %vm3776 = vweird.f32 %v2418
        %v3777 = vadd.s32 %v3773, 3
        %v3778 = vand.u32 %v3777, 3
        %vm3779 = vcmp.lt.s32.totalorder %v3778, 2
        %vm3780 = vcmp.eq.s32.totalorder %v3778, 0
        %v3781 = vxor.u32 %v3775, 2147483648
        %v3782 = vsel %vm3780, %v3774, %v3781
        %vm3783 = vcmp.eq.s32.totalorder %v3778, 2
        %v3784 = vxor.u32 %v3774, 2147483648
        %v3785 = vsel %vm3783, %v3784, %v3775
        %v3786 = vsel %vm3779, %v3782, %v3785
        %v3787 = vsel %vm3776, nan, %v3786
        %v3788 = vand.u32 2147483647, %v2423
        %vm3789 = vcmp.le.f32.partialorder %v3788, 0.7853982
        %vm3790 = vcmp.lt.s32.totalorder %v2423, 0
        %v3791 = vand.u32 %v2423, 2139095040
        %v3792 = vshrl.u32 %v3791, 23
        %v3793 = vsub.s32 %v3792, 127
        %v3794 = vand.u32 2147483647, %v2423
        %v3795 = vand.u32 %v3794, 8388607
        %v3796 = vor.u32 %v3795, 8388608
        %v3797 = vsub.s32 0, %v3796
        %v3798 = vadd.s32 %v3793, 1
        %vm3799 = vcmp.gt.s32.totalorder %v3798, 0
        %v3800 = vsel %vm3799, %v3798, 0
        %v3801 = vshrl.u32 %v3800, 5
        %v3802 = vand.u32 %v3800, 31
        %v3803 = vsub.s32 32, %v3802
        %v3804 = vshrl.u32 683565275, %v3803
        %v3805 = vshll.u32 683565275, %v3802
        %v3806 = vshrl.u32 2475754826, %v3803
        %v3807 = vor.u32 %v3805, %v3806
        %v3808 = vshll.u32 2475754826, %v3802
        %v3809 = vshrl.u32 2131351028, %v3803
        %v3810 = vor.u32 %v3808, %v3809
        %v3811 = vshll.u32 2131351028, %v3802
        %v3812 = vshrl.u32 2102212464, %v3803
        %v3813 = vor.u32 %v3811, %v3812
        %v3814 = vshll.u32 2102212464, %v3802
        %v3815 = vshrl.u32 920167782, %v3803
        %v3816 = vor.u32 %v3814, %v3815
        %v3817 = vshll.u32 920167782, %v3802
        %v3818 = vshrl.u32 1326507024, %v3803
        %v3819 = vor.u32 %v3817, %v3818
        %vm3820 = vcmp.lt.s32.totalorder %v3801, 1
        %vm3821 = vcmp.lt.s32.totalorder %v3801, 2
        %vm3822 = vcmp.lt.s32.totalorder %v3801, 3
        %vm3823 = vcmp.lt.s32.totalorder %v3801, 4
        %v3824 = vsel %vm3820, %v3804, %v3807
        %v3825 = vsel %vm3823, %v3813, 2102212464
        %v3826 = vsel %vm3822, %v3810, %v3825
        %v3827 = vsel %vm3821, %v3824, %v3826
        %v3828 = vsel %vm3820, %v3807, %v3810
        %v3829 = vsel %vm3823, %v3816, 920167782
        %v3830 = vsel %vm3822, %v3813, %v3829
        %v3831 = vsel %vm3821, %v3828, %v3830
        %v3832 = vsel %vm3820, %v3810, %v3813
        %v3833 = vsel %vm3823, %v3819, 1326507024
        %v3834 = vsel %vm3822, %v3816, %v3833
        %v3835 = vsel %vm3821, %v3832, %v3834
        %v3836 = vshll.u32 %v3796, 8
        %v3837 = vmul.u32.u64.compose %v3836, %v3835
        %v3838 = vextract.low.u32 %v3837
        %v3839 = vextract.high.u32 %v3837
        %v3840 = vmul.u32.u64.compose %v3836, %v3831
        %v3841 = vextract.low.u32 %v3840
        %v3842 = vextract.high.u32 %v3840
        %v3843 = vmul.u32 %v3836, %v3827
        %v3844 = vadd.s32 %v3839, %v3841
        %vm3845 = vc.u32 %v3839, %v3841
        %v3846 = vadd.s32 %v3842, 1
        %v3847 = vsel %vm3845, %v3846, %v3842
        %v3848 = vadd.s32 %v3843, %v3847
        %v3849 = vadd.s32 %v3848, 536870912
        %v3850 = vshrl.u32 %v3849, 30
        %v3851 = vshll.u32 %v3850, 30
        %v3852 = vsub.s32 %v3848, %v3851
        %vm3853 = vcmp.lt.s32.totalorder %v3852, 0
        %v3854 = vsub.s32 0, %v3852
        %v3855 = vsel %vm3853, %v3854, %v3852
        %v3856 = vclz %v3855
        %v3857 = vsub.s32 %v3856, 2
        %vm3858 = vcmp.gt.s32.totalorder 0, %v3857
        %v3859 = vsel %vm3858, 0, %v3857
        %v3860 = vsub.s32 32, %v3859
        %v3861 = vshll.u32 %v3852, %v3859
        %v3862 = vshrl.u32 %v3844, %v3860
        %v3863 = vor.u32 %v3861, %v3862
        %v3864 = vsub.s32 4294967266, %v3859
        %v3865 = vadd.s32 %v3864, 127
        %v3866 = vshll.u32 %v3865, 23
        %v3867 = vor.u32 4788187, %v3866
        %v3868 = vand.u32 2147483647, %v3867
        %v3870 = vcvt.s32.f32 %v3863
        %v3871 = vmul.f32 %v3870, %v3868
        %v3872 = vxor.u32 %v3871, 2147483648
        %v3873 = vsel %vm3790, %v3872, %v3871
        %v3874 = vsub.s32 4, %v3850
        %v3875 = vsel %vm3790, %v3874, %v3850
        %v3876 = vsel %vm3789, %v2423, %v3873
        %v3877 = vsel %vm3789, 0, %v3875
        %v3878 = vcosq.f32.pop %v3876
        %v3879 = vsinq.f32.pop %v3876
        %vm3880 = vweird.f32 %v2423
        %v3881 = vadd.s32 %v3877, 3
        %v3882 = vand.u32 %v3881, 3
        %vm3883 = vcmp.lt.s32.totalorder %v3882, 2
        %vm3884 = vcmp.eq.s32.totalorder %v3882, 0
        %v3885 = vxor.u32 %v3879, 2147483648
        %v3886 = vsel %vm3884, %v3878, %v3885
        %vm3887 = vcmp.eq.s32.totalorder %v3882, 2
        %v3888 = vxor.u32 %v3878, 2147483648
        %v3889 = vsel %vm3887, %v3888, %v3879
        %v3890 = vsel %vm3883, %v3886, %v3889
        %v3891 = vsel %vm3880, nan, %v3890
        %v3892 = vand.u32 2147483647, %v2428
        %vm3893 = vcmp.le.f32.partialorder %v3892, 0.7853982
        %vm3894 = vcmp.lt.s32.totalorder %v2428, 0
        %v3895 = vand.u32 %v2428, 2139095040
        %v3896 = vshrl.u32 %v3895, 23
        %v3897 = vsub.s32 %v3896, 127
        %v3898 = vand.u32 2147483647, %v2428
        %v3899 = vand.u32 %v3898, 8388607
        %v3900 = vor.u32 %v3899, 8388608
        %v3901 = vsub.s32 0, %v3900
        %v3902 = vadd.s32 %v3897, 1
        %vm3903 = vcmp.gt.s32.totalorder %v3902, 0
        %v3904 = vsel %vm3903, %v3902, 0
        %v3905 = vshrl.u32 %v3904, 5
        %v3906 = vand.u32 %v3904, 31
        %v3907 = vsub.s32 32, %v3906
        %v3908 = vshrl.u32 683565275, %v3907
        %v3909 = vshll.u32 683565275, %v3906
        %v3910 = vshrl.u32 2475754826, %v3907
        %v3911 = vor.u32 %v3909, %v3910
        %v3912 = vshll.u32 2475754826, %v3906
        %v3913 = vshrl.u32 2131351028, %v3907
        %v3914 = vor.u32 %v3912, %v3913
        %v3915 = vshll.u32 2131351028, %v3906
        %v3916 = vshrl.u32 2102212464, %v3907
        %v3917 = vor.u32 %v3915, %v3916
        %v3918 = vshll.u32 2102212464, %v3906
        %v3919 = vshrl.u32 920167782, %v3907
        %v3920 = vor.u32 %v3918, %v3919
        %v3921 = vshll.u32 920167782, %v3906
        %v3922 = vshrl.u32 1326507024, %v3907
        %v3923 = vor.u32 %v3921, %v3922
        %vm3924 = vcmp.lt.s32.totalorder %v3905, 1
        %vm3925 = vcmp.lt.s32.totalorder %v3905, 2
        %vm3926 = vcmp.lt.s32.totalorder %v3905, 3
        %vm3927 = vcmp.lt.s32.totalorder %v3905, 4
        %v3928 = vsel %vm3924, %v3908, %v3911
        %v3929 = vsel %vm3927, %v3917, 2102212464
        %v3930 = vsel %vm3926, %v3914, %v3929
        %v3931 = vsel %vm3925, %v3928, %v3930
        %v3932 = vsel %vm3924, %v3911, %v3914
        %v3933 = vsel %vm3927, %v3920, 920167782
        %v3934 = vsel %vm3926, %v3917, %v3933
        %v3935 = vsel %vm3925, %v3932, %v3934
        %v3936 = vsel %vm3924, %v3914, %v3917
        %v3937 = vsel %vm3927, %v3923, 1326507024
        %v3938 = vsel %vm3926, %v3920, %v3937
        %v3939 = vsel %vm3925, %v3936, %v3938
        %v3940 = vshll.u32 %v3900, 8
        %v3941 = vmul.u32.u64.compose %v3940, %v3939
        %v3942 = vextract.low.u32 %v3941
        %v3943 = vextract.high.u32 %v3941
        %v3944 = vmul.u32.u64.compose %v3940, %v3935
        %v3945 = vextract.low.u32 %v3944
        %v3946 = vextract.high.u32 %v3944
        %v3947 = vmul.u32 %v3940, %v3931
        %v3948 = vadd.s32 %v3943, %v3945
        %vm3949 = vc.u32 %v3943, %v3945
        %v3950 = vadd.s32 %v3946, 1
        %v3951 = vsel %vm3949, %v3950, %v3946
        %v3952 = vadd.s32 %v3947, %v3951
        %v3953 = vadd.s32 %v3952, 536870912
        %v3954 = vshrl.u32 %v3953, 30
        %v3955 = vshll.u32 %v3954, 30
        %v3956 = vsub.s32 %v3952, %v3955
        %vm3957 = vcmp.lt.s32.totalorder %v3956, 0
        %v3958 = vsub.s32 0, %v3956
        %v3959 = vsel %vm3957, %v3958, %v3956
        %v3960 = vclz %v3959
        %v3961 = vsub.s32 %v3960, 2
        %vm3962 = vcmp.gt.s32.totalorder 0, %v3961
        %v3963 = vsel %vm3962, 0, %v3961
        %v3964 = vsub.s32 32, %v3963
        %v3965 = vshll.u32 %v3956, %v3963
        %v3966 = vshrl.u32 %v3948, %v3964
        %v3967 = vor.u32 %v3965, %v3966
        %v3968 = vsub.s32 4294967266, %v3963
        %v3969 = vadd.s32 %v3968, 127
        %v3970 = vshll.u32 %v3969, 23
        %v3971 = vor.u32 4788187, %v3970
        %v3972 = vand.u32 2147483647, %v3971
        %v3974 = vcvt.s32.f32 %v3967
        %v3975 = vmul.f32 %v3974, %v3972
        %v3976 = vxor.u32 %v3975, 2147483648
        %v3977 = vsel %vm3894, %v3976, %v3975
        %v3978 = vsub.s32 4, %v3954
        %v3979 = vsel %vm3894, %v3978, %v3954
        %v3980 = vsel %vm3893, %v2428, %v3977
        %v3981 = vsel %vm3893, 0, %v3979
        %v3982 = vcosq.f32.pop %v3980
        %v3983 = vsinq.f32.pop %v3980
        %vm3984 = vweird.f32 %v2428
        %v3985 = vadd.s32 %v3981, 3
        %v3986 = vand.u32 %v3985, 3
        %vm3987 = vcmp.lt.s32.totalorder %v3986, 2
        %vm3988 = vcmp.eq.s32.totalorder %v3986, 0
        %v3989 = vxor.u32 %v3983, 2147483648
        %v3990 = vsel %vm3988, %v3982, %v3989
        %vm3991 = vcmp.eq.s32.totalorder %v3986, 2
        %v3992 = vxor.u32 %v3982, 2147483648
        %v3993 = vsel %vm3991, %v3992, %v3983
        %v3994 = vsel %vm3987, %v3990, %v3993
        %v3995 = vsel %vm3984, nan, %v3994
        %v3996 = vand.u32 2147483647, %v2433
        %vm3997 = vcmp.le.f32.partialorder %v3996, 0.7853982
        %vm3998 = vcmp.lt.s32.totalorder %v2433, 0
        %v3999 = vand.u32 %v2433, 2139095040
        %v4000 = vshrl.u32 %v3999, 23
        %v4001 = vsub.s32 %v4000, 127
        %v4002 = vand.u32 2147483647, %v2433
        %v4003 = vand.u32 %v4002, 8388607
        %v4004 = vor.u32 %v4003, 8388608
        %v4005 = vsub.s32 0, %v4004
        %v4006 = vadd.s32 %v4001, 1
        %vm4007 = vcmp.gt.s32.totalorder %v4006, 0
        %v4008 = vsel %vm4007, %v4006, 0
        %v4009 = vshrl.u32 %v4008, 5
        %v4010 = vand.u32 %v4008, 31
        %v4011 = vsub.s32 32, %v4010
        %v4012 = vshrl.u32 683565275, %v4011
        %v4013 = vshll.u32 683565275, %v4010
        %v4014 = vshrl.u32 2475754826, %v4011
        %v4015 = vor.u32 %v4013, %v4014
        %v4016 = vshll.u32 2475754826, %v4010
        %v4017 = vshrl.u32 2131351028, %v4011
        %v4018 = vor.u32 %v4016, %v4017
        %v4019 = vshll.u32 2131351028, %v4010
        %v4020 = vshrl.u32 2102212464, %v4011
        %v4021 = vor.u32 %v4019, %v4020
        %v4022 = vshll.u32 2102212464, %v4010
        %v4023 = vshrl.u32 920167782, %v4011
        %v4024 = vor.u32 %v4022, %v4023
        %v4025 = vshll.u32 920167782, %v4010
        %v4026 = vshrl.u32 1326507024, %v4011
        %v4027 = vor.u32 %v4025, %v4026
        %vm4028 = vcmp.lt.s32.totalorder %v4009, 1
        %vm4029 = vcmp.lt.s32.totalorder %v4009, 2
        %vm4030 = vcmp.lt.s32.totalorder %v4009, 3
        %vm4031 = vcmp.lt.s32.totalorder %v4009, 4
        %v4032 = vsel %vm4028, %v4012, %v4015
        %v4033 = vsel %vm4031, %v4021, 2102212464
        %v4034 = vsel %vm4030, %v4018, %v4033
        %v4035 = vsel %vm4029, %v4032, %v4034
        %v4036 = vsel %vm4028, %v4015, %v4018
        %v4037 = vsel %vm4031, %v4024, 920167782
        %v4038 = vsel %vm4030, %v4021, %v4037
        %v4039 = vsel %vm4029, %v4036, %v4038
        %v4040 = vsel %vm4028, %v4018, %v4021
        %v4041 = vsel %vm4031, %v4027, 1326507024
        %v4042 = vsel %vm4030, %v4024, %v4041
        %v4043 = vsel %vm4029, %v4040, %v4042
        %v4044 = vshll.u32 %v4004, 8
        %v4045 = vmul.u32.u64.compose %v4044, %v4043
        %v4046 = vextract.low.u32 %v4045
        %v4047 = vextract.high.u32 %v4045
        %v4048 = vmul.u32.u64.compose %v4044, %v4039
        %v4049 = vextract.low.u32 %v4048
        %v4050 = vextract.high.u32 %v4048
        %v4051 = vmul.u32 %v4044, %v4035
        %v4052 = vadd.s32 %v4047, %v4049
        %vm4053 = vc.u32 %v4047, %v4049
        %v4054 = vadd.s32 %v4050, 1
        %v4055 = vsel %vm4053, %v4054, %v4050
        %v4056 = vadd.s32 %v4051, %v4055
        %v4057 = vadd.s32 %v4056, 536870912
        %v4058 = vshrl.u32 %v4057, 30
        %v4059 = vshll.u32 %v4058, 30
        %v4060 = vsub.s32 %v4056, %v4059
        %vm4061 = vcmp.lt.s32.totalorder %v4060, 0
        %v4062 = vsub.s32 0, %v4060
        %v4063 = vsel %vm4061, %v4062, %v4060
        %v4064 = vclz %v4063
        %v4065 = vsub.s32 %v4064, 2
        %vm4066 = vcmp.gt.s32.totalorder 0, %v4065
        %v4067 = vsel %vm4066, 0, %v4065
        %v4068 = vsub.s32 32, %v4067
        %v4069 = vshll.u32 %v4060, %v4067
        %v4070 = vshrl.u32 %v4052, %v4068
        %v4071 = vor.u32 %v4069, %v4070
        %v4072 = vsub.s32 4294967266, %v4067
        %v4073 = vadd.s32 %v4072, 127
        %v4074 = vshll.u32 %v4073, 23
        %v4075 = vor.u32 4788187, %v4074
        %v4076 = vand.u32 2147483647, %v4075
        %v4078 = vcvt.s32.f32 %v4071
        %v4079 = vmul.f32 %v4078, %v4076
        %v4080 = vxor.u32 %v4079, 2147483648
        %v4081 = vsel %vm3998, %v4080, %v4079
        %v4082 = vsub.s32 4, %v4058
        %v4083 = vsel %vm3998, %v4082, %v4058
        %v4084 = vsel %vm3997, %v2433, %v4081
        %v4085 = vsel %vm3997, 0, %v4083
        %v4086 = vcosq.f32.pop %v4084
        %v4087 = vsinq.f32.pop %v4084
        %vm4088 = vweird.f32 %v2433
        %v4089 = vadd.s32 %v4085, 3
        %v4090 = vand.u32 %v4089, 3
        %vm4091 = vcmp.lt.s32.totalorder %v4090, 2
        %vm4092 = vcmp.eq.s32.totalorder %v4090, 0
        %v4093 = vxor.u32 %v4087, 2147483648
        %v4094 = vsel %vm4092, %v4086, %v4093
        %vm4095 = vcmp.eq.s32.totalorder %v4090, 2
        %v4096 = vxor.u32 %v4086, 2147483648
        %v4097 = vsel %vm4095, %v4096, %v4087
        %v4098 = vsel %vm4091, %v4094, %v4097
        %v4099 = vsel %vm4088, nan, %v4098
        %v4100 = vld [vmem:[%s5] sm:$0xff]
        %v4101 = vld [vmem:[%s5 + $0x8] sm:$0xff]
        %v4102 = vld [vmem:[%s5 + $0x10] sm:$0xff]
        %v4103 = vld [vmem:[%s5 + $0x18] sm:$0xff]
        %v4104 = vld [vmem:[%s5 + $0x20] sm:$0xff]
        %v4105 = vld [vmem:[%s5 + $0x28] sm:$0xff]
        %v4106 = vld [vmem:[%s5 + $0x30] sm:$0xff]
        %v4107 = vld [vmem:[%s5 + $0x38] sm:$0xff]
        %v4108 = vld [vmem:[%s5 + $0x40] sm:$0xff]
        %v4109 = vld [vmem:[%s5 + $0x48] sm:$0xff]
        %v4110 = vld [vmem:[%s5 + $0x50] sm:$0xff]
        %v4111 = vld [vmem:[%s5 + $0x58] sm:$0xff]
        %v4112 = vld [vmem:[%s5 + $0x60] sm:$0xff]
        %v4113 = vld [vmem:[%s5 + $0x68] sm:$0xff]
        %v4114 = vld [vmem:[%s5 + $0x70] sm:$0xff]
        %v4115 = vld [vmem:[%s5 + $0x78] sm:$0xff]
        %v4116 = vld [vmem:[%s5 + $0x80] sm:$0xff]
        %v4117 = vld [vmem:[%s5 + $0x88] sm:$0xff]
        %v4118 = vld [vmem:[%s5 + $0x90] sm:$0xff]
        %v4119 = vld [vmem:[%s5 + $0x98] sm:$0xff]
        %v4120 = vld [vmem:[%s5 + $0xa0] sm:$0xff]
        %v4121 = vld [vmem:[%s5 + $0xa8] sm:$0xff]
        %v4122 = vld [vmem:[%s5 + $0xb0] sm:$0xff]
        %v4123 = vld [vmem:[%s5 + $0xb8] sm:$0xff]
        %v4124 = vld [vmem:[%s5 + $0xc0] sm:$0xff]
        %v4125 = vld [vmem:[%s5 + $0xc8] sm:$0xff]
        %v4126 = vld [vmem:[%s5 + $0xd0] sm:$0xff]
        %v4127 = vld [vmem:[%s5 + $0xd8] sm:$0xff]
        %v4128 = vld [vmem:[%s5 + $0xe0] sm:$0xff]
        %v4129 = vld [vmem:[%s5 + $0xe8] sm:$0xff]
        %v4130 = vld [vmem:[%s5 + $0xf0] sm:$0xff]
        %v4131 = vld [vmem:[%s5 + $0xf8] sm:$0xff]
        %v4132 = vld [vmem:[%s6] sm:$0x3]
        %v4134 = vlaneseq
        %v4135 = vshrl.u32 %v4134, 7
        %v4136 = vsub.s32 0, %v4135
        %v4137 = vrot.slane %v4132, %v4136
        %v4138 = vlaneseq
        %v4139 = vshrl.u32 %v4138, 7
        %v4140 = vsub.s32 1, %v4139
        %v4141 = vrot.slane %v4132, %v4140
        %4144 = vmatprep.subr.mxu0 %v4101
        %4145 = vmatpush1.msra.mxu0 %v4100
        %4146 = vmatprep.subr.mxu0 %v4103
        %4147 = vmatpush1.msra.mxu0 %v4102
        %4148 = vmatprep.subr.mxu0 %v4105
        %4149 = vmatpush1.msra.mxu0 %v4104
        %4150 = vmatprep.subr.mxu0 %v4107
        %4151 = vmatpush1.msra.mxu0 %v4106
        %4152 = vmatprep.subr.mxu0 %v4109
        %4153 = vmatpush1.msra.mxu0 %v4108
        %4154 = vmatprep.subr.mxu0 %v4111
        %4155 = vmatpush1.msra.mxu0 %v4110
        %4156 = vmatprep.subr.mxu0 %v4113
        %4157 = vmatpush1.msra.mxu0 %v4112
        %4158 = vmatprep.subr.mxu0 %v4115
        %4159 = vmatpush1.msra.mxu0 %v4114
        %4160 = vmatprep.subr.mxu0 %v4117
        %4161 = vmatpush1.msra.mxu0 %v4116
        %4162 = vmatprep.subr.mxu0 %v4119
        %4163 = vmatpush1.msra.mxu0 %v4118
        %4164 = vmatprep.subr.mxu0 %v4121
        %4165 = vmatpush1.msra.mxu0 %v4120
        %4166 = vmatprep.subr.mxu0 %v4123
        %4167 = vmatpush1.msra.mxu0 %v4122
        %4168 = vmatprep.subr.mxu0 %v4125
        %4169 = vmatpush1.msra.mxu0 %v4124
        %4170 = vmatprep.subr.mxu0 %v4127
        %4171 = vmatpush1.msra.mxu0 %v4126
        %4172 = vmatprep.subr.mxu0 %v4129
        %4173 = vmatpush1.msra.mxu0 %v4128
        %4174 = vmatprep.subr.mxu0 %v4131
        %4175 = vmatpush1.msra.mxu0 %v4130
        %4176 = vmatprep.subr.mxu0 0.0
        %4177 = vmatpush1.msra.mxu0 0.0
        %4178 = vmatprep.subr.mxu0 0.0
        %4179 = vmatpush1.msra.mxu0 0.0
        %4180 = vmatprep.subr.mxu0 0.0
        %4181 = vmatpush1.msra.mxu0 0.0
        %4182 = vmatprep.subr.mxu0 0.0
        %4183 = vmatpush1.msra.mxu0 0.0
        %4184 = vmatprep.subr.mxu0 0.0
        %4185 = vmatpush1.msra.mxu0 0.0
        %4186 = vmatprep.subr.mxu0 0.0
        %4187 = vmatpush1.msra.mxu0 0.0
        %4188 = vmatprep.subr.mxu0 0.0
        %4189 = vmatpush1.msra.mxu0 0.0
        %4190 = vmatprep.subr.mxu0 0.0
        %4191 = vmatpush1.msra.mxu0 0.0
        %4192 = vmatprep.subr.mxu0 0.0
        %4193 = vmatpush1.msra.mxu0 0.0
        %4194 = vmatprep.subr.mxu0 0.0
        %4195 = vmatpush1.msra.mxu0 0.0
        %4196 = vmatprep.subr.mxu0 0.0
        %4197 = vmatpush1.msra.mxu0 0.0
        %4198 = vmatprep.subr.mxu0 0.0
        %4199 = vmatpush1.msra.mxu0 0.0
        %4200 = vmatprep.subr.mxu0 0.0
        %4201 = vmatpush1.msra.mxu0 0.0
        %4202 = vmatprep.subr.mxu0 0.0
        %4203 = vmatpush1.msra.mxu0 0.0
        %4204 = vmatprep.subr.mxu0 0.0
        %4205 = vmatpush1.msra.mxu0 0.0
        %4206 = vmatprep.subr.mxu0 0.0
        %4207 = vmatpush1.msra.mxu0 0.0
        %4208 = vmatprep.mubr.f32.mxu0 0.0
        %4209 = vmatmul.mubr.f32.gmra.mrb[0].mxu0 %v2539
        %v4210 = vpop.f32.mrb[0].mxu0
        %v4211 = vadd.f32 %v4137, %v4210
        %v4212 = vpop.f32.mrb[0].mxu0
        %v4213 = vadd.f32 %v4141, %v4212
        %4214 = vmatprep.mubr.f32.mxu0 0.0
        %4215 = vmatmul.mubr.f32.gmra.mrb[0].mxu0 %v2643
        %v4216 = vpop.f32.mrb[0].mxu0
        %v4217 = vadd.f32 %v4137, %v4216
        %v4218 = vpop.f32.mrb[0].mxu0
        %v4219 = vadd.f32 %v4141, %v4218
        %4220 = vmatprep.mubr.f32.mxu0 0.0
        %4221 = vmatmul.mubr.f32.gmra.mrb[0].mxu0 %v2747
        %v4222 = vpop.f32.mrb[0].mxu0
        %v4223 = vadd.f32 %v4137, %v4222
        %v4224 = vpop.f32.mrb[0].mxu0
        %v4225 = vadd.f32 %v4141, %v4224
        %4226 = vmatprep.mubr.f32.mxu0 0.0
        %4227 = vmatmul.mubr.f32.gmra.mrb[0].mxu0 %v2851
        %v4228 = vpop.f32.mrb[0].mxu0
        %v4229 = vadd.f32 %v4137, %v4228
        %v4230 = vpop.f32.mrb[0].mxu0
        %v4231 = vadd.f32 %v4141, %v4230
        %4232 = vmatprep.mubr.f32.mxu0 0.0
        %4233 = vmatmul.mubr.f32.gmra.mrb[0].mxu0 %v2955
        %v4234 = vpop.f32.mrb[0].mxu0
        %v4235 = vadd.f32 %v4137, %v4234
        %v4236 = vpop.f32.mrb[0].mxu0
        %v4237 = vadd.f32 %v4141, %v4236
        %4238 = vmatprep.mubr.f32.mxu0 0.0
        %4239 = vmatmul.mubr.f32.gmra.mrb[0].mxu0 %v3059
        %v4240 = vpop.f32.mrb[0].mxu0
        %v4241 = vadd.f32 %v4137, %v4240
        %v4242 = vpop.f32.mrb[0].mxu0
        %v4243 = vadd.f32 %v4141, %v4242
        %4244 = vmatprep.mubr.f32.mxu0 0.0
        %4245 = vmatmul.mubr.f32.gmra.mrb[0].mxu0 %v3163
        %v4246 = vpop.f32.mrb[0].mxu0
        %v4247 = vadd.f32 %v4137, %v4246
        %v4248 = vpop.f32.mrb[0].mxu0
        %v4249 = vadd.f32 %v4141, %v4248
        %4250 = vmatprep.mubr.f32.mxu0 0.0
        %4251 = vmatmul.mubr.f32.gmra.mrb[0].mxu0 %v3267
        %v4252 = vpop.f32.mrb[0].mxu0
        %v4253 = vadd.f32 %v4137, %v4252
        %v4254 = vpop.f32.mrb[0].mxu0
        %v4255 = vadd.f32 %v4141, %v4254
        %4256 = vmatprep.mubr.f32.mxu0 0.0
        %4257 = vmatmul.mubr.f32.gmra.mrb[0].mxu0 %v3371
        %v4258 = vpop.f32.mrb[0].mxu0
        %v4259 = vadd.f32 %v4137, %v4258
        %v4260 = vpop.f32.mrb[0].mxu0
        %v4261 = vadd.f32 %v4141, %v4260
        %4262 = vmatprep.mubr.f32.mxu0 0.0
        %4263 = vmatmul.mubr.f32.gmra.mrb[0].mxu0 %v3475
        %v4264 = vpop.f32.mrb[0].mxu0
        %v4265 = vadd.f32 %v4137, %v4264
        %v4266 = vpop.f32.mrb[0].mxu0
        %v4267 = vadd.f32 %v4141, %v4266
        %4268 = vmatprep.mubr.f32.mxu0 0.0
        %4269 = vmatmul.mubr.f32.gmra.mrb[0].mxu0 %v3579
        %v4270 = vpop.f32.mrb[0].mxu0
        %v4271 = vadd.f32 %v4137, %v4270
        %v4272 = vpop.f32.mrb[0].mxu0
        %v4273 = vadd.f32 %v4141, %v4272
        %4274 = vmatprep.mubr.f32.mxu0 0.0
        %4275 = vmatmul.mubr.f32.gmra.mrb[0].mxu0 %v3683
        %v4276 = vpop.f32.mrb[0].mxu0
        %v4277 = vadd.f32 %v4137, %v4276
        %v4278 = vpop.f32.mrb[0].mxu0
        %v4279 = vadd.f32 %v4141, %v4278
        %4280 = vmatprep.mubr.f32.mxu0 0.0
        %4281 = vmatmul.mubr.f32.gmra.mrb[0].mxu0 %v3787
        %v4282 = vpop.f32.mrb[0].mxu0
        %v4283 = vadd.f32 %v4137, %v4282
        %v4284 = vpop.f32.mrb[0].mxu0
        %v4285 = vadd.f32 %v4141, %v4284
        %4286 = vmatprep.mubr.f32.mxu0 0.0
        %4287 = vmatmul.mubr.f32.gmra.mrb[0].mxu0 %v3891
        %v4288 = vpop.f32.mrb[0].mxu0
        %v4289 = vadd.f32 %v4137, %v4288
        %v4290 = vpop.f32.mrb[0].mxu0
        %v4291 = vadd.f32 %v4141, %v4290
        %4292 = vmatprep.mubr.f32.mxu0 0.0
        %4293 = vmatmul.mubr.f32.gmra.mrb[0].mxu0 %v3995
        %v4294 = vpop.f32.mrb[0].mxu0
        %v4295 = vadd.f32 %v4137, %v4294
        %v4296 = vpop.f32.mrb[0].mxu0
        %v4297 = vadd.f32 %v4141, %v4296
        %4298 = vmatprep.mubr.f32.mxu0 0.0
        %4299 = vmatmul.mubr.f32.gmra.mrb[0].mxu0 %v4099
        %v4300 = vpop.f32.mrb[0].mxu0
        %v4301 = vadd.f32 %v4137, %v4300
        %v4302 = vpop.f32.mrb[0].mxu0
        %v4303 = vadd.f32 %v4141, %v4302
        %4304 = vdwg.mxu0
        %v4305 = vand.u32 2147483647, %v4211
        %vm4306 = vcmp.le.f32.partialorder %v4305, 0.7853982
        %vm4307 = vcmp.lt.s32.totalorder %v4211, 0
        %v4308 = vand.u32 %v4211, 2139095040
        %v4309 = vshrl.u32 %v4308, 23
        %v4310 = vsub.s32 %v4309, 127
        %v4311 = vand.u32 2147483647, %v4211
        %v4312 = vand.u32 %v4311, 8388607
        %v4313 = vor.u32 %v4312, 8388608
        %v4314 = vsub.s32 0, %v4313
        %v4315 = vadd.s32 %v4310, 1
        %vm4316 = vcmp.gt.s32.totalorder %v4315, 0
        %v4317 = vsel %vm4316, %v4315, 0
        %v4318 = vshrl.u32 %v4317, 5
        %v4319 = vand.u32 %v4317, 31
        %v4320 = vsub.s32 32, %v4319
        %v4321 = vshrl.u32 683565275, %v4320
        %v4322 = vshll.u32 683565275, %v4319
        %v4323 = vshrl.u32 2475754826, %v4320
        %v4324 = vor.u32 %v4322, %v4323
        %v4325 = vshll.u32 2475754826, %v4319
        %v4326 = vshrl.u32 2131351028, %v4320
        %v4327 = vor.u32 %v4325, %v4326
        %v4328 = vshll.u32 2131351028, %v4319
        %v4329 = vshrl.u32 2102212464, %v4320
        %v4330 = vor.u32 %v4328, %v4329
        %v4331 = vshll.u32 2102212464, %v4319
        %v4332 = vshrl.u32 920167782, %v4320
        %v4333 = vor.u32 %v4331, %v4332
        %v4334 = vshll.u32 920167782, %v4319
        %v4335 = vshrl.u32 1326507024, %v4320
        %v4336 = vor.u32 %v4334, %v4335
        %vm4337 = vcmp.lt.s32.totalorder %v4318, 1
        %vm4338 = vcmp.lt.s32.totalorder %v4318, 2
        %vm4339 = vcmp.lt.s32.totalorder %v4318, 3
        %vm4340 = vcmp.lt.s32.totalorder %v4318, 4
        %v4341 = vsel %vm4337, %v4321, %v4324
        %v4342 = vsel %vm4340, %v4330, 2102212464
        %v4343 = vsel %vm4339, %v4327, %v4342
        %v4344 = vsel %vm4338, %v4341, %v4343
        %v4345 = vsel %vm4337, %v4324, %v4327
        %v4346 = vsel %vm4340, %v4333, 920167782
        %v4347 = vsel %vm4339, %v4330, %v4346
        %v4348 = vsel %vm4338, %v4345, %v4347
        %v4349 = vsel %vm4337, %v4327, %v4330
        %v4350 = vsel %vm4340, %v4336, 1326507024
        %v4351 = vsel %vm4339, %v4333, %v4350
        %v4352 = vsel %vm4338, %v4349, %v4351
        %v4353 = vshll.u32 %v4313, 8
        %v4354 = vmul.u32.u64.compose %v4353, %v4352
        %v4355 = vextract.low.u32 %v4354
        %v4356 = vextract.high.u32 %v4354
        %v4357 = vmul.u32.u64.compose %v4353, %v4348
        %v4358 = vextract.low.u32 %v4357
        %v4359 = vextract.high.u32 %v4357
        %v4360 = vmul.u32 %v4353, %v4344
        %v4361 = vadd.s32 %v4356, %v4358
        %vm4362 = vc.u32 %v4356, %v4358
        %v4363 = vadd.s32 %v4359, 1
        %v4364 = vsel %vm4362, %v4363, %v4359
        %v4365 = vadd.s32 %v4360, %v4364
        %v4366 = vadd.s32 %v4365, 536870912
        %v4367 = vshrl.u32 %v4366, 30
        %v4368 = vshll.u32 %v4367, 30
        %v4369 = vsub.s32 %v4365, %v4368
        %vm4370 = vcmp.lt.s32.totalorder %v4369, 0
        %v4371 = vsub.s32 0, %v4369
        %v4372 = vsel %vm4370, %v4371, %v4369
        %v4373 = vclz %v4372
        %v4374 = vsub.s32 %v4373, 2
        %vm4375 = vcmp.gt.s32.totalorder 0, %v4374
        %v4376 = vsel %vm4375, 0, %v4374
        %v4377 = vsub.s32 32, %v4376
        %v4378 = vshll.u32 %v4369, %v4376
        %v4379 = vshrl.u32 %v4361, %v4377
        %v4380 = vor.u32 %v4378, %v4379
        %v4381 = vsub.s32 4294967266, %v4376
        %v4382 = vadd.s32 %v4381, 127
        %v4383 = vshll.u32 %v4382, 23
        %v4384 = vor.u32 4788187, %v4383
        %v4385 = vand.u32 2147483647, %v4384
        %v4387 = vcvt.s32.f32 %v4380
        %v4388 = vmul.f32 %v4387, %v4385
        %v4389 = vxor.u32 %v4388, 2147483648
        %v4390 = vsel %vm4307, %v4389, %v4388
        %v4391 = vsub.s32 4, %v4367
        %v4392 = vsel %vm4307, %v4391, %v4367
        %v4393 = vsel %vm4306, %v4211, %v4390
        %v4394 = vsel %vm4306, 0, %v4392
        %v4395 = vcosq.f32.pop %v4393
        %v4396 = vsinq.f32.pop %v4393
        %vm4397 = vweird.f32 %v4211
        %v4398 = vadd.s32 %v4394, 3
        %v4399 = vand.u32 %v4398, 3
        %vm4400 = vcmp.lt.s32.totalorder %v4399, 2
        %vm4401 = vcmp.eq.s32.totalorder %v4399, 0
        %v4402 = vxor.u32 %v4396, 2147483648
        %v4403 = vsel %vm4401, %v4395, %v4402
        %vm4404 = vcmp.eq.s32.totalorder %v4399, 2
        %v4405 = vxor.u32 %v4395, 2147483648
        %v4406 = vsel %vm4404, %v4405, %v4396
        %v4407 = vsel %vm4400, %v4403, %v4406
        %v4408 = vsel %vm4397, nan, %v4407
        %v4409 = vand.u32 2147483647, %v4213
        %vm4410 = vcmp.le.f32.partialorder %v4409, 0.7853982
        %vm4411 = vcmp.lt.s32.totalorder %v4213, 0
        %v4412 = vand.u32 %v4213, 2139095040
        %v4413 = vshrl.u32 %v4412, 23
        %v4414 = vsub.s32 %v4413, 127
        %v4415 = vand.u32 2147483647, %v4213
        %v4416 = vand.u32 %v4415, 8388607
        %v4417 = vor.u32 %v4416, 8388608
        %v4418 = vsub.s32 0, %v4417
        %v4419 = vadd.s32 %v4414, 1
        %vm4420 = vcmp.gt.s32.totalorder %v4419, 0
        %v4421 = vsel %vm4420, %v4419, 0
        %v4422 = vshrl.u32 %v4421, 5
        %v4423 = vand.u32 %v4421, 31
        %v4424 = vsub.s32 32, %v4423
        %v4425 = vshrl.u32 683565275, %v4424
        %v4426 = vshll.u32 683565275, %v4423
        %v4427 = vshrl.u32 2475754826, %v4424
        %v4428 = vor.u32 %v4426, %v4427
        %v4429 = vshll.u32 2475754826, %v4423
        %v4430 = vshrl.u32 2131351028, %v4424
        %v4431 = vor.u32 %v4429, %v4430
        %v4432 = vshll.u32 2131351028, %v4423
        %v4433 = vshrl.u32 2102212464, %v4424
        %v4434 = vor.u32 %v4432, %v4433
        %v4435 = vshll.u32 2102212464, %v4423
        %v4436 = vshrl.u32 920167782, %v4424
        %v4437 = vor.u32 %v4435, %v4436
        %v4438 = vshll.u32 920167782, %v4423
        %v4439 = vshrl.u32 1326507024, %v4424
        %v4440 = vor.u32 %v4438, %v4439
        %vm4441 = vcmp.lt.s32.totalorder %v4422, 1
        %vm4442 = vcmp.lt.s32.totalorder %v4422, 2
        %vm4443 = vcmp.lt.s32.totalorder %v4422, 3
        %vm4444 = vcmp.lt.s32.totalorder %v4422, 4
        %v4445 = vsel %vm4441, %v4425, %v4428
        %v4446 = vsel %vm4444, %v4434, 2102212464
        %v4447 = vsel %vm4443, %v4431, %v4446
        %v4448 = vsel %vm4442, %v4445, %v4447
        %v4449 = vsel %vm4441, %v4428, %v4431
        %v4450 = vsel %vm4444, %v4437, 920167782
        %v4451 = vsel %vm4443, %v4434, %v4450
        %v4452 = vsel %vm4442, %v4449, %v4451
        %v4453 = vsel %vm4441, %v4431, %v4434
        %v4454 = vsel %vm4444, %v4440, 1326507024
        %v4455 = vsel %vm4443, %v4437, %v4454
        %v4456 = vsel %vm4442, %v4453, %v4455
        %v4457 = vshll.u32 %v4417, 8
        %v4458 = vmul.u32.u64.compose %v4457, %v4456
        %v4459 = vextract.low.u32 %v4458
        %v4460 = vextract.high.u32 %v4458
        %v4461 = vmul.u32.u64.compose %v4457, %v4452
        %v4462 = vextract.low.u32 %v4461
        %v4463 = vextract.high.u32 %v4461
        %v4464 = vmul.u32 %v4457, %v4448
        %v4465 = vadd.s32 %v4460, %v4462
        %vm4466 = vc.u32 %v4460, %v4462
        %v4467 = vadd.s32 %v4463, 1
        %v4468 = vsel %vm4466, %v4467, %v4463
        %v4469 = vadd.s32 %v4464, %v4468
        %v4470 = vadd.s32 %v4469, 536870912
        %v4471 = vshrl.u32 %v4470, 30
        %v4472 = vshll.u32 %v4471, 30
        %v4473 = vsub.s32 %v4469, %v4472
        %vm4474 = vcmp.lt.s32.totalorder %v4473, 0
        %v4475 = vsub.s32 0, %v4473
        %v4476 = vsel %vm4474, %v4475, %v4473
        %v4477 = vclz %v4476
        %v4478 = vsub.s32 %v4477, 2
        %vm4479 = vcmp.gt.s32.totalorder 0, %v4478
        %v4480 = vsel %vm4479, 0, %v4478
        %v4481 = vsub.s32 32, %v4480
        %v4482 = vshll.u32 %v4473, %v4480
        %v4483 = vshrl.u32 %v4465, %v4481
        %v4484 = vor.u32 %v4482, %v4483
        %v4485 = vsub.s32 4294967266, %v4480
        %v4486 = vadd.s32 %v4485, 127
        %v4487 = vshll.u32 %v4486, 23
        %v4488 = vor.u32 4788187, %v4487
        %v4489 = vand.u32 2147483647, %v4488
        %v4491 = vcvt.s32.f32 %v4484
        %v4492 = vmul.f32 %v4491, %v4489
        %v4493 = vxor.u32 %v4492, 2147483648
        %v4494 = vsel %vm4411, %v4493, %v4492
        %v4495 = vsub.s32 4, %v4471
        %v4496 = vsel %vm4411, %v4495, %v4471
        %v4497 = vsel %vm4410, %v4213, %v4494
        %v4498 = vsel %vm4410, 0, %v4496
        %v4499 = vcosq.f32.pop %v4497
        %v4500 = vsinq.f32.pop %v4497
        %vm4501 = vweird.f32 %v4213
        %v4502 = vadd.s32 %v4498, 3
        %v4503 = vand.u32 %v4502, 3
        %vm4504 = vcmp.lt.s32.totalorder %v4503, 2
        %vm4505 = vcmp.eq.s32.totalorder %v4503, 0
        %v4506 = vxor.u32 %v4500, 2147483648
        %v4507 = vsel %vm4505, %v4499, %v4506
        %vm4508 = vcmp.eq.s32.totalorder %v4503, 2
        %v4509 = vxor.u32 %v4499, 2147483648
        %v4510 = vsel %vm4508, %v4509, %v4500
        %v4511 = vsel %vm4504, %v4507, %v4510
        %v4512 = vsel %vm4501, nan, %v4511
        %v4513 = vand.u32 2147483647, %v4217
        %vm4514 = vcmp.le.f32.partialorder %v4513, 0.7853982
        %vm4515 = vcmp.lt.s32.totalorder %v4217, 0
        %v4516 = vand.u32 %v4217, 2139095040
        %v4517 = vshrl.u32 %v4516, 23
        %v4518 = vsub.s32 %v4517, 127
        %v4519 = vand.u32 2147483647, %v4217
        %v4520 = vand.u32 %v4519, 8388607
        %v4521 = vor.u32 %v4520, 8388608
        %v4522 = vsub.s32 0, %v4521
        %v4523 = vadd.s32 %v4518, 1
        %vm4524 = vcmp.gt.s32.totalorder %v4523, 0
        %v4525 = vsel %vm4524, %v4523, 0
        %v4526 = vshrl.u32 %v4525, 5
        %v4527 = vand.u32 %v4525, 31
        %v4528 = vsub.s32 32, %v4527
        %v4529 = vshrl.u32 683565275, %v4528
        %v4530 = vshll.u32 683565275, %v4527
        %v4531 = vshrl.u32 2475754826, %v4528
        %v4532 = vor.u32 %v4530, %v4531
        %v4533 = vshll.u32 2475754826, %v4527
        %v4534 = vshrl.u32 2131351028, %v4528
        %v4535 = vor.u32 %v4533, %v4534
        %v4536 = vshll.u32 2131351028, %v4527
        %v4537 = vshrl.u32 2102212464, %v4528
        %v4538 = vor.u32 %v4536, %v4537
        %v4539 = vshll.u32 2102212464, %v4527
        %v4540 = vshrl.u32 920167782, %v4528
        %v4541 = vor.u32 %v4539, %v4540
        %v4542 = vshll.u32 920167782, %v4527
        %v4543 = vshrl.u32 1326507024, %v4528
        %v4544 = vor.u32 %v4542, %v4543
        %vm4545 = vcmp.lt.s32.totalorder %v4526, 1
        %vm4546 = vcmp.lt.s32.totalorder %v4526, 2
        %vm4547 = vcmp.lt.s32.totalorder %v4526, 3
        %vm4548 = vcmp.lt.s32.totalorder %v4526, 4
        %v4549 = vsel %vm4545, %v4529, %v4532
        %v4550 = vsel %vm4548, %v4538, 2102212464
        %v4551 = vsel %vm4547, %v4535, %v4550
        %v4552 = vsel %vm4546, %v4549, %v4551
        %v4553 = vsel %vm4545, %v4532, %v4535
        %v4554 = vsel %vm4548, %v4541, 920167782
        %v4555 = vsel %vm4547, %v4538, %v4554
        %v4556 = vsel %vm4546, %v4553, %v4555
        %v4557 = vsel %vm4545, %v4535, %v4538
        %v4558 = vsel %vm4548, %v4544, 1326507024
        %v4559 = vsel %vm4547, %v4541, %v4558
        %v4560 = vsel %vm4546, %v4557, %v4559
        %v4561 = vshll.u32 %v4521, 8
        %v4562 = vmul.u32.u64.compose %v4561, %v4560
        %v4563 = vextract.low.u32 %v4562
        %v4564 = vextract.high.u32 %v4562
        %v4565 = vmul.u32.u64.compose %v4561, %v4556
        %v4566 = vextract.low.u32 %v4565
        %v4567 = vextract.high.u32 %v4565
        %v4568 = vmul.u32 %v4561, %v4552
        %v4569 = vadd.s32 %v4564, %v4566
        %vm4570 = vc.u32 %v4564, %v4566
        %v4571 = vadd.s32 %v4567, 1
        %v4572 = vsel %vm4570, %v4571, %v4567
        %v4573 = vadd.s32 %v4568, %v4572
        %v4574 = vadd.s32 %v4573, 536870912
        %v4575 = vshrl.u32 %v4574, 30
        %v4576 = vshll.u32 %v4575, 30
        %v4577 = vsub.s32 %v4573, %v4576
        %vm4578 = vcmp.lt.s32.totalorder %v4577, 0
        %v4579 = vsub.s32 0, %v4577
        %v4580 = vsel %vm4578, %v4579, %v4577
        %v4581 = vclz %v4580
        %v4582 = vsub.s32 %v4581, 2
        %vm4583 = vcmp.gt.s32.totalorder 0, %v4582
        %v4584 = vsel %vm4583, 0, %v4582
        %v4585 = vsub.s32 32, %v4584
        %v4586 = vshll.u32 %v4577, %v4584
        %v4587 = vshrl.u32 %v4569, %v4585
        %v4588 = vor.u32 %v4586, %v4587
        %v4589 = vsub.s32 4294967266, %v4584
        %v4590 = vadd.s32 %v4589, 127
        %v4591 = vshll.u32 %v4590, 23
        %v4592 = vor.u32 4788187, %v4591
        %v4593 = vand.u32 2147483647, %v4592
        %v4595 = vcvt.s32.f32 %v4588
        %v4596 = vmul.f32 %v4595, %v4593
        %v4597 = vxor.u32 %v4596, 2147483648
        %v4598 = vsel %vm4515, %v4597, %v4596
        %v4599 = vsub.s32 4, %v4575
        %v4600 = vsel %vm4515, %v4599, %v4575
        %v4601 = vsel %vm4514, %v4217, %v4598
        %v4602 = vsel %vm4514, 0, %v4600
        %v4603 = vcosq.f32.pop %v4601
        %v4604 = vsinq.f32.pop %v4601
        %vm4605 = vweird.f32 %v4217
        %v4606 = vadd.s32 %v4602, 3
        %v4607 = vand.u32 %v4606, 3
        %vm4608 = vcmp.lt.s32.totalorder %v4607, 2
        %vm4609 = vcmp.eq.s32.totalorder %v4607, 0
        %v4610 = vxor.u32 %v4604, 2147483648
        %v4611 = vsel %vm4609, %v4603, %v4610
        %vm4612 = vcmp.eq.s32.totalorder %v4607, 2
        %v4613 = vxor.u32 %v4603, 2147483648
        %v4614 = vsel %vm4612, %v4613, %v4604
        %v4615 = vsel %vm4608, %v4611, %v4614
        %v4616 = vsel %vm4605, nan, %v4615
        %v4617 = vand.u32 2147483647, %v4219
        %vm4618 = vcmp.le.f32.partialorder %v4617, 0.7853982
        %vm4619 = vcmp.lt.s32.totalorder %v4219, 0
        %v4620 = vand.u32 %v4219, 2139095040
        %v4621 = vshrl.u32 %v4620, 23
        %v4622 = vsub.s32 %v4621, 127
        %v4623 = vand.u32 2147483647, %v4219
        %v4624 = vand.u32 %v4623, 8388607
        %v4625 = vor.u32 %v4624, 8388608
        %v4626 = vsub.s32 0, %v4625
        %v4627 = vadd.s32 %v4622, 1
        %vm4628 = vcmp.gt.s32.totalorder %v4627, 0
        %v4629 = vsel %vm4628, %v4627, 0
        %v4630 = vshrl.u32 %v4629, 5
        %v4631 = vand.u32 %v4629, 31
        %v4632 = vsub.s32 32, %v4631
        %v4633 = vshrl.u32 683565275, %v4632
        %v4634 = vshll.u32 683565275, %v4631
        %v4635 = vshrl.u32 2475754826, %v4632
        %v4636 = vor.u32 %v4634, %v4635
        %v4637 = vshll.u32 2475754826, %v4631
        %v4638 = vshrl.u32 2131351028, %v4632
        %v4639 = vor.u32 %v4637, %v4638
        %v4640 = vshll.u32 2131351028, %v4631
        %v4641 = vshrl.u32 2102212464, %v4632
        %v4642 = vor.u32 %v4640, %v4641
        %v4643 = vshll.u32 2102212464, %v4631
        %v4644 = vshrl.u32 920167782, %v4632
        %v4645 = vor.u32 %v4643, %v4644
        %v4646 = vshll.u32 920167782, %v4631
        %v4647 = vshrl.u32 1326507024, %v4632
        %v4648 = vor.u32 %v4646, %v4647
        %vm4649 = vcmp.lt.s32.totalorder %v4630, 1
        %vm4650 = vcmp.lt.s32.totalorder %v4630, 2
        %vm4651 = vcmp.lt.s32.totalorder %v4630, 3
        %vm4652 = vcmp.lt.s32.totalorder %v4630, 4
        %v4653 = vsel %vm4649, %v4633, %v4636
        %v4654 = vsel %vm4652, %v4642, 2102212464
        %v4655 = vsel %vm4651, %v4639, %v4654
        %v4656 = vsel %vm4650, %v4653, %v4655
        %v4657 = vsel %vm4649, %v4636, %v4639
        %v4658 = vsel %vm4652, %v4645, 920167782
        %v4659 = vsel %vm4651, %v4642, %v4658
        %v4660 = vsel %vm4650, %v4657, %v4659
        %v4661 = vsel %vm4649, %v4639, %v4642
        %v4662 = vsel %vm4652, %v4648, 1326507024
        %v4663 = vsel %vm4651, %v4645, %v4662
        %v4664 = vsel %vm4650, %v4661, %v4663
        %v4665 = vshll.u32 %v4625, 8
        %v4666 = vmul.u32.u64.compose %v4665, %v4664
        %v4667 = vextract.low.u32 %v4666
        %v4668 = vextract.high.u32 %v4666
        %v4669 = vmul.u32.u64.compose %v4665, %v4660
        %v4670 = vextract.low.u32 %v4669
        %v4671 = vextract.high.u32 %v4669
        %v4672 = vmul.u32 %v4665, %v4656
        %v4673 = vadd.s32 %v4668, %v4670
        %vm4674 = vc.u32 %v4668, %v4670
        %v4675 = vadd.s32 %v4671, 1
        %v4676 = vsel %vm4674, %v4675, %v4671
        %v4677 = vadd.s32 %v4672, %v4676
        %v4678 = vadd.s32 %v4677, 536870912
        %v4679 = vshrl.u32 %v4678, 30
        %v4680 = vshll.u32 %v4679, 30
        %v4681 = vsub.s32 %v4677, %v4680
        %vm4682 = vcmp.lt.s32.totalorder %v4681, 0
        %v4683 = vsub.s32 0, %v4681
        %v4684 = vsel %vm4682, %v4683, %v4681
        %v4685 = vclz %v4684
        %v4686 = vsub.s32 %v4685, 2
        %vm4687 = vcmp.gt.s32.totalorder 0, %v4686
        %v4688 = vsel %vm4687, 0, %v4686
        %v4689 = vsub.s32 32, %v4688
        %v4690 = vshll.u32 %v4681, %v4688
        %v4691 = vshrl.u32 %v4673, %v4689
        %v4692 = vor.u32 %v4690, %v4691
        %v4693 = vsub.s32 4294967266, %v4688
        %v4694 = vadd.s32 %v4693, 127
        %v4695 = vshll.u32 %v4694, 23
        %v4696 = vor.u32 4788187, %v4695
        %v4697 = vand.u32 2147483647, %v4696
        %v4699 = vcvt.s32.f32 %v4692
        %v4700 = vmul.f32 %v4699, %v4697
        %v4701 = vxor.u32 %v4700, 2147483648
        %v4702 = vsel %vm4619, %v4701, %v4700
        %v4703 = vsub.s32 4, %v4679
        %v4704 = vsel %vm4619, %v4703, %v4679
        %v4705 = vsel %vm4618, %v4219, %v4702
        %v4706 = vsel %vm4618, 0, %v4704
        %v4707 = vcosq.f32.pop %v4705
        %v4708 = vsinq.f32.pop %v4705
        %vm4709 = vweird.f32 %v4219
        %v4710 = vadd.s32 %v4706, 3
        %v4711 = vand.u32 %v4710, 3
        %vm4712 = vcmp.lt.s32.totalorder %v4711, 2
        %vm4713 = vcmp.eq.s32.totalorder %v4711, 0
        %v4714 = vxor.u32 %v4708, 2147483648
        %v4715 = vsel %vm4713, %v4707, %v4714
        %vm4716 = vcmp.eq.s32.totalorder %v4711, 2
        %v4717 = vxor.u32 %v4707, 2147483648
        %v4718 = vsel %vm4716, %v4717, %v4708
        %v4719 = vsel %vm4712, %v4715, %v4718
        %v4720 = vsel %vm4709, nan, %v4719
        %v4721 = vand.u32 2147483647, %v4223
        %vm4722 = vcmp.le.f32.partialorder %v4721, 0.7853982
        %vm4723 = vcmp.lt.s32.totalorder %v4223, 0
        %v4724 = vand.u32 %v4223, 2139095040
        %v4725 = vshrl.u32 %v4724, 23
        %v4726 = vsub.s32 %v4725, 127
        %v4727 = vand.u32 2147483647, %v4223
        %v4728 = vand.u32 %v4727, 8388607
        %v4729 = vor.u32 %v4728, 8388608
        %v4730 = vsub.s32 0, %v4729
        %v4731 = vadd.s32 %v4726, 1
        %vm4732 = vcmp.gt.s32.totalorder %v4731, 0
        %v4733 = vsel %vm4732, %v4731, 0
        %v4734 = vshrl.u32 %v4733, 5
        %v4735 = vand.u32 %v4733, 31
        %v4736 = vsub.s32 32, %v4735
        %v4737 = vshrl.u32 683565275, %v4736
        %v4738 = vshll.u32 683565275, %v4735
        %v4739 = vshrl.u32 2475754826, %v4736
        %v4740 = vor.u32 %v4738, %v4739
        %v4741 = vshll.u32 2475754826, %v4735
        %v4742 = vshrl.u32 2131351028, %v4736
        %v4743 = vor.u32 %v4741, %v4742
        %v4744 = vshll.u32 2131351028, %v4735
        %v4745 = vshrl.u32 2102212464, %v4736
        %v4746 = vor.u32 %v4744, %v4745
        %v4747 = vshll.u32 2102212464, %v4735
        %v4748 = vshrl.u32 920167782, %v4736
        %v4749 = vor.u32 %v4747, %v4748
        %v4750 = vshll.u32 920167782, %v4735
        %v4751 = vshrl.u32 1326507024, %v4736
        %v4752 = vor.u32 %v4750, %v4751
        %vm4753 = vcmp.lt.s32.totalorder %v4734, 1
        %vm4754 = vcmp.lt.s32.totalorder %v4734, 2
        %vm4755 = vcmp.lt.s32.totalorder %v4734, 3
        %vm4756 = vcmp.lt.s32.totalorder %v4734, 4
        %v4757 = vsel %vm4753, %v4737, %v4740
        %v4758 = vsel %vm4756, %v4746, 2102212464
        %v4759 = vsel %vm4755, %v4743, %v4758
        %v4760 = vsel %vm4754, %v4757, %v4759
        %v4761 = vsel %vm4753, %v4740, %v4743
        %v4762 = vsel %vm4756, %v4749, 920167782
        %v4763 = vsel %vm4755, %v4746, %v4762
        %v4764 = vsel %vm4754, %v4761, %v4763
        %v4765 = vsel %vm4753, %v4743, %v4746
        %v4766 = vsel %vm4756, %v4752, 1326507024
        %v4767 = vsel %vm4755, %v4749, %v4766
        %v4768 = vsel %vm4754, %v4765, %v4767
        %v4769 = vshll.u32 %v4729, 8
        %v4770 = vmul.u32.u64.compose %v4769, %v4768
        %v4771 = vextract.low.u32 %v4770
        %v4772 = vextract.high.u32 %v4770
        %v4773 = vmul.u32.u64.compose %v4769, %v4764
        %v4774 = vextract.low.u32 %v4773
        %v4775 = vextract.high.u32 %v4773
        %v4776 = vmul.u32 %v4769, %v4760
        %v4777 = vadd.s32 %v4772, %v4774
        %vm4778 = vc.u32 %v4772, %v4774
        %v4779 = vadd.s32 %v4775, 1
        %v4780 = vsel %vm4778, %v4779, %v4775
        %v4781 = vadd.s32 %v4776, %v4780
        %v4782 = vadd.s32 %v4781, 536870912
        %v4783 = vshrl.u32 %v4782, 30
        %v4784 = vshll.u32 %v4783, 30
        %v4785 = vsub.s32 %v4781, %v4784
        %vm4786 = vcmp.lt.s32.totalorder %v4785, 0
        %v4787 = vsub.s32 0, %v4785
        %v4788 = vsel %vm4786, %v4787, %v4785
        %v4789 = vclz %v4788
        %v4790 = vsub.s32 %v4789, 2
        %vm4791 = vcmp.gt.s32.totalorder 0, %v4790
        %v4792 = vsel %vm4791, 0, %v4790
        %v4793 = vsub.s32 32, %v4792
        %v4794 = vshll.u32 %v4785, %v4792
        %v4795 = vshrl.u32 %v4777, %v4793
        %v4796 = vor.u32 %v4794, %v4795
        %v4797 = vsub.s32 4294967266, %v4792
        %v4798 = vadd.s32 %v4797, 127
        %v4799 = vshll.u32 %v4798, 23
        %v4800 = vor.u32 4788187, %v4799
        %v4801 = vand.u32 2147483647, %v4800
        %v4803 = vcvt.s32.f32 %v4796
        %v4804 = vmul.f32 %v4803, %v4801
        %v4805 = vxor.u32 %v4804, 2147483648
        %v4806 = vsel %vm4723, %v4805, %v4804
        %v4807 = vsub.s32 4, %v4783
        %v4808 = vsel %vm4723, %v4807, %v4783
        %v4809 = vsel %vm4722, %v4223, %v4806
        %v4810 = vsel %vm4722, 0, %v4808
        %v4811 = vcosq.f32.pop %v4809
        %v4812 = vsinq.f32.pop %v4809
        %vm4813 = vweird.f32 %v4223
        %v4814 = vadd.s32 %v4810, 3
        %v4815 = vand.u32 %v4814, 3
        %vm4816 = vcmp.lt.s32.totalorder %v4815, 2
        %vm4817 = vcmp.eq.s32.totalorder %v4815, 0
        %v4818 = vxor.u32 %v4812, 2147483648
        %v4819 = vsel %vm4817, %v4811, %v4818
        %vm4820 = vcmp.eq.s32.totalorder %v4815, 2
        %v4821 = vxor.u32 %v4811, 2147483648
        %v4822 = vsel %vm4820, %v4821, %v4812
        %v4823 = vsel %vm4816, %v4819, %v4822
        %v4824 = vsel %vm4813, nan, %v4823
        %v4825 = vand.u32 2147483647, %v4225
        %vm4826 = vcmp.le.f32.partialorder %v4825, 0.7853982
        %vm4827 = vcmp.lt.s32.totalorder %v4225, 0
        %v4828 = vand.u32 %v4225, 2139095040
        %v4829 = vshrl.u32 %v4828, 23
        %v4830 = vsub.s32 %v4829, 127
        %v4831 = vand.u32 2147483647, %v4225
        %v4832 = vand.u32 %v4831, 8388607
        %v4833 = vor.u32 %v4832, 8388608
        %v4834 = vsub.s32 0, %v4833
        %v4835 = vadd.s32 %v4830, 1
        %vm4836 = vcmp.gt.s32.totalorder %v4835, 0
        %v4837 = vsel %vm4836, %v4835, 0
        %v4838 = vshrl.u32 %v4837, 5
        %v4839 = vand.u32 %v4837, 31
        %v4840 = vsub.s32 32, %v4839
        %v4841 = vshrl.u32 683565275, %v4840
        %v4842 = vshll.u32 683565275, %v4839
        %v4843 = vshrl.u32 2475754826, %v4840
        %v4844 = vor.u32 %v4842, %v4843
        %v4845 = vshll.u32 2475754826, %v4839
        %v4846 = vshrl.u32 2131351028, %v4840
        %v4847 = vor.u32 %v4845, %v4846
        %v4848 = vshll.u32 2131351028, %v4839
        %v4849 = vshrl.u32 2102212464, %v4840
        %v4850 = vor.u32 %v4848, %v4849
        %v4851 = vshll.u32 2102212464, %v4839
        %v4852 = vshrl.u32 920167782, %v4840
        %v4853 = vor.u32 %v4851, %v4852
        %v4854 = vshll.u32 920167782, %v4839
        %v4855 = vshrl.u32 1326507024, %v4840
        %v4856 = vor.u32 %v4854, %v4855
        %vm4857 = vcmp.lt.s32.totalorder %v4838, 1
        %vm4858 = vcmp.lt.s32.totalorder %v4838, 2
        %vm4859 = vcmp.lt.s32.totalorder %v4838, 3
        %vm4860 = vcmp.lt.s32.totalorder %v4838, 4
        %v4861 = vsel %vm4857, %v4841, %v4844
        %v4862 = vsel %vm4860, %v4850, 2102212464
        %v4863 = vsel %vm4859, %v4847, %v4862
        %v4864 = vsel %vm4858, %v4861, %v4863
        %v4865 = vsel %vm4857, %v4844, %v4847
        %v4866 = vsel %vm4860, %v4853, 920167782
        %v4867 = vsel %vm4859, %v4850, %v4866
        %v4868 = vsel %vm4858, %v4865, %v4867
        %v4869 = vsel %vm4857, %v4847, %v4850
        %v4870 = vsel %vm4860, %v4856, 1326507024
        %v4871 = vsel %vm4859, %v4853, %v4870
        %v4872 = vsel %vm4858, %v4869, %v4871
        %v4873 = vshll.u32 %v4833, 8
        %v4874 = vmul.u32.u64.compose %v4873, %v4872
        %v4875 = vextract.low.u32 %v4874
        %v4876 = vextract.high.u32 %v4874
        %v4877 = vmul.u32.u64.compose %v4873, %v4868
        %v4878 = vextract.low.u32 %v4877
        %v4879 = vextract.high.u32 %v4877
        %v4880 = vmul.u32 %v4873, %v4864
        %v4881 = vadd.s32 %v4876, %v4878
        %vm4882 = vc.u32 %v4876, %v4878
        %v4883 = vadd.s32 %v4879, 1
        %v4884 = vsel %vm4882, %v4883, %v4879
        %v4885 = vadd.s32 %v4880, %v4884
        %v4886 = vadd.s32 %v4885, 536870912
        %v4887 = vshrl.u32 %v4886, 30
        %v4888 = vshll.u32 %v4887, 30
        %v4889 = vsub.s32 %v4885, %v4888
        %vm4890 = vcmp.lt.s32.totalorder %v4889, 0
        %v4891 = vsub.s32 0, %v4889
        %v4892 = vsel %vm4890, %v4891, %v4889
        %v4893 = vclz %v4892
        %v4894 = vsub.s32 %v4893, 2
        %vm4895 = vcmp.gt.s32.totalorder 0, %v4894
        %v4896 = vsel %vm4895, 0, %v4894
        %v4897 = vsub.s32 32, %v4896
        %v4898 = vshll.u32 %v4889, %v4896
        %v4899 = vshrl.u32 %v4881, %v4897
        %v4900 = vor.u32 %v4898, %v4899
        %v4901 = vsub.s32 4294967266, %v4896
        %v4902 = vadd.s32 %v4901, 127
        %v4903 = vshll.u32 %v4902, 23
        %v4904 = vor.u32 4788187, %v4903
        %v4905 = vand.u32 2147483647, %v4904
        %v4907 = vcvt.s32.f32 %v4900
        %v4908 = vmul.f32 %v4907, %v4905
        %v4909 = vxor.u32 %v4908, 2147483648
        %v4910 = vsel %vm4827, %v4909, %v4908
        %v4911 = vsub.s32 4, %v4887
        %v4912 = vsel %vm4827, %v4911, %v4887
        %v4913 = vsel %vm4826, %v4225, %v4910
        %v4914 = vsel %vm4826, 0, %v4912
        %v4915 = vcosq.f32.pop %v4913
        %v4916 = vsinq.f32.pop %v4913
        %vm4917 = vweird.f32 %v4225
        %v4918 = vadd.s32 %v4914, 3
        %v4919 = vand.u32 %v4918, 3
        %vm4920 = vcmp.lt.s32.totalorder %v4919, 2
        %vm4921 = vcmp.eq.s32.totalorder %v4919, 0
        %v4922 = vxor.u32 %v4916, 2147483648
        %v4923 = vsel %vm4921, %v4915, %v4922
        %vm4924 = vcmp.eq.s32.totalorder %v4919, 2
        %v4925 = vxor.u32 %v4915, 2147483648
        %v4926 = vsel %vm4924, %v4925, %v4916
        %v4927 = vsel %vm4920, %v4923, %v4926
        %v4928 = vsel %vm4917, nan, %v4927
        %v4929 = vand.u32 2147483647, %v4229
        %vm4930 = vcmp.le.f32.partialorder %v4929, 0.7853982
        %vm4931 = vcmp.lt.s32.totalorder %v4229, 0
        %v4932 = vand.u32 %v4229, 2139095040
        %v4933 = vshrl.u32 %v4932, 23
        %v4934 = vsub.s32 %v4933, 127
        %v4935 = vand.u32 2147483647, %v4229
        %v4936 = vand.u32 %v4935, 8388607
        %v4937 = vor.u32 %v4936, 8388608
        %v4938 = vsub.s32 0, %v4937
        %v4939 = vadd.s32 %v4934, 1
        %vm4940 = vcmp.gt.s32.totalorder %v4939, 0
        %v4941 = vsel %vm4940, %v4939, 0
        %v4942 = vshrl.u32 %v4941, 5
        %v4943 = vand.u32 %v4941, 31
        %v4944 = vsub.s32 32, %v4943
        %v4945 = vshrl.u32 683565275, %v4944
        %v4946 = vshll.u32 683565275, %v4943
        %v4947 = vshrl.u32 2475754826, %v4944
        %v4948 = vor.u32 %v4946, %v4947
        %v4949 = vshll.u32 2475754826, %v4943
        %v4950 = vshrl.u32 2131351028, %v4944
        %v4951 = vor.u32 %v4949, %v4950
        %v4952 = vshll.u32 2131351028, %v4943
        %v4953 = vshrl.u32 2102212464, %v4944
        %v4954 = vor.u32 %v4952, %v4953
        %v4955 = vshll.u32 2102212464, %v4943
        %v4956 = vshrl.u32 920167782, %v4944
        %v4957 = vor.u32 %v4955, %v4956
        %v4958 = vshll.u32 920167782, %v4943
        %v4959 = vshrl.u32 1326507024, %v4944
        %v4960 = vor.u32 %v4958, %v4959
        %vm4961 = vcmp.lt.s32.totalorder %v4942, 1
        %vm4962 = vcmp.lt.s32.totalorder %v4942, 2
        %vm4963 = vcmp.lt.s32.totalorder %v4942, 3
        %vm4964 = vcmp.lt.s32.totalorder %v4942, 4
        %v4965 = vsel %vm4961, %v4945, %v4948
        %v4966 = vsel %vm4964, %v4954, 2102212464
        %v4967 = vsel %vm4963, %v4951, %v4966
        %v4968 = vsel %vm4962, %v4965, %v4967
        %v4969 = vsel %vm4961, %v4948, %v4951
        %v4970 = vsel %vm4964, %v4957, 920167782
        %v4971 = vsel %vm4963, %v4954, %v4970
        %v4972 = vsel %vm4962, %v4969, %v4971
        %v4973 = vsel %vm4961, %v4951, %v4954
        %v4974 = vsel %vm4964, %v4960, 1326507024
        %v4975 = vsel %vm4963, %v4957, %v4974
        %v4976 = vsel %vm4962, %v4973, %v4975
        %v4977 = vshll.u32 %v4937, 8
        %v4978 = vmul.u32.u64.compose %v4977, %v4976
        %v4979 = vextract.low.u32 %v4978
        %v4980 = vextract.high.u32 %v4978
        %v4981 = vmul.u32.u64.compose %v4977, %v4972
        %v4982 = vextract.low.u32 %v4981
        %v4983 = vextract.high.u32 %v4981
        %v4984 = vmul.u32 %v4977, %v4968
        %v4985 = vadd.s32 %v4980, %v4982
        %vm4986 = vc.u32 %v4980, %v4982
        %v4987 = vadd.s32 %v4983, 1
        %v4988 = vsel %vm4986, %v4987, %v4983
        %v4989 = vadd.s32 %v4984, %v4988
        %v4990 = vadd.s32 %v4989, 536870912
        %v4991 = vshrl.u32 %v4990, 30
        %v4992 = vshll.u32 %v4991, 30
        %v4993 = vsub.s32 %v4989, %v4992
        %vm4994 = vcmp.lt.s32.totalorder %v4993, 0
        %v4995 = vsub.s32 0, %v4993
        %v4996 = vsel %vm4994, %v4995, %v4993
        %v4997 = vclz %v4996
        %v4998 = vsub.s32 %v4997, 2
        %vm4999 = vcmp.gt.s32.totalorder 0, %v4998
        %v5000 = vsel %vm4999, 0, %v4998
        %v5001 = vsub.s32 32, %v5000
        %v5002 = vshll.u32 %v4993, %v5000
        %v5003 = vshrl.u32 %v4985, %v5001
        %v5004 = vor.u32 %v5002, %v5003
        %v5005 = vsub.s32 4294967266, %v5000
        %v5006 = vadd.s32 %v5005, 127
        %v5007 = vshll.u32 %v5006, 23
        %v5008 = vor.u32 4788187, %v5007
        %v5009 = vand.u32 2147483647, %v5008
        %v5011 = vcvt.s32.f32 %v5004
        %v5012 = vmul.f32 %v5011, %v5009
        %v5013 = vxor.u32 %v5012, 2147483648
        %v5014 = vsel %vm4931, %v5013, %v5012
        %v5015 = vsub.s32 4, %v4991
        %v5016 = vsel %vm4931, %v5015, %v4991
        %v5017 = vsel %vm4930, %v4229, %v5014
        %v5018 = vsel %vm4930, 0, %v5016
        %v5019 = vcosq.f32.pop %v5017
        %v5020 = vsinq.f32.pop %v5017
        %vm5021 = vweird.f32 %v4229
        %v5022 = vadd.s32 %v5018, 3
        %v5023 = vand.u32 %v5022, 3
        %vm5024 = vcmp.lt.s32.totalorder %v5023, 2
        %vm5025 = vcmp.eq.s32.totalorder %v5023, 0
        %v5026 = vxor.u32 %v5020, 2147483648
        %v5027 = vsel %vm5025, %v5019, %v5026
        %vm5028 = vcmp.eq.s32.totalorder %v5023, 2
        %v5029 = vxor.u32 %v5019, 2147483648
        %v5030 = vsel %vm5028, %v5029, %v5020
        %v5031 = vsel %vm5024, %v5027, %v5030
        %v5032 = vsel %vm5021, nan, %v5031
        %v5033 = vand.u32 2147483647, %v4231
        %vm5034 = vcmp.le.f32.partialorder %v5033, 0.7853982
        %vm5035 = vcmp.lt.s32.totalorder %v4231, 0
        %v5036 = vand.u32 %v4231, 2139095040
        %v5037 = vshrl.u32 %v5036, 23
        %v5038 = vsub.s32 %v5037, 127
        %v5039 = vand.u32 2147483647, %v4231
        %v5040 = vand.u32 %v5039, 8388607
        %v5041 = vor.u32 %v5040, 8388608
        %v5042 = vsub.s32 0, %v5041
        %v5043 = vadd.s32 %v5038, 1
        %vm5044 = vcmp.gt.s32.totalorder %v5043, 0
        %v5045 = vsel %vm5044, %v5043, 0
        %v5046 = vshrl.u32 %v5045, 5
        %v5047 = vand.u32 %v5045, 31
        %v5048 = vsub.s32 32, %v5047
        %v5049 = vshrl.u32 683565275, %v5048
        %v5050 = vshll.u32 683565275, %v5047
        %v5051 = vshrl.u32 2475754826, %v5048
        %v5052 = vor.u32 %v5050, %v5051
        %v5053 = vshll.u32 2475754826, %v5047
        %v5054 = vshrl.u32 2131351028, %v5048
        %v5055 = vor.u32 %v5053, %v5054
        %v5056 = vshll.u32 2131351028, %v5047
        %v5057 = vshrl.u32 2102212464, %v5048
        %v5058 = vor.u32 %v5056, %v5057
        %v5059 = vshll.u32 2102212464, %v5047
        %v5060 = vshrl.u32 920167782, %v5048
        %v5061 = vor.u32 %v5059, %v5060
        %v5062 = vshll.u32 920167782, %v5047
        %v5063 = vshrl.u32 1326507024, %v5048
        %v5064 = vor.u32 %v5062, %v5063
        %vm5065 = vcmp.lt.s32.totalorder %v5046, 1
        %vm5066 = vcmp.lt.s32.totalorder %v5046, 2
        %vm5067 = vcmp.lt.s32.totalorder %v5046, 3
        %vm5068 = vcmp.lt.s32.totalorder %v5046, 4
        %v5069 = vsel %vm5065, %v5049, %v5052
        %v5070 = vsel %vm5068, %v5058, 2102212464
        %v5071 = vsel %vm5067, %v5055, %v5070
        %v5072 = vsel %vm5066, %v5069, %v5071
        %v5073 = vsel %vm5065, %v5052, %v5055
        %v5074 = vsel %vm5068, %v5061, 920167782
        %v5075 = vsel %vm5067, %v5058, %v5074
        %v5076 = vsel %vm5066, %v5073, %v5075
        %v5077 = vsel %vm5065, %v5055, %v5058
        %v5078 = vsel %vm5068, %v5064, 1326507024
        %v5079 = vsel %vm5067, %v5061, %v5078
        %v5080 = vsel %vm5066, %v5077, %v5079
        %v5081 = vshll.u32 %v5041, 8
        %v5082 = vmul.u32.u64.compose %v5081, %v5080
        %v5083 = vextract.low.u32 %v5082
        %v5084 = vextract.high.u32 %v5082
        %v5085 = vmul.u32.u64.compose %v5081, %v5076
        %v5086 = vextract.low.u32 %v5085
        %v5087 = vextract.high.u32 %v5085
        %v5088 = vmul.u32 %v5081, %v5072
        %v5089 = vadd.s32 %v5084, %v5086
        %vm5090 = vc.u32 %v5084, %v5086
        %v5091 = vadd.s32 %v5087, 1
        %v5092 = vsel %vm5090, %v5091, %v5087
        %v5093 = vadd.s32 %v5088, %v5092
        %v5094 = vadd.s32 %v5093, 536870912
        %v5095 = vshrl.u32 %v5094, 30
        %v5096 = vshll.u32 %v5095, 30
        %v5097 = vsub.s32 %v5093, %v5096
        %vm5098 = vcmp.lt.s32.totalorder %v5097, 0
        %v5099 = vsub.s32 0, %v5097
        %v5100 = vsel %vm5098, %v5099, %v5097
        %v5101 = vclz %v5100
        %v5102 = vsub.s32 %v5101, 2
        %vm5103 = vcmp.gt.s32.totalorder 0, %v5102
        %v5104 = vsel %vm5103, 0, %v5102
        %v5105 = vsub.s32 32, %v5104
        %v5106 = vshll.u32 %v5097, %v5104
        %v5107 = vshrl.u32 %v5089, %v5105
        %v5108 = vor.u32 %v5106, %v5107
        %v5109 = vsub.s32 4294967266, %v5104
        %v5110 = vadd.s32 %v5109, 127
        %v5111 = vshll.u32 %v5110, 23
        %v5112 = vor.u32 4788187, %v5111
        %v5113 = vand.u32 2147483647, %v5112
        %v5115 = vcvt.s32.f32 %v5108
        %v5116 = vmul.f32 %v5115, %v5113
        %v5117 = vxor.u32 %v5116, 2147483648
        %v5118 = vsel %vm5035, %v5117, %v5116
        %v5119 = vsub.s32 4, %v5095
        %v5120 = vsel %vm5035, %v5119, %v5095
        %v5121 = vsel %vm5034, %v4231, %v5118
        %v5122 = vsel %vm5034, 0, %v5120
        %v5123 = vcosq.f32.pop %v5121
        %v5124 = vsinq.f32.pop %v5121
        %vm5125 = vweird.f32 %v4231
        %v5126 = vadd.s32 %v5122, 3
        %v5127 = vand.u32 %v5126, 3
        %vm5128 = vcmp.lt.s32.totalorder %v5127, 2
        %vm5129 = vcmp.eq.s32.totalorder %v5127, 0
        %v5130 = vxor.u32 %v5124, 2147483648
        %v5131 = vsel %vm5129, %v5123, %v5130
        %vm5132 = vcmp.eq.s32.totalorder %v5127, 2
        %v5133 = vxor.u32 %v5123, 2147483648
        %v5134 = vsel %vm5132, %v5133, %v5124
        %v5135 = vsel %vm5128, %v5131, %v5134
        %v5136 = vsel %vm5125, nan, %v5135
        %v5137 = vand.u32 2147483647, %v4235
        %vm5138 = vcmp.le.f32.partialorder %v5137, 0.7853982
        %vm5139 = vcmp.lt.s32.totalorder %v4235, 0
        %v5140 = vand.u32 %v4235, 2139095040
        %v5141 = vshrl.u32 %v5140, 23
        %v5142 = vsub.s32 %v5141, 127
        %v5143 = vand.u32 2147483647, %v4235
        %v5144 = vand.u32 %v5143, 8388607
        %v5145 = vor.u32 %v5144, 8388608
        %v5146 = vsub.s32 0, %v5145
        %v5147 = vadd.s32 %v5142, 1
        %vm5148 = vcmp.gt.s32.totalorder %v5147, 0
        %v5149 = vsel %vm5148, %v5147, 0
        %v5150 = vshrl.u32 %v5149, 5
        %v5151 = vand.u32 %v5149, 31
        %v5152 = vsub.s32 32, %v5151
        %v5153 = vshrl.u32 683565275, %v5152
        %v5154 = vshll.u32 683565275, %v5151
        %v5155 = vshrl.u32 2475754826, %v5152
        %v5156 = vor.u32 %v5154, %v5155
        %v5157 = vshll.u32 2475754826, %v5151
        %v5158 = vshrl.u32 2131351028, %v5152
        %v5159 = vor.u32 %v5157, %v5158
        %v5160 = vshll.u32 2131351028, %v5151
        %v5161 = vshrl.u32 2102212464, %v5152
        %v5162 = vor.u32 %v5160, %v5161
        %v5163 = vshll.u32 2102212464, %v5151
        %v5164 = vshrl.u32 920167782, %v5152
        %v5165 = vor.u32 %v5163, %v5164
        %v5166 = vshll.u32 920167782, %v5151
        %v5167 = vshrl.u32 1326507024, %v5152
        %v5168 = vor.u32 %v5166, %v5167
        %vm5169 = vcmp.lt.s32.totalorder %v5150, 1
        %vm5170 = vcmp.lt.s32.totalorder %v5150, 2
        %vm5171 = vcmp.lt.s32.totalorder %v5150, 3
        %vm5172 = vcmp.lt.s32.totalorder %v5150, 4
        %v5173 = vsel %vm5169, %v5153, %v5156
        %v5174 = vsel %vm5172, %v5162, 2102212464
        %v5175 = vsel %vm5171, %v5159, %v5174
        %v5176 = vsel %vm5170, %v5173, %v5175
        %v5177 = vsel %vm5169, %v5156, %v5159
        %v5178 = vsel %vm5172, %v5165, 920167782
        %v5179 = vsel %vm5171, %v5162, %v5178
        %v5180 = vsel %vm5170, %v5177, %v5179
        %v5181 = vsel %vm5169, %v5159, %v5162
        %v5182 = vsel %vm5172, %v5168, 1326507024
        %v5183 = vsel %vm5171, %v5165, %v5182
        %v5184 = vsel %vm5170, %v5181, %v5183
        %v5185 = vshll.u32 %v5145, 8
        %v5186 = vmul.u32.u64.compose %v5185, %v5184
        %v5187 = vextract.low.u32 %v5186
        %v5188 = vextract.high.u32 %v5186
        %v5189 = vmul.u32.u64.compose %v5185, %v5180
        %v5190 = vextract.low.u32 %v5189
        %v5191 = vextract.high.u32 %v5189
        %v5192 = vmul.u32 %v5185, %v5176
        %v5193 = vadd.s32 %v5188, %v5190
        %vm5194 = vc.u32 %v5188, %v5190
        %v5195 = vadd.s32 %v5191, 1
        %v5196 = vsel %vm5194, %v5195, %v5191
        %v5197 = vadd.s32 %v5192, %v5196
        %v5198 = vadd.s32 %v5197, 536870912
        %v5199 = vshrl.u32 %v5198, 30
        %v5200 = vshll.u32 %v5199, 30
        %v5201 = vsub.s32 %v5197, %v5200
        %vm5202 = vcmp.lt.s32.totalorder %v5201, 0
        %v5203 = vsub.s32 0, %v5201
        %v5204 = vsel %vm5202, %v5203, %v5201
        %v5205 = vclz %v5204
        %v5206 = vsub.s32 %v5205, 2
        %vm5207 = vcmp.gt.s32.totalorder 0, %v5206
        %v5208 = vsel %vm5207, 0, %v5206
        %v5209 = vsub.s32 32, %v5208
        %v5210 = vshll.u32 %v5201, %v5208
        %v5211 = vshrl.u32 %v5193, %v5209
        %v5212 = vor.u32 %v5210, %v5211
        %v5213 = vsub.s32 4294967266, %v5208
        %v5214 = vadd.s32 %v5213, 127
        %v5215 = vshll.u32 %v5214, 23
        %v5216 = vor.u32 4788187, %v5215
        %v5217 = vand.u32 2147483647, %v5216
        %v5219 = vcvt.s32.f32 %v5212
        %v5220 = vmul.f32 %v5219, %v5217
        %v5221 = vxor.u32 %v5220, 2147483648
        %v5222 = vsel %vm5139, %v5221, %v5220
        %v5223 = vsub.s32 4, %v5199
        %v5224 = vsel %vm5139, %v5223, %v5199
        %v5225 = vsel %vm5138, %v4235, %v5222
        %v5226 = vsel %vm5138, 0, %v5224
        %v5227 = vcosq.f32.pop %v5225
        %v5228 = vsinq.f32.pop %v5225
        %vm5229 = vweird.f32 %v4235
        %v5230 = vadd.s32 %v5226, 3
        %v5231 = vand.u32 %v5230, 3
        %vm5232 = vcmp.lt.s32.totalorder %v5231, 2
        %vm5233 = vcmp.eq.s32.totalorder %v5231, 0
        %v5234 = vxor.u32 %v5228, 2147483648
        %v5235 = vsel %vm5233, %v5227, %v5234
        %vm5236 = vcmp.eq.s32.totalorder %v5231, 2
        %v5237 = vxor.u32 %v5227, 2147483648
        %v5238 = vsel %vm5236, %v5237, %v5228
        %v5239 = vsel %vm5232, %v5235, %v5238
        %v5240 = vsel %vm5229, nan, %v5239
        %v5241 = vand.u32 2147483647, %v4237
        %vm5242 = vcmp.le.f32.partialorder %v5241, 0.7853982
        %vm5243 = vcmp.lt.s32.totalorder %v4237, 0
        %v5244 = vand.u32 %v4237, 2139095040
        %v5245 = vshrl.u32 %v5244, 23
        %v5246 = vsub.s32 %v5245, 127
        %v5247 = vand.u32 2147483647, %v4237
        %v5248 = vand.u32 %v5247, 8388607
        %v5249 = vor.u32 %v5248, 8388608
        %v5250 = vsub.s32 0, %v5249
        %v5251 = vadd.s32 %v5246, 1
        %vm5252 = vcmp.gt.s32.totalorder %v5251, 0
        %v5253 = vsel %vm5252, %v5251, 0
        %v5254 = vshrl.u32 %v5253, 5
        %v5255 = vand.u32 %v5253, 31
        %v5256 = vsub.s32 32, %v5255
        %v5257 = vshrl.u32 683565275, %v5256
        %v5258 = vshll.u32 683565275, %v5255
        %v5259 = vshrl.u32 2475754826, %v5256
        %v5260 = vor.u32 %v5258, %v5259
        %v5261 = vshll.u32 2475754826, %v5255
        %v5262 = vshrl.u32 2131351028, %v5256
        %v5263 = vor.u32 %v5261, %v5262
        %v5264 = vshll.u32 2131351028, %v5255
        %v5265 = vshrl.u32 2102212464, %v5256
        %v5266 = vor.u32 %v5264, %v5265
        %v5267 = vshll.u32 2102212464, %v5255
        %v5268 = vshrl.u32 920167782, %v5256
        %v5269 = vor.u32 %v5267, %v5268
        %v5270 = vshll.u32 920167782, %v5255
        %v5271 = vshrl.u32 1326507024, %v5256
        %v5272 = vor.u32 %v5270, %v5271
        %vm5273 = vcmp.lt.s32.totalorder %v5254, 1
        %vm5274 = vcmp.lt.s32.totalorder %v5254, 2
        %vm5275 = vcmp.lt.s32.totalorder %v5254, 3
        %vm5276 = vcmp.lt.s32.totalorder %v5254, 4
        %v5277 = vsel %vm5273, %v5257, %v5260
        %v5278 = vsel %vm5276, %v5266, 2102212464
        %v5279 = vsel %vm5275, %v5263, %v5278
        %v5280 = vsel %vm5274, %v5277, %v5279
        %v5281 = vsel %vm5273, %v5260, %v5263
        %v5282 = vsel %vm5276, %v5269, 920167782
        %v5283 = vsel %vm5275, %v5266, %v5282
        %v5284 = vsel %vm5274, %v5281, %v5283
        %v5285 = vsel %vm5273, %v5263, %v5266
        %v5286 = vsel %vm5276, %v5272, 1326507024
        %v5287 = vsel %vm5275, %v5269, %v5286
        %v5288 = vsel %vm5274, %v5285, %v5287
        %v5289 = vshll.u32 %v5249, 8
        %v5290 = vmul.u32.u64.compose %v5289, %v5288
        %v5291 = vextract.low.u32 %v5290
        %v5292 = vextract.high.u32 %v5290
        %v5293 = vmul.u32.u64.compose %v5289, %v5284
        %v5294 = vextract.low.u32 %v5293
        %v5295 = vextract.high.u32 %v5293
        %v5296 = vmul.u32 %v5289, %v5280
        %v5297 = vadd.s32 %v5292, %v5294
        %vm5298 = vc.u32 %v5292, %v5294
        %v5299 = vadd.s32 %v5295, 1
        %v5300 = vsel %vm5298, %v5299, %v5295
        %v5301 = vadd.s32 %v5296, %v5300
        %v5302 = vadd.s32 %v5301, 536870912
        %v5303 = vshrl.u32 %v5302, 30
        %v5304 = vshll.u32 %v5303, 30
        %v5305 = vsub.s32 %v5301, %v5304
        %vm5306 = vcmp.lt.s32.totalorder %v5305, 0
        %v5307 = vsub.s32 0, %v5305
        %v5308 = vsel %vm5306, %v5307, %v5305
        %v5309 = vclz %v5308
        %v5310 = vsub.s32 %v5309, 2
        %vm5311 = vcmp.gt.s32.totalorder 0, %v5310
        %v5312 = vsel %vm5311, 0, %v5310
        %v5313 = vsub.s32 32, %v5312
        %v5314 = vshll.u32 %v5305, %v5312
        %v5315 = vshrl.u32 %v5297, %v5313
        %v5316 = vor.u32 %v5314, %v5315
        %v5317 = vsub.s32 4294967266, %v5312
        %v5318 = vadd.s32 %v5317, 127
        %v5319 = vshll.u32 %v5318, 23
        %v5320 = vor.u32 4788187, %v5319
        %v5321 = vand.u32 2147483647, %v5320
        %v5323 = vcvt.s32.f32 %v5316
        %v5324 = vmul.f32 %v5323, %v5321
        %v5325 = vxor.u32 %v5324, 2147483648
        %v5326 = vsel %vm5243, %v5325, %v5324
        %v5327 = vsub.s32 4, %v5303
        %v5328 = vsel %vm5243, %v5327, %v5303
        %v5329 = vsel %vm5242, %v4237, %v5326
        %v5330 = vsel %vm5242, 0, %v5328
        %v5331 = vcosq.f32.pop %v5329
        %v5332 = vsinq.f32.pop %v5329
        %vm5333 = vweird.f32 %v4237
        %v5334 = vadd.s32 %v5330, 3
        %v5335 = vand.u32 %v5334, 3
        %vm5336 = vcmp.lt.s32.totalorder %v5335, 2
        %vm5337 = vcmp.eq.s32.totalorder %v5335, 0
        %v5338 = vxor.u32 %v5332, 2147483648
        %v5339 = vsel %vm5337, %v5331, %v5338
        %vm5340 = vcmp.eq.s32.totalorder %v5335, 2
        %v5341 = vxor.u32 %v5331, 2147483648
        %v5342 = vsel %vm5340, %v5341, %v5332
        %v5343 = vsel %vm5336, %v5339, %v5342
        %v5344 = vsel %vm5333, nan, %v5343
        %v5345 = vand.u32 2147483647, %v4241
        %vm5346 = vcmp.le.f32.partialorder %v5345, 0.7853982
        %vm5347 = vcmp.lt.s32.totalorder %v4241, 0
        %v5348 = vand.u32 %v4241, 2139095040
        %v5349 = vshrl.u32 %v5348, 23
        %v5350 = vsub.s32 %v5349, 127
        %v5351 = vand.u32 2147483647, %v4241
        %v5352 = vand.u32 %v5351, 8388607
        %v5353 = vor.u32 %v5352, 8388608
        %v5354 = vsub.s32 0, %v5353
        %v5355 = vadd.s32 %v5350, 1
        %vm5356 = vcmp.gt.s32.totalorder %v5355, 0
        %v5357 = vsel %vm5356, %v5355, 0
        %v5358 = vshrl.u32 %v5357, 5
        %v5359 = vand.u32 %v5357, 31
        %v5360 = vsub.s32 32, %v5359
        %v5361 = vshrl.u32 683565275, %v5360
        %v5362 = vshll.u32 683565275, %v5359
        %v5363 = vshrl.u32 2475754826, %v5360
        %v5364 = vor.u32 %v5362, %v5363
        %v5365 = vshll.u32 2475754826, %v5359
        %v5366 = vshrl.u32 2131351028, %v5360
        %v5367 = vor.u32 %v5365, %v5366
        %v5368 = vshll.u32 2131351028, %v5359
        %v5369 = vshrl.u32 2102212464, %v5360
        %v5370 = vor.u32 %v5368, %v5369
        %v5371 = vshll.u32 2102212464, %v5359
        %v5372 = vshrl.u32 920167782, %v5360
        %v5373 = vor.u32 %v5371, %v5372
        %v5374 = vshll.u32 920167782, %v5359
        %v5375 = vshrl.u32 1326507024, %v5360
        %v5376 = vor.u32 %v5374, %v5375
        %vm5377 = vcmp.lt.s32.totalorder %v5358, 1
        %vm5378 = vcmp.lt.s32.totalorder %v5358, 2
        %vm5379 = vcmp.lt.s32.totalorder %v5358, 3
        %vm5380 = vcmp.lt.s32.totalorder %v5358, 4
        %v5381 = vsel %vm5377, %v5361, %v5364
        %v5382 = vsel %vm5380, %v5370, 2102212464
        %v5383 = vsel %vm5379, %v5367, %v5382
        %v5384 = vsel %vm5378, %v5381, %v5383
        %v5385 = vsel %vm5377, %v5364, %v5367
        %v5386 = vsel %vm5380, %v5373, 920167782
        %v5387 = vsel %vm5379, %v5370, %v5386
        %v5388 = vsel %vm5378, %v5385, %v5387
        %v5389 = vsel %vm5377, %v5367, %v5370
        %v5390 = vsel %vm5380, %v5376, 1326507024
        %v5391 = vsel %vm5379, %v5373, %v5390
        %v5392 = vsel %vm5378, %v5389, %v5391
        %v5393 = vshll.u32 %v5353, 8
        %v5394 = vmul.u32.u64.compose %v5393, %v5392
        %v5395 = vextract.low.u32 %v5394
        %v5396 = vextract.high.u32 %v5394
        %v5397 = vmul.u32.u64.compose %v5393, %v5388
        %v5398 = vextract.low.u32 %v5397
        %v5399 = vextract.high.u32 %v5397
        %v5400 = vmul.u32 %v5393, %v5384
        %v5401 = vadd.s32 %v5396, %v5398
        %vm5402 = vc.u32 %v5396, %v5398
        %v5403 = vadd.s32 %v5399, 1
        %v5404 = vsel %vm5402, %v5403, %v5399
        %v5405 = vadd.s32 %v5400, %v5404
        %v5406 = vadd.s32 %v5405, 536870912
        %v5407 = vshrl.u32 %v5406, 30
        %v5408 = vshll.u32 %v5407, 30
        %v5409 = vsub.s32 %v5405, %v5408
        %vm5410 = vcmp.lt.s32.totalorder %v5409, 0
        %v5411 = vsub.s32 0, %v5409
        %v5412 = vsel %vm5410, %v5411, %v5409
        %v5413 = vclz %v5412
        %v5414 = vsub.s32 %v5413, 2
        %vm5415 = vcmp.gt.s32.totalorder 0, %v5414
        %v5416 = vsel %vm5415, 0, %v5414
        %v5417 = vsub.s32 32, %v5416
        %v5418 = vshll.u32 %v5409, %v5416
        %v5419 = vshrl.u32 %v5401, %v5417
        %v5420 = vor.u32 %v5418, %v5419
        %v5421 = vsub.s32 4294967266, %v5416
        %v5422 = vadd.s32 %v5421, 127
        %v5423 = vshll.u32 %v5422, 23
        %v5424 = vor.u32 4788187, %v5423
        %v5425 = vand.u32 2147483647, %v5424
        %v5427 = vcvt.s32.f32 %v5420
        %v5428 = vmul.f32 %v5427, %v5425
        %v5429 = vxor.u32 %v5428, 2147483648
        %v5430 = vsel %vm5347, %v5429, %v5428
        %v5431 = vsub.s32 4, %v5407
        %v5432 = vsel %vm5347, %v5431, %v5407
        %v5433 = vsel %vm5346, %v4241, %v5430
        %v5434 = vsel %vm5346, 0, %v5432
        %v5435 = vcosq.f32.pop %v5433
        %v5436 = vsinq.f32.pop %v5433
        %vm5437 = vweird.f32 %v4241
        %v5438 = vadd.s32 %v5434, 3
        %v5439 = vand.u32 %v5438, 3
        %vm5440 = vcmp.lt.s32.totalorder %v5439, 2
        %vm5441 = vcmp.eq.s32.totalorder %v5439, 0
        %v5442 = vxor.u32 %v5436, 2147483648
        %v5443 = vsel %vm5441, %v5435, %v5442
        %vm5444 = vcmp.eq.s32.totalorder %v5439, 2
        %v5445 = vxor.u32 %v5435, 2147483648
        %v5446 = vsel %vm5444, %v5445, %v5436
        %v5447 = vsel %vm5440, %v5443, %v5446
        %v5448 = vsel %vm5437, nan, %v5447
        %v5449 = vand.u32 2147483647, %v4243
        %vm5450 = vcmp.le.f32.partialorder %v5449, 0.7853982
        %vm5451 = vcmp.lt.s32.totalorder %v4243, 0
        %v5452 = vand.u32 %v4243, 2139095040
        %v5453 = vshrl.u32 %v5452, 23
        %v5454 = vsub.s32 %v5453, 127
        %v5455 = vand.u32 2147483647, %v4243
        %v5456 = vand.u32 %v5455, 8388607
        %v5457 = vor.u32 %v5456, 8388608
        %v5458 = vsub.s32 0, %v5457
        %v5459 = vadd.s32 %v5454, 1
        %vm5460 = vcmp.gt.s32.totalorder %v5459, 0
        %v5461 = vsel %vm5460, %v5459, 0
        %v5462 = vshrl.u32 %v5461, 5
        %v5463 = vand.u32 %v5461, 31
        %v5464 = vsub.s32 32, %v5463
        %v5465 = vshrl.u32 683565275, %v5464
        %v5466 = vshll.u32 683565275, %v5463
        %v5467 = vshrl.u32 2475754826, %v5464
        %v5468 = vor.u32 %v5466, %v5467
        %v5469 = vshll.u32 2475754826, %v5463
        %v5470 = vshrl.u32 2131351028, %v5464
        %v5471 = vor.u32 %v5469, %v5470
        %v5472 = vshll.u32 2131351028, %v5463
        %v5473 = vshrl.u32 2102212464, %v5464
        %v5474 = vor.u32 %v5472, %v5473
        %v5475 = vshll.u32 2102212464, %v5463
        %v5476 = vshrl.u32 920167782, %v5464
        %v5477 = vor.u32 %v5475, %v5476
        %v5478 = vshll.u32 920167782, %v5463
        %v5479 = vshrl.u32 1326507024, %v5464
        %v5480 = vor.u32 %v5478, %v5479
        %vm5481 = vcmp.lt.s32.totalorder %v5462, 1
        %vm5482 = vcmp.lt.s32.totalorder %v5462, 2
        %vm5483 = vcmp.lt.s32.totalorder %v5462, 3
        %vm5484 = vcmp.lt.s32.totalorder %v5462, 4
        %v5485 = vsel %vm5481, %v5465, %v5468
        %v5486 = vsel %vm5484, %v5474, 2102212464
        %v5487 = vsel %vm5483, %v5471, %v5486
        %v5488 = vsel %vm5482, %v5485, %v5487
        %v5489 = vsel %vm5481, %v5468, %v5471
        %v5490 = vsel %vm5484, %v5477, 920167782
        %v5491 = vsel %vm5483, %v5474, %v5490
        %v5492 = vsel %vm5482, %v5489, %v5491
        %v5493 = vsel %vm5481, %v5471, %v5474
        %v5494 = vsel %vm5484, %v5480, 1326507024
        %v5495 = vsel %vm5483, %v5477, %v5494
        %v5496 = vsel %vm5482, %v5493, %v5495
        %v5497 = vshll.u32 %v5457, 8
        %v5498 = vmul.u32.u64.compose %v5497, %v5496
        %v5499 = vextract.low.u32 %v5498
        %v5500 = vextract.high.u32 %v5498
        %v5501 = vmul.u32.u64.compose %v5497, %v5492
        %v5502 = vextract.low.u32 %v5501
        %v5503 = vextract.high.u32 %v5501
        %v5504 = vmul.u32 %v5497, %v5488
        %v5505 = vadd.s32 %v5500, %v5502
        %vm5506 = vc.u32 %v5500, %v5502
        %v5507 = vadd.s32 %v5503, 1
        %v5508 = vsel %vm5506, %v5507, %v5503
        %v5509 = vadd.s32 %v5504, %v5508
        %v5510 = vadd.s32 %v5509, 536870912
        %v5511 = vshrl.u32 %v5510, 30
        %v5512 = vshll.u32 %v5511, 30
        %v5513 = vsub.s32 %v5509, %v5512
        %vm5514 = vcmp.lt.s32.totalorder %v5513, 0
        %v5515 = vsub.s32 0, %v5513
        %v5516 = vsel %vm5514, %v5515, %v5513
        %v5517 = vclz %v5516
        %v5518 = vsub.s32 %v5517, 2
        %vm5519 = vcmp.gt.s32.totalorder 0, %v5518
        %v5520 = vsel %vm5519, 0, %v5518
        %v5521 = vsub.s32 32, %v5520
        %v5522 = vshll.u32 %v5513, %v5520
        %v5523 = vshrl.u32 %v5505, %v5521
        %v5524 = vor.u32 %v5522, %v5523
        %v5525 = vsub.s32 4294967266, %v5520
        %v5526 = vadd.s32 %v5525, 127
        %v5527 = vshll.u32 %v5526, 23
        %v5528 = vor.u32 4788187, %v5527
        %v5529 = vand.u32 2147483647, %v5528
        %v5531 = vcvt.s32.f32 %v5524
        %v5532 = vmul.f32 %v5531, %v5529
        %v5533 = vxor.u32 %v5532, 2147483648
        %v5534 = vsel %vm5451, %v5533, %v5532
        %v5535 = vsub.s32 4, %v5511
        %v5536 = vsel %vm5451, %v5535, %v5511
        %v5537 = vsel %vm5450, %v4243, %v5534
        %v5538 = vsel %vm5450, 0, %v5536
        %v5539 = vcosq.f32.pop %v5537
        %v5540 = vsinq.f32.pop %v5537
        %vm5541 = vweird.f32 %v4243
        %v5542 = vadd.s32 %v5538, 3
        %v5543 = vand.u32 %v5542, 3
        %vm5544 = vcmp.lt.s32.totalorder %v5543, 2
        %vm5545 = vcmp.eq.s32.totalorder %v5543, 0
        %v5546 = vxor.u32 %v5540, 2147483648
        %v5547 = vsel %vm5545, %v5539, %v5546
        %vm5548 = vcmp.eq.s32.totalorder %v5543, 2
        %v5549 = vxor.u32 %v5539, 2147483648
        %v5550 = vsel %vm5548, %v5549, %v5540
        %v5551 = vsel %vm5544, %v5547, %v5550
        %v5552 = vsel %vm5541, nan, %v5551
        %v5553 = vand.u32 2147483647, %v4247
        %vm5554 = vcmp.le.f32.partialorder %v5553, 0.7853982
        %vm5555 = vcmp.lt.s32.totalorder %v4247, 0
        %v5556 = vand.u32 %v4247, 2139095040
        %v5557 = vshrl.u32 %v5556, 23
        %v5558 = vsub.s32 %v5557, 127
        %v5559 = vand.u32 2147483647, %v4247
        %v5560 = vand.u32 %v5559, 8388607
        %v5561 = vor.u32 %v5560, 8388608
        %v5562 = vsub.s32 0, %v5561
        %v5563 = vadd.s32 %v5558, 1
        %vm5564 = vcmp.gt.s32.totalorder %v5563, 0
        %v5565 = vsel %vm5564, %v5563, 0
        %v5566 = vshrl.u32 %v5565, 5
        %v5567 = vand.u32 %v5565, 31
        %v5568 = vsub.s32 32, %v5567
        %v5569 = vshrl.u32 683565275, %v5568
        %v5570 = vshll.u32 683565275, %v5567
        %v5571 = vshrl.u32 2475754826, %v5568
        %v5572 = vor.u32 %v5570, %v5571
        %v5573 = vshll.u32 2475754826, %v5567
        %v5574 = vshrl.u32 2131351028, %v5568
        %v5575 = vor.u32 %v5573, %v5574
        %v5576 = vshll.u32 2131351028, %v5567
        %v5577 = vshrl.u32 2102212464, %v5568
        %v5578 = vor.u32 %v5576, %v5577
        %v5579 = vshll.u32 2102212464, %v5567
        %v5580 = vshrl.u32 920167782, %v5568
        %v5581 = vor.u32 %v5579, %v5580
        %v5582 = vshll.u32 920167782, %v5567
        %v5583 = vshrl.u32 1326507024, %v5568
        %v5584 = vor.u32 %v5582, %v5583
        %vm5585 = vcmp.lt.s32.totalorder %v5566, 1
        %vm5586 = vcmp.lt.s32.totalorder %v5566, 2
        %vm5587 = vcmp.lt.s32.totalorder %v5566, 3
        %vm5588 = vcmp.lt.s32.totalorder %v5566, 4
        %v5589 = vsel %vm5585, %v5569, %v5572
        %v5590 = vsel %vm5588, %v5578, 2102212464
        %v5591 = vsel %vm5587, %v5575, %v5590
        %v5592 = vsel %vm5586, %v5589, %v5591
        %v5593 = vsel %vm5585, %v5572, %v5575
        %v5594 = vsel %vm5588, %v5581, 920167782
        %v5595 = vsel %vm5587, %v5578, %v5594
        %v5596 = vsel %vm5586, %v5593, %v5595
        %v5597 = vsel %vm5585, %v5575, %v5578
        %v5598 = vsel %vm5588, %v5584, 1326507024
        %v5599 = vsel %vm5587, %v5581, %v5598
        %v5600 = vsel %vm5586, %v5597, %v5599
        %v5601 = vshll.u32 %v5561, 8
        %v5602 = vmul.u32.u64.compose %v5601, %v5600
        %v5603 = vextract.low.u32 %v5602
        %v5604 = vextract.high.u32 %v5602
        %v5605 = vmul.u32.u64.compose %v5601, %v5596
        %v5606 = vextract.low.u32 %v5605
        %v5607 = vextract.high.u32 %v5605
        %v5608 = vmul.u32 %v5601, %v5592
        %v5609 = vadd.s32 %v5604, %v5606
        %vm5610 = vc.u32 %v5604, %v5606
        %v5611 = vadd.s32 %v5607, 1
        %v5612 = vsel %vm5610, %v5611, %v5607
        %v5613 = vadd.s32 %v5608, %v5612
        %v5614 = vadd.s32 %v5613, 536870912
        %v5615 = vshrl.u32 %v5614, 30
        %v5616 = vshll.u32 %v5615, 30
        %v5617 = vsub.s32 %v5613, %v5616
        %vm5618 = vcmp.lt.s32.totalorder %v5617, 0
        %v5619 = vsub.s32 0, %v5617
        %v5620 = vsel %vm5618, %v5619, %v5617
        %v5621 = vclz %v5620
        %v5622 = vsub.s32 %v5621, 2
        %vm5623 = vcmp.gt.s32.totalorder 0, %v5622
        %v5624 = vsel %vm5623, 0, %v5622
        %v5625 = vsub.s32 32, %v5624
        %v5626 = vshll.u32 %v5617, %v5624
        %v5627 = vshrl.u32 %v5609, %v5625
        %v5628 = vor.u32 %v5626, %v5627
        %v5629 = vsub.s32 4294967266, %v5624
        %v5630 = vadd.s32 %v5629, 127
        %v5631 = vshll.u32 %v5630, 23
        %v5632 = vor.u32 4788187, %v5631
        %v5633 = vand.u32 2147483647, %v5632
        %v5635 = vcvt.s32.f32 %v5628
        %v5636 = vmul.f32 %v5635, %v5633
        %v5637 = vxor.u32 %v5636, 2147483648
        %v5638 = vsel %vm5555, %v5637, %v5636
        %v5639 = vsub.s32 4, %v5615
        %v5640 = vsel %vm5555, %v5639, %v5615
        %v5641 = vsel %vm5554, %v4247, %v5638
        %v5642 = vsel %vm5554, 0, %v5640
        %v5643 = vcosq.f32.pop %v5641
        %v5644 = vsinq.f32.pop %v5641
        %vm5645 = vweird.f32 %v4247
        %v5646 = vadd.s32 %v5642, 3
        %v5647 = vand.u32 %v5646, 3
        %vm5648 = vcmp.lt.s32.totalorder %v5647, 2
        %vm5649 = vcmp.eq.s32.totalorder %v5647, 0
        %v5650 = vxor.u32 %v5644, 2147483648
        %v5651 = vsel %vm5649, %v5643, %v5650
        %vm5652 = vcmp.eq.s32.totalorder %v5647, 2
        %v5653 = vxor.u32 %v5643, 2147483648
        %v5654 = vsel %vm5652, %v5653, %v5644
        %v5655 = vsel %vm5648, %v5651, %v5654
        %v5656 = vsel %vm5645, nan, %v5655
        %v5657 = vand.u32 2147483647, %v4249
        %vm5658 = vcmp.le.f32.partialorder %v5657, 0.7853982
        %vm5659 = vcmp.lt.s32.totalorder %v4249, 0
        %v5660 = vand.u32 %v4249, 2139095040
        %v5661 = vshrl.u32 %v5660, 23
        %v5662 = vsub.s32 %v5661, 127
        %v5663 = vand.u32 2147483647, %v4249
        %v5664 = vand.u32 %v5663, 8388607
        %v5665 = vor.u32 %v5664, 8388608
        %v5666 = vsub.s32 0, %v5665
        %v5667 = vadd.s32 %v5662, 1
        %vm5668 = vcmp.gt.s32.totalorder %v5667, 0
        %v5669 = vsel %vm5668, %v5667, 0
        %v5670 = vshrl.u32 %v5669, 5
        %v5671 = vand.u32 %v5669, 31
        %v5672 = vsub.s32 32, %v5671
        %v5673 = vshrl.u32 683565275, %v5672
        %v5674 = vshll.u32 683565275, %v5671
        %v5675 = vshrl.u32 2475754826, %v5672
        %v5676 = vor.u32 %v5674, %v5675
        %v5677 = vshll.u32 2475754826, %v5671
        %v5678 = vshrl.u32 2131351028, %v5672
        %v5679 = vor.u32 %v5677, %v5678
        %v5680 = vshll.u32 2131351028, %v5671
        %v5681 = vshrl.u32 2102212464, %v5672
        %v5682 = vor.u32 %v5680, %v5681
        %v5683 = vshll.u32 2102212464, %v5671
        %v5684 = vshrl.u32 920167782, %v5672
        %v5685 = vor.u32 %v5683, %v5684
        %v5686 = vshll.u32 920167782, %v5671
        %v5687 = vshrl.u32 1326507024, %v5672
        %v5688 = vor.u32 %v5686, %v5687
        %vm5689 = vcmp.lt.s32.totalorder %v5670, 1
        %vm5690 = vcmp.lt.s32.totalorder %v5670, 2
        %vm5691 = vcmp.lt.s32.totalorder %v5670, 3
        %vm5692 = vcmp.lt.s32.totalorder %v5670, 4
        %v5693 = vsel %vm5689, %v5673, %v5676
        %v5694 = vsel %vm5692, %v5682, 2102212464
        %v5695 = vsel %vm5691, %v5679, %v5694
        %v5696 = vsel %vm5690, %v5693, %v5695
        %v5697 = vsel %vm5689, %v5676, %v5679
        %v5698 = vsel %vm5692, %v5685, 920167782
        %v5699 = vsel %vm5691, %v5682, %v5698
        %v5700 = vsel %vm5690, %v5697, %v5699
        %v5701 = vsel %vm5689, %v5679, %v5682
        %v5702 = vsel %vm5692, %v5688, 1326507024
        %v5703 = vsel %vm5691, %v5685, %v5702
        %v5704 = vsel %vm5690, %v5701, %v5703
        %v5705 = vshll.u32 %v5665, 8
        %v5706 = vmul.u32.u64.compose %v5705, %v5704
        %v5707 = vextract.low.u32 %v5706
        %v5708 = vextract.high.u32 %v5706
        %v5709 = vmul.u32.u64.compose %v5705, %v5700
        %v5710 = vextract.low.u32 %v5709
        %v5711 = vextract.high.u32 %v5709
        %v5712 = vmul.u32 %v5705, %v5696
        %v5713 = vadd.s32 %v5708, %v5710
        %vm5714 = vc.u32 %v5708, %v5710
        %v5715 = vadd.s32 %v5711, 1
        %v5716 = vsel %vm5714, %v5715, %v5711
        %v5717 = vadd.s32 %v5712, %v5716
        %v5718 = vadd.s32 %v5717, 536870912
        %v5719 = vshrl.u32 %v5718, 30
        %v5720 = vshll.u32 %v5719, 30
        %v5721 = vsub.s32 %v5717, %v5720
        %vm5722 = vcmp.lt.s32.totalorder %v5721, 0
        %v5723 = vsub.s32 0, %v5721
        %v5724 = vsel %vm5722, %v5723, %v5721
        %v5725 = vclz %v5724
        %v5726 = vsub.s32 %v5725, 2
        %vm5727 = vcmp.gt.s32.totalorder 0, %v5726
        %v5728 = vsel %vm5727, 0, %v5726
        %v5729 = vsub.s32 32, %v5728
        %v5730 = vshll.u32 %v5721, %v5728
        %v5731 = vshrl.u32 %v5713, %v5729
        %v5732 = vor.u32 %v5730, %v5731
        %v5733 = vsub.s32 4294967266, %v5728
        %v5734 = vadd.s32 %v5733, 127
        %v5735 = vshll.u32 %v5734, 23
        %v5736 = vor.u32 4788187, %v5735
        %v5737 = vand.u32 2147483647, %v5736
        %v5739 = vcvt.s32.f32 %v5732
        %v5740 = vmul.f32 %v5739, %v5737
        %v5741 = vxor.u32 %v5740, 2147483648
        %v5742 = vsel %vm5659, %v5741, %v5740
        %v5743 = vsub.s32 4, %v5719
        %v5744 = vsel %vm5659, %v5743, %v5719
        %v5745 = vsel %vm5658, %v4249, %v5742
        %v5746 = vsel %vm5658, 0, %v5744
        %v5747 = vcosq.f32.pop %v5745
        %v5748 = vsinq.f32.pop %v5745
        %vm5749 = vweird.f32 %v4249
        %v5750 = vadd.s32 %v5746, 3
        %v5751 = vand.u32 %v5750, 3
        %vm5752 = vcmp.lt.s32.totalorder %v5751, 2
        %vm5753 = vcmp.eq.s32.totalorder %v5751, 0
        %v5754 = vxor.u32 %v5748, 2147483648
        %v5755 = vsel %vm5753, %v5747, %v5754
        %vm5756 = vcmp.eq.s32.totalorder %v5751, 2
        %v5757 = vxor.u32 %v5747, 2147483648
        %v5758 = vsel %vm5756, %v5757, %v5748
        %v5759 = vsel %vm5752, %v5755, %v5758
        %v5760 = vsel %vm5749, nan, %v5759
        %v5761 = vand.u32 2147483647, %v4253
        %vm5762 = vcmp.le.f32.partialorder %v5761, 0.7853982
        %vm5763 = vcmp.lt.s32.totalorder %v4253, 0
        %v5764 = vand.u32 %v4253, 2139095040
        %v5765 = vshrl.u32 %v5764, 23
        %v5766 = vsub.s32 %v5765, 127
        %v5767 = vand.u32 2147483647, %v4253
        %v5768 = vand.u32 %v5767, 8388607
        %v5769 = vor.u32 %v5768, 8388608
        %v5770 = vsub.s32 0, %v5769
        %v5771 = vadd.s32 %v5766, 1
        %vm5772 = vcmp.gt.s32.totalorder %v5771, 0
        %v5773 = vsel %vm5772, %v5771, 0
        %v5774 = vshrl.u32 %v5773, 5
        %v5775 = vand.u32 %v5773, 31
        %v5776 = vsub.s32 32, %v5775
        %v5777 = vshrl.u32 683565275, %v5776
        %v5778 = vshll.u32 683565275, %v5775
        %v5779 = vshrl.u32 2475754826, %v5776
        %v5780 = vor.u32 %v5778, %v5779
        %v5781 = vshll.u32 2475754826, %v5775
        %v5782 = vshrl.u32 2131351028, %v5776
        %v5783 = vor.u32 %v5781, %v5782
        %v5784 = vshll.u32 2131351028, %v5775
        %v5785 = vshrl.u32 2102212464, %v5776
        %v5786 = vor.u32 %v5784, %v5785
        %v5787 = vshll.u32 2102212464, %v5775
        %v5788 = vshrl.u32 920167782, %v5776
        %v5789 = vor.u32 %v5787, %v5788
        %v5790 = vshll.u32 920167782, %v5775
        %v5791 = vshrl.u32 1326507024, %v5776
        %v5792 = vor.u32 %v5790, %v5791
        %vm5793 = vcmp.lt.s32.totalorder %v5774, 1
        %vm5794 = vcmp.lt.s32.totalorder %v5774, 2
        %vm5795 = vcmp.lt.s32.totalorder %v5774, 3
        %vm5796 = vcmp.lt.s32.totalorder %v5774, 4
        %v5797 = vsel %vm5793, %v5777, %v5780
        %v5798 = vsel %vm5796, %v5786, 2102212464
        %v5799 = vsel %vm5795, %v5783, %v5798
        %v5800 = vsel %vm5794, %v5797, %v5799
        %v5801 = vsel %vm5793, %v5780, %v5783
        %v5802 = vsel %vm5796, %v5789, 920167782
        %v5803 = vsel %vm5795, %v5786, %v5802
        %v5804 = vsel %vm5794, %v5801, %v5803
        %v5805 = vsel %vm5793, %v5783, %v5786
        %v5806 = vsel %vm5796, %v5792, 1326507024
        %v5807 = vsel %vm5795, %v5789, %v5806
        %v5808 = vsel %vm5794, %v5805, %v5807
        %v5809 = vshll.u32 %v5769, 8
        %v5810 = vmul.u32.u64.compose %v5809, %v5808
        %v5811 = vextract.low.u32 %v5810
        %v5812 = vextract.high.u32 %v5810
        %v5813 = vmul.u32.u64.compose %v5809, %v5804
        %v5814 = vextract.low.u32 %v5813
        %v5815 = vextract.high.u32 %v5813
        %v5816 = vmul.u32 %v5809, %v5800
        %v5817 = vadd.s32 %v5812, %v5814
        %vm5818 = vc.u32 %v5812, %v5814
        %v5819 = vadd.s32 %v5815, 1
        %v5820 = vsel %vm5818, %v5819, %v5815
        %v5821 = vadd.s32 %v5816, %v5820
        %v5822 = vadd.s32 %v5821, 536870912
        %v5823 = vshrl.u32 %v5822, 30
        %v5824 = vshll.u32 %v5823, 30
        %v5825 = vsub.s32 %v5821, %v5824
        %vm5826 = vcmp.lt.s32.totalorder %v5825, 0
        %v5827 = vsub.s32 0, %v5825
        %v5828 = vsel %vm5826, %v5827, %v5825
        %v5829 = vclz %v5828
        %v5830 = vsub.s32 %v5829, 2
        %vm5831 = vcmp.gt.s32.totalorder 0, %v5830
        %v5832 = vsel %vm5831, 0, %v5830
        %v5833 = vsub.s32 32, %v5832
        %v5834 = vshll.u32 %v5825, %v5832
        %v5835 = vshrl.u32 %v5817, %v5833
        %v5836 = vor.u32 %v5834, %v5835
        %v5837 = vsub.s32 4294967266, %v5832
        %v5838 = vadd.s32 %v5837, 127
        %v5839 = vshll.u32 %v5838, 23
        %v5840 = vor.u32 4788187, %v5839
        %v5841 = vand.u32 2147483647, %v5840
        %v5843 = vcvt.s32.f32 %v5836
        %v5844 = vmul.f32 %v5843, %v5841
        %v5845 = vxor.u32 %v5844, 2147483648
        %v5846 = vsel %vm5763, %v5845, %v5844
        %v5847 = vsub.s32 4, %v5823
        %v5848 = vsel %vm5763, %v5847, %v5823
        %v5849 = vsel %vm5762, %v4253, %v5846
        %v5850 = vsel %vm5762, 0, %v5848
        %v5851 = vcosq.f32.pop %v5849
        %v5852 = vsinq.f32.pop %v5849
        %vm5853 = vweird.f32 %v4253
        %v5854 = vadd.s32 %v5850, 3
        %v5855 = vand.u32 %v5854, 3
        %vm5856 = vcmp.lt.s32.totalorder %v5855, 2
        %vm5857 = vcmp.eq.s32.totalorder %v5855, 0
        %v5858 = vxor.u32 %v5852, 2147483648
        %v5859 = vsel %vm5857, %v5851, %v5858
        %vm5860 = vcmp.eq.s32.totalorder %v5855, 2
        %v5861 = vxor.u32 %v5851, 2147483648
        %v5862 = vsel %vm5860, %v5861, %v5852
        %v5863 = vsel %vm5856, %v5859, %v5862
        %v5864 = vsel %vm5853, nan, %v5863
        %v5865 = vand.u32 2147483647, %v4255
        %vm5866 = vcmp.le.f32.partialorder %v5865, 0.7853982
        %vm5867 = vcmp.lt.s32.totalorder %v4255, 0
        %v5868 = vand.u32 %v4255, 2139095040
        %v5869 = vshrl.u32 %v5868, 23
        %v5870 = vsub.s32 %v5869, 127
        %v5871 = vand.u32 2147483647, %v4255
        %v5872 = vand.u32 %v5871, 8388607
        %v5873 = vor.u32 %v5872, 8388608
        %v5874 = vsub.s32 0, %v5873
        %v5875 = vadd.s32 %v5870, 1
        %vm5876 = vcmp.gt.s32.totalorder %v5875, 0
        %v5877 = vsel %vm5876, %v5875, 0
        %v5878 = vshrl.u32 %v5877, 5
        %v5879 = vand.u32 %v5877, 31
        %v5880 = vsub.s32 32, %v5879
        %v5881 = vshrl.u32 683565275, %v5880
        %v5882 = vshll.u32 683565275, %v5879
        %v5883 = vshrl.u32 2475754826, %v5880
        %v5884 = vor.u32 %v5882, %v5883
        %v5885 = vshll.u32 2475754826, %v5879
        %v5886 = vshrl.u32 2131351028, %v5880
        %v5887 = vor.u32 %v5885, %v5886
        %v5888 = vshll.u32 2131351028, %v5879
        %v5889 = vshrl.u32 2102212464, %v5880
        %v5890 = vor.u32 %v5888, %v5889
        %v5891 = vshll.u32 2102212464, %v5879
        %v5892 = vshrl.u32 920167782, %v5880
        %v5893 = vor.u32 %v5891, %v5892
        %v5894 = vshll.u32 920167782, %v5879
        %v5895 = vshrl.u32 1326507024, %v5880
        %v5896 = vor.u32 %v5894, %v5895
        %vm5897 = vcmp.lt.s32.totalorder %v5878, 1
        %vm5898 = vcmp.lt.s32.totalorder %v5878, 2
        %vm5899 = vcmp.lt.s32.totalorder %v5878, 3
        %vm5900 = vcmp.lt.s32.totalorder %v5878, 4
        %v5901 = vsel %vm5897, %v5881, %v5884
        %v5902 = vsel %vm5900, %v5890, 2102212464
        %v5903 = vsel %vm5899, %v5887, %v5902
        %v5904 = vsel %vm5898, %v5901, %v5903
        %v5905 = vsel %vm5897, %v5884, %v5887
        %v5906 = vsel %vm5900, %v5893, 920167782
        %v5907 = vsel %vm5899, %v5890, %v5906
        %v5908 = vsel %vm5898, %v5905, %v5907
        %v5909 = vsel %vm5897, %v5887, %v5890
        %v5910 = vsel %vm5900, %v5896, 1326507024
        %v5911 = vsel %vm5899, %v5893, %v5910
        %v5912 = vsel %vm5898, %v5909, %v5911
        %v5913 = vshll.u32 %v5873, 8
        %v5914 = vmul.u32.u64.compose %v5913, %v5912
        %v5915 = vextract.low.u32 %v5914
        %v5916 = vextract.high.u32 %v5914
        %v5917 = vmul.u32.u64.compose %v5913, %v5908
        %v5918 = vextract.low.u32 %v5917
        %v5919 = vextract.high.u32 %v5917
        %v5920 = vmul.u32 %v5913, %v5904
        %v5921 = vadd.s32 %v5916, %v5918
        %vm5922 = vc.u32 %v5916, %v5918
        %v5923 = vadd.s32 %v5919, 1
        %v5924 = vsel %vm5922, %v5923, %v5919
        %v5925 = vadd.s32 %v5920, %v5924
        %v5926 = vadd.s32 %v5925, 536870912
        %v5927 = vshrl.u32 %v5926, 30
        %v5928 = vshll.u32 %v5927, 30
        %v5929 = vsub.s32 %v5925, %v5928
        %vm5930 = vcmp.lt.s32.totalorder %v5929, 0
        %v5931 = vsub.s32 0, %v5929
        %v5932 = vsel %vm5930, %v5931, %v5929
        %v5933 = vclz %v5932
        %v5934 = vsub.s32 %v5933, 2
        %vm5935 = vcmp.gt.s32.totalorder 0, %v5934
        %v5936 = vsel %vm5935, 0, %v5934
        %v5937 = vsub.s32 32, %v5936
        %v5938 = vshll.u32 %v5929, %v5936
        %v5939 = vshrl.u32 %v5921, %v5937
        %v5940 = vor.u32 %v5938, %v5939
        %v5941 = vsub.s32 4294967266, %v5936
        %v5942 = vadd.s32 %v5941, 127
        %v5943 = vshll.u32 %v5942, 23
        %v5944 = vor.u32 4788187, %v5943
        %v5945 = vand.u32 2147483647, %v5944
        %v5947 = vcvt.s32.f32 %v5940
        %v5948 = vmul.f32 %v5947, %v5945
        %v5949 = vxor.u32 %v5948, 2147483648
        %v5950 = vsel %vm5867, %v5949, %v5948
        %v5951 = vsub.s32 4, %v5927
        %v5952 = vsel %vm5867, %v5951, %v5927
        %v5953 = vsel %vm5866, %v4255, %v5950
        %v5954 = vsel %vm5866, 0, %v5952
        %v5955 = vcosq.f32.pop %v5953
        %v5956 = vsinq.f32.pop %v5953
        %vm5957 = vweird.f32 %v4255
        %v5958 = vadd.s32 %v5954, 3
        %v5959 = vand.u32 %v5958, 3
        %vm5960 = vcmp.lt.s32.totalorder %v5959, 2
        %vm5961 = vcmp.eq.s32.totalorder %v5959, 0
        %v5962 = vxor.u32 %v5956, 2147483648
        %v5963 = vsel %vm5961, %v5955, %v5962
        %vm5964 = vcmp.eq.s32.totalorder %v5959, 2
        %v5965 = vxor.u32 %v5955, 2147483648
        %v5966 = vsel %vm5964, %v5965, %v5956
        %v5967 = vsel %vm5960, %v5963, %v5966
        %v5968 = vsel %vm5957, nan, %v5967
        %v5969 = vand.u32 2147483647, %v4259
        %vm5970 = vcmp.le.f32.partialorder %v5969, 0.7853982
        %vm5971 = vcmp.lt.s32.totalorder %v4259, 0
        %v5972 = vand.u32 %v4259, 2139095040
        %v5973 = vshrl.u32 %v5972, 23
        %v5974 = vsub.s32 %v5973, 127
        %v5975 = vand.u32 2147483647, %v4259
        %v5976 = vand.u32 %v5975, 8388607
        %v5977 = vor.u32 %v5976, 8388608
        %v5978 = vsub.s32 0, %v5977
        %v5979 = vadd.s32 %v5974, 1
        %vm5980 = vcmp.gt.s32.totalorder %v5979, 0
        %v5981 = vsel %vm5980, %v5979, 0
        %v5982 = vshrl.u32 %v5981, 5
        %v5983 = vand.u32 %v5981, 31
        %v5984 = vsub.s32 32, %v5983
        %v5985 = vshrl.u32 683565275, %v5984
        %v5986 = vshll.u32 683565275, %v5983
        %v5987 = vshrl.u32 2475754826, %v5984
        %v5988 = vor.u32 %v5986, %v5987
        %v5989 = vshll.u32 2475754826, %v5983
        %v5990 = vshrl.u32 2131351028, %v5984
        %v5991 = vor.u32 %v5989, %v5990
        %v5992 = vshll.u32 2131351028, %v5983
        %v5993 = vshrl.u32 2102212464, %v5984
        %v5994 = vor.u32 %v5992, %v5993
        %v5995 = vshll.u32 2102212464, %v5983
        %v5996 = vshrl.u32 920167782, %v5984
        %v5997 = vor.u32 %v5995, %v5996
        %v5998 = vshll.u32 920167782, %v5983
        %v5999 = vshrl.u32 1326507024, %v5984
        %v6000 = vor.u32 %v5998, %v5999
        %vm6001 = vcmp.lt.s32.totalorder %v5982, 1
        %vm6002 = vcmp.lt.s32.totalorder %v5982, 2
        %vm6003 = vcmp.lt.s32.totalorder %v5982, 3
        %vm6004 = vcmp.lt.s32.totalorder %v5982, 4
        %v6005 = vsel %vm6001, %v5985, %v5988
        %v6006 = vsel %vm6004, %v5994, 2102212464
        %v6007 = vsel %vm6003, %v5991, %v6006
        %v6008 = vsel %vm6002, %v6005, %v6007
        %v6009 = vsel %vm6001, %v5988, %v5991
        %v6010 = vsel %vm6004, %v5997, 920167782
        %v6011 = vsel %vm6003, %v5994, %v6010
        %v6012 = vsel %vm6002, %v6009, %v6011
        %v6013 = vsel %vm6001, %v5991, %v5994
        %v6014 = vsel %vm6004, %v6000, 1326507024
        %v6015 = vsel %vm6003, %v5997, %v6014
        %v6016 = vsel %vm6002, %v6013, %v6015
        %v6017 = vshll.u32 %v5977, 8
        %v6018 = vmul.u32.u64.compose %v6017, %v6016
        %v6019 = vextract.low.u32 %v6018
        %v6020 = vextract.high.u32 %v6018
        %v6021 = vmul.u32.u64.compose %v6017, %v6012
        %v6022 = vextract.low.u32 %v6021
        %v6023 = vextract.high.u32 %v6021
        %v6024 = vmul.u32 %v6017, %v6008
        %v6025 = vadd.s32 %v6020, %v6022
        %vm6026 = vc.u32 %v6020, %v6022
        %v6027 = vadd.s32 %v6023, 1
        %v6028 = vsel %vm6026, %v6027, %v6023
        %v6029 = vadd.s32 %v6024, %v6028
        %v6030 = vadd.s32 %v6029, 536870912
        %v6031 = vshrl.u32 %v6030, 30
        %v6032 = vshll.u32 %v6031, 30
        %v6033 = vsub.s32 %v6029, %v6032
        %vm6034 = vcmp.lt.s32.totalorder %v6033, 0
        %v6035 = vsub.s32 0, %v6033
        %v6036 = vsel %vm6034, %v6035, %v6033
        %v6037 = vclz %v6036
        %v6038 = vsub.s32 %v6037, 2
        %vm6039 = vcmp.gt.s32.totalorder 0, %v6038
        %v6040 = vsel %vm6039, 0, %v6038
        %v6041 = vsub.s32 32, %v6040
        %v6042 = vshll.u32 %v6033, %v6040
        %v6043 = vshrl.u32 %v6025, %v6041
        %v6044 = vor.u32 %v6042, %v6043
        %v6045 = vsub.s32 4294967266, %v6040
        %v6046 = vadd.s32 %v6045, 127
        %v6047 = vshll.u32 %v6046, 23
        %v6048 = vor.u32 4788187, %v6047
        %v6049 = vand.u32 2147483647, %v6048
        %v6051 = vcvt.s32.f32 %v6044
        %v6052 = vmul.f32 %v6051, %v6049
        %v6053 = vxor.u32 %v6052, 2147483648
        %v6054 = vsel %vm5971, %v6053, %v6052
        %v6055 = vsub.s32 4, %v6031
        %v6056 = vsel %vm5971, %v6055, %v6031
        %v6057 = vsel %vm5970, %v4259, %v6054
        %v6058 = vsel %vm5970, 0, %v6056
        %v6059 = vcosq.f32.pop %v6057
        %v6060 = vsinq.f32.pop %v6057
        %vm6061 = vweird.f32 %v4259
        %v6062 = vadd.s32 %v6058, 3
        %v6063 = vand.u32 %v6062, 3
        %vm6064 = vcmp.lt.s32.totalorder %v6063, 2
        %vm6065 = vcmp.eq.s32.totalorder %v6063, 0
        %v6066 = vxor.u32 %v6060, 2147483648
        %v6067 = vsel %vm6065, %v6059, %v6066
        %vm6068 = vcmp.eq.s32.totalorder %v6063, 2
        %v6069 = vxor.u32 %v6059, 2147483648
        %v6070 = vsel %vm6068, %v6069, %v6060
        %v6071 = vsel %vm6064, %v6067, %v6070
        %v6072 = vsel %vm6061, nan, %v6071
        %v6073 = vand.u32 2147483647, %v4261
        %vm6074 = vcmp.le.f32.partialorder %v6073, 0.7853982
        %vm6075 = vcmp.lt.s32.totalorder %v4261, 0
        %v6076 = vand.u32 %v4261, 2139095040
        %v6077 = vshrl.u32 %v6076, 23
        %v6078 = vsub.s32 %v6077, 127
        %v6079 = vand.u32 2147483647, %v4261
        %v6080 = vand.u32 %v6079, 8388607
        %v6081 = vor.u32 %v6080, 8388608
        %v6082 = vsub.s32 0, %v6081
        %v6083 = vadd.s32 %v6078, 1
        %vm6084 = vcmp.gt.s32.totalorder %v6083, 0
        %v6085 = vsel %vm6084, %v6083, 0
        %v6086 = vshrl.u32 %v6085, 5
        %v6087 = vand.u32 %v6085, 31
        %v6088 = vsub.s32 32, %v6087
        %v6089 = vshrl.u32 683565275, %v6088
        %v6090 = vshll.u32 683565275, %v6087
        %v6091 = vshrl.u32 2475754826, %v6088
        %v6092 = vor.u32 %v6090, %v6091
        %v6093 = vshll.u32 2475754826, %v6087
        %v6094 = vshrl.u32 2131351028, %v6088
        %v6095 = vor.u32 %v6093, %v6094
        %v6096 = vshll.u32 2131351028, %v6087
        %v6097 = vshrl.u32 2102212464, %v6088
        %v6098 = vor.u32 %v6096, %v6097
        %v6099 = vshll.u32 2102212464, %v6087
        %v6100 = vshrl.u32 920167782, %v6088
        %v6101 = vor.u32 %v6099, %v6100
        %v6102 = vshll.u32 920167782, %v6087
        %v6103 = vshrl.u32 1326507024, %v6088
        %v6104 = vor.u32 %v6102, %v6103
        %vm6105 = vcmp.lt.s32.totalorder %v6086, 1
        %vm6106 = vcmp.lt.s32.totalorder %v6086, 2
        %vm6107 = vcmp.lt.s32.totalorder %v6086, 3
        %vm6108 = vcmp.lt.s32.totalorder %v6086, 4
        %v6109 = vsel %vm6105, %v6089, %v6092
        %v6110 = vsel %vm6108, %v6098, 2102212464
        %v6111 = vsel %vm6107, %v6095, %v6110
        %v6112 = vsel %vm6106, %v6109, %v6111
        %v6113 = vsel %vm6105, %v6092, %v6095
        %v6114 = vsel %vm6108, %v6101, 920167782
        %v6115 = vsel %vm6107, %v6098, %v6114
        %v6116 = vsel %vm6106, %v6113, %v6115
        %v6117 = vsel %vm6105, %v6095, %v6098
        %v6118 = vsel %vm6108, %v6104, 1326507024
        %v6119 = vsel %vm6107, %v6101, %v6118
        %v6120 = vsel %vm6106, %v6117, %v6119
        %v6121 = vshll.u32 %v6081, 8
        %v6122 = vmul.u32.u64.compose %v6121, %v6120
        %v6123 = vextract.low.u32 %v6122
        %v6124 = vextract.high.u32 %v6122
        %v6125 = vmul.u32.u64.compose %v6121, %v6116
        %v6126 = vextract.low.u32 %v6125
        %v6127 = vextract.high.u32 %v6125
        %v6128 = vmul.u32 %v6121, %v6112
        %v6129 = vadd.s32 %v6124, %v6126
        %vm6130 = vc.u32 %v6124, %v6126
        %v6131 = vadd.s32 %v6127, 1
        %v6132 = vsel %vm6130, %v6131, %v6127
        %v6133 = vadd.s32 %v6128, %v6132
        %v6134 = vadd.s32 %v6133, 536870912
        %v6135 = vshrl.u32 %v6134, 30
        %v6136 = vshll.u32 %v6135, 30
        %v6137 = vsub.s32 %v6133, %v6136
        %vm6138 = vcmp.lt.s32.totalorder %v6137, 0
        %v6139 = vsub.s32 0, %v6137
        %v6140 = vsel %vm6138, %v6139, %v6137
        %v6141 = vclz %v6140
        %v6142 = vsub.s32 %v6141, 2
        %vm6143 = vcmp.gt.s32.totalorder 0, %v6142
        %v6144 = vsel %vm6143, 0, %v6142
        %v6145 = vsub.s32 32, %v6144
        %v6146 = vshll.u32 %v6137, %v6144
        %v6147 = vshrl.u32 %v6129, %v6145
        %v6148 = vor.u32 %v6146, %v6147
        %v6149 = vsub.s32 4294967266, %v6144
        %v6150 = vadd.s32 %v6149, 127
        %v6151 = vshll.u32 %v6150, 23
        %v6152 = vor.u32 4788187, %v6151
        %v6153 = vand.u32 2147483647, %v6152
        %v6155 = vcvt.s32.f32 %v6148
        %v6156 = vmul.f32 %v6155, %v6153
        %v6157 = vxor.u32 %v6156, 2147483648
        %v6158 = vsel %vm6075, %v6157, %v6156
        %v6159 = vsub.s32 4, %v6135
        %v6160 = vsel %vm6075, %v6159, %v6135
        %v6161 = vsel %vm6074, %v4261, %v6158
        %v6162 = vsel %vm6074, 0, %v6160
        %v6163 = vcosq.f32.pop %v6161
        %v6164 = vsinq.f32.pop %v6161
        %vm6165 = vweird.f32 %v4261
        %v6166 = vadd.s32 %v6162, 3
        %v6167 = vand.u32 %v6166, 3
        %vm6168 = vcmp.lt.s32.totalorder %v6167, 2
        %vm6169 = vcmp.eq.s32.totalorder %v6167, 0
        %v6170 = vxor.u32 %v6164, 2147483648
        %v6171 = vsel %vm6169, %v6163, %v6170
        %vm6172 = vcmp.eq.s32.totalorder %v6167, 2
        %v6173 = vxor.u32 %v6163, 2147483648
        %v6174 = vsel %vm6172, %v6173, %v6164
        %v6175 = vsel %vm6168, %v6171, %v6174
        %v6176 = vsel %vm6165, nan, %v6175
        %v6177 = vand.u32 2147483647, %v4265
        %vm6178 = vcmp.le.f32.partialorder %v6177, 0.7853982
        %vm6179 = vcmp.lt.s32.totalorder %v4265, 0
        %v6180 = vand.u32 %v4265, 2139095040
        %v6181 = vshrl.u32 %v6180, 23
        %v6182 = vsub.s32 %v6181, 127
        %v6183 = vand.u32 2147483647, %v4265
        %v6184 = vand.u32 %v6183, 8388607
        %v6185 = vor.u32 %v6184, 8388608
        %v6186 = vsub.s32 0, %v6185
        %v6187 = vadd.s32 %v6182, 1
        %vm6188 = vcmp.gt.s32.totalorder %v6187, 0
        %v6189 = vsel %vm6188, %v6187, 0
        %v6190 = vshrl.u32 %v6189, 5
        %v6191 = vand.u32 %v6189, 31
        %v6192 = vsub.s32 32, %v6191
        %v6193 = vshrl.u32 683565275, %v6192
        %v6194 = vshll.u32 683565275, %v6191
        %v6195 = vshrl.u32 2475754826, %v6192
        %v6196 = vor.u32 %v6194, %v6195
        %v6197 = vshll.u32 2475754826, %v6191
        %v6198 = vshrl.u32 2131351028, %v6192
        %v6199 = vor.u32 %v6197, %v6198
        %v6200 = vshll.u32 2131351028, %v6191
        %v6201 = vshrl.u32 2102212464, %v6192
        %v6202 = vor.u32 %v6200, %v6201
        %v6203 = vshll.u32 2102212464, %v6191
        %v6204 = vshrl.u32 920167782, %v6192
        %v6205 = vor.u32 %v6203, %v6204
        %v6206 = vshll.u32 920167782, %v6191
        %v6207 = vshrl.u32 1326507024, %v6192
        %v6208 = vor.u32 %v6206, %v6207
        %vm6209 = vcmp.lt.s32.totalorder %v6190, 1
        %vm6210 = vcmp.lt.s32.totalorder %v6190, 2
        %vm6211 = vcmp.lt.s32.totalorder %v6190, 3
        %vm6212 = vcmp.lt.s32.totalorder %v6190, 4
        %v6213 = vsel %vm6209, %v6193, %v6196
        %v6214 = vsel %vm6212, %v6202, 2102212464
        %v6215 = vsel %vm6211, %v6199, %v6214
        %v6216 = vsel %vm6210, %v6213, %v6215
        %v6217 = vsel %vm6209, %v6196, %v6199
        %v6218 = vsel %vm6212, %v6205, 920167782
        %v6219 = vsel %vm6211, %v6202, %v6218
        %v6220 = vsel %vm6210, %v6217, %v6219
        %v6221 = vsel %vm6209, %v6199, %v6202
        %v6222 = vsel %vm6212, %v6208, 1326507024
        %v6223 = vsel %vm6211, %v6205, %v6222
        %v6224 = vsel %vm6210, %v6221, %v6223
        %v6225 = vshll.u32 %v6185, 8
        %v6226 = vmul.u32.u64.compose %v6225, %v6224
        %v6227 = vextract.low.u32 %v6226
        %v6228 = vextract.high.u32 %v6226
        %v6229 = vmul.u32.u64.compose %v6225, %v6220
        %v6230 = vextract.low.u32 %v6229
        %v6231 = vextract.high.u32 %v6229
        %v6232 = vmul.u32 %v6225, %v6216
        %v6233 = vadd.s32 %v6228, %v6230
        %vm6234 = vc.u32 %v6228, %v6230
        %v6235 = vadd.s32 %v6231, 1
        %v6236 = vsel %vm6234, %v6235, %v6231
        %v6237 = vadd.s32 %v6232, %v6236
        %v6238 = vadd.s32 %v6237, 536870912
        %v6239 = vshrl.u32 %v6238, 30
        %v6240 = vshll.u32 %v6239, 30
        %v6241 = vsub.s32 %v6237, %v6240
        %vm6242 = vcmp.lt.s32.totalorder %v6241, 0
        %v6243 = vsub.s32 0, %v6241
        %v6244 = vsel %vm6242, %v6243, %v6241
        %v6245 = vclz %v6244
        %v6246 = vsub.s32 %v6245, 2
        %vm6247 = vcmp.gt.s32.totalorder 0, %v6246
        %v6248 = vsel %vm6247, 0, %v6246
        %v6249 = vsub.s32 32, %v6248
        %v6250 = vshll.u32 %v6241, %v6248
        %v6251 = vshrl.u32 %v6233, %v6249
        %v6252 = vor.u32 %v6250, %v6251
        %v6253 = vsub.s32 4294967266, %v6248
        %v6254 = vadd.s32 %v6253, 127
        %v6255 = vshll.u32 %v6254, 23
        %v6256 = vor.u32 4788187, %v6255
        %v6257 = vand.u32 2147483647, %v6256
        %v6259 = vcvt.s32.f32 %v6252
        %v6260 = vmul.f32 %v6259, %v6257
        %v6261 = vxor.u32 %v6260, 2147483648
        %v6262 = vsel %vm6179, %v6261, %v6260
        %v6263 = vsub.s32 4, %v6239
        %v6264 = vsel %vm6179, %v6263, %v6239
        %v6265 = vsel %vm6178, %v4265, %v6262
        %v6266 = vsel %vm6178, 0, %v6264
        %v6267 = vcosq.f32.pop %v6265
        %v6268 = vsinq.f32.pop %v6265
        %vm6269 = vweird.f32 %v4265
        %v6270 = vadd.s32 %v6266, 3
        %v6271 = vand.u32 %v6270, 3
        %vm6272 = vcmp.lt.s32.totalorder %v6271, 2
        %vm6273 = vcmp.eq.s32.totalorder %v6271, 0
        %v6274 = vxor.u32 %v6268, 2147483648
        %v6275 = vsel %vm6273, %v6267, %v6274
        %vm6276 = vcmp.eq.s32.totalorder %v6271, 2
        %v6277 = vxor.u32 %v6267, 2147483648
        %v6278 = vsel %vm6276, %v6277, %v6268
        %v6279 = vsel %vm6272, %v6275, %v6278
        %v6280 = vsel %vm6269, nan, %v6279
        %v6281 = vand.u32 2147483647, %v4267
        %vm6282 = vcmp.le.f32.partialorder %v6281, 0.7853982
        %vm6283 = vcmp.lt.s32.totalorder %v4267, 0
        %v6284 = vand.u32 %v4267, 2139095040
        %v6285 = vshrl.u32 %v6284, 23
        %v6286 = vsub.s32 %v6285, 127
        %v6287 = vand.u32 2147483647, %v4267
        %v6288 = vand.u32 %v6287, 8388607
        %v6289 = vor.u32 %v6288, 8388608
        %v6290 = vsub.s32 0, %v6289
        %v6291 = vadd.s32 %v6286, 1
        %vm6292 = vcmp.gt.s32.totalorder %v6291, 0
        %v6293 = vsel %vm6292, %v6291, 0
        %v6294 = vshrl.u32 %v6293, 5
        %v6295 = vand.u32 %v6293, 31
        %v6296 = vsub.s32 32, %v6295
        %v6297 = vshrl.u32 683565275, %v6296
        %v6298 = vshll.u32 683565275, %v6295
        %v6299 = vshrl.u32 2475754826, %v6296
        %v6300 = vor.u32 %v6298, %v6299
        %v6301 = vshll.u32 2475754826, %v6295
        %v6302 = vshrl.u32 2131351028, %v6296
        %v6303 = vor.u32 %v6301, %v6302
        %v6304 = vshll.u32 2131351028, %v6295
        %v6305 = vshrl.u32 2102212464, %v6296
        %v6306 = vor.u32 %v6304, %v6305
        %v6307 = vshll.u32 2102212464, %v6295
        %v6308 = vshrl.u32 920167782, %v6296
        %v6309 = vor.u32 %v6307, %v6308
        %v6310 = vshll.u32 920167782, %v6295
        %v6311 = vshrl.u32 1326507024, %v6296
        %v6312 = vor.u32 %v6310, %v6311
        %vm6313 = vcmp.lt.s32.totalorder %v6294, 1
        %vm6314 = vcmp.lt.s32.totalorder %v6294, 2
        %vm6315 = vcmp.lt.s32.totalorder %v6294, 3
        %vm6316 = vcmp.lt.s32.totalorder %v6294, 4
        %v6317 = vsel %vm6313, %v6297, %v6300
        %v6318 = vsel %vm6316, %v6306, 2102212464
        %v6319 = vsel %vm6315, %v6303, %v6318
        %v6320 = vsel %vm6314, %v6317, %v6319
        %v6321 = vsel %vm6313, %v6300, %v6303
        %v6322 = vsel %vm6316, %v6309, 920167782
        %v6323 = vsel %vm6315, %v6306, %v6322
        %v6324 = vsel %vm6314, %v6321, %v6323
        %v6325 = vsel %vm6313, %v6303, %v6306
        %v6326 = vsel %vm6316, %v6312, 1326507024
        %v6327 = vsel %vm6315, %v6309, %v6326
        %v6328 = vsel %vm6314, %v6325, %v6327
        %v6329 = vshll.u32 %v6289, 8
        %v6330 = vmul.u32.u64.compose %v6329, %v6328
        %v6331 = vextract.low.u32 %v6330
        %v6332 = vextract.high.u32 %v6330
        %v6333 = vmul.u32.u64.compose %v6329, %v6324
        %v6334 = vextract.low.u32 %v6333
        %v6335 = vextract.high.u32 %v6333
        %v6336 = vmul.u32 %v6329, %v6320
        %v6337 = vadd.s32 %v6332, %v6334
        %vm6338 = vc.u32 %v6332, %v6334
        %v6339 = vadd.s32 %v6335, 1
        %v6340 = vsel %vm6338, %v6339, %v6335
        %v6341 = vadd.s32 %v6336, %v6340
        %v6342 = vadd.s32 %v6341, 536870912
        %v6343 = vshrl.u32 %v6342, 30
        %v6344 = vshll.u32 %v6343, 30
        %v6345 = vsub.s32 %v6341, %v6344
        %vm6346 = vcmp.lt.s32.totalorder %v6345, 0
        %v6347 = vsub.s32 0, %v6345
        %v6348 = vsel %vm6346, %v6347, %v6345
        %v6349 = vclz %v6348
        %v6350 = vsub.s32 %v6349, 2
        %vm6351 = vcmp.gt.s32.totalorder 0, %v6350
        %v6352 = vsel %vm6351, 0, %v6350
        %v6353 = vsub.s32 32, %v6352
        %v6354 = vshll.u32 %v6345, %v6352
        %v6355 = vshrl.u32 %v6337, %v6353
        %v6356 = vor.u32 %v6354, %v6355
        %v6357 = vsub.s32 4294967266, %v6352
        %v6358 = vadd.s32 %v6357, 127
        %v6359 = vshll.u32 %v6358, 23
        %v6360 = vor.u32 4788187, %v6359
        %v6361 = vand.u32 2147483647, %v6360
        %v6363 = vcvt.s32.f32 %v6356
        %v6364 = vmul.f32 %v6363, %v6361
        %v6365 = vxor.u32 %v6364, 2147483648
        %v6366 = vsel %vm6283, %v6365, %v6364
        %v6367 = vsub.s32 4, %v6343
        %v6368 = vsel %vm6283, %v6367, %v6343
        %v6369 = vsel %vm6282, %v4267, %v6366
        %v6370 = vsel %vm6282, 0, %v6368
        %v6371 = vcosq.f32.pop %v6369
        %v6372 = vsinq.f32.pop %v6369
        %vm6373 = vweird.f32 %v4267
        %v6374 = vadd.s32 %v6370, 3
        %v6375 = vand.u32 %v6374, 3
        %vm6376 = vcmp.lt.s32.totalorder %v6375, 2
        %vm6377 = vcmp.eq.s32.totalorder %v6375, 0
        %v6378 = vxor.u32 %v6372, 2147483648
        %v6379 = vsel %vm6377, %v6371, %v6378
        %vm6380 = vcmp.eq.s32.totalorder %v6375, 2
        %v6381 = vxor.u32 %v6371, 2147483648
        %v6382 = vsel %vm6380, %v6381, %v6372
        %v6383 = vsel %vm6376, %v6379, %v6382
        %v6384 = vsel %vm6373, nan, %v6383
        %v6385 = vand.u32 2147483647, %v4271
        %vm6386 = vcmp.le.f32.partialorder %v6385, 0.7853982
        %vm6387 = vcmp.lt.s32.totalorder %v4271, 0
        %v6388 = vand.u32 %v4271, 2139095040
        %v6389 = vshrl.u32 %v6388, 23
        %v6390 = vsub.s32 %v6389, 127
        %v6391 = vand.u32 2147483647, %v4271
        %v6392 = vand.u32 %v6391, 8388607
        %v6393 = vor.u32 %v6392, 8388608
        %v6394 = vsub.s32 0, %v6393
        %v6395 = vadd.s32 %v6390, 1
        %vm6396 = vcmp.gt.s32.totalorder %v6395, 0
        %v6397 = vsel %vm6396, %v6395, 0
        %v6398 = vshrl.u32 %v6397, 5
        %v6399 = vand.u32 %v6397, 31
        %v6400 = vsub.s32 32, %v6399
        %v6401 = vshrl.u32 683565275, %v6400
        %v6402 = vshll.u32 683565275, %v6399
        %v6403 = vshrl.u32 2475754826, %v6400
        %v6404 = vor.u32 %v6402, %v6403
        %v6405 = vshll.u32 2475754826, %v6399
        %v6406 = vshrl.u32 2131351028, %v6400
        %v6407 = vor.u32 %v6405, %v6406
        %v6408 = vshll.u32 2131351028, %v6399
        %v6409 = vshrl.u32 2102212464, %v6400
        %v6410 = vor.u32 %v6408, %v6409
        %v6411 = vshll.u32 2102212464, %v6399
        %v6412 = vshrl.u32 920167782, %v6400
        %v6413 = vor.u32 %v6411, %v6412
        %v6414 = vshll.u32 920167782, %v6399
        %v6415 = vshrl.u32 1326507024, %v6400
        %v6416 = vor.u32 %v6414, %v6415
        %vm6417 = vcmp.lt.s32.totalorder %v6398, 1
        %vm6418 = vcmp.lt.s32.totalorder %v6398, 2
        %vm6419 = vcmp.lt.s32.totalorder %v6398, 3
        %vm6420 = vcmp.lt.s32.totalorder %v6398, 4
        %v6421 = vsel %vm6417, %v6401, %v6404
        %v6422 = vsel %vm6420, %v6410, 2102212464
        %v6423 = vsel %vm6419, %v6407, %v6422
        %v6424 = vsel %vm6418, %v6421, %v6423
        %v6425 = vsel %vm6417, %v6404, %v6407
        %v6426 = vsel %vm6420, %v6413, 920167782
        %v6427 = vsel %vm6419, %v6410, %v6426
        %v6428 = vsel %vm6418, %v6425, %v6427
        %v6429 = vsel %vm6417, %v6407, %v6410
        %v6430 = vsel %vm6420, %v6416, 1326507024
        %v6431 = vsel %vm6419, %v6413, %v6430
        %v6432 = vsel %vm6418, %v6429, %v6431
        %v6433 = vshll.u32 %v6393, 8
        %v6434 = vmul.u32.u64.compose %v6433, %v6432
        %v6435 = vextract.low.u32 %v6434
        %v6436 = vextract.high.u32 %v6434
        %v6437 = vmul.u32.u64.compose %v6433, %v6428
        %v6438 = vextract.low.u32 %v6437
        %v6439 = vextract.high.u32 %v6437
        %v6440 = vmul.u32 %v6433, %v6424
        %v6441 = vadd.s32 %v6436, %v6438
        %vm6442 = vc.u32 %v6436, %v6438
        %v6443 = vadd.s32 %v6439, 1
        %v6444 = vsel %vm6442, %v6443, %v6439
        %v6445 = vadd.s32 %v6440, %v6444
        %v6446 = vadd.s32 %v6445, 536870912
        %v6447 = vshrl.u32 %v6446, 30
        %v6448 = vshll.u32 %v6447, 30
        %v6449 = vsub.s32 %v6445, %v6448
        %vm6450 = vcmp.lt.s32.totalorder %v6449, 0
        %v6451 = vsub.s32 0, %v6449
        %v6452 = vsel %vm6450, %v6451, %v6449
        %v6453 = vclz %v6452
        %v6454 = vsub.s32 %v6453, 2
        %vm6455 = vcmp.gt.s32.totalorder 0, %v6454
        %v6456 = vsel %vm6455, 0, %v6454
        %v6457 = vsub.s32 32, %v6456
        %v6458 = vshll.u32 %v6449, %v6456
        %v6459 = vshrl.u32 %v6441, %v6457
        %v6460 = vor.u32 %v6458, %v6459
        %v6461 = vsub.s32 4294967266, %v6456
        %v6462 = vadd.s32 %v6461, 127
        %v6463 = vshll.u32 %v6462, 23
        %v6464 = vor.u32 4788187, %v6463
        %v6465 = vand.u32 2147483647, %v6464
        %v6467 = vcvt.s32.f32 %v6460
        %v6468 = vmul.f32 %v6467, %v6465
        %v6469 = vxor.u32 %v6468, 2147483648
        %v6470 = vsel %vm6387, %v6469, %v6468
        %v6471 = vsub.s32 4, %v6447
        %v6472 = vsel %vm6387, %v6471, %v6447
        %v6473 = vsel %vm6386, %v4271, %v6470
        %v6474 = vsel %vm6386, 0, %v6472
        %v6475 = vcosq.f32.pop %v6473
        %v6476 = vsinq.f32.pop %v6473
        %vm6477 = vweird.f32 %v4271
        %v6478 = vadd.s32 %v6474, 3
        %v6479 = vand.u32 %v6478, 3
        %vm6480 = vcmp.lt.s32.totalorder %v6479, 2
        %vm6481 = vcmp.eq.s32.totalorder %v6479, 0
        %v6482 = vxor.u32 %v6476, 2147483648
        %v6483 = vsel %vm6481, %v6475, %v6482
        %vm6484 = vcmp.eq.s32.totalorder %v6479, 2
        %v6485 = vxor.u32 %v6475, 2147483648
        %v6486 = vsel %vm6484, %v6485, %v6476
        %v6487 = vsel %vm6480, %v6483, %v6486
        %v6488 = vsel %vm6477, nan, %v6487
        %v6489 = vand.u32 2147483647, %v4273
        %vm6490 = vcmp.le.f32.partialorder %v6489, 0.7853982
        %vm6491 = vcmp.lt.s32.totalorder %v4273, 0
        %v6492 = vand.u32 %v4273, 2139095040
        %v6493 = vshrl.u32 %v6492, 23
        %v6494 = vsub.s32 %v6493, 127
        %v6495 = vand.u32 2147483647, %v4273
        %v6496 = vand.u32 %v6495, 8388607
        %v6497 = vor.u32 %v6496, 8388608
        %v6498 = vsub.s32 0, %v6497
        %v6499 = vadd.s32 %v6494, 1
        %vm6500 = vcmp.gt.s32.totalorder %v6499, 0
        %v6501 = vsel %vm6500, %v6499, 0
        %v6502 = vshrl.u32 %v6501, 5
        %v6503 = vand.u32 %v6501, 31
        %v6504 = vsub.s32 32, %v6503
        %v6505 = vshrl.u32 683565275, %v6504
        %v6506 = vshll.u32 683565275, %v6503
        %v6507 = vshrl.u32 2475754826, %v6504
        %v6508 = vor.u32 %v6506, %v6507
        %v6509 = vshll.u32 2475754826, %v6503
        %v6510 = vshrl.u32 2131351028, %v6504
        %v6511 = vor.u32 %v6509, %v6510
        %v6512 = vshll.u32 2131351028, %v6503
        %v6513 = vshrl.u32 2102212464, %v6504
        %v6514 = vor.u32 %v6512, %v6513
        %v6515 = vshll.u32 2102212464, %v6503
        %v6516 = vshrl.u32 920167782, %v6504
        %v6517 = vor.u32 %v6515, %v6516
        %v6518 = vshll.u32 920167782, %v6503
        %v6519 = vshrl.u32 1326507024, %v6504
        %v6520 = vor.u32 %v6518, %v6519
        %vm6521 = vcmp.lt.s32.totalorder %v6502, 1
        %vm6522 = vcmp.lt.s32.totalorder %v6502, 2
        %vm6523 = vcmp.lt.s32.totalorder %v6502, 3
        %vm6524 = vcmp.lt.s32.totalorder %v6502, 4
        %v6525 = vsel %vm6521, %v6505, %v6508
        %v6526 = vsel %vm6524, %v6514, 2102212464
        %v6527 = vsel %vm6523, %v6511, %v6526
        %v6528 = vsel %vm6522, %v6525, %v6527
        %v6529 = vsel %vm6521, %v6508, %v6511
        %v6530 = vsel %vm6524, %v6517, 920167782
        %v6531 = vsel %vm6523, %v6514, %v6530
        %v6532 = vsel %vm6522, %v6529, %v6531
        %v6533 = vsel %vm6521, %v6511, %v6514
        %v6534 = vsel %vm6524, %v6520, 1326507024
        %v6535 = vsel %vm6523, %v6517, %v6534
        %v6536 = vsel %vm6522, %v6533, %v6535
        %v6537 = vshll.u32 %v6497, 8
        %v6538 = vmul.u32.u64.compose %v6537, %v6536
        %v6539 = vextract.low.u32 %v6538
        %v6540 = vextract.high.u32 %v6538
        %v6541 = vmul.u32.u64.compose %v6537, %v6532
        %v6542 = vextract.low.u32 %v6541
        %v6543 = vextract.high.u32 %v6541
        %v6544 = vmul.u32 %v6537, %v6528
        %v6545 = vadd.s32 %v6540, %v6542
        %vm6546 = vc.u32 %v6540, %v6542
        %v6547 = vadd.s32 %v6543, 1
        %v6548 = vsel %vm6546, %v6547, %v6543
        %v6549 = vadd.s32 %v6544, %v6548
        %v6550 = vadd.s32 %v6549, 536870912
        %v6551 = vshrl.u32 %v6550, 30
        %v6552 = vshll.u32 %v6551, 30
        %v6553 = vsub.s32 %v6549, %v6552
        %vm6554 = vcmp.lt.s32.totalorder %v6553, 0
        %v6555 = vsub.s32 0, %v6553
        %v6556 = vsel %vm6554, %v6555, %v6553
        %v6557 = vclz %v6556
        %v6558 = vsub.s32 %v6557, 2
        %vm6559 = vcmp.gt.s32.totalorder 0, %v6558
        %v6560 = vsel %vm6559, 0, %v6558
        %v6561 = vsub.s32 32, %v6560
        %v6562 = vshll.u32 %v6553, %v6560
        %v6563 = vshrl.u32 %v6545, %v6561
        %v6564 = vor.u32 %v6562, %v6563
        %v6565 = vsub.s32 4294967266, %v6560
        %v6566 = vadd.s32 %v6565, 127
        %v6567 = vshll.u32 %v6566, 23
        %v6568 = vor.u32 4788187, %v6567
        %v6569 = vand.u32 2147483647, %v6568
        %v6571 = vcvt.s32.f32 %v6564
        %v6572 = vmul.f32 %v6571, %v6569
        %v6573 = vxor.u32 %v6572, 2147483648
        %v6574 = vsel %vm6491, %v6573, %v6572
        %v6575 = vsub.s32 4, %v6551
        %v6576 = vsel %vm6491, %v6575, %v6551
        %v6577 = vsel %vm6490, %v4273, %v6574
        %v6578 = vsel %vm6490, 0, %v6576
        %v6579 = vcosq.f32.pop %v6577
        %v6580 = vsinq.f32.pop %v6577
        %vm6581 = vweird.f32 %v4273
        %v6582 = vadd.s32 %v6578, 3
        %v6583 = vand.u32 %v6582, 3
        %vm6584 = vcmp.lt.s32.totalorder %v6583, 2
        %vm6585 = vcmp.eq.s32.totalorder %v6583, 0
        %v6586 = vxor.u32 %v6580, 2147483648
        %v6587 = vsel %vm6585, %v6579, %v6586
        %vm6588 = vcmp.eq.s32.totalorder %v6583, 2
        %v6589 = vxor.u32 %v6579, 2147483648
        %v6590 = vsel %vm6588, %v6589, %v6580
        %v6591 = vsel %vm6584, %v6587, %v6590
        %v6592 = vsel %vm6581, nan, %v6591
        %v6593 = vand.u32 2147483647, %v4277
        %vm6594 = vcmp.le.f32.partialorder %v6593, 0.7853982
        %vm6595 = vcmp.lt.s32.totalorder %v4277, 0
        %v6596 = vand.u32 %v4277, 2139095040
        %v6597 = vshrl.u32 %v6596, 23
        %v6598 = vsub.s32 %v6597, 127
        %v6599 = vand.u32 2147483647, %v4277
        %v6600 = vand.u32 %v6599, 8388607
        %v6601 = vor.u32 %v6600, 8388608
        %v6602 = vsub.s32 0, %v6601
        %v6603 = vadd.s32 %v6598, 1
        %vm6604 = vcmp.gt.s32.totalorder %v6603, 0
        %v6605 = vsel %vm6604, %v6603, 0
        %v6606 = vshrl.u32 %v6605, 5
        %v6607 = vand.u32 %v6605, 31
        %v6608 = vsub.s32 32, %v6607
        %v6609 = vshrl.u32 683565275, %v6608
        %v6610 = vshll.u32 683565275, %v6607
        %v6611 = vshrl.u32 2475754826, %v6608
        %v6612 = vor.u32 %v6610, %v6611
        %v6613 = vshll.u32 2475754826, %v6607
        %v6614 = vshrl.u32 2131351028, %v6608
        %v6615 = vor.u32 %v6613, %v6614
        %v6616 = vshll.u32 2131351028, %v6607
        %v6617 = vshrl.u32 2102212464, %v6608
        %v6618 = vor.u32 %v6616, %v6617
        %v6619 = vshll.u32 2102212464, %v6607
        %v6620 = vshrl.u32 920167782, %v6608
        %v6621 = vor.u32 %v6619, %v6620
        %v6622 = vshll.u32 920167782, %v6607
        %v6623 = vshrl.u32 1326507024, %v6608
        %v6624 = vor.u32 %v6622, %v6623
        %vm6625 = vcmp.lt.s32.totalorder %v6606, 1
        %vm6626 = vcmp.lt.s32.totalorder %v6606, 2
        %vm6627 = vcmp.lt.s32.totalorder %v6606, 3
        %vm6628 = vcmp.lt.s32.totalorder %v6606, 4
        %v6629 = vsel %vm6625, %v6609, %v6612
        %v6630 = vsel %vm6628, %v6618, 2102212464
        %v6631 = vsel %vm6627, %v6615, %v6630
        %v6632 = vsel %vm6626, %v6629, %v6631
        %v6633 = vsel %vm6625, %v6612, %v6615
        %v6634 = vsel %vm6628, %v6621, 920167782
        %v6635 = vsel %vm6627, %v6618, %v6634
        %v6636 = vsel %vm6626, %v6633, %v6635
        %v6637 = vsel %vm6625, %v6615, %v6618
        %v6638 = vsel %vm6628, %v6624, 1326507024
        %v6639 = vsel %vm6627, %v6621, %v6638
        %v6640 = vsel %vm6626, %v6637, %v6639
        %v6641 = vshll.u32 %v6601, 8
        %v6642 = vmul.u32.u64.compose %v6641, %v6640
        %v6643 = vextract.low.u32 %v6642
        %v6644 = vextract.high.u32 %v6642
        %v6645 = vmul.u32.u64.compose %v6641, %v6636
        %v6646 = vextract.low.u32 %v6645
        %v6647 = vextract.high.u32 %v6645
        %v6648 = vmul.u32 %v6641, %v6632
        %v6649 = vadd.s32 %v6644, %v6646
        %vm6650 = vc.u32 %v6644, %v6646
        %v6651 = vadd.s32 %v6647, 1
        %v6652 = vsel %vm6650, %v6651, %v6647
        %v6653 = vadd.s32 %v6648, %v6652
        %v6654 = vadd.s32 %v6653, 536870912
        %v6655 = vshrl.u32 %v6654, 30
        %v6656 = vshll.u32 %v6655, 30
        %v6657 = vsub.s32 %v6653, %v6656
        %vm6658 = vcmp.lt.s32.totalorder %v6657, 0
        %v6659 = vsub.s32 0, %v6657
        %v6660 = vsel %vm6658, %v6659, %v6657
        %v6661 = vclz %v6660
        %v6662 = vsub.s32 %v6661, 2
        %vm6663 = vcmp.gt.s32.totalorder 0, %v6662
        %v6664 = vsel %vm6663, 0, %v6662
        %v6665 = vsub.s32 32, %v6664
        %v6666 = vshll.u32 %v6657, %v6664
        %v6667 = vshrl.u32 %v6649, %v6665
        %v6668 = vor.u32 %v6666, %v6667
        %v6669 = vsub.s32 4294967266, %v6664
        %v6670 = vadd.s32 %v6669, 127
        %v6671 = vshll.u32 %v6670, 23
        %v6672 = vor.u32 4788187, %v6671
        %v6673 = vand.u32 2147483647, %v6672
        %v6675 = vcvt.s32.f32 %v6668
        %v6676 = vmul.f32 %v6675, %v6673
        %v6677 = vxor.u32 %v6676, 2147483648
        %v6678 = vsel %vm6595, %v6677, %v6676
        %v6679 = vsub.s32 4, %v6655
        %v6680 = vsel %vm6595, %v6679, %v6655
        %v6681 = vsel %vm6594, %v4277, %v6678
        %v6682 = vsel %vm6594, 0, %v6680
        %v6683 = vcosq.f32.pop %v6681
        %v6684 = vsinq.f32.pop %v6681
        %vm6685 = vweird.f32 %v4277
        %v6686 = vadd.s32 %v6682, 3
        %v6687 = vand.u32 %v6686, 3
        %vm6688 = vcmp.lt.s32.totalorder %v6687, 2
        %vm6689 = vcmp.eq.s32.totalorder %v6687, 0
        %v6690 = vxor.u32 %v6684, 2147483648
        %v6691 = vsel %vm6689, %v6683, %v6690
        %vm6692 = vcmp.eq.s32.totalorder %v6687, 2
        %v6693 = vxor.u32 %v6683, 2147483648
        %v6694 = vsel %vm6692, %v6693, %v6684
        %v6695 = vsel %vm6688, %v6691, %v6694
        %v6696 = vsel %vm6685, nan, %v6695
        %v6697 = vand.u32 2147483647, %v4279
        %vm6698 = vcmp.le.f32.partialorder %v6697, 0.7853982
        %vm6699 = vcmp.lt.s32.totalorder %v4279, 0
        %v6700 = vand.u32 %v4279, 2139095040
        %v6701 = vshrl.u32 %v6700, 23
        %v6702 = vsub.s32 %v6701, 127
        %v6703 = vand.u32 2147483647, %v4279
        %v6704 = vand.u32 %v6703, 8388607
        %v6705 = vor.u32 %v6704, 8388608
        %v6706 = vsub.s32 0, %v6705
        %v6707 = vadd.s32 %v6702, 1
        %vm6708 = vcmp.gt.s32.totalorder %v6707, 0
        %v6709 = vsel %vm6708, %v6707, 0
        %v6710 = vshrl.u32 %v6709, 5
        %v6711 = vand.u32 %v6709, 31
        %v6712 = vsub.s32 32, %v6711
        %v6713 = vshrl.u32 683565275, %v6712
        %v6714 = vshll.u32 683565275, %v6711
        %v6715 = vshrl.u32 2475754826, %v6712
        %v6716 = vor.u32 %v6714, %v6715
        %v6717 = vshll.u32 2475754826, %v6711
        %v6718 = vshrl.u32 2131351028, %v6712
        %v6719 = vor.u32 %v6717, %v6718
        %v6720 = vshll.u32 2131351028, %v6711
        %v6721 = vshrl.u32 2102212464, %v6712
        %v6722 = vor.u32 %v6720, %v6721
        %v6723 = vshll.u32 2102212464, %v6711
        %v6724 = vshrl.u32 920167782, %v6712
        %v6725 = vor.u32 %v6723, %v6724
        %v6726 = vshll.u32 920167782, %v6711
        %v6727 = vshrl.u32 1326507024, %v6712
        %v6728 = vor.u32 %v6726, %v6727
        %vm6729 = vcmp.lt.s32.totalorder %v6710, 1
        %vm6730 = vcmp.lt.s32.totalorder %v6710, 2
        %vm6731 = vcmp.lt.s32.totalorder %v6710, 3
        %vm6732 = vcmp.lt.s32.totalorder %v6710, 4
        %v6733 = vsel %vm6729, %v6713, %v6716
        %v6734 = vsel %vm6732, %v6722, 2102212464
        %v6735 = vsel %vm6731, %v6719, %v6734
        %v6736 = vsel %vm6730, %v6733, %v6735
        %v6737 = vsel %vm6729, %v6716, %v6719
        %v6738 = vsel %vm6732, %v6725, 920167782
        %v6739 = vsel %vm6731, %v6722, %v6738
        %v6740 = vsel %vm6730, %v6737, %v6739
        %v6741 = vsel %vm6729, %v6719, %v6722
        %v6742 = vsel %vm6732, %v6728, 1326507024
        %v6743 = vsel %vm6731, %v6725, %v6742
        %v6744 = vsel %vm6730, %v6741, %v6743
        %v6745 = vshll.u32 %v6705, 8
        %v6746 = vmul.u32.u64.compose %v6745, %v6744
        %v6747 = vextract.low.u32 %v6746
        %v6748 = vextract.high.u32 %v6746
        %v6749 = vmul.u32.u64.compose %v6745, %v6740
        %v6750 = vextract.low.u32 %v6749
        %v6751 = vextract.high.u32 %v6749
        %v6752 = vmul.u32 %v6745, %v6736
        %v6753 = vadd.s32 %v6748, %v6750
        %vm6754 = vc.u32 %v6748, %v6750
        %v6755 = vadd.s32 %v6751, 1
        %v6756 = vsel %vm6754, %v6755, %v6751
        %v6757 = vadd.s32 %v6752, %v6756
        %v6758 = vadd.s32 %v6757, 536870912
        %v6759 = vshrl.u32 %v6758, 30
        %v6760 = vshll.u32 %v6759, 30
        %v6761 = vsub.s32 %v6757, %v6760
        %vm6762 = vcmp.lt.s32.totalorder %v6761, 0
        %v6763 = vsub.s32 0, %v6761
        %v6764 = vsel %vm6762, %v6763, %v6761
        %v6765 = vclz %v6764
        %v6766 = vsub.s32 %v6765, 2
        %vm6767 = vcmp.gt.s32.totalorder 0, %v6766
        %v6768 = vsel %vm6767, 0, %v6766
        %v6769 = vsub.s32 32, %v6768
        %v6770 = vshll.u32 %v6761, %v6768
        %v6771 = vshrl.u32 %v6753, %v6769
        %v6772 = vor.u32 %v6770, %v6771
        %v6773 = vsub.s32 4294967266, %v6768
        %v6774 = vadd.s32 %v6773, 127
        %v6775 = vshll.u32 %v6774, 23
        %v6776 = vor.u32 4788187, %v6775
        %v6777 = vand.u32 2147483647, %v6776
        %v6779 = vcvt.s32.f32 %v6772
        %v6780 = vmul.f32 %v6779, %v6777
        %v6781 = vxor.u32 %v6780, 2147483648
        %v6782 = vsel %vm6699, %v6781, %v6780
        %v6783 = vsub.s32 4, %v6759
        %v6784 = vsel %vm6699, %v6783, %v6759
        %v6785 = vsel %vm6698, %v4279, %v6782
        %v6786 = vsel %vm6698, 0, %v6784
        %v6787 = vcosq.f32.pop %v6785
        %v6788 = vsinq.f32.pop %v6785
        %vm6789 = vweird.f32 %v4279
        %v6790 = vadd.s32 %v6786, 3
        %v6791 = vand.u32 %v6790, 3
        %vm6792 = vcmp.lt.s32.totalorder %v6791, 2
        %vm6793 = vcmp.eq.s32.totalorder %v6791, 0
        %v6794 = vxor.u32 %v6788, 2147483648
        %v6795 = vsel %vm6793, %v6787, %v6794
        %vm6796 = vcmp.eq.s32.totalorder %v6791, 2
        %v6797 = vxor.u32 %v6787, 2147483648
        %v6798 = vsel %vm6796, %v6797, %v6788
        %v6799 = vsel %vm6792, %v6795, %v6798
        %v6800 = vsel %vm6789, nan, %v6799
        %v6801 = vand.u32 2147483647, %v4283
        %vm6802 = vcmp.le.f32.partialorder %v6801, 0.7853982
        %vm6803 = vcmp.lt.s32.totalorder %v4283, 0
        %v6804 = vand.u32 %v4283, 2139095040
        %v6805 = vshrl.u32 %v6804, 23
        %v6806 = vsub.s32 %v6805, 127
        %v6807 = vand.u32 2147483647, %v4283
        %v6808 = vand.u32 %v6807, 8388607
        %v6809 = vor.u32 %v6808, 8388608
        %v6810 = vsub.s32 0, %v6809
        %v6811 = vadd.s32 %v6806, 1
        %vm6812 = vcmp.gt.s32.totalorder %v6811, 0
        %v6813 = vsel %vm6812, %v6811, 0
        %v6814 = vshrl.u32 %v6813, 5
        %v6815 = vand.u32 %v6813, 31
        %v6816 = vsub.s32 32, %v6815
        %v6817 = vshrl.u32 683565275, %v6816
        %v6818 = vshll.u32 683565275, %v6815
        %v6819 = vshrl.u32 2475754826, %v6816
        %v6820 = vor.u32 %v6818, %v6819
        %v6821 = vshll.u32 2475754826, %v6815
        %v6822 = vshrl.u32 2131351028, %v6816
        %v6823 = vor.u32 %v6821, %v6822
        %v6824 = vshll.u32 2131351028, %v6815
        %v6825 = vshrl.u32 2102212464, %v6816
        %v6826 = vor.u32 %v6824, %v6825
        %v6827 = vshll.u32 2102212464, %v6815
        %v6828 = vshrl.u32 920167782, %v6816
        %v6829 = vor.u32 %v6827, %v6828
        %v6830 = vshll.u32 920167782, %v6815
        %v6831 = vshrl.u32 1326507024, %v6816
        %v6832 = vor.u32 %v6830, %v6831
        %vm6833 = vcmp.lt.s32.totalorder %v6814, 1
        %vm6834 = vcmp.lt.s32.totalorder %v6814, 2
        %vm6835 = vcmp.lt.s32.totalorder %v6814, 3
        %vm6836 = vcmp.lt.s32.totalorder %v6814, 4
        %v6837 = vsel %vm6833, %v6817, %v6820
        %v6838 = vsel %vm6836, %v6826, 2102212464
        %v6839 = vsel %vm6835, %v6823, %v6838
        %v6840 = vsel %vm6834, %v6837, %v6839
        %v6841 = vsel %vm6833, %v6820, %v6823
        %v6842 = vsel %vm6836, %v6829, 920167782
        %v6843 = vsel %vm6835, %v6826, %v6842
        %v6844 = vsel %vm6834, %v6841, %v6843
        %v6845 = vsel %vm6833, %v6823, %v6826
        %v6846 = vsel %vm6836, %v6832, 1326507024
        %v6847 = vsel %vm6835, %v6829, %v6846
        %v6848 = vsel %vm6834, %v6845, %v6847
        %v6849 = vshll.u32 %v6809, 8
        %v6850 = vmul.u32.u64.compose %v6849, %v6848
        %v6851 = vextract.low.u32 %v6850
        %v6852 = vextract.high.u32 %v6850
        %v6853 = vmul.u32.u64.compose %v6849, %v6844
        %v6854 = vextract.low.u32 %v6853
        %v6855 = vextract.high.u32 %v6853
        %v6856 = vmul.u32 %v6849, %v6840
        %v6857 = vadd.s32 %v6852, %v6854
        %vm6858 = vc.u32 %v6852, %v6854
        %v6859 = vadd.s32 %v6855, 1
        %v6860 = vsel %vm6858, %v6859, %v6855
        %v6861 = vadd.s32 %v6856, %v6860
        %v6862 = vadd.s32 %v6861, 536870912
        %v6863 = vshrl.u32 %v6862, 30
        %v6864 = vshll.u32 %v6863, 30
        %v6865 = vsub.s32 %v6861, %v6864
        %vm6866 = vcmp.lt.s32.totalorder %v6865, 0
        %v6867 = vsub.s32 0, %v6865
        %v6868 = vsel %vm6866, %v6867, %v6865
        %v6869 = vclz %v6868
        %v6870 = vsub.s32 %v6869, 2
        %vm6871 = vcmp.gt.s32.totalorder 0, %v6870
        %v6872 = vsel %vm6871, 0, %v6870
        %v6873 = vsub.s32 32, %v6872
        %v6874 = vshll.u32 %v6865, %v6872
        %v6875 = vshrl.u32 %v6857, %v6873
        %v6876 = vor.u32 %v6874, %v6875
        %v6877 = vsub.s32 4294967266, %v6872
        %v6878 = vadd.s32 %v6877, 127
        %v6879 = vshll.u32 %v6878, 23
        %v6880 = vor.u32 4788187, %v6879
        %v6881 = vand.u32 2147483647, %v6880
        %v6883 = vcvt.s32.f32 %v6876
        %v6884 = vmul.f32 %v6883, %v6881
        %v6885 = vxor.u32 %v6884, 2147483648
        %v6886 = vsel %vm6803, %v6885, %v6884
        %v6887 = vsub.s32 4, %v6863
        %v6888 = vsel %vm6803, %v6887, %v6863
        %v6889 = vsel %vm6802, %v4283, %v6886
        %v6890 = vsel %vm6802, 0, %v6888
        %v6891 = vcosq.f32.pop %v6889
        %v6892 = vsinq.f32.pop %v6889
        %vm6893 = vweird.f32 %v4283
        %v6894 = vadd.s32 %v6890, 3
        %v6895 = vand.u32 %v6894, 3
        %vm6896 = vcmp.lt.s32.totalorder %v6895, 2
        %vm6897 = vcmp.eq.s32.totalorder %v6895, 0
        %v6898 = vxor.u32 %v6892, 2147483648
        %v6899 = vsel %vm6897, %v6891, %v6898
        %vm6900 = vcmp.eq.s32.totalorder %v6895, 2
        %v6901 = vxor.u32 %v6891, 2147483648
        %v6902 = vsel %vm6900, %v6901, %v6892
        %v6903 = vsel %vm6896, %v6899, %v6902
        %v6904 = vsel %vm6893, nan, %v6903
        %v6905 = vand.u32 2147483647, %v4285
        %vm6906 = vcmp.le.f32.partialorder %v6905, 0.7853982
        %vm6907 = vcmp.lt.s32.totalorder %v4285, 0
        %v6908 = vand.u32 %v4285, 2139095040
        %v6909 = vshrl.u32 %v6908, 23
        %v6910 = vsub.s32 %v6909, 127
        %v6911 = vand.u32 2147483647, %v4285
        %v6912 = vand.u32 %v6911, 8388607
        %v6913 = vor.u32 %v6912, 8388608
        %v6914 = vsub.s32 0, %v6913
        %v6915 = vadd.s32 %v6910, 1
        %vm6916 = vcmp.gt.s32.totalorder %v6915, 0
        %v6917 = vsel %vm6916, %v6915, 0
        %v6918 = vshrl.u32 %v6917, 5
        %v6919 = vand.u32 %v6917, 31
        %v6920 = vsub.s32 32, %v6919
        %v6921 = vshrl.u32 683565275, %v6920
        %v6922 = vshll.u32 683565275, %v6919
        %v6923 = vshrl.u32 2475754826, %v6920
        %v6924 = vor.u32 %v6922, %v6923
        %v6925 = vshll.u32 2475754826, %v6919
        %v6926 = vshrl.u32 2131351028, %v6920
        %v6927 = vor.u32 %v6925, %v6926
        %v6928 = vshll.u32 2131351028, %v6919
        %v6929 = vshrl.u32 2102212464, %v6920
        %v6930 = vor.u32 %v6928, %v6929
        %v6931 = vshll.u32 2102212464, %v6919
        %v6932 = vshrl.u32 920167782, %v6920
        %v6933 = vor.u32 %v6931, %v6932
        %v6934 = vshll.u32 920167782, %v6919
        %v6935 = vshrl.u32 1326507024, %v6920
        %v6936 = vor.u32 %v6934, %v6935
        %vm6937 = vcmp.lt.s32.totalorder %v6918, 1
        %vm6938 = vcmp.lt.s32.totalorder %v6918, 2
        %vm6939 = vcmp.lt.s32.totalorder %v6918, 3
        %vm6940 = vcmp.lt.s32.totalorder %v6918, 4
        %v6941 = vsel %vm6937, %v6921, %v6924
        %v6942 = vsel %vm6940, %v6930, 2102212464
        %v6943 = vsel %vm6939, %v6927, %v6942
        %v6944 = vsel %vm6938, %v6941, %v6943
        %v6945 = vsel %vm6937, %v6924, %v6927
        %v6946 = vsel %vm6940, %v6933, 920167782
        %v6947 = vsel %vm6939, %v6930, %v6946
        %v6948 = vsel %vm6938, %v6945, %v6947
        %v6949 = vsel %vm6937, %v6927, %v6930
        %v6950 = vsel %vm6940, %v6936, 1326507024
        %v6951 = vsel %vm6939, %v6933, %v6950
        %v6952 = vsel %vm6938, %v6949, %v6951
        %v6953 = vshll.u32 %v6913, 8
        %v6954 = vmul.u32.u64.compose %v6953, %v6952
        %v6955 = vextract.low.u32 %v6954
        %v6956 = vextract.high.u32 %v6954
        %v6957 = vmul.u32.u64.compose %v6953, %v6948
        %v6958 = vextract.low.u32 %v6957
        %v6959 = vextract.high.u32 %v6957
        %v6960 = vmul.u32 %v6953, %v6944
        %v6961 = vadd.s32 %v6956, %v6958
        %vm6962 = vc.u32 %v6956, %v6958
        %v6963 = vadd.s32 %v6959, 1
        %v6964 = vsel %vm6962, %v6963, %v6959
        %v6965 = vadd.s32 %v6960, %v6964
        %v6966 = vadd.s32 %v6965, 536870912
        %v6967 = vshrl.u32 %v6966, 30
        %v6968 = vshll.u32 %v6967, 30
        %v6969 = vsub.s32 %v6965, %v6968
        %vm6970 = vcmp.lt.s32.totalorder %v6969, 0
        %v6971 = vsub.s32 0, %v6969
        %v6972 = vsel %vm6970, %v6971, %v6969
        %v6973 = vclz %v6972
        %v6974 = vsub.s32 %v6973, 2
        %vm6975 = vcmp.gt.s32.totalorder 0, %v6974
        %v6976 = vsel %vm6975, 0, %v6974
        %v6977 = vsub.s32 32, %v6976
        %v6978 = vshll.u32 %v6969, %v6976
        %v6979 = vshrl.u32 %v6961, %v6977
        %v6980 = vor.u32 %v6978, %v6979
        %v6981 = vsub.s32 4294967266, %v6976
        %v6982 = vadd.s32 %v6981, 127
        %v6983 = vshll.u32 %v6982, 23
        %v6984 = vor.u32 4788187, %v6983
        %v6985 = vand.u32 2147483647, %v6984
        %v6987 = vcvt.s32.f32 %v6980
        %v6988 = vmul.f32 %v6987, %v6985
        %v6989 = vxor.u32 %v6988, 2147483648
        %v6990 = vsel %vm6907, %v6989, %v6988
        %v6991 = vsub.s32 4, %v6967
        %v6992 = vsel %vm6907, %v6991, %v6967
        %v6993 = vsel %vm6906, %v4285, %v6990
        %v6994 = vsel %vm6906, 0, %v6992
        %v6995 = vcosq.f32.pop %v6993
        %v6996 = vsinq.f32.pop %v6993
        %vm6997 = vweird.f32 %v4285
        %v6998 = vadd.s32 %v6994, 3
        %v6999 = vand.u32 %v6998, 3
        %vm7000 = vcmp.lt.s32.totalorder %v6999, 2
        %vm7001 = vcmp.eq.s32.totalorder %v6999, 0
        %v7002 = vxor.u32 %v6996, 2147483648
        %v7003 = vsel %vm7001, %v6995, %v7002
        %vm7004 = vcmp.eq.s32.totalorder %v6999, 2
        %v7005 = vxor.u32 %v6995, 2147483648
        %v7006 = vsel %vm7004, %v7005, %v6996
        %v7007 = vsel %vm7000, %v7003, %v7006
        %v7008 = vsel %vm6997, nan, %v7007
        %v7009 = vand.u32 2147483647, %v4289
        %vm7010 = vcmp.le.f32.partialorder %v7009, 0.7853982
        %vm7011 = vcmp.lt.s32.totalorder %v4289, 0
        %v7012 = vand.u32 %v4289, 2139095040
        %v7013 = vshrl.u32 %v7012, 23
        %v7014 = vsub.s32 %v7013, 127
        %v7015 = vand.u32 2147483647, %v4289
        %v7016 = vand.u32 %v7015, 8388607
        %v7017 = vor.u32 %v7016, 8388608
        %v7018 = vsub.s32 0, %v7017
        %v7019 = vadd.s32 %v7014, 1
        %vm7020 = vcmp.gt.s32.totalorder %v7019, 0
        %v7021 = vsel %vm7020, %v7019, 0
        %v7022 = vshrl.u32 %v7021, 5
        %v7023 = vand.u32 %v7021, 31
        %v7024 = vsub.s32 32, %v7023
        %v7025 = vshrl.u32 683565275, %v7024
        %v7026 = vshll.u32 683565275, %v7023
        %v7027 = vshrl.u32 2475754826, %v7024
        %v7028 = vor.u32 %v7026, %v7027
        %v7029 = vshll.u32 2475754826, %v7023
        %v7030 = vshrl.u32 2131351028, %v7024
        %v7031 = vor.u32 %v7029, %v7030
        %v7032 = vshll.u32 2131351028, %v7023
        %v7033 = vshrl.u32 2102212464, %v7024
        %v7034 = vor.u32 %v7032, %v7033
        %v7035 = vshll.u32 2102212464, %v7023
        %v7036 = vshrl.u32 920167782, %v7024
        %v7037 = vor.u32 %v7035, %v7036
        %v7038 = vshll.u32 920167782, %v7023
        %v7039 = vshrl.u32 1326507024, %v7024
        %v7040 = vor.u32 %v7038, %v7039
        %vm7041 = vcmp.lt.s32.totalorder %v7022, 1
        %vm7042 = vcmp.lt.s32.totalorder %v7022, 2
        %vm7043 = vcmp.lt.s32.totalorder %v7022, 3
        %vm7044 = vcmp.lt.s32.totalorder %v7022, 4
        %v7045 = vsel %vm7041, %v7025, %v7028
        %v7046 = vsel %vm7044, %v7034, 2102212464
        %v7047 = vsel %vm7043, %v7031, %v7046
        %v7048 = vsel %vm7042, %v7045, %v7047
        %v7049 = vsel %vm7041, %v7028, %v7031
        %v7050 = vsel %vm7044, %v7037, 920167782
        %v7051 = vsel %vm7043, %v7034, %v7050
        %v7052 = vsel %vm7042, %v7049, %v7051
        %v7053 = vsel %vm7041, %v7031, %v7034
        %v7054 = vsel %vm7044, %v7040, 1326507024
        %v7055 = vsel %vm7043, %v7037, %v7054
        %v7056 = vsel %vm7042, %v7053, %v7055
        %v7057 = vshll.u32 %v7017, 8
        %v7058 = vmul.u32.u64.compose %v7057, %v7056
        %v7059 = vextract.low.u32 %v7058
        %v7060 = vextract.high.u32 %v7058
        %v7061 = vmul.u32.u64.compose %v7057, %v7052
        %v7062 = vextract.low.u32 %v7061
        %v7063 = vextract.high.u32 %v7061
        %v7064 = vmul.u32 %v7057, %v7048
        %v7065 = vadd.s32 %v7060, %v7062
        %vm7066 = vc.u32 %v7060, %v7062
        %v7067 = vadd.s32 %v7063, 1
        %v7068 = vsel %vm7066, %v7067, %v7063
        %v7069 = vadd.s32 %v7064, %v7068
        %v7070 = vadd.s32 %v7069, 536870912
        %v7071 = vshrl.u32 %v7070, 30
        %v7072 = vshll.u32 %v7071, 30
        %v7073 = vsub.s32 %v7069, %v7072
        %vm7074 = vcmp.lt.s32.totalorder %v7073, 0
        %v7075 = vsub.s32 0, %v7073
        %v7076 = vsel %vm7074, %v7075, %v7073
        %v7077 = vclz %v7076
        %v7078 = vsub.s32 %v7077, 2
        %vm7079 = vcmp.gt.s32.totalorder 0, %v7078
        %v7080 = vsel %vm7079, 0, %v7078
        %v7081 = vsub.s32 32, %v7080
        %v7082 = vshll.u32 %v7073, %v7080
        %v7083 = vshrl.u32 %v7065, %v7081
        %v7084 = vor.u32 %v7082, %v7083
        %v7085 = vsub.s32 4294967266, %v7080
        %v7086 = vadd.s32 %v7085, 127
        %v7087 = vshll.u32 %v7086, 23
        %v7088 = vor.u32 4788187, %v7087
        %v7089 = vand.u32 2147483647, %v7088
        %v7091 = vcvt.s32.f32 %v7084
        %v7092 = vmul.f32 %v7091, %v7089
        %v7093 = vxor.u32 %v7092, 2147483648
        %v7094 = vsel %vm7011, %v7093, %v7092
        %v7095 = vsub.s32 4, %v7071
        %v7096 = vsel %vm7011, %v7095, %v7071
        %v7097 = vsel %vm7010, %v4289, %v7094
        %v7098 = vsel %vm7010, 0, %v7096
        %v7099 = vcosq.f32.pop %v7097
        %v7100 = vsinq.f32.pop %v7097
        %vm7101 = vweird.f32 %v4289
        %v7102 = vadd.s32 %v7098, 3
        %v7103 = vand.u32 %v7102, 3
        %vm7104 = vcmp.lt.s32.totalorder %v7103, 2
        %vm7105 = vcmp.eq.s32.totalorder %v7103, 0
        %v7106 = vxor.u32 %v7100, 2147483648
        %v7107 = vsel %vm7105, %v7099, %v7106
        %vm7108 = vcmp.eq.s32.totalorder %v7103, 2
        %v7109 = vxor.u32 %v7099, 2147483648
        %v7110 = vsel %vm7108, %v7109, %v7100
        %v7111 = vsel %vm7104, %v7107, %v7110
        %v7112 = vsel %vm7101, nan, %v7111
        %v7113 = vand.u32 2147483647, %v4291
        %vm7114 = vcmp.le.f32.partialorder %v7113, 0.7853982
        %vm7115 = vcmp.lt.s32.totalorder %v4291, 0
        %v7116 = vand.u32 %v4291, 2139095040
        %v7117 = vshrl.u32 %v7116, 23
        %v7118 = vsub.s32 %v7117, 127
        %v7119 = vand.u32 2147483647, %v4291
        %v7120 = vand.u32 %v7119, 8388607
        %v7121 = vor.u32 %v7120, 8388608
        %v7122 = vsub.s32 0, %v7121
        %v7123 = vadd.s32 %v7118, 1
        %vm7124 = vcmp.gt.s32.totalorder %v7123, 0
        %v7125 = vsel %vm7124, %v7123, 0
        %v7126 = vshrl.u32 %v7125, 5
        %v7127 = vand.u32 %v7125, 31
        %v7128 = vsub.s32 32, %v7127
        %v7129 = vshrl.u32 683565275, %v7128
        %v7130 = vshll.u32 683565275, %v7127
        %v7131 = vshrl.u32 2475754826, %v7128
        %v7132 = vor.u32 %v7130, %v7131
        %v7133 = vshll.u32 2475754826, %v7127
        %v7134 = vshrl.u32 2131351028, %v7128
        %v7135 = vor.u32 %v7133, %v7134
        %v7136 = vshll.u32 2131351028, %v7127
        %v7137 = vshrl.u32 2102212464, %v7128
        %v7138 = vor.u32 %v7136, %v7137
        %v7139 = vshll.u32 2102212464, %v7127
        %v7140 = vshrl.u32 920167782, %v7128
        %v7141 = vor.u32 %v7139, %v7140
        %v7142 = vshll.u32 920167782, %v7127
        %v7143 = vshrl.u32 1326507024, %v7128
        %v7144 = vor.u32 %v7142, %v7143
        %vm7145 = vcmp.lt.s32.totalorder %v7126, 1
        %vm7146 = vcmp.lt.s32.totalorder %v7126, 2
        %vm7147 = vcmp.lt.s32.totalorder %v7126, 3
        %vm7148 = vcmp.lt.s32.totalorder %v7126, 4
        %v7149 = vsel %vm7145, %v7129, %v7132
        %v7150 = vsel %vm7148, %v7138, 2102212464
        %v7151 = vsel %vm7147, %v7135, %v7150
        %v7152 = vsel %vm7146, %v7149, %v7151
        %v7153 = vsel %vm7145, %v7132, %v7135
        %v7154 = vsel %vm7148, %v7141, 920167782
        %v7155 = vsel %vm7147, %v7138, %v7154
        %v7156 = vsel %vm7146, %v7153, %v7155
        %v7157 = vsel %vm7145, %v7135, %v7138
        %v7158 = vsel %vm7148, %v7144, 1326507024
        %v7159 = vsel %vm7147, %v7141, %v7158
        %v7160 = vsel %vm7146, %v7157, %v7159
        %v7161 = vshll.u32 %v7121, 8
        %v7162 = vmul.u32.u64.compose %v7161, %v7160
        %v7163 = vextract.low.u32 %v7162
        %v7164 = vextract.high.u32 %v7162
        %v7165 = vmul.u32.u64.compose %v7161, %v7156
        %v7166 = vextract.low.u32 %v7165
        %v7167 = vextract.high.u32 %v7165
        %v7168 = vmul.u32 %v7161, %v7152
        %v7169 = vadd.s32 %v7164, %v7166
        %vm7170 = vc.u32 %v7164, %v7166
        %v7171 = vadd.s32 %v7167, 1
        %v7172 = vsel %vm7170, %v7171, %v7167
        %v7173 = vadd.s32 %v7168, %v7172
        %v7174 = vadd.s32 %v7173, 536870912
        %v7175 = vshrl.u32 %v7174, 30
        %v7176 = vshll.u32 %v7175, 30
        %v7177 = vsub.s32 %v7173, %v7176
        %vm7178 = vcmp.lt.s32.totalorder %v7177, 0
        %v7179 = vsub.s32 0, %v7177
        %v7180 = vsel %vm7178, %v7179, %v7177
        %v7181 = vclz %v7180
        %v7182 = vsub.s32 %v7181, 2
        %vm7183 = vcmp.gt.s32.totalorder 0, %v7182
        %v7184 = vsel %vm7183, 0, %v7182
        %v7185 = vsub.s32 32, %v7184
        %v7186 = vshll.u32 %v7177, %v7184
        %v7187 = vshrl.u32 %v7169, %v7185
        %v7188 = vor.u32 %v7186, %v7187
        %v7189 = vsub.s32 4294967266, %v7184
        %v7190 = vadd.s32 %v7189, 127
        %v7191 = vshll.u32 %v7190, 23
        %v7192 = vor.u32 4788187, %v7191
        %v7193 = vand.u32 2147483647, %v7192
        %v7195 = vcvt.s32.f32 %v7188
        %v7196 = vmul.f32 %v7195, %v7193
        %v7197 = vxor.u32 %v7196, 2147483648
        %v7198 = vsel %vm7115, %v7197, %v7196
        %v7199 = vsub.s32 4, %v7175
        %v7200 = vsel %vm7115, %v7199, %v7175
        %v7201 = vsel %vm7114, %v4291, %v7198
        %v7202 = vsel %vm7114, 0, %v7200
        %v7203 = vcosq.f32.pop %v7201
        %v7204 = vsinq.f32.pop %v7201
        %vm7205 = vweird.f32 %v4291
        %v7206 = vadd.s32 %v7202, 3
        %v7207 = vand.u32 %v7206, 3
        %vm7208 = vcmp.lt.s32.totalorder %v7207, 2
        %vm7209 = vcmp.eq.s32.totalorder %v7207, 0
        %v7210 = vxor.u32 %v7204, 2147483648
        %v7211 = vsel %vm7209, %v7203, %v7210
        %vm7212 = vcmp.eq.s32.totalorder %v7207, 2
        %v7213 = vxor.u32 %v7203, 2147483648
        %v7214 = vsel %vm7212, %v7213, %v7204
        %v7215 = vsel %vm7208, %v7211, %v7214
        %v7216 = vsel %vm7205, nan, %v7215
        %v7217 = vand.u32 2147483647, %v4295
        %vm7218 = vcmp.le.f32.partialorder %v7217, 0.7853982
        %vm7219 = vcmp.lt.s32.totalorder %v4295, 0
        %v7220 = vand.u32 %v4295, 2139095040
        %v7221 = vshrl.u32 %v7220, 23
        %v7222 = vsub.s32 %v7221, 127
        %v7223 = vand.u32 2147483647, %v4295
        %v7224 = vand.u32 %v7223, 8388607
        %v7225 = vor.u32 %v7224, 8388608
        %v7226 = vsub.s32 0, %v7225
        %v7227 = vadd.s32 %v7222, 1
        %vm7228 = vcmp.gt.s32.totalorder %v7227, 0
        %v7229 = vsel %vm7228, %v7227, 0
        %v7230 = vshrl.u32 %v7229, 5
        %v7231 = vand.u32 %v7229, 31
        %v7232 = vsub.s32 32, %v7231
        %v7233 = vshrl.u32 683565275, %v7232
        %v7234 = vshll.u32 683565275, %v7231
        %v7235 = vshrl.u32 2475754826, %v7232
        %v7236 = vor.u32 %v7234, %v7235
        %v7237 = vshll.u32 2475754826, %v7231
        %v7238 = vshrl.u32 2131351028, %v7232
        %v7239 = vor.u32 %v7237, %v7238
        %v7240 = vshll.u32 2131351028, %v7231
        %v7241 = vshrl.u32 2102212464, %v7232
        %v7242 = vor.u32 %v7240, %v7241
        %v7243 = vshll.u32 2102212464, %v7231
        %v7244 = vshrl.u32 920167782, %v7232
        %v7245 = vor.u32 %v7243, %v7244
        %v7246 = vshll.u32 920167782, %v7231
        %v7247 = vshrl.u32 1326507024, %v7232
        %v7248 = vor.u32 %v7246, %v7247
        %vm7249 = vcmp.lt.s32.totalorder %v7230, 1
        %vm7250 = vcmp.lt.s32.totalorder %v7230, 2
        %vm7251 = vcmp.lt.s32.totalorder %v7230, 3
        %vm7252 = vcmp.lt.s32.totalorder %v7230, 4
        %v7253 = vsel %vm7249, %v7233, %v7236
        %v7254 = vsel %vm7252, %v7242, 2102212464
        %v7255 = vsel %vm7251, %v7239, %v7254
        %v7256 = vsel %vm7250, %v7253, %v7255
        %v7257 = vsel %vm7249, %v7236, %v7239
        %v7258 = vsel %vm7252, %v7245, 920167782
        %v7259 = vsel %vm7251, %v7242, %v7258
        %v7260 = vsel %vm7250, %v7257, %v7259
        %v7261 = vsel %vm7249, %v7239, %v7242
        %v7262 = vsel %vm7252, %v7248, 1326507024
        %v7263 = vsel %vm7251, %v7245, %v7262
        %v7264 = vsel %vm7250, %v7261, %v7263
        %v7265 = vshll.u32 %v7225, 8
        %v7266 = vmul.u32.u64.compose %v7265, %v7264
        %v7267 = vextract.low.u32 %v7266
        %v7268 = vextract.high.u32 %v7266
        %v7269 = vmul.u32.u64.compose %v7265, %v7260
        %v7270 = vextract.low.u32 %v7269
        %v7271 = vextract.high.u32 %v7269
        %v7272 = vmul.u32 %v7265, %v7256
        %v7273 = vadd.s32 %v7268, %v7270
        %vm7274 = vc.u32 %v7268, %v7270
        %v7275 = vadd.s32 %v7271, 1
        %v7276 = vsel %vm7274, %v7275, %v7271
        %v7277 = vadd.s32 %v7272, %v7276
        %v7278 = vadd.s32 %v7277, 536870912
        %v7279 = vshrl.u32 %v7278, 30
        %v7280 = vshll.u32 %v7279, 30
        %v7281 = vsub.s32 %v7277, %v7280
        %vm7282 = vcmp.lt.s32.totalorder %v7281, 0
        %v7283 = vsub.s32 0, %v7281
        %v7284 = vsel %vm7282, %v7283, %v7281
        %v7285 = vclz %v7284
        %v7286 = vsub.s32 %v7285, 2
        %vm7287 = vcmp.gt.s32.totalorder 0, %v7286
        %v7288 = vsel %vm7287, 0, %v7286
        %v7289 = vsub.s32 32, %v7288
        %v7290 = vshll.u32 %v7281, %v7288
        %v7291 = vshrl.u32 %v7273, %v7289
        %v7292 = vor.u32 %v7290, %v7291
        %v7293 = vsub.s32 4294967266, %v7288
        %v7294 = vadd.s32 %v7293, 127
        %v7295 = vshll.u32 %v7294, 23
        %v7296 = vor.u32 4788187, %v7295
        %v7297 = vand.u32 2147483647, %v7296
        %v7299 = vcvt.s32.f32 %v7292
        %v7300 = vmul.f32 %v7299, %v7297
        %v7301 = vxor.u32 %v7300, 2147483648
        %v7302 = vsel %vm7219, %v7301, %v7300
        %v7303 = vsub.s32 4, %v7279
        %v7304 = vsel %vm7219, %v7303, %v7279
        %v7305 = vsel %vm7218, %v4295, %v7302
        %v7306 = vsel %vm7218, 0, %v7304
        %v7307 = vcosq.f32.pop %v7305
        %v7308 = vsinq.f32.pop %v7305
        %vm7309 = vweird.f32 %v4295
        %v7310 = vadd.s32 %v7306, 3
        %v7311 = vand.u32 %v7310, 3
        %vm7312 = vcmp.lt.s32.totalorder %v7311, 2
        %vm7313 = vcmp.eq.s32.totalorder %v7311, 0
        %v7314 = vxor.u32 %v7308, 2147483648
        %v7315 = vsel %vm7313, %v7307, %v7314
        %vm7316 = vcmp.eq.s32.totalorder %v7311, 2
        %v7317 = vxor.u32 %v7307, 2147483648
        %v7318 = vsel %vm7316, %v7317, %v7308
        %v7319 = vsel %vm7312, %v7315, %v7318
        %v7320 = vsel %vm7309, nan, %v7319
        %v7321 = vand.u32 2147483647, %v4297
        %vm7322 = vcmp.le.f32.partialorder %v7321, 0.7853982
        %vm7323 = vcmp.lt.s32.totalorder %v4297, 0
        %v7324 = vand.u32 %v4297, 2139095040
        %v7325 = vshrl.u32 %v7324, 23
        %v7326 = vsub.s32 %v7325, 127
        %v7327 = vand.u32 2147483647, %v4297
        %v7328 = vand.u32 %v7327, 8388607
        %v7329 = vor.u32 %v7328, 8388608
        %v7330 = vsub.s32 0, %v7329
        %v7331 = vadd.s32 %v7326, 1
        %vm7332 = vcmp.gt.s32.totalorder %v7331, 0
        %v7333 = vsel %vm7332, %v7331, 0
        %v7334 = vshrl.u32 %v7333, 5
        %v7335 = vand.u32 %v7333, 31
        %v7336 = vsub.s32 32, %v7335
        %v7337 = vshrl.u32 683565275, %v7336
        %v7338 = vshll.u32 683565275, %v7335
        %v7339 = vshrl.u32 2475754826, %v7336
        %v7340 = vor.u32 %v7338, %v7339
        %v7341 = vshll.u32 2475754826, %v7335
        %v7342 = vshrl.u32 2131351028, %v7336
        %v7343 = vor.u32 %v7341, %v7342
        %v7344 = vshll.u32 2131351028, %v7335
        %v7345 = vshrl.u32 2102212464, %v7336
        %v7346 = vor.u32 %v7344, %v7345
        %v7347 = vshll.u32 2102212464, %v7335
        %v7348 = vshrl.u32 920167782, %v7336
        %v7349 = vor.u32 %v7347, %v7348
        %v7350 = vshll.u32 920167782, %v7335
        %v7351 = vshrl.u32 1326507024, %v7336
        %v7352 = vor.u32 %v7350, %v7351
        %vm7353 = vcmp.lt.s32.totalorder %v7334, 1
        %vm7354 = vcmp.lt.s32.totalorder %v7334, 2
        %vm7355 = vcmp.lt.s32.totalorder %v7334, 3
        %vm7356 = vcmp.lt.s32.totalorder %v7334, 4
        %v7357 = vsel %vm7353, %v7337, %v7340
        %v7358 = vsel %vm7356, %v7346, 2102212464
        %v7359 = vsel %vm7355, %v7343, %v7358
        %v7360 = vsel %vm7354, %v7357, %v7359
        %v7361 = vsel %vm7353, %v7340, %v7343
        %v7362 = vsel %vm7356, %v7349, 920167782
        %v7363 = vsel %vm7355, %v7346, %v7362
        %v7364 = vsel %vm7354, %v7361, %v7363
        %v7365 = vsel %vm7353, %v7343, %v7346
        %v7366 = vsel %vm7356, %v7352, 1326507024
        %v7367 = vsel %vm7355, %v7349, %v7366
        %v7368 = vsel %vm7354, %v7365, %v7367
        %v7369 = vshll.u32 %v7329, 8
        %v7370 = vmul.u32.u64.compose %v7369, %v7368
        %v7371 = vextract.low.u32 %v7370
        %v7372 = vextract.high.u32 %v7370
        %v7373 = vmul.u32.u64.compose %v7369, %v7364
        %v7374 = vextract.low.u32 %v7373
        %v7375 = vextract.high.u32 %v7373
        %v7376 = vmul.u32 %v7369, %v7360
        %v7377 = vadd.s32 %v7372, %v7374
        %vm7378 = vc.u32 %v7372, %v7374
        %v7379 = vadd.s32 %v7375, 1
        %v7380 = vsel %vm7378, %v7379, %v7375
        %v7381 = vadd.s32 %v7376, %v7380
        %v7382 = vadd.s32 %v7381, 536870912
        %v7383 = vshrl.u32 %v7382, 30
        %v7384 = vshll.u32 %v7383, 30
        %v7385 = vsub.s32 %v7381, %v7384
        %vm7386 = vcmp.lt.s32.totalorder %v7385, 0
        %v7387 = vsub.s32 0, %v7385
        %v7388 = vsel %vm7386, %v7387, %v7385
        %v7389 = vclz %v7388
        %v7390 = vsub.s32 %v7389, 2
        %vm7391 = vcmp.gt.s32.totalorder 0, %v7390
        %v7392 = vsel %vm7391, 0, %v7390
        %v7393 = vsub.s32 32, %v7392
        %v7394 = vshll.u32 %v7385, %v7392
        %v7395 = vshrl.u32 %v7377, %v7393
        %v7396 = vor.u32 %v7394, %v7395
        %v7397 = vsub.s32 4294967266, %v7392
        %v7398 = vadd.s32 %v7397, 127
        %v7399 = vshll.u32 %v7398, 23
        %v7400 = vor.u32 4788187, %v7399
        %v7401 = vand.u32 2147483647, %v7400
        %v7403 = vcvt.s32.f32 %v7396
        %v7404 = vmul.f32 %v7403, %v7401
        %v7405 = vxor.u32 %v7404, 2147483648
        %v7406 = vsel %vm7323, %v7405, %v7404
        %v7407 = vsub.s32 4, %v7383
        %v7408 = vsel %vm7323, %v7407, %v7383
        %v7409 = vsel %vm7322, %v4297, %v7406
        %v7410 = vsel %vm7322, 0, %v7408
        %v7411 = vcosq.f32.pop %v7409
        %v7412 = vsinq.f32.pop %v7409
        %vm7413 = vweird.f32 %v4297
        %v7414 = vadd.s32 %v7410, 3
        %v7415 = vand.u32 %v7414, 3
        %vm7416 = vcmp.lt.s32.totalorder %v7415, 2
        %vm7417 = vcmp.eq.s32.totalorder %v7415, 0
        %v7418 = vxor.u32 %v7412, 2147483648
        %v7419 = vsel %vm7417, %v7411, %v7418
        %vm7420 = vcmp.eq.s32.totalorder %v7415, 2
        %v7421 = vxor.u32 %v7411, 2147483648
        %v7422 = vsel %vm7420, %v7421, %v7412
        %v7423 = vsel %vm7416, %v7419, %v7422
        %v7424 = vsel %vm7413, nan, %v7423
        %v7425 = vand.u32 2147483647, %v4301
        %vm7426 = vcmp.le.f32.partialorder %v7425, 0.7853982
        %vm7427 = vcmp.lt.s32.totalorder %v4301, 0
        %v7428 = vand.u32 %v4301, 2139095040
        %v7429 = vshrl.u32 %v7428, 23
        %v7430 = vsub.s32 %v7429, 127
        %v7431 = vand.u32 2147483647, %v4301
        %v7432 = vand.u32 %v7431, 8388607
        %v7433 = vor.u32 %v7432, 8388608
        %v7434 = vsub.s32 0, %v7433
        %v7435 = vadd.s32 %v7430, 1
        %vm7436 = vcmp.gt.s32.totalorder %v7435, 0
        %v7437 = vsel %vm7436, %v7435, 0
        %v7438 = vshrl.u32 %v7437, 5
        %v7439 = vand.u32 %v7437, 31
        %v7440 = vsub.s32 32, %v7439
        %v7441 = vshrl.u32 683565275, %v7440
        %v7442 = vshll.u32 683565275, %v7439
        %v7443 = vshrl.u32 2475754826, %v7440
        %v7444 = vor.u32 %v7442, %v7443
        %v7445 = vshll.u32 2475754826, %v7439
        %v7446 = vshrl.u32 2131351028, %v7440
        %v7447 = vor.u32 %v7445, %v7446
        %v7448 = vshll.u32 2131351028, %v7439
        %v7449 = vshrl.u32 2102212464, %v7440
        %v7450 = vor.u32 %v7448, %v7449
        %v7451 = vshll.u32 2102212464, %v7439
        %v7452 = vshrl.u32 920167782, %v7440
        %v7453 = vor.u32 %v7451, %v7452
        %v7454 = vshll.u32 920167782, %v7439
        %v7455 = vshrl.u32 1326507024, %v7440
        %v7456 = vor.u32 %v7454, %v7455
        %vm7457 = vcmp.lt.s32.totalorder %v7438, 1
        %vm7458 = vcmp.lt.s32.totalorder %v7438, 2
        %vm7459 = vcmp.lt.s32.totalorder %v7438, 3
        %vm7460 = vcmp.lt.s32.totalorder %v7438, 4
        %v7461 = vsel %vm7457, %v7441, %v7444
        %v7462 = vsel %vm7460, %v7450, 2102212464
        %v7463 = vsel %vm7459, %v7447, %v7462
        %v7464 = vsel %vm7458, %v7461, %v7463
        %v7465 = vsel %vm7457, %v7444, %v7447
        %v7466 = vsel %vm7460, %v7453, 920167782
        %v7467 = vsel %vm7459, %v7450, %v7466
        %v7468 = vsel %vm7458, %v7465, %v7467
        %v7469 = vsel %vm7457, %v7447, %v7450
        %v7470 = vsel %vm7460, %v7456, 1326507024
        %v7471 = vsel %vm7459, %v7453, %v7470
        %v7472 = vsel %vm7458, %v7469, %v7471
        %v7473 = vshll.u32 %v7433, 8
        %v7474 = vmul.u32.u64.compose %v7473, %v7472
        %v7475 = vextract.low.u32 %v7474
        %v7476 = vextract.high.u32 %v7474
        %v7477 = vmul.u32.u64.compose %v7473, %v7468
        %v7478 = vextract.low.u32 %v7477
        %v7479 = vextract.high.u32 %v7477
        %v7480 = vmul.u32 %v7473, %v7464
        %v7481 = vadd.s32 %v7476, %v7478
        %vm7482 = vc.u32 %v7476, %v7478
        %v7483 = vadd.s32 %v7479, 1
        %v7484 = vsel %vm7482, %v7483, %v7479
        %v7485 = vadd.s32 %v7480, %v7484
        %v7486 = vadd.s32 %v7485, 536870912
        %v7487 = vshrl.u32 %v7486, 30
        %v7488 = vshll.u32 %v7487, 30
        %v7489 = vsub.s32 %v7485, %v7488
        %vm7490 = vcmp.lt.s32.totalorder %v7489, 0
        %v7491 = vsub.s32 0, %v7489
        %v7492 = vsel %vm7490, %v7491, %v7489
        %v7493 = vclz %v7492
        %v7494 = vsub.s32 %v7493, 2
        %vm7495 = vcmp.gt.s32.totalorder 0, %v7494
        %v7496 = vsel %vm7495, 0, %v7494
        %v7497 = vsub.s32 32, %v7496
        %v7498 = vshll.u32 %v7489, %v7496
        %v7499 = vshrl.u32 %v7481, %v7497
        %v7500 = vor.u32 %v7498, %v7499
        %v7501 = vsub.s32 4294967266, %v7496
        %v7502 = vadd.s32 %v7501, 127
        %v7503 = vshll.u32 %v7502, 23
        %v7504 = vor.u32 4788187, %v7503
        %v7505 = vand.u32 2147483647, %v7504
        %v7507 = vcvt.s32.f32 %v7500
        %v7508 = vmul.f32 %v7507, %v7505
        %v7509 = vxor.u32 %v7508, 2147483648
        %v7510 = vsel %vm7427, %v7509, %v7508
        %v7511 = vsub.s32 4, %v7487
        %v7512 = vsel %vm7427, %v7511, %v7487
        %v7513 = vsel %vm7426, %v4301, %v7510
        %v7514 = vsel %vm7426, 0, %v7512
        %v7515 = vcosq.f32.pop %v7513
        %v7516 = vsinq.f32.pop %v7513
        %vm7517 = vweird.f32 %v4301
        %v7518 = vadd.s32 %v7514, 3
        %v7519 = vand.u32 %v7518, 3
        %vm7520 = vcmp.lt.s32.totalorder %v7519, 2
        %vm7521 = vcmp.eq.s32.totalorder %v7519, 0
        %v7522 = vxor.u32 %v7516, 2147483648
        %v7523 = vsel %vm7521, %v7515, %v7522
        %vm7524 = vcmp.eq.s32.totalorder %v7519, 2
        %v7525 = vxor.u32 %v7515, 2147483648
        %v7526 = vsel %vm7524, %v7525, %v7516
        %v7527 = vsel %vm7520, %v7523, %v7526
        %v7528 = vsel %vm7517, nan, %v7527
        %v7529 = vand.u32 2147483647, %v4303
        %vm7530 = vcmp.le.f32.partialorder %v7529, 0.7853982
        %vm7531 = vcmp.lt.s32.totalorder %v4303, 0
        %v7532 = vand.u32 %v4303, 2139095040
        %v7533 = vshrl.u32 %v7532, 23
        %v7534 = vsub.s32 %v7533, 127
        %v7535 = vand.u32 2147483647, %v4303
        %v7536 = vand.u32 %v7535, 8388607
        %v7537 = vor.u32 %v7536, 8388608
        %v7538 = vsub.s32 0, %v7537
        %v7539 = vadd.s32 %v7534, 1
        %vm7540 = vcmp.gt.s32.totalorder %v7539, 0
        %v7541 = vsel %vm7540, %v7539, 0
        %v7542 = vshrl.u32 %v7541, 5
        %v7543 = vand.u32 %v7541, 31
        %v7544 = vsub.s32 32, %v7543
        %v7545 = vshrl.u32 683565275, %v7544
        %v7546 = vshll.u32 683565275, %v7543
        %v7547 = vshrl.u32 2475754826, %v7544
        %v7548 = vor.u32 %v7546, %v7547
        %v7549 = vshll.u32 2475754826, %v7543
        %v7550 = vshrl.u32 2131351028, %v7544
        %v7551 = vor.u32 %v7549, %v7550
        %v7552 = vshll.u32 2131351028, %v7543
        %v7553 = vshrl.u32 2102212464, %v7544
        %v7554 = vor.u32 %v7552, %v7553
        %v7555 = vshll.u32 2102212464, %v7543
        %v7556 = vshrl.u32 920167782, %v7544
        %v7557 = vor.u32 %v7555, %v7556
        %v7558 = vshll.u32 920167782, %v7543
        %v7559 = vshrl.u32 1326507024, %v7544
        %v7560 = vor.u32 %v7558, %v7559
        %vm7561 = vcmp.lt.s32.totalorder %v7542, 1
        %vm7562 = vcmp.lt.s32.totalorder %v7542, 2
        %vm7563 = vcmp.lt.s32.totalorder %v7542, 3
        %vm7564 = vcmp.lt.s32.totalorder %v7542, 4
        %v7565 = vsel %vm7561, %v7545, %v7548
        %v7566 = vsel %vm7564, %v7554, 2102212464
        %v7567 = vsel %vm7563, %v7551, %v7566
        %v7568 = vsel %vm7562, %v7565, %v7567
        %v7569 = vsel %vm7561, %v7548, %v7551
        %v7570 = vsel %vm7564, %v7557, 920167782
        %v7571 = vsel %vm7563, %v7554, %v7570
        %v7572 = vsel %vm7562, %v7569, %v7571
        %v7573 = vsel %vm7561, %v7551, %v7554
        %v7574 = vsel %vm7564, %v7560, 1326507024
        %v7575 = vsel %vm7563, %v7557, %v7574
        %v7576 = vsel %vm7562, %v7573, %v7575
        %v7577 = vshll.u32 %v7537, 8
        %v7578 = vmul.u32.u64.compose %v7577, %v7576
        %v7579 = vextract.low.u32 %v7578
        %v7580 = vextract.high.u32 %v7578
        %v7581 = vmul.u32.u64.compose %v7577, %v7572
        %v7582 = vextract.low.u32 %v7581
        %v7583 = vextract.high.u32 %v7581
        %v7584 = vmul.u32 %v7577, %v7568
        %v7585 = vadd.s32 %v7580, %v7582
        %vm7586 = vc.u32 %v7580, %v7582
        %v7587 = vadd.s32 %v7583, 1
        %v7588 = vsel %vm7586, %v7587, %v7583
        %v7589 = vadd.s32 %v7584, %v7588
        %v7590 = vadd.s32 %v7589, 536870912
        %v7591 = vshrl.u32 %v7590, 30
        %v7592 = vshll.u32 %v7591, 30
        %v7593 = vsub.s32 %v7589, %v7592
        %vm7594 = vcmp.lt.s32.totalorder %v7593, 0
        %v7595 = vsub.s32 0, %v7593
        %v7596 = vsel %vm7594, %v7595, %v7593
        %v7597 = vclz %v7596
        %v7598 = vsub.s32 %v7597, 2
        %vm7599 = vcmp.gt.s32.totalorder 0, %v7598
        %v7600 = vsel %vm7599, 0, %v7598
        %v7601 = vsub.s32 32, %v7600
        %v7602 = vshll.u32 %v7593, %v7600
        %v7603 = vshrl.u32 %v7585, %v7601
        %v7604 = vor.u32 %v7602, %v7603
        %v7605 = vsub.s32 4294967266, %v7600
        %v7606 = vadd.s32 %v7605, 127
        %v7607 = vshll.u32 %v7606, 23
        %v7608 = vor.u32 4788187, %v7607
        %v7609 = vand.u32 2147483647, %v7608
        %v7611 = vcvt.s32.f32 %v7604
        %v7612 = vmul.f32 %v7611, %v7609
        %v7613 = vxor.u32 %v7612, 2147483648
        %v7614 = vsel %vm7531, %v7613, %v7612
        %v7615 = vsub.s32 4, %v7591
        %v7616 = vsel %vm7531, %v7615, %v7591
        %v7617 = vsel %vm7530, %v4303, %v7614
        %v7618 = vsel %vm7530, 0, %v7616
        %v7619 = vcosq.f32.pop %v7617
        %v7620 = vsinq.f32.pop %v7617
        %vm7621 = vweird.f32 %v4303
        %v7622 = vadd.s32 %v7618, 3
        %v7623 = vand.u32 %v7622, 3
        %vm7624 = vcmp.lt.s32.totalorder %v7623, 2
        %vm7625 = vcmp.eq.s32.totalorder %v7623, 0
        %v7626 = vxor.u32 %v7620, 2147483648
        %v7627 = vsel %vm7625, %v7619, %v7626
        %vm7628 = vcmp.eq.s32.totalorder %v7623, 2
        %v7629 = vxor.u32 %v7619, 2147483648
        %v7630 = vsel %vm7628, %v7629, %v7620
        %v7631 = vsel %vm7624, %v7627, %v7630
        %v7632 = vsel %vm7621, nan, %v7631
        %v7633 = vld [vmem:[#allocation5] sm:$0xff]
        %v7634 = vld [vmem:[#allocation5 + $0x8] sm:$0xff]
        %v7635 = vld [vmem:[#allocation5 + $0x10] sm:$0xff]
        %v7636 = vld [vmem:[#allocation5 + $0x18] sm:$0xff]
        %v7637 = vld [vmem:[#allocation5 + $0x20] sm:$0xff]
        %v7638 = vld [vmem:[#allocation5 + $0x28] sm:$0xff]
        %v7639 = vld [vmem:[#allocation5 + $0x30] sm:$0xff]
        %v7640 = vld [vmem:[#allocation5 + $0x38] sm:$0xff]
        %v7641 = vld [vmem:[#allocation5 + $0x40] sm:$0xff]
        %v7642 = vld [vmem:[#allocation5 + $0x48] sm:$0xff]
        %v7643 = vld [vmem:[#allocation5 + $0x50] sm:$0xff]
        %v7644 = vld [vmem:[#allocation5 + $0x58] sm:$0xff]
        %v7645 = vld [vmem:[#allocation5 + $0x60] sm:$0xff]
        %v7646 = vld [vmem:[#allocation5 + $0x68] sm:$0xff]
        %v7647 = vld [vmem:[#allocation5 + $0x70] sm:$0xff]
        %v7648 = vld [vmem:[#allocation5 + $0x78] sm:$0xff]
        %v7649 = vld [vmem:[#allocation5 + $0x80] sm:$0xff]
        %v7650 = vld [vmem:[#allocation5 + $0x88] sm:$0xff]
        %v7651 = vld [vmem:[#allocation5 + $0x90] sm:$0xff]
        %v7652 = vld [vmem:[#allocation5 + $0x98] sm:$0xff]
        %v7653 = vld [vmem:[#allocation5 + $0xa0] sm:$0xff]
        %v7654 = vld [vmem:[#allocation5 + $0xa8] sm:$0xff]
        %v7655 = vld [vmem:[#allocation5 + $0xb0] sm:$0xff]
        %v7656 = vld [vmem:[#allocation5 + $0xb8] sm:$0xff]
        %v7657 = vld [vmem:[#allocation5 + $0xc0] sm:$0xff]
        %v7658 = vld [vmem:[#allocation5 + $0xc8] sm:$0xff]
        %v7659 = vld [vmem:[#allocation5 + $0xd0] sm:$0xff]
        %v7660 = vld [vmem:[#allocation5 + $0xd8] sm:$0xff]
        %v7661 = vld [vmem:[#allocation5 + $0xe0] sm:$0xff]
        %v7662 = vld [vmem:[#allocation5 + $0xe8] sm:$0xff]
        %v7663 = vld [vmem:[#allocation5 + $0xf0] sm:$0xff]
        %v7664 = vld [vmem:[#allocation5 + $0xf8] sm:$0xff]
        %v7665 = vld [vmem:[%s8] sm:$0x1]
        %v7667 = vlaneseq
        %v7668 = vshrl.u32 %v7667, 7
        %v7669 = vsub.s32 0, %v7668
        %v7670 = vrot.slane %v7665, %v7669
        %7672 = vmatprep.subr.mxu0 0.0
        %7673 = vmatpush1.msra.mxu0 %v7633
        %7674 = vmatprep.subr.mxu0 0.0
        %7675 = vmatpush1.msra.mxu0 %v7634
        %7676 = vmatprep.subr.mxu0 0.0
        %7677 = vmatpush1.msra.mxu0 %v7635
        %7678 = vmatprep.subr.mxu0 0.0
        %7679 = vmatpush1.msra.mxu0 %v7636
        %7680 = vmatprep.subr.mxu0 0.0
        %7681 = vmatpush1.msra.mxu0 %v7637
        %7682 = vmatprep.subr.mxu0 0.0
        %7683 = vmatpush1.msra.mxu0 %v7638
        %7684 = vmatprep.subr.mxu0 0.0
        %7685 = vmatpush1.msra.mxu0 %v7639
        %7686 = vmatprep.subr.mxu0 0.0
        %7687 = vmatpush1.msra.mxu0 %v7640
        %7688 = vmatprep.subr.mxu0 0.0
        %7689 = vmatpush1.msra.mxu0 %v7641
        %7690 = vmatprep.subr.mxu0 0.0
        %7691 = vmatpush1.msra.mxu0 %v7642
        %7692 = vmatprep.subr.mxu0 0.0
        %7693 = vmatpush1.msra.mxu0 %v7643
        %7694 = vmatprep.subr.mxu0 0.0
        %7695 = vmatpush1.msra.mxu0 %v7644
        %7696 = vmatprep.subr.mxu0 0.0
        %7697 = vmatpush1.msra.mxu0 %v7645
        %7698 = vmatprep.subr.mxu0 0.0
        %7699 = vmatpush1.msra.mxu0 %v7646
        %7700 = vmatprep.subr.mxu0 0.0
        %7701 = vmatpush1.msra.mxu0 %v7647
        %7702 = vmatprep.subr.mxu0 0.0
        %7703 = vmatpush1.msra.mxu0 %v7648
        %7704 = vmatprep.subr.mxu0 0.0
        %7705 = vmatpush1.msra.mxu0 %v7649
        %7706 = vmatprep.subr.mxu0 0.0
        %7707 = vmatpush1.msra.mxu0 %v7650
        %7708 = vmatprep.subr.mxu0 0.0
        %7709 = vmatpush1.msra.mxu0 %v7651
        %7710 = vmatprep.subr.mxu0 0.0
        %7711 = vmatpush1.msra.mxu0 %v7652
        %7712 = vmatprep.subr.mxu0 0.0
        %7713 = vmatpush1.msra.mxu0 %v7653
        %7714 = vmatprep.subr.mxu0 0.0
        %7715 = vmatpush1.msra.mxu0 %v7654
        %7716 = vmatprep.subr.mxu0 0.0
        %7717 = vmatpush1.msra.mxu0 %v7655
        %7718 = vmatprep.subr.mxu0 0.0
        %7719 = vmatpush1.msra.mxu0 %v7656
        %7720 = vmatprep.subr.mxu0 0.0
        %7721 = vmatpush1.msra.mxu0 %v7657
        %7722 = vmatprep.subr.mxu0 0.0
        %7723 = vmatpush1.msra.mxu0 %v7658
        %7724 = vmatprep.subr.mxu0 0.0
        %7725 = vmatpush1.msra.mxu0 %v7659
        %7726 = vmatprep.subr.mxu0 0.0
        %7727 = vmatpush1.msra.mxu0 %v7660
        %7728 = vmatprep.subr.mxu0 0.0
        %7729 = vmatpush1.msra.mxu0 %v7661
        %7730 = vmatprep.subr.mxu0 0.0
        %7731 = vmatpush1.msra.mxu0 %v7662
        %7732 = vmatprep.subr.mxu0 0.0
        %7733 = vmatpush1.msra.mxu0 %v7663
        %7734 = vmatprep.subr.mxu0 0.0
        %7735 = vmatpush1.msra.mxu0 %v7664
        %7736 = vmatprep.mubr.f32.mxu0 %v4512
        %7737 = vmatmul.mubr.f32.gmra.mrb[0].mxu0 %v4408
        %v7738 = vpop.f32.mrb[0].mxu0
        %v7739 = vadd.f32 %v7670, %v7738
        %v7740 = vpop.f32.mrb[0].mxu0
        %7741 = vmatprep.mubr.f32.mxu0 %v4720
        %7742 = vmatmul.mubr.f32.gmra.mrb[0].mxu0 %v4616
        %v7743 = vpop.f32.mrb[0].mxu0
        %v7744 = vadd.f32 %v7670, %v7743
        %v7745 = vpop.f32.mrb[0].mxu0
        %7746 = vmatprep.mubr.f32.mxu0 %v4928
        %7747 = vmatmul.mubr.f32.gmra.mrb[0].mxu0 %v4824
        %v7748 = vpop.f32.mrb[0].mxu0
        %v7749 = vadd.f32 %v7670, %v7748
        %v7750 = vpop.f32.mrb[0].mxu0
        %7751 = vmatprep.mubr.f32.mxu0 %v5136
        %7752 = vmatmul.mubr.f32.gmra.mrb[0].mxu0 %v5032
        %v7753 = vpop.f32.mrb[0].mxu0
        %v7754 = vadd.f32 %v7670, %v7753
        %v7755 = vpop.f32.mrb[0].mxu0
        %7756 = vmatprep.mubr.f32.mxu0 %v5344
        %7757 = vmatmul.mubr.f32.gmra.mrb[0].mxu0 %v5240
        %v7758 = vpop.f32.mrb[0].mxu0
        %v7759 = vadd.f32 %v7670, %v7758
        %v7760 = vpop.f32.mrb[0].mxu0
        %7761 = vmatprep.mubr.f32.mxu0 %v5552
        %7762 = vmatmul.mubr.f32.gmra.mrb[0].mxu0 %v5448
        %v7763 = vpop.f32.mrb[0].mxu0
        %v7764 = vadd.f32 %v7670, %v7763
        %v7765 = vpop.f32.mrb[0].mxu0
        %7766 = vmatprep.mubr.f32.mxu0 %v5760
        %7767 = vmatmul.mubr.f32.gmra.mrb[0].mxu0 %v5656
        %v7768 = vpop.f32.mrb[0].mxu0
        %v7769 = vadd.f32 %v7670, %v7768
        %v7770 = vpop.f32.mrb[0].mxu0
        %7771 = vmatprep.mubr.f32.mxu0 %v5968
        %7772 = vmatmul.mubr.f32.gmra.mrb[0].mxu0 %v5864
        %v7773 = vpop.f32.mrb[0].mxu0
        %v7774 = vadd.f32 %v7670, %v7773
        %v7775 = vpop.f32.mrb[0].mxu0
        %7776 = vmatprep.mubr.f32.mxu0 %v6176
        %7777 = vmatmul.mubr.f32.gmra.mrb[0].mxu0 %v6072
        %v7778 = vpop.f32.mrb[0].mxu0
        %v7779 = vadd.f32 %v7670, %v7778
        %v7780 = vpop.f32.mrb[0].mxu0
        %7781 = vmatprep.mubr.f32.mxu0 %v6384
        %7782 = vmatmul.mubr.f32.gmra.mrb[0].mxu0 %v6280
        %v7783 = vpop.f32.mrb[0].mxu0
        %v7784 = vadd.f32 %v7670, %v7783
        %v7785 = vpop.f32.mrb[0].mxu0
        %7786 = vmatprep.mubr.f32.mxu0 %v6592
        %7787 = vmatmul.mubr.f32.gmra.mrb[0].mxu0 %v6488
        %v7788 = vpop.f32.mrb[0].mxu0
        %v7789 = vadd.f32 %v7670, %v7788
        %v7790 = vpop.f32.mrb[0].mxu0
        %7791 = vmatprep.mubr.f32.mxu0 %v6800
        %7792 = vmatmul.mubr.f32.gmra.mrb[0].mxu0 %v6696
        %v7793 = vpop.f32.mrb[0].mxu0
        %v7794 = vadd.f32 %v7670, %v7793
        %v7795 = vpop.f32.mrb[0].mxu0
        %7796 = vmatprep.mubr.f32.mxu0 %v7008
        %7797 = vmatmul.mubr.f32.gmra.mrb[0].mxu0 %v6904
        %v7798 = vpop.f32.mrb[0].mxu0
        %v7799 = vadd.f32 %v7670, %v7798
        %v7800 = vpop.f32.mrb[0].mxu0
        %7801 = vmatprep.mubr.f32.mxu0 %v7216
        %7802 = vmatmul.mubr.f32.gmra.mrb[0].mxu0 %v7112
        %v7803 = vpop.f32.mrb[0].mxu0
        %v7804 = vadd.f32 %v7670, %v7803
        %v7805 = vpop.f32.mrb[0].mxu0
        %7806 = vmatprep.mubr.f32.mxu0 %v7424
        %7807 = vmatmul.mubr.f32.gmra.mrb[0].mxu0 %v7320
        %v7808 = vpop.f32.mrb[0].mxu0
        %v7809 = vadd.f32 %v7670, %v7808
        %v7810 = vpop.f32.mrb[0].mxu0
        %7811 = vmatprep.mubr.f32.mxu0 %v7632
        %7812 = vmatmul.mubr.f32.gmra.mrb[0].mxu0 %v7528
        %v7813 = vpop.f32.mrb[0].mxu0
        %v7814 = vadd.f32 %v7670, %v7813
        %v7815 = vpop.f32.mrb[0].mxu0
        %7816 = vdwg.mxu0
        %7817 = vst [vmem:[%s356] sm:$0xff] %v7739
        %7818 = vst [vmem:[%s356 + $0x8] sm:$0xff] %v7744
        %7819 = vst [vmem:[%s356 + $0x10] sm:$0xff] %v7749
        %7820 = vst [vmem:[%s356 + $0x18] sm:$0xff] %v7754
        %7821 = vst [vmem:[%s356 + $0x20] sm:$0xff] %v7759
        %7822 = vst [vmem:[%s356 + $0x28] sm:$0xff] %v7764
        %7823 = vst [vmem:[%s356 + $0x30] sm:$0xff] %v7769
        %7824 = vst [vmem:[%s356 + $0x38] sm:$0xff] %v7774
        %7825 = vst [vmem:[%s356 + $0x40] sm:$0xff] %v7779
        %7826 = vst [vmem:[%s356 + $0x48] sm:$0xff] %v7784
        %7827 = vst [vmem:[%s356 + $0x50] sm:$0xff] %v7789
        %7828 = vst [vmem:[%s356 + $0x58] sm:$0xff] %v7794
        %7829 = vst [vmem:[%s356 + $0x60] sm:$0xff] %v7799
        %7830 = vst [vmem:[%s356 + $0x68] sm:$0xff] %v7804
        %7831 = vst [vmem:[%s356 + $0x70] sm:$0xff] %v7809
        %7832 = vst [vmem:[%s356 + $0x78] sm:$0xff] %v7814
        %s7833 = sand.u32 %s227, 1
        %s7834 = scalar_lea.sflag [#allocation4], %s7833
        %s7835 = sand.u32 %s227, 1
        %s7836 = smul.addr %s7835, 128
        %s7837 = scalar_lea.vmem [#allocation7], %s7836
        // Predicated region
        $region65: #{tpu_custom_call.1} parent=55 // pred_check
          %p7838 = pneg %p237
        $region66: #{tpu_custom_call.1} parent=55 // pred_check_branch
          %7840 = sbr.rel (%p7838) target = $region68
        $region67: #{tpu_custom_call.1} parent=55 // pred_region
          %s7841 = smul.u32 16, %s25
          %s7843 = ssub.s32 2048, 2048
          %7844 = vsyncadd %s7834, %s7843
          %s7845 = smul.addr %s7841, 128
          %s7846 = scalar_lea.hbm %s9, %s7845
          %s7847 = sshll.u32 %s7837, 4
          %s7848 = int_to_ptr.vmem [resolvable:$true] %s7847
          %7853 = dma.vmem_to_hbm [thread:$0]  %s7848, 2048, %s7846, %s7834, 128, 128, 8
        $region68: #{tpu_custom_call.1} parent=55 // pred_fallthru
          _
      $region56: #{tpu_custom_call.1} parent=5 // pred_fallthru
        _
      %p7854 = scmp.le.s32.totalorder 2, %s20
      // Predicated region
      $region69: #{tpu_custom_call.1} parent=5 // pred_check
        %p7855 = pneg %p7854
      $region70: #{tpu_custom_call.1} parent=5 // pred_check_branch
        %7857 = sbr.rel (%p7855) target = $region72
      $region71: #{tpu_custom_call.1} parent=5 // pred_region
        %s7858 = ssub.s32 %s20, 2
        // Predicated region
        $region73: #{tpu_custom_call.1} parent=71 // pred_check
          %p7859 = pneg %p243
        $region74: #{tpu_custom_call.1} parent=71 // pred_check_branch
          %7861 = sbr.rel (%p7859) target = $region76
        $region75: #{tpu_custom_call.1} parent=71 // pred_region
          %s7862 = sand.u32 %s228, 1
          %s7863 = scalar_lea.sflag [#allocation4], %s7862
          %s7864 = sand.u32 %s228, 1
          %s7865 = smul.addr %s7864, 128
          %s7866 = scalar_lea.vmem [#allocation7], %s7865
          %7867 = dma.done %s7863, 2048
        $region76: #{tpu_custom_call.1} parent=71 // pred_fallthru
          _
      $region72: #{tpu_custom_call.1} parent=5 // pred_fallthru
        _
    $region6: #{tpu_custom_call.1} parent=1 // loop_footer
      %s24 = sadd.s32 1, %s20
    $region7: #{tpu_custom_call.1} parent=1 // loop_footer_branch
      %19 = sbr.rel target = $region3
    $region8: #{tpu_custom_call.1} parent=1 // loop_exit
      _
    %7868 = vsyncpa [#allocation3], 1
    %s7869 = scalar_lea.sflag [#allocation3], 1
    %7870 = vsyncpa %s7869, 1
    %7871 = vsyncpa [#allocation6], 1
    %7872 = vsyncpa [#allocation4], 1
    %s7873 = scalar_lea.sflag [#allocation4], 1
    %7874 = vsyncpa %s7873, 1

</llo_original>
